<compile_context>
chip_gen: v5e
topology: v5e:2x2
jax: 0.10.0
libtpu: 0.0.40
codegen_flags: <defaults>
</compile_context>

<pallas_src>
import jax
import jax.numpy as jnp
from jax import lax
from jax.experimental import pallas as pl
from jax.experimental.pallas import tpu as pltpu


_LPAD = 8                      # interior column offset inside the padded scratch
_SCRATCH_DT = jnp.bfloat16     # halo-scratch dtype (MXU-ready taps, half footprint)


# ---------------------------------------------------------------------------
# Kernel
# ---------------------------------------------------------------------------
def _core_cnn_block_kernel(
    x_ref,      # (1, H, W, Cin)    f32
    w1f_ref,    # (Cin, Cout)       bf16  conv1 weight * BN scale
    b1f_ref,    # (1, Cout)         f32   conv1 bias*scale + BN shift
    wmf_ref,    # (Cin, Cout)       bf16  match_channels weight * BN scale
    tmf_ref,    # (1, Cout)         f32   match_channels BN shift
    w2f_ref,    # (9, Cout)         f32   depthwise taps * BN scale
    t2f_ref,    # (1, Cout)         f32
    w3f_ref,    # (9, Cout, Cout)   bf16  conv3 taps * BN scale
    t3f_ref,    # (1, Cout)         f32
    wse1_ref,   # (Cout, hidden)    f32
    wse2_ref,   # (hidden, Cout)    f32
    o_ref,      # (1, H, W*Cout) lane-dense, or (1, H, W, Cout) fallback
    pad_ref,    # (H+2, Wp, Cout)   bf16 VMEM scratch with zero halo border
):
    H, W, Cin = x_ref.shape[1], x_ref.shape[2], x_ref.shape[3]
    Cout = t3f_ref.shape[1]
    HW = H * W

    # --- re-zero ONLY the halo border.  The scratch persists across grid
    # steps (and is per-core under megacore), but the interior is fully
    # rewritten below, so a full re-zero would just burn vst slots. ----------
    zrow = jnp.zeros((1, W + 2, Cout), _SCRATCH_DT)
    zcol = jnp.zeros((H, 1, Cout), _SCRATCH_DT)
    pad_ref[pl.ds(0, 1), pl.ds(_LPAD - 1, W + 2), :] = zrow
    pad_ref[pl.ds(H + 1, 1), pl.ds(_LPAD - 1, W + 2), :] = zrow
    pad_ref[pl.ds(1, H), pl.ds(_LPAD - 1, 1), :] = zcol
    pad_ref[pl.ds(1, H), pl.ds(_LPAD + W, 1), :] = zcol

    # --- conv1 (1x1) and match_channels (1x1): two lane-contiguous bf16 MXU
    # matmuls (no lane-crossing split of a fused result), BN folded ----------
    x_flat = x_ref[0].reshape(HW, Cin).astype(jnp.bfloat16)
    h1 = jnp.dot(x_flat, w1f_ref[...], preferred_element_type=jnp.float32)
    h1 = jnp.maximum(h1 + b1f_ref[...], 0.0)          # conv1 -> norm1 -> relu
    matched = jnp.dot(x_flat, wmf_ref[...],
                      preferred_element_type=jnp.float32) + tmf_ref[...]

    # --- conv2 (3x3 depthwise, groups=Cout): VPU, taps read from the bf16
    # scratch, accumulation in f32 (portable to v5e's f32-only VALU). --------
    pad_ref[pl.ds(1, H), pl.ds(_LPAD, W), :] = (
        h1.astype(_SCRATCH_DT).reshape(H, W, Cout))
    w2 = w2f_ref[...]                                  # (9, Cout)
    acc2 = None
    for k in range(9):
        ky, kx = divmod(k, 3)
        tap = pad_ref[pl.ds(ky, H), pl.ds(_LPAD - 1 + kx, W), :].astype(jnp.float32)
        term = tap * w2[k:k + 1, :]                    # per-channel weight
        acc2 = term if acc2 is None else acc2 + term
    h2 = jnp.maximum(acc2 + t2f_ref[...], 0.0)         # (H, W, Cout)

    # --- conv3 (3x3 dense): 9 accumulating bf16 MXU matmuls straight from the
    # bf16 scratch (no materialized im2col), f32 accumulation ----------------
    pad_ref[pl.ds(1, H), pl.ds(_LPAD, W), :] = h2.astype(_SCRATCH_DT)
    acc3 = None
    for k in range(9):
        ky, kx = divmod(k, 3)
        tap = pad_ref[pl.ds(ky, H), pl.ds(_LPAD - 1 + kx, W), :].reshape(HW, Cout)
        part = jnp.dot(tap, w3f_ref[k], preferred_element_type=jnp.float32)
        acc3 = part if acc3 is None else acc3 + part
    h3 = acc3 + t3f_ref[...]                           # norm3 folded in

    # --- squeeze-and-excitation gate (f32) -----------------------------------
    gap = jnp.mean(h3, axis=0, keepdims=True)          # (1, Cout)
    se = jnp.maximum(
        jnp.dot(gap, wse1_ref[...], preferred_element_type=jnp.float32), 0.0)
    gate = jax.nn.sigmoid(
        jnp.dot(se, wse2_ref[...], preferred_element_type=jnp.float32))

    # --- gate * h3 + matched residual, final relu ----------------------------
    out = jnp.maximum(h3 * gate + matched, 0.0)
    if o_ref.ndim == 3:        # lane-dense (1, H, W*Cout) output block
        o_ref[0] = out.reshape(H, W * Cout).astype(o_ref.dtype)
    else:                      # (1, H, W, Cout) fallback layout
        o_ref[0] = out.reshape(H, W, Cout).astype(o_ref.dtype)


# ---------------------------------------------------------------------------
# Wrapper
# ---------------------------------------------------------------------------
_PARAM_ORDER = ["w1f", "b1f", "wmf", "tmf", "w2f", "t2f", "w3f", "t3f",
                "wse1", "wse2"]


def prepare_params(p):
    """Fold eval-mode BN scale/shift + conv biases into the weights and cast
    the MXU operands to bf16 (done once at trace time, free for the kernel)."""
    w1f = (p["w1"] * p["s1"]).astype(jnp.bfloat16)          # (Cin, C)
    b1f = p["b1"] * p["s1"] + p["t1"]
    wmf = (p["wm"] * p["sm"]).astype(jnp.bfloat16)          # (Cin, C)
    w2f = p["w2"] * p["s2"]                                 # (9, C)
    t2f = p["b2"] * p["s2"] + p["t2"]
    w3f = (p["w3"] * p["s3"][None]).astype(jnp.bfloat16)    # (9, C, C)
    t3f = p["b3"] * p["s3"] + p["t3"]
    return dict(w1f=w1f, b1f=b1f, wmf=wmf, tmf=p["tm"], w2f=w2f, t2f=t2f,
                w3f=w3f, t3f=t3f, wse1=p["wse1"], wse2=p["wse2"])


def _vmem_limit_bytes(target=48 * 1024 * 1024):
    """Generation-aware scoped-VMEM limit: <= ~0.65x physical capacity, so the
    48 MiB target does not crowd v7x's 64 MiB while still raising the v5e/v6e
    defaults."""
    cap = 128 * 1024 * 1024
    try:
        cap = int(pltpu.get_tpu_info().vmem_capacity_bytes)
    except Exception:
        pass
    return max(16 * 1024 * 1024, min(int(target), int(0.65 * cap)))


def core_cnn_block(x_nchw, params, *, out_dtype=jnp.float32):
    fp = prepare_params(params)
    x = jnp.transpose(x_nchw, (0, 2, 3, 1)).astype(jnp.float32)  # NCHW -> NHWC
    N, H, W, Cin = x.shape
    Cout = fp["t3f"].shape[1]
    # NOTE: W should be a multiple of 8 (ideally 16 for the bf16 scratch) for
    # tile-aligned scratch writes; the kernel stays correct otherwise.
    Wp = ((_LPAD + W + 1) + 15) // 16 * 16       # bf16-tile-friendly scratch width
    vals = [fp[k] for k in _PARAM_ORDER]

    def full_spec(a):
        nd = a.ndim
        return pl.BlockSpec(a.shape, lambda n, _nd=nd: (0,) * _nd)

    in_specs = [pl.BlockSpec((1, H, W, Cin), lambda n: (n, 0, 0, 0))]
    in_specs += [full_spec(v) for v in vals]

    def run(lane_dense):
        if lane_dense:
            out_shape = jax.ShapeDtypeStruct((N, H, W * Cout), out_dtype)
            out_spec = pl.BlockSpec((1, H, W * Cout), lambda n: (n, 0, 0))
        else:
            out_shape = jax.ShapeDtypeStruct((N, H, W, Cout), out_dtype)
            out_spec = pl.BlockSpec((1, H, W, Cout), lambda n: (n, 0, 0, 0))
        return pl.pallas_call(
            _core_cnn_block_kernel,
            out_shape=out_shape,
            grid_spec=pltpu.PrefetchScalarGridSpec(
                num_scalar_prefetch=0,
                grid=(N,),
                in_specs=in_specs,
                out_specs=out_spec,
                scratch_shapes=[pltpu.VMEM((H + 2, Wp, Cout), _SCRATCH_DT)],
            ),
            compiler_params=pltpu.CompilerParams(
                # batch elements are independent -> shard across TCs on v7x
                dimension_semantics=("parallel",),
                vmem_limit_bytes=_vmem_limit_bytes(),
            ),
        )(x, *vals)

    try:
        # Lane-dense store path (full 128-lane stores even when Cout < 128).
        out_packed = jax.block_until_ready(run(lane_dense=True))
        out_nhwc = out_packed.reshape(N, H, W, Cout)
    except Exception:
        # Fallback for Mosaic builds that cannot lower the last-dim-changing
        # in-kernel reshape needed for the lane-dense store.
        out_nhwc = run(lane_dense=False)
    return jnp.transpose(out_nhwc, (0, 3, 1, 2))                 # NHWC -> NCHW


# ---------------------------------------------------------------------------
# Deterministic parameter construction (synthetic, no checkpoint)
# ---------------------------------------------------------------------------
def build_params(key, cin, cout):
    hid = max(cout // 16, 1)          # SE_Block reduction=16
    ks = jax.random.split(key, 13)

    def bn(k, c):
        k1, k2, k3, k4 = jax.random.split(k, 4)
        gamma = 1.0 + 0.1 * jax.random.normal(k1, (c,), jnp.float32)
        beta = 0.1 * jax.random.normal(k2, (c,), jnp.float32)
        mean = 0.1 * jax.random.normal(k3, (c,), jnp.float32)
        var = jnp.abs(jax.random.normal(k4, (c,), jnp.float32)) + 0.5
        scale = gamma / jnp.sqrt(var + 1e-5)   # eval-mode BN -> scale/shift
        shift = beta - mean * scale
        return scale.reshape(1, c), shift.reshape(1, c)

    s1, t1 = bn(ks[0], cout)
    s2, t2 = bn(ks[1], cout)
    s3, t3 = bn(ks[2], cout)
    sm, tm = bn(ks[3], cout)

    return dict(
        w1=0.2 * jax.random.normal(ks[4], (cin, cout), jnp.float32),
        b1=0.1 * jax.random.normal(ks[5], (1, cout), jnp.float32),
        s1=s1, t1=t1,
        w2=0.2 * jax.random.normal(ks[6], (9, cout), jnp.float32),
        b2=0.1 * jax.random.normal(ks[7], (1, cout), jnp.float32),
        s2=s2, t2=t2,
        w3=0.1 * jax.random.normal(ks[8], (9, cout, cout), jnp.float32),
        b3=0.1 * jax.random.normal(ks[9], (1, cout), jnp.float32),
        s3=s3, t3=t3,
        wse1=0.3 * jax.random.normal(ks[10], (cout, hid), jnp.float32),
        wse2=0.3 * jax.random.normal(ks[11], (hid, cout), jnp.float32),
        wm=0.2 * jax.random.normal(ks[12], (cin, cout), jnp.float32),
        sm=sm, tm=tm,
    )


# ---------------------------------------------------------------------------
# Pure-JAX references (sanity checks only)
# ---------------------------------------------------------------------------
def reference_forward(x_nchw, p):
    """Module semantics in pure f32 (unfolded BN, HIGHEST-precision convs)."""
    x = jnp.transpose(x_nchw, (0, 2, 3, 1)).astype(jnp.float32)
    Cout = p["w1"].shape[1]
    hp = lax.Precision.HIGHEST

    h1 = jnp.einsum("nhwi,io->nhwo", x, p["w1"], precision=hp) + p["b1"][0]
    h1 = jax.nn.relu(h1 * p["s1"][0] + p["t1"][0])

    w2 = p["w2"].reshape(3, 3, 1, Cout)
    h2 = lax.conv_general_dilated(
        h1, w2, (1, 1), "SAME",
        dimension_numbers=("NHWC", "HWIO", "NHWC"),
        feature_group_count=Cout, precision=hp)
    h2 = jax.nn.relu((h2 + p["b2"][0]) * p["s2"][0] + p["t2"][0])

    w3 = p["w3"].reshape(3, 3, Cout, Cout)
    h3 = lax.conv_general_dilated(
        h2, w3, (1, 1), "SAME",
        dimension_numbers=("NHWC", "HWIO", "NHWC"), precision=hp)
    h3 = (h3 + p["b3"][0]) * p["s3"][0] + p["t3"][0]

    gap = jnp.mean(h3, axis=(1, 2))
    gate = jax.nn.sigmoid(jnp.maximum(gap @ p["wse1"], 0.0) @ p["wse2"])

    matched = jnp.einsum("nhwi,io->nhwo", x, p["wm"], precision=hp)
    matched = matched * p["sm"][0] + p["tm"][0]

    out = jax.nn.relu(h3 * gate[:, None, None, :] + matched)
    return jnp.transpose(out, (0, 3, 1, 2))


def reference_forward_mixed(x_nchw, p):
    """Mirrors the kernel math exactly: folded BN, bf16 MXU operands, bf16
    halo-scratch quantization of h1/h2, f32 accumulation everywhere."""
    fp = prepare_params(p)
    x = jnp.transpose(x_nchw, (0, 2, 3, 1)).astype(jnp.float32)
    N, H, W, _ = x.shape

    xb = x.astype(jnp.bfloat16)
    h1 = jnp.einsum("nhwi,io->nhwo", xb, fp["w1f"],
                    preferred_element_type=jnp.float32) + fp["b1f"][0]
    h1 = jax.nn.relu(h1)
    matched = jnp.einsum("nhwi,io->nhwo", xb, fp["wmf"],
                         preferred_element_type=jnp.float32) + fp["tmf"][0]

    # depthwise conv2 on bf16-quantized h1 (mirrors the bf16 scratch), f32 acc
    h1q = h1.astype(jnp.bfloat16).astype(jnp.float32)
    h1p = jnp.pad(h1q, ((0, 0), (1, 1), (1, 1), (0, 0)))
    acc2 = None
    for k in range(9):
        ky, kx = divmod(k, 3)
        term = h1p[:, ky:ky + H, kx:kx + W, :] * fp["w2f"][k]
        acc2 = term if acc2 is None else acc2 + term
    h2 = jax.nn.relu(acc2 + fp["t2f"][0])

    # conv3 as 9 accumulating bf16 matmuls (mirrors the kernel)
    h2q = h2.astype(jnp.bfloat16)
    h2p = jnp.pad(h2q, ((0, 0), (1, 1), (1, 1), (0, 0)))
    acc3 = None
    for k in range(9):
        ky, kx = divmod(k, 3)
        part = jnp.einsum("nhwc,co->nhwo", h2p[:, ky:ky + H, kx:kx + W, :],
                          fp["w3f"][k], preferred_element_type=jnp.float32)
        acc3 = part if acc3 is None else acc3 + part
    h3 = acc3 + fp["t3f"][0]

    gap = jnp.mean(h3, axis=(1, 2))
    gate = jax.nn.sigmoid(jnp.maximum(gap @ fp["wse1"], 0.0) @ fp["wse2"])

    out = jax.nn.relu(h3 * gate[:, None, None, :] + matched)
    return jnp.transpose(out, (0, 3, 1, 2))


if __name__ == "__main__":
    key = jax.random.PRNGKey(0)
    kx, kp = jax.random.split(key)
    N, Cin, Cout, H, W = 2, 4, 32, 16, 16       # Cout >= 16 so SE hidden dim >= 1

    x = jax.random.normal(kx, (N, Cin, H, W), jnp.float32)
    params = build_params(kp, Cin, Cout)

    out = jax.block_until_ready(core_cnn_block(x, params))
    assert out.shape == (N, Cout, H, W)

    # tight check against a precision-mirrored reference (bf16 MXU / scratch)
    ref_mixed = jax.block_until_ready(reference_forward_mixed(x, params))
    err_mixed = float(jnp.max(jnp.abs(out - ref_mixed)))
    assert jnp.allclose(out, ref_mixed, atol=2e-3, rtol=2e-3), err_mixed

    # loose sanity check against the pure-f32 module semantics
    ref_f32 = jax.block_until_ready(reference_forward(x, params))
    err_f32 = float(jnp.max(jnp.abs(out - ref_f32)))
    assert jnp.allclose(out, ref_f32, atol=5e-2, rtol=5e-2), err_f32

    print("KERNEL_OK")
</pallas_src>

<mosaic_0001>
module attributes {stable_mosaic.version = 11 : i64} {
  func.func @_core_cnn_block_kernel(%arg0: i32, %arg1: memref<1x16x16x4xf32, #tpu.memory_space<vmem>>, %arg2: memref<4x32xbf16, #tpu.memory_space<vmem>>, %arg3: memref<1x32xf32, #tpu.memory_space<vmem>>, %arg4: memref<4x32xbf16, #tpu.memory_space<vmem>>, %arg5: memref<1x32xf32, #tpu.memory_space<vmem>>, %arg6: memref<9x32xf32, #tpu.memory_space<vmem>>, %arg7: memref<1x32xf32, #tpu.memory_space<vmem>>, %arg8: memref<9x32x32xbf16, #tpu.memory_space<vmem>>, %arg9: memref<1x32xf32, #tpu.memory_space<vmem>>, %arg10: memref<32x2xf32, #tpu.memory_space<vmem>>, %arg11: memref<2x32xf32, #tpu.memory_space<vmem>>, %arg12: memref<1x16x512xf32, #tpu.memory_space<vmem>>, %arg13: memref<18x32x32xbf16, #tpu.memory_space<vmem>>) attributes {dimension_semantics = [#tpu.dimension_semantics<parallel>], iteration_bounds = array<i64: 2>, scalar_prefetch = 0 : i64, scratch_operands = 1 : i64, tpu.core_type = #tpu.core_type<tc>, window_params = [{transform_indices = @transform_0, window_bounds = array<i64: 1, 16, 16, 4>}, {pipeline_mode = #tpu.pipeline_mode<synchronous>, transform_indices = @transform_1, window_bounds = array<i64: 4, 32>}, {pipeline_mode = #tpu.pipeline_mode<synchronous>, transform_indices = @transform_2, window_bounds = array<i64: 1, 32>}, {pipeline_mode = #tpu.pipeline_mode<synchronous>, transform_indices = @transform_3, window_bounds = array<i64: 4, 32>}, {pipeline_mode = #tpu.pipeline_mode<synchronous>, transform_indices = @transform_4, window_bounds = array<i64: 1, 32>}, {pipeline_mode = #tpu.pipeline_mode<synchronous>, transform_indices = @transform_5, window_bounds = array<i64: 9, 32>}, {pipeline_mode = #tpu.pipeline_mode<synchronous>, transform_indices = @transform_6, window_bounds = array<i64: 1, 32>}, {pipeline_mode = #tpu.pipeline_mode<synchronous>, transform_indices = @transform_7, window_bounds = array<i64: 9, 32, 32>}, {pipeline_mode = #tpu.pipeline_mode<synchronous>, transform_indices = @transform_8, window_bounds = array<i64: 1, 32>}, {pipeline_mode = #tpu.pipeline_mode<synchronous>, transform_indices = @transform_9, window_bounds = array<i64: 32, 2>}, {pipeline_mode = #tpu.pipeline_mode<synchronous>, transform_indices = @transform_10, window_bounds = array<i64: 2, 32>}, {transform_indices = @transform_11, window_bounds = array<i64: 1, 16, 512>}]} {
    %cst = arith.constant 0.000000e+00 : bf16
    %0 = vector.broadcast %cst : bf16 to vector<1x18x32xbf16>
    %cst_0 = arith.constant 0.000000e+00 : bf16
    %1 = vector.broadcast %cst_0 : bf16 to vector<16x1x32xbf16>
    %c0 = arith.constant 0 : index
    %c7 = arith.constant 7 : index
    %c0_1 = arith.constant 0 : index
    %2 = vector.load %arg13[%c0, %c7, %c0_1] : memref<18x32x32xbf16, #tpu.memory_space<vmem>>, vector<1x18x32xbf16>
    tpu.vector_store %arg13[%c0, %c7, %c0_1], %0 {strides = array<i32>} : memref<18x32x32xbf16, #tpu.memory_space<vmem>>, vector<1x18x32xbf16>,
    %c17 = arith.constant 17 : index
    %c7_2 = arith.constant 7 : index
    %c0_3 = arith.constant 0 : index
    %3 = vector.load %arg13[%c17, %c7_2, %c0_3] : memref<18x32x32xbf16, #tpu.memory_space<vmem>>, vector<1x18x32xbf16>
    tpu.vector_store %arg13[%c17, %c7_2, %c0_3], %0 {strides = array<i32>} : memref<18x32x32xbf16, #tpu.memory_space<vmem>>, vector<1x18x32xbf16>,
    %c1 = arith.constant 1 : index
    %c7_4 = arith.constant 7 : index
    %c0_5 = arith.constant 0 : index
    %4 = vector.load %arg13[%c1, %c7_4, %c0_5] : memref<18x32x32xbf16, #tpu.memory_space<vmem>>, vector<16x1x32xbf16>
    tpu.vector_store %arg13[%c1, %c7_4, %c0_5], %1 {strides = array<i32>} : memref<18x32x32xbf16, #tpu.memory_space<vmem>>, vector<16x1x32xbf16>,
    %c1_6 = arith.constant 1 : index
    %c24 = arith.constant 24 : index
    %c0_7 = arith.constant 0 : index
    %5 = vector.load %arg13[%c1_6, %c24, %c0_7] : memref<18x32x32xbf16, #tpu.memory_space<vmem>>, vector<16x1x32xbf16>
    tpu.vector_store %arg13[%c1_6, %c24, %c0_7], %1 {strides = array<i32>} : memref<18x32x32xbf16, #tpu.memory_space<vmem>>, vector<16x1x32xbf16>,
    %c0_8 = arith.constant 0 : index
    %c0_9 = arith.constant 0 : index
    %c0_10 = arith.constant 0 : index
    %c0_11 = arith.constant 0 : index
    %6 = vector.load %arg1[%c0_8, %c0_9, %c0_10, %c0_11] : memref<1x16x16x4xf32, #tpu.memory_space<vmem>>, vector<1x16x16x4xf32>
    %7 = vector.shape_cast %6 : vector<1x16x16x4xf32> to vector<16x16x4xf32>
    %8 = vector.shape_cast %7 : vector<16x16x4xf32> to vector<256x4xf32>
    %9 = arith.truncf %8 : vector<256x4xf32> to vector<256x4xbf16>
    %c0_12 = arith.constant 0 : index
    %c0_13 = arith.constant 0 : index
    %10 = vector.load %arg2[%c0_12, %c0_13] : memref<4x32xbf16, #tpu.memory_space<vmem>>, vector<4x32xbf16>
    %cst_14 = arith.constant dense<0.000000e+00> : vector<256x32xf32>
    %11 = tpu.matmul %9, %10, %cst_14 {dimension_numbers = #tpu.dot_dimension_numbers<[1], [0], [0], [1], [0, 0, 1, 1], [], []>} : vector<256x4xbf16>, vector<4x32xbf16>, vector<256x32xf32> -> vector<256x32xf32>
    %c0_15 = arith.constant 0 : index
    %c0_16 = arith.constant 0 : index
    %12 = vector.load %arg3[%c0_15, %c0_16] : memref<1x32xf32, #tpu.memory_space<vmem>>, vector<1x32xf32>
    %13 = vector.broadcast %12 : vector<1x32xf32> to vector<256x32xf32>
    %14 = arith.addf %11, %13 : vector<256x32xf32>
    %cst_17 = arith.constant 0.000000e+00 : f32
    %15 = vector.broadcast %cst_17 : f32 to vector<256x32xf32>
    %16 = arith.maximumf %14, %15 : vector<256x32xf32>
    %c0_18 = arith.constant 0 : index
    %c0_19 = arith.constant 0 : index
    %17 = vector.load %arg4[%c0_18, %c0_19] : memref<4x32xbf16, #tpu.memory_space<vmem>>, vector<4x32xbf16>
    %cst_20 = arith.constant dense<0.000000e+00> : vector<256x32xf32>
    %18 = tpu.matmul %9, %17, %cst_20 {dimension_numbers = #tpu.dot_dimension_numbers<[1], [0], [0], [1], [0, 0, 1, 1], [], []>} : vector<256x4xbf16>, vector<4x32xbf16>, vector<256x32xf32> -> vector<256x32xf32>
    %c0_21 = arith.constant 0 : index
    %c0_22 = arith.constant 0 : index
    %19 = vector.load %arg5[%c0_21, %c0_22] : memref<1x32xf32, #tpu.memory_space<vmem>>, vector<1x32xf32>
    %20 = vector.broadcast %19 : vector<1x32xf32> to vector<256x32xf32>
    %21 = arith.addf %18, %20 : vector<256x32xf32>
    %22 = arith.truncf %16 : vector<256x32xf32> to vector<256x32xbf16>
    %23 = vector.shape_cast %22 : vector<256x32xbf16> to vector<16x16x32xbf16>
    %c1_23 = arith.constant 1 : index
    %c8 = arith.constant 8 : index
    %c0_24 = arith.constant 0 : index
    %24 = vector.load %arg13[%c1_23, %c8, %c0_24] : memref<18x32x32xbf16, #tpu.memory_space<vmem>>, vector<16x16x32xbf16>
    tpu.vector_store %arg13[%c1_23, %c8, %c0_24], %23 {strides = array<i32>} : memref<18x32x32xbf16, #tpu.memory_space<vmem>>, vector<16x16x32xbf16>,
    %c0_25 = arith.constant 0 : index
    %c0_26 = arith.constant 0 : index
    %25 = vector.load %arg6[%c0_25, %c0_26] : memref<9x32xf32, #tpu.memory_space<vmem>>, vector<9x32xf32>
    %c0_27 = arith.constant 0 : index
    %c7_28 = arith.constant 7 : index
    %c0_29 = arith.constant 0 : index
    %26 = vector.load %arg13[%c0_27, %c7_28, %c0_29] : memref<18x32x32xbf16, #tpu.memory_space<vmem>>, vector<16x16x32xbf16>
    %27 = arith.extf %26 : vector<16x16x32xbf16> to vector<16x16x32xf32>
    %28 = vector.extract_strided_slice %25 {offsets = [0, 0], sizes = [1, 32], strides = [1, 1]} : vector<9x32xf32> to vector<1x32xf32>
    %29 = vector.shape_cast %28 : vector<1x32xf32> to vector<1x1x32xf32>
    %30 = vector.broadcast %29 : vector<1x1x32xf32> to vector<16x16x32xf32>
    %31 = arith.mulf %27, %30 : vector<16x16x32xf32>
    %c0_30 = arith.constant 0 : index
    %c8_31 = arith.constant 8 : index
    %c0_32 = arith.constant 0 : index
    %32 = vector.load %arg13[%c0_30, %c8_31, %c0_32] : memref<18x32x32xbf16, #tpu.memory_space<vmem>>, vector<16x16x32xbf16>
    %33 = arith.extf %32 : vector<16x16x32xbf16> to vector<16x16x32xf32>
    %34 = vector.extract_strided_slice %25 {offsets = [1, 0], sizes = [1, 32], strides = [1, 1]} : vector<9x32xf32> to vector<1x32xf32>
    %35 = vector.shape_cast %34 : vector<1x32xf32> to vector<1x1x32xf32>
    %36 = vector.broadcast %35 : vector<1x1x32xf32> to vector<16x16x32xf32>
    %37 = arith.mulf %33, %36 : vector<16x16x32xf32>
    %38 = arith.addf %31, %37 : vector<16x16x32xf32>
    %c0_33 = arith.constant 0 : index
    %c9 = arith.constant 9 : index
    %c0_34 = arith.constant 0 : index
    %39 = vector.load %arg13[%c0_33, %c9, %c0_34] : memref<18x32x32xbf16, #tpu.memory_space<vmem>>, vector<16x16x32xbf16>
    %40 = arith.extf %39 : vector<16x16x32xbf16> to vector<16x16x32xf32>
    %41 = vector.extract_strided_slice %25 {offsets = [2, 0], sizes = [1, 32], strides = [1, 1]} : vector<9x32xf32> to vector<1x32xf32>
    %42 = vector.shape_cast %41 : vector<1x32xf32> to vector<1x1x32xf32>
    %43 = vector.broadcast %42 : vector<1x1x32xf32> to vector<16x16x32xf32>
    %44 = arith.mulf %40, %43 : vector<16x16x32xf32>
    %45 = arith.addf %38, %44 : vector<16x16x32xf32>
    %c1_35 = arith.constant 1 : index
    %c7_36 = arith.constant 7 : index
    %c0_37 = arith.constant 0 : index
    %46 = vector.load %arg13[%c1_35, %c7_36, %c0_37] : memref<18x32x32xbf16, #tpu.memory_space<vmem>>, vector<16x16x32xbf16>
    %47 = arith.extf %46 : vector<16x16x32xbf16> to vector<16x16x32xf32>
    %48 = vector.extract_strided_slice %25 {offsets = [3, 0], sizes = [1, 32], strides = [1, 1]} : vector<9x32xf32> to vector<1x32xf32>
    %49 = vector.shape_cast %48 : vector<1x32xf32> to vector<1x1x32xf32>
    %50 = vector.broadcast %49 : vector<1x1x32xf32> to vector<16x16x32xf32>
    %51 = arith.mulf %47, %50 : vector<16x16x32xf32>
    %52 = arith.addf %45, %51 : vector<16x16x32xf32>
    %c1_38 = arith.constant 1 : index
    %c8_39 = arith.constant 8 : index
    %c0_40 = arith.constant 0 : index
    %53 = vector.load %arg13[%c1_38, %c8_39, %c0_40] : memref<18x32x32xbf16, #tpu.memory_space<vmem>>, vector<16x16x32xbf16>
    %54 = arith.extf %53 : vector<16x16x32xbf16> to vector<16x16x32xf32>
    %55 = vector.extract_strided_slice %25 {offsets = [4, 0], sizes = [1, 32], strides = [1, 1]} : vector<9x32xf32> to vector<1x32xf32>
    %56 = vector.shape_cast %55 : vector<1x32xf32> to vector<1x1x32xf32>
    %57 = vector.broadcast %56 : vector<1x1x32xf32> to vector<16x16x32xf32>
    %58 = arith.mulf %54, %57 : vector<16x16x32xf32>
    %59 = arith.addf %52, %58 : vector<16x16x32xf32>
    %c1_41 = arith.constant 1 : index
    %c9_42 = arith.constant 9 : index
    %c0_43 = arith.constant 0 : index
    %60 = vector.load %arg13[%c1_41, %c9_42, %c0_43] : memref<18x32x32xbf16, #tpu.memory_space<vmem>>, vector<16x16x32xbf16>
    %61 = arith.extf %60 : vector<16x16x32xbf16> to vector<16x16x32xf32>
    %62 = vector.extract_strided_slice %25 {offsets = [5, 0], sizes = [1, 32], strides = [1, 1]} : vector<9x32xf32> to vector<1x32xf32>
    %63 = vector.shape_cast %62 : vector<1x32xf32> to vector<1x1x32xf32>
    %64 = vector.broadcast %63 : vector<1x1x32xf32> to vector<16x16x32xf32>
    %65 = arith.mulf %61, %64 : vector<16x16x32xf32>
    %66 = arith.addf %59, %65 : vector<16x16x32xf32>
    %c2 = arith.constant 2 : index
    %c7_44 = arith.constant 7 : index
    %c0_45 = arith.constant 0 : index
    %67 = vector.load %arg13[%c2, %c7_44, %c0_45] : memref<18x32x32xbf16, #tpu.memory_space<vmem>>, vector<16x16x32xbf16>
    %68 = arith.extf %67 : vector<16x16x32xbf16> to vector<16x16x32xf32>
    %69 = vector.extract_strided_slice %25 {offsets = [6, 0], sizes = [1, 32], strides = [1, 1]} : vector<9x32xf32> to vector<1x32xf32>
    %70 = vector.shape_cast %69 : vector<1x32xf32> to vector<1x1x32xf32>
    %71 = vector.broadcast %70 : vector<1x1x32xf32> to vector<16x16x32xf32>
    %72 = arith.mulf %68, %71 : vector<16x16x32xf32>
    %73 = arith.addf %66, %72 : vector<16x16x32xf32>
    %c2_46 = arith.constant 2 : index
    %c8_47 = arith.constant 8 : index
    %c0_48 = arith.constant 0 : index
    %74 = vector.load %arg13[%c2_46, %c8_47, %c0_48] : memref<18x32x32xbf16, #tpu.memory_space<vmem>>, vector<16x16x32xbf16>
    %75 = arith.extf %74 : vector<16x16x32xbf16> to vector<16x16x32xf32>
    %76 = vector.extract_strided_slice %25 {offsets = [7, 0], sizes = [1, 32], strides = [1, 1]} : vector<9x32xf32> to vector<1x32xf32>
    %77 = vector.shape_cast %76 : vector<1x32xf32> to vector<1x1x32xf32>
    %78 = vector.broadcast %77 : vector<1x1x32xf32> to vector<16x16x32xf32>
    %79 = arith.mulf %75, %78 : vector<16x16x32xf32>
    %80 = arith.addf %73, %79 : vector<16x16x32xf32>
    %c2_49 = arith.constant 2 : index
    %c9_50 = arith.constant 9 : index
    %c0_51 = arith.constant 0 : index
    %81 = vector.load %arg13[%c2_49, %c9_50, %c0_51] : memref<18x32x32xbf16, #tpu.memory_space<vmem>>, vector<16x16x32xbf16>
    %82 = arith.extf %81 : vector<16x16x32xbf16> to vector<16x16x32xf32>
    %83 = vector.extract_strided_slice %25 {offsets = [8, 0], sizes = [1, 32], strides = [1, 1]} : vector<9x32xf32> to vector<1x32xf32>
    %84 = vector.shape_cast %83 : vector<1x32xf32> to vector<1x1x32xf32>
    %85 = vector.broadcast %84 : vector<1x1x32xf32> to vector<16x16x32xf32>
    %86 = arith.mulf %82, %85 : vector<16x16x32xf32>
    %87 = arith.addf %80, %86 : vector<16x16x32xf32>
    %c0_52 = arith.constant 0 : index
    %c0_53 = arith.constant 0 : index
    %88 = vector.load %arg7[%c0_52, %c0_53] : memref<1x32xf32, #tpu.memory_space<vmem>>, vector<1x32xf32>
    %89 = vector.shape_cast %88 : vector<1x32xf32> to vector<1x1x32xf32>
    %90 = vector.broadcast %89 : vector<1x1x32xf32> to vector<16x16x32xf32>
    %91 = arith.addf %87, %90 : vector<16x16x32xf32>
    %cst_54 = arith.constant 0.000000e+00 : f32
    %92 = vector.broadcast %cst_54 : f32 to vector<16x16x32xf32>
    %93 = arith.maximumf %91, %92 : vector<16x16x32xf32>
    %94 = arith.truncf %93 : vector<16x16x32xf32> to vector<16x16x32xbf16>
    %c1_55 = arith.constant 1 : index
    %c8_56 = arith.constant 8 : index
    %c0_57 = arith.constant 0 : index
    %95 = vector.load %arg13[%c1_55, %c8_56, %c0_57] : memref<18x32x32xbf16, #tpu.memory_space<vmem>>, vector<16x16x32xbf16>
    tpu.vector_store %arg13[%c1_55, %c8_56, %c0_57], %94 {strides = array<i32>} : memref<18x32x32xbf16, #tpu.memory_space<vmem>>, vector<16x16x32xbf16>,
    %c0_58 = arith.constant 0 : index
    %c7_59 = arith.constant 7 : index
    %c0_60 = arith.constant 0 : index
    %96 = vector.load %arg13[%c0_58, %c7_59, %c0_60] : memref<18x32x32xbf16, #tpu.memory_space<vmem>>, vector<16x16x32xbf16>
    %97 = vector.shape_cast %96 : vector<16x16x32xbf16> to vector<256x32xbf16>
    %c0_61 = arith.constant 0 : index
    %c0_62 = arith.constant 0 : index
    %c0_63 = arith.constant 0 : index
    %98 = vector.load %arg8[%c0_61, %c0_62, %c0_63] : memref<9x32x32xbf16, #tpu.memory_space<vmem>>, vector<1x32x32xbf16>
    %99 = vector.shape_cast %98 : vector<1x32x32xbf16> to vector<32x32xbf16>
    %cst_64 = arith.constant dense<0.000000e+00> : vector<256x32xf32>
    %100 = tpu.matmul %97, %99, %cst_64 {dimension_numbers = #tpu.dot_dimension_numbers<[1], [0], [0], [1], [0, 0, 1, 1], [], []>} : vector<256x32xbf16>, vector<32x32xbf16>, vector<256x32xf32> -> vector<256x32xf32>
    %c0_65 = arith.constant 0 : index
    %c8_66 = arith.constant 8 : index
    %c0_67 = arith.constant 0 : index
    %101 = vector.load %arg13[%c0_65, %c8_66, %c0_67] : memref<18x32x32xbf16, #tpu.memory_space<vmem>>, vector<16x16x32xbf16>
    %102 = vector.shape_cast %101 : vector<16x16x32xbf16> to vector<256x32xbf16>
    %c1_68 = arith.constant 1 : index
    %c0_69 = arith.constant 0 : index
    %c0_70 = arith.constant 0 : index
    %103 = vector.load %arg8[%c1_68, %c0_69, %c0_70] : memref<9x32x32xbf16, #tpu.memory_space<vmem>>, vector<1x32x32xbf16>
    %104 = vector.shape_cast %103 : vector<1x32x32xbf16> to vector<32x32xbf16>
    %cst_71 = arith.constant dense<0.000000e+00> : vector<256x32xf32>
    %105 = tpu.matmul %102, %104, %cst_71 {dimension_numbers = #tpu.dot_dimension_numbers<[1], [0], [0], [1], [0, 0, 1, 1], [], []>} : vector<256x32xbf16>, vector<32x32xbf16>, vector<256x32xf32> -> vector<256x32xf32>
    %106 = arith.addf %100, %105 : vector<256x32xf32>
    %c0_72 = arith.constant 0 : index
    %c9_73 = arith.constant 9 : index
    %c0_74 = arith.constant 0 : index
    %107 = vector.load %arg13[%c0_72, %c9_73, %c0_74] : memref<18x32x32xbf16, #tpu.memory_space<vmem>>, vector<16x16x32xbf16>
    %108 = vector.shape_cast %107 : vector<16x16x32xbf16> to vector<256x32xbf16>
    %c2_75 = arith.constant 2 : index
    %c0_76 = arith.constant 0 : index
    %c0_77 = arith.constant 0 : index
    %109 = vector.load %arg8[%c2_75, %c0_76, %c0_77] : memref<9x32x32xbf16, #tpu.memory_space<vmem>>, vector<1x32x32xbf16>
    %110 = vector.shape_cast %109 : vector<1x32x32xbf16> to vector<32x32xbf16>
    %cst_78 = arith.constant dense<0.000000e+00> : vector<256x32xf32>
    %111 = tpu.matmul %108, %110, %cst_78 {dimension_numbers = #tpu.dot_dimension_numbers<[1], [0], [0], [1], [0, 0, 1, 1], [], []>} : vector<256x32xbf16>, vector<32x32xbf16>, vector<256x32xf32> -> vector<256x32xf32>
    %112 = arith.addf %106, %111 : vector<256x32xf32>
    %c1_79 = arith.constant 1 : index
    %c7_80 = arith.constant 7 : index
    %c0_81 = arith.constant 0 : index
    %113 = vector.load %arg13[%c1_79, %c7_80, %c0_81] : memref<18x32x32xbf16, #tpu.memory_space<vmem>>, vector<16x16x32xbf16>
    %114 = vector.shape_cast %113 : vector<16x16x32xbf16> to vector<256x32xbf16>
    %c3 = arith.constant 3 : index
    %c0_82 = arith.constant 0 : index
    %c0_83 = arith.constant 0 : index
    %115 = vector.load %arg8[%c3, %c0_82, %c0_83] : memref<9x32x32xbf16, #tpu.memory_space<vmem>>, vector<1x32x32xbf16>
    %116 = vector.shape_cast %115 : vector<1x32x32xbf16> to vector<32x32xbf16>
    %cst_84 = arith.constant dense<0.000000e+00> : vector<256x32xf32>
    %117 = tpu.matmul %114, %116, %cst_84 {dimension_numbers = #tpu.dot_dimension_numbers<[1], [0], [0], [1], [0, 0, 1, 1], [], []>} : vector<256x32xbf16>, vector<32x32xbf16>, vector<256x32xf32> -> vector<256x32xf32>
    %118 = arith.addf %112, %117 : vector<256x32xf32>
    %c1_85 = arith.constant 1 : index
    %c8_86 = arith.constant 8 : index
    %c0_87 = arith.constant 0 : index
    %119 = vector.load %arg13[%c1_85, %c8_86, %c0_87] : memref<18x32x32xbf16, #tpu.memory_space<vmem>>, vector<16x16x32xbf16>
    %120 = vector.shape_cast %119 : vector<16x16x32xbf16> to vector<256x32xbf16>
    %c4 = arith.constant 4 : index
    %c0_88 = arith.constant 0 : index
    %c0_89 = arith.constant 0 : index
    %121 = vector.load %arg8[%c4, %c0_88, %c0_89] : memref<9x32x32xbf16, #tpu.memory_space<vmem>>, vector<1x32x32xbf16>
    %122 = vector.shape_cast %121 : vector<1x32x32xbf16> to vector<32x32xbf16>
    %cst_90 = arith.constant dense<0.000000e+00> : vector<256x32xf32>
    %123 = tpu.matmul %120, %122, %cst_90 {dimension_numbers = #tpu.dot_dimension_numbers<[1], [0], [0], [1], [0, 0, 1, 1], [], []>} : vector<256x32xbf16>, vector<32x32xbf16>, vector<256x32xf32> -> vector<256x32xf32>
    %124 = arith.addf %118, %123 : vector<256x32xf32>
    %c1_91 = arith.constant 1 : index
    %c9_92 = arith.constant 9 : index
    %c0_93 = arith.constant 0 : index
    %125 = vector.load %arg13[%c1_91, %c9_92, %c0_93] : memref<18x32x32xbf16, #tpu.memory_space<vmem>>, vector<16x16x32xbf16>
    %126 = vector.shape_cast %125 : vector<16x16x32xbf16> to vector<256x32xbf16>
    %c5 = arith.constant 5 : index
    %c0_94 = arith.constant 0 : index
    %c0_95 = arith.constant 0 : index
    %127 = vector.load %arg8[%c5, %c0_94, %c0_95] : memref<9x32x32xbf16, #tpu.memory_space<vmem>>, vector<1x32x32xbf16>
    %128 = vector.shape_cast %127 : vector<1x32x32xbf16> to vector<32x32xbf16>
    %cst_96 = arith.constant dense<0.000000e+00> : vector<256x32xf32>
    %129 = tpu.matmul %126, %128, %cst_96 {dimension_numbers = #tpu.dot_dimension_numbers<[1], [0], [0], [1], [0, 0, 1, 1], [], []>} : vector<256x32xbf16>, vector<32x32xbf16>, vector<256x32xf32> -> vector<256x32xf32>
    %130 = arith.addf %124, %129 : vector<256x32xf32>
    %c2_97 = arith.constant 2 : index
    %c7_98 = arith.constant 7 : index
    %c0_99 = arith.constant 0 : index
    %131 = vector.load %arg13[%c2_97, %c7_98, %c0_99] : memref<18x32x32xbf16, #tpu.memory_space<vmem>>, vector<16x16x32xbf16>
    %132 = vector.shape_cast %131 : vector<16x16x32xbf16> to vector<256x32xbf16>
    %c6 = arith.constant 6 : index
    %c0_100 = arith.constant 0 : index
    %c0_101 = arith.constant 0 : index
    %133 = vector.load %arg8[%c6, %c0_100, %c0_101] : memref<9x32x32xbf16, #tpu.memory_space<vmem>>, vector<1x32x32xbf16>
    %134 = vector.shape_cast %133 : vector<1x32x32xbf16> to vector<32x32xbf16>
    %cst_102 = arith.constant dense<0.000000e+00> : vector<256x32xf32>
    %135 = tpu.matmul %132, %134, %cst_102 {dimension_numbers = #tpu.dot_dimension_numbers<[1], [0], [0], [1], [0, 0, 1, 1], [], []>} : vector<256x32xbf16>, vector<32x32xbf16>, vector<256x32xf32> -> vector<256x32xf32>
    %136 = arith.addf %130, %135 : vector<256x32xf32>
    %c2_103 = arith.constant 2 : index
    %c8_104 = arith.constant 8 : index
    %c0_105 = arith.constant 0 : index
    %137 = vector.load %arg13[%c2_103, %c8_104, %c0_105] : memref<18x32x32xbf16, #tpu.memory_space<vmem>>, vector<16x16x32xbf16>
    %138 = vector.shape_cast %137 : vector<16x16x32xbf16> to vector<256x32xbf16>
    %c7_106 = arith.constant 7 : index
    %c0_107 = arith.constant 0 : index
    %c0_108 = arith.constant 0 : index
    %139 = vector.load %arg8[%c7_106, %c0_107, %c0_108] : memref<9x32x32xbf16, #tpu.memory_space<vmem>>, vector<1x32x32xbf16>
    %140 = vector.shape_cast %139 : vector<1x32x32xbf16> to vector<32x32xbf16>
    %cst_109 = arith.constant dense<0.000000e+00> : vector<256x32xf32>
    %141 = tpu.matmul %138, %140, %cst_109 {dimension_numbers = #tpu.dot_dimension_numbers<[1], [0], [0], [1], [0, 0, 1, 1], [], []>} : vector<256x32xbf16>, vector<32x32xbf16>, vector<256x32xf32> -> vector<256x32xf32>
    %142 = arith.addf %136, %141 : vector<256x32xf32>
    %c2_110 = arith.constant 2 : index
    %c9_111 = arith.constant 9 : index
    %c0_112 = arith.constant 0 : index
    %143 = vector.load %arg13[%c2_110, %c9_111, %c0_112] : memref<18x32x32xbf16, #tpu.memory_space<vmem>>, vector<16x16x32xbf16>
    %144 = vector.shape_cast %143 : vector<16x16x32xbf16> to vector<256x32xbf16>
    %c8_113 = arith.constant 8 : index
    %c0_114 = arith.constant 0 : index
    %c0_115 = arith.constant 0 : index
    %145 = vector.load %arg8[%c8_113, %c0_114, %c0_115] : memref<9x32x32xbf16, #tpu.memory_space<vmem>>, vector<1x32x32xbf16>
    %146 = vector.shape_cast %145 : vector<1x32x32xbf16> to vector<32x32xbf16>
    %cst_116 = arith.constant dense<0.000000e+00> : vector<256x32xf32>
    %147 = tpu.matmul %144, %146, %cst_116 {dimension_numbers = #tpu.dot_dimension_numbers<[1], [0], [0], [1], [0, 0, 1, 1], [], []>} : vector<256x32xbf16>, vector<32x32xbf16>, vector<256x32xf32> -> vector<256x32xf32>
    %148 = arith.addf %142, %147 : vector<256x32xf32>
    %c0_117 = arith.constant 0 : index
    %c0_118 = arith.constant 0 : index
    %149 = vector.load %arg9[%c0_117, %c0_118] : memref<1x32xf32, #tpu.memory_space<vmem>>, vector<1x32xf32>
    %150 = vector.broadcast %149 : vector<1x32xf32> to vector<256x32xf32>
    %151 = arith.addf %148, %150 : vector<256x32xf32>
    %cst_119 = arith.constant dense<0.000000e+00> : vector<32xf32>
    %152 = vector.multi_reduction <add>, %151, %cst_119 [0] : vector<256x32xf32> to vector<32xf32>
    %153 = vector.shape_cast %152 : vector<32xf32> to vector<1x32xf32>
    %cst_120 = arith.constant 2.560000e+02 : f32
    %154 = vector.broadcast %cst_120 : f32 to vector<1x32xf32>
    %155 = arith.divf %153, %154 : vector<1x32xf32>
    %c0_121 = arith.constant 0 : index
    %c0_122 = arith.constant 0 : index
    %156 = vector.load %arg10[%c0_121, %c0_122] : memref<32x2xf32, #tpu.memory_space<vmem>>, vector<32x2xf32>
    %cst_123 = arith.constant dense<0.000000e+00> : vector<1x2xf32>
    %157 = tpu.matmul %155, %156, %cst_123 {dimension_numbers = #tpu.dot_dimension_numbers<[1], [0], [0], [1], [0, 0, 1, 1], [], []>} : vector<1x32xf32>, vector<32x2xf32>, vector<1x2xf32> -> vector<1x2xf32>
    %cst_124 = arith.constant 0.000000e+00 : f32
    %158 = vector.broadcast %cst_124 : f32 to vector<1x2xf32>
    %159 = arith.maximumf %157, %158 : vector<1x2xf32>
    %c0_125 = arith.constant 0 : index
    %c0_126 = arith.constant 0 : index
    %160 = vector.load %arg11[%c0_125, %c0_126] : memref<2x32xf32, #tpu.memory_space<vmem>>, vector<2x32xf32>
    %cst_127 = arith.constant dense<0.000000e+00> : vector<1x32xf32>
    %161 = tpu.matmul %159, %160, %cst_127 {dimension_numbers = #tpu.dot_dimension_numbers<[1], [0], [0], [1], [0, 0, 1, 1], [], []>} : vector<1x2xf32>, vector<2x32xf32>, vector<1x32xf32> -> vector<1x32xf32>
    %162 = arith.negf %161 : vector<1x32xf32>
    %163 = math.exp %162 : vector<1x32xf32>
    %cst_128 = arith.constant 1.000000e+00 : f32
    %164 = vector.broadcast %cst_128 : f32 to vector<1x32xf32>
    %165 = arith.addf %164, %163 : vector<1x32xf32>
    %166 = arith.divf %164, %165 : vector<1x32xf32>
    %167 = vector.broadcast %166 : vector<1x32xf32> to vector<256x32xf32>
    %168 = arith.mulf %151, %167 : vector<256x32xf32>
    %169 = arith.addf %168, %21 : vector<256x32xf32>
    %cst_129 = arith.constant 0.000000e+00 : f32
    %170 = vector.broadcast %cst_129 : f32 to vector<256x32xf32>
    %171 = arith.maximumf %169, %170 : vector<256x32xf32>
    %172 = vector.shape_cast %171 : vector<256x32xf32> to vector<16x512xf32>
    %c0_130 = arith.constant 0 : index
    %c0_131 = arith.constant 0 : index
    %c0_132 = arith.constant 0 : index
    %173 = vector.load %arg12[%c0_130, %c0_131, %c0_132] : memref<1x16x512xf32, #tpu.memory_space<vmem>>, vector<1x16x512xf32>
    %174 = vector.shape_cast %173 : vector<1x16x512xf32> to vector<16x512xf32>
    %175 = vector.shape_cast %172 : vector<16x512xf32> to vector<1x16x512xf32>
    tpu.vector_store %arg12[%c0_130, %c0_131, %c0_132], %175 {strides = array<i32>} : memref<1x16x512xf32, #tpu.memory_space<vmem>>, vector<1x16x512xf32>,
    return
  }
  func.func @transform_0(%arg0: i32) -> (i32, i32, i32, i32) {
    %c0_i32 = arith.constant 0 : i32
    %c0_i32_0 = arith.constant 0 : i32
    %c0_i32_1 = arith.constant 0 : i32
    %c0_i32_2 = arith.constant 0 : i32
    return %arg0, %c0_i32, %c0_i32_0, %c0_i32_1 : i32, i32, i32, i32
  }
  func.func @transform_1(%arg0: i32) -> (i32, i32) {
    %c0_i32 = arith.constant 0 : i32
    %c0_i32_0 = arith.constant 0 : i32
    %c0_i32_1 = arith.constant 0 : i32
    return %c0_i32, %c0_i32_0 : i32, i32
  }
  func.func @transform_2(%arg0: i32) -> (i32, i32) {
    %c0_i32 = arith.constant 0 : i32
    %c0_i32_0 = arith.constant 0 : i32
    %c0_i32_1 = arith.constant 0 : i32
    return %c0_i32, %c0_i32_0 : i32, i32
  }
  func.func @transform_3(%arg0: i32) -> (i32, i32) {
    %c0_i32 = arith.constant 0 : i32
    %c0_i32_0 = arith.constant 0 : i32
    %c0_i32_1 = arith.constant 0 : i32
    return %c0_i32, %c0_i32_0 : i32, i32
  }
  func.func @transform_4(%arg0: i32) -> (i32, i32) {
    %c0_i32 = arith.constant 0 : i32
    %c0_i32_0 = arith.constant 0 : i32
    %c0_i32_1 = arith.constant 0 : i32
    return %c0_i32, %c0_i32_0 : i32, i32
  }
  func.func @transform_5(%arg0: i32) -> (i32, i32) {
    %c0_i32 = arith.constant 0 : i32
    %c0_i32_0 = arith.constant 0 : i32
    %c0_i32_1 = arith.constant 0 : i32
    return %c0_i32, %c0_i32_0 : i32, i32
  }
  func.func @transform_6(%arg0: i32) -> (i32, i32) {
    %c0_i32 = arith.constant 0 : i32
    %c0_i32_0 = arith.constant 0 : i32
    %c0_i32_1 = arith.constant 0 : i32
    return %c0_i32, %c0_i32_0 : i32, i32
  }
  func.func @transform_7(%arg0: i32) -> (i32, i32, i32) {
    %c0_i32 = arith.constant 0 : i32
    %c0_i32_0 = arith.constant 0 : i32
    %c0_i32_1 = arith.constant 0 : i32
    %c0_i32_2 = arith.constant 0 : i32
    return %c0_i32, %c0_i32_0, %c0_i32_1 : i32, i32, i32
  }
  func.func @transform_8(%arg0: i32) -> (i32, i32) {
    %c0_i32 = arith.constant 0 : i32
    %c0_i32_0 = arith.constant 0 : i32
    %c0_i32_1 = arith.constant 0 : i32
    return %c0_i32, %c0_i32_0 : i32, i32
  }
  func.func @transform_9(%arg0: i32) -> (i32, i32) {
    %c0_i32 = arith.constant 0 : i32
    %c0_i32_0 = arith.constant 0 : i32
    %c0_i32_1 = arith.constant 0 : i32
    return %c0_i32, %c0_i32_0 : i32, i32
  }
  func.func @transform_10(%arg0: i32) -> (i32, i32) {
    %c0_i32 = arith.constant 0 : i32
    %c0_i32_0 = arith.constant 0 : i32
    %c0_i32_1 = arith.constant 0 : i32
    return %c0_i32, %c0_i32_0 : i32, i32
  }
  func.func @transform_11(%arg0: i32) -> (i32, i32, i32) {
    %c0_i32 = arith.constant 0 : i32
    %c0_i32_0 = arith.constant 0 : i32
    %c0_i32_1 = arith.constant 0 : i32
    return %arg0, %c0_i32, %c0_i32_0 : i32, i32, i32
  }
}

module attributes {stable_mosaic.version = 11 : i64} {
  func.func @_core_cnn_block_kernel(%arg0: i32, %arg1: memref<1x16x16x4xf32, #tpu.memory_space<vmem>>, %arg2: memref<4x32xbf16, #tpu.memory_space<vmem>>, %arg3: memref<1x32xf32, #tpu.memory_space<vmem>>, %arg4: memref<4x32xbf16, #tpu.memory_space<vmem>>, %arg5: memref<1x32xf32, #tpu.memory_space<vmem>>, %arg6: memref<9x32xf32, #tpu.memory_space<vmem>>, %arg7: memref<1x32xf32, #tpu.memory_space<vmem>>, %arg8: memref<9x32x32xbf16, #tpu.memory_space<vmem>>, %arg9: memref<1x32xf32, #tpu.memory_space<vmem>>, %arg10: memref<32x2xf32, #tpu.memory_space<vmem>>, %arg11: memref<2x32xf32, #tpu.memory_space<vmem>>, %arg12: memref<1x16x16x32xf32, #tpu.memory_space<vmem>>, %arg13: memref<18x32x32xbf16, #tpu.memory_space<vmem>>) attributes {dimension_semantics = [#tpu.dimension_semantics<parallel>], iteration_bounds = array<i64: 2>, scalar_prefetch = 0 : i64, scratch_operands = 1 : i64, tpu.core_type = #tpu.core_type<tc>, window_params = [{transform_indices = @transform_0, window_bounds = array<i64: 1, 16, 16, 4>}, {pipeline_mode = #tpu.pipeline_mode<synchronous>, transform_indices = @transform_1, window_bounds = array<i64: 4, 32>}, {pipeline_mode = #tpu.pipeline_mode<synchronous>, transform_indices = @transform_2, window_bounds = array<i64: 1, 32>}, {pipeline_mode = #tpu.pipeline_mode<synchronous>, transform_indices = @transform_3, window_bounds = array<i64: 4, 32>}, {pipeline_mode = #tpu.pipeline_mode<synchronous>, transform_indices = @transform_4, window_bounds = array<i64: 1, 32>}, {pipeline_mode = #tpu.pipeline_mode<synchronous>, transform_indices = @transform_5, window_bounds = array<i64: 9, 32>}, {pipeline_mode = #tpu.pipeline_mode<synchronous>, transform_indices = @transform_6, window_bounds = array<i64: 1, 32>}, {pipeline_mode = #tpu.pipeline_mode<synchronous>, transform_indices = @transform_7, window_bounds = array<i64: 9, 32, 32>}, {pipeline_mode = #tpu.pipeline_mode<synchronous>, transform_indices = @transform_8, window_bounds = array<i64: 1, 32>}, {pipeline_mode = #tpu.pipeline_mode<synchronous>, transform_indices = @transform_9, window_bounds = array<i64: 32, 2>}, {pipeline_mode = #tpu.pipeline_mode<synchronous>, transform_indices = @transform_10, window_bounds = array<i64: 2, 32>}, {transform_indices = @transform_11, window_bounds = array<i64: 1, 16, 16, 32>}]} {
    %cst = arith.constant 0.000000e+00 : bf16
    %0 = vector.broadcast %cst : bf16 to vector<1x18x32xbf16>
    %cst_0 = arith.constant 0.000000e+00 : bf16
    %1 = vector.broadcast %cst_0 : bf16 to vector<16x1x32xbf16>
    %c0 = arith.constant 0 : index
    %c7 = arith.constant 7 : index
    %c0_1 = arith.constant 0 : index
    %2 = vector.load %arg13[%c0, %c7, %c0_1] : memref<18x32x32xbf16, #tpu.memory_space<vmem>>, vector<1x18x32xbf16>
    tpu.vector_store %arg13[%c0, %c7, %c0_1], %0 {strides = array<i32>} : memref<18x32x32xbf16, #tpu.memory_space<vmem>>, vector<1x18x32xbf16>,
    %c17 = arith.constant 17 : index
    %c7_2 = arith.constant 7 : index
    %c0_3 = arith.constant 0 : index
    %3 = vector.load %arg13[%c17, %c7_2, %c0_3] : memref<18x32x32xbf16, #tpu.memory_space<vmem>>, vector<1x18x32xbf16>
    tpu.vector_store %arg13[%c17, %c7_2, %c0_3], %0 {strides = array<i32>} : memref<18x32x32xbf16, #tpu.memory_space<vmem>>, vector<1x18x32xbf16>,
    %c1 = arith.constant 1 : index
    %c7_4 = arith.constant 7 : index
    %c0_5 = arith.constant 0 : index
    %4 = vector.load %arg13[%c1, %c7_4, %c0_5] : memref<18x32x32xbf16, #tpu.memory_space<vmem>>, vector<16x1x32xbf16>
    tpu.vector_store %arg13[%c1, %c7_4, %c0_5], %1 {strides = array<i32>} : memref<18x32x32xbf16, #tpu.memory_space<vmem>>, vector<16x1x32xbf16>,
    %c1_6 = arith.constant 1 : index
    %c24 = arith.constant 24 : index
    %c0_7 = arith.constant 0 : index
    %5 = vector.load %arg13[%c1_6, %c24, %c0_7] : memref<18x32x32xbf16, #tpu.memory_space<vmem>>, vector<16x1x32xbf16>
    tpu.vector_store %arg13[%c1_6, %c24, %c0_7], %1 {strides = array<i32>} : memref<18x32x32xbf16, #tpu.memory_space<vmem>>, vector<16x1x32xbf16>,
    %c0_8 = arith.constant 0 : index
    %c0_9 = arith.constant 0 : index
    %c0_10 = arith.constant 0 : index
    %c0_11 = arith.constant 0 : index
    %6 = vector.load %arg1[%c0_8, %c0_9, %c0_10, %c0_11] : memref<1x16x16x4xf32, #tpu.memory_space<vmem>>, vector<1x16x16x4xf32>
    %7 = vector.shape_cast %6 : vector<1x16x16x4xf32> to vector<16x16x4xf32>
    %8 = vector.shape_cast %7 : vector<16x16x4xf32> to vector<256x4xf32>
    %9 = arith.truncf %8 : vector<256x4xf32> to vector<256x4xbf16>
    %c0_12 = arith.constant 0 : index
    %c0_13 = arith.constant 0 : index
    %10 = vector.load %arg2[%c0_12, %c0_13] : memref<4x32xbf16, #tpu.memory_space<vmem>>, vector<4x32xbf16>
    %cst_14 = arith.constant dense<0.000000e+00> : vector<256x32xf32>
    %11 = tpu.matmul %9, %10, %cst_14 {dimension_numbers = #tpu.dot_dimension_numbers<[1], [0], [0], [1], [0, 0, 1, 1], [], []>} : vector<256x4xbf16>, vector<4x32xbf16>, vector<256x32xf32> -> vector<256x32xf32>
    %c0_15 = arith.constant 0 : index
    %c0_16 = arith.constant 0 : index
    %12 = vector.load %arg3[%c0_15, %c0_16] : memref<1x32xf32, #tpu.memory_space<vmem>>, vector<1x32xf32>
    %13 = vector.broadcast %12 : vector<1x32xf32> to vector<256x32xf32>
    %14 = arith.addf %11, %13 : vector<256x32xf32>
    %cst_17 = arith.constant 0.000000e+00 : f32
    %15 = vector.broadcast %cst_17 : f32 to vector<256x32xf32>
    %16 = arith.maximumf %14, %15 : vector<256x32xf32>
    %c0_18 = arith.constant 0 : index
    %c0_19 = arith.constant 0 : index
    %17 = vector.load %arg4[%c0_18, %c0_19] : memref<4x32xbf16, #tpu.memory_space<vmem>>, vector<4x32xbf16>
    %cst_20 = arith.constant dense<0.000000e+00> : vector<256x32xf32>
    %18 = tpu.matmul %9, %17, %cst_20 {dimension_numbers = #tpu.dot_dimension_numbers<[1], [0], [0], [1], [0, 0, 1, 1], [], []>} : vector<256x4xbf16>, vector<4x32xbf16>, vector<256x32xf32> -> vector<256x32xf32>
    %c0_21 = arith.constant 0 : index
    %c0_22 = arith.constant 0 : index
    %19 = vector.load %arg5[%c0_21, %c0_22] : memref<1x32xf32, #tpu.memory_space<vmem>>, vector<1x32xf32>
    %20 = vector.broadcast %19 : vector<1x32xf32> to vector<256x32xf32>
    %21 = arith.addf %18, %20 : vector<256x32xf32>
    %22 = arith.truncf %16 : vector<256x32xf32> to vector<256x32xbf16>
    %23 = vector.shape_cast %22 : vector<256x32xbf16> to vector<16x16x32xbf16>
    %c1_23 = arith.constant 1 : index
    %c8 = arith.constant 8 : index
    %c0_24 = arith.constant 0 : index
    %24 = vector.load %arg13[%c1_23, %c8, %c0_24] : memref<18x32x32xbf16, #tpu.memory_space<vmem>>, vector<16x16x32xbf16>
    tpu.vector_store %arg13[%c1_23, %c8, %c0_24], %23 {strides = array<i32>} : memref<18x32x32xbf16, #tpu.memory_space<vmem>>, vector<16x16x32xbf16>,
    %c0_25 = arith.constant 0 : index
    %c0_26 = arith.constant 0 : index
    %25 = vector.load %arg6[%c0_25, %c0_26] : memref<9x32xf32, #tpu.memory_space<vmem>>, vector<9x32xf32>
    %c0_27 = arith.constant 0 : index
    %c7_28 = arith.constant 7 : index
    %c0_29 = arith.constant 0 : index
    %26 = vector.load %arg13[%c0_27, %c7_28, %c0_29] : memref<18x32x32xbf16, #tpu.memory_space<vmem>>, vector<16x16x32xbf16>
    %27 = arith.extf %26 : vector<16x16x32xbf16> to vector<16x16x32xf32>
    %28 = vector.extract_strided_slice %25 {offsets = [0, 0], sizes = [1, 32], strides = [1, 1]} : vector<9x32xf32> to vector<1x32xf32>
    %29 = vector.shape_cast %28 : vector<1x32xf32> to vector<1x1x32xf32>
    %30 = vector.broadcast %29 : vector<1x1x32xf32> to vector<16x16x32xf32>
    %31 = arith.mulf %27, %30 : vector<16x16x32xf32>
    %c0_30 = arith.constant 0 : index
    %c8_31 = arith.constant 8 : index
    %c0_32 = arith.constant 0 : index
    %32 = vector.load %arg13[%c0_30, %c8_31, %c0_32] : memref<18x32x32xbf16, #tpu.memory_space<vmem>>, vector<16x16x32xbf16>
    %33 = arith.extf %32 : vector<16x16x32xbf16> to vector<16x16x32xf32>
    %34 = vector.extract_strided_slice %25 {offsets = [1, 0], sizes = [1, 32], strides = [1, 1]} : vector<9x32xf32> to vector<1x32xf32>
    %35 = vector.shape_cast %34 : vector<1x32xf32> to vector<1x1x32xf32>
    %36 = vector.broadcast %35 : vector<1x1x32xf32> to vector<16x16x32xf32>
    %37 = arith.mulf %33, %36 : vector<16x16x32xf32>
    %38 = arith.addf %31, %37 : vector<16x16x32xf32>
    %c0_33 = arith.constant 0 : index
    %c9 = arith.constant 9 : index
    %c0_34 = arith.constant 0 : index
    %39 = vector.load %arg13[%c0_33, %c9, %c0_34] : memref<18x32x32xbf16, #tpu.memory_space<vmem>>, vector<16x16x32xbf16>
    %40 = arith.extf %39 : vector<16x16x32xbf16> to vector<16x16x32xf32>
    %41 = vector.extract_strided_slice %25 {offsets = [2, 0], sizes = [1, 32], strides = [1, 1]} : vector<9x32xf32> to vector<1x32xf32>
    %42 = vector.shape_cast %41 : vector<1x32xf32> to vector<1x1x32xf32>
    %43 = vector.broadcast %42 : vector<1x1x32xf32> to vector<16x16x32xf32>
    %44 = arith.mulf %40, %43 : vector<16x16x32xf32>
    %45 = arith.addf %38, %44 : vector<16x16x32xf32>
    %c1_35 = arith.constant 1 : index
    %c7_36 = arith.constant 7 : index
    %c0_37 = arith.constant 0 : index
    %46 = vector.load %arg13[%c1_35, %c7_36, %c0_37] : memref<18x32x32xbf16, #tpu.memory_space<vmem>>, vector<16x16x32xbf16>
    %47 = arith.extf %46 : vector<16x16x32xbf16> to vector<16x16x32xf32>
    %48 = vector.extract_strided_slice %25 {offsets = [3, 0], sizes = [1, 32], strides = [1, 1]} : vector<9x32xf32> to vector<1x32xf32>
    %49 = vector.shape_cast %48 : vector<1x32xf32> to vector<1x1x32xf32>
    %50 = vector.broadcast %49 : vector<1x1x32xf32> to vector<16x16x32xf32>
    %51 = arith.mulf %47, %50 : vector<16x16x32xf32>
    %52 = arith.addf %45, %51 : vector<16x16x32xf32>
    %c1_38 = arith.constant 1 : index
    %c8_39 = arith.constant 8 : index
    %c0_40 = arith.constant 0 : index
    %53 = vector.load %arg13[%c1_38, %c8_39, %c0_40] : memref<18x32x32xbf16, #tpu.memory_space<vmem>>, vector<16x16x32xbf16>
    %54 = arith.extf %53 : vector<16x16x32xbf16> to vector<16x16x32xf32>
    %55 = vector.extract_strided_slice %25 {offsets = [4, 0], sizes = [1, 32], strides = [1, 1]} : vector<9x32xf32> to vector<1x32xf32>
    %56 = vector.shape_cast %55 : vector<1x32xf32> to vector<1x1x32xf32>
    %57 = vector.broadcast %56 : vector<1x1x32xf32> to vector<16x16x32xf32>
    %58 = arith.mulf %54, %57 : vector<16x16x32xf32>
    %59 = arith.addf %52, %58 : vector<16x16x32xf32>
    %c1_41 = arith.constant 1 : index
    %c9_42 = arith.constant 9 : index
    %c0_43 = arith.constant 0 : index
    %60 = vector.load %arg13[%c1_41, %c9_42, %c0_43] : memref<18x32x32xbf16, #tpu.memory_space<vmem>>, vector<16x16x32xbf16>
    %61 = arith.extf %60 : vector<16x16x32xbf16> to vector<16x16x32xf32>
    %62 = vector.extract_strided_slice %25 {offsets = [5, 0], sizes = [1, 32], strides = [1, 1]} : vector<9x32xf32> to vector<1x32xf32>
    %63 = vector.shape_cast %62 : vector<1x32xf32> to vector<1x1x32xf32>
    %64 = vector.broadcast %63 : vector<1x1x32xf32> to vector<16x16x32xf32>
    %65 = arith.mulf %61, %64 : vector<16x16x32xf32>
    %66 = arith.addf %59, %65 : vector<16x16x32xf32>
    %c2 = arith.constant 2 : index
    %c7_44 = arith.constant 7 : index
    %c0_45 = arith.constant 0 : index
    %67 = vector.load %arg13[%c2, %c7_44, %c0_45] : memref<18x32x32xbf16, #tpu.memory_space<vmem>>, vector<16x16x32xbf16>
    %68 = arith.extf %67 : vector<16x16x32xbf16> to vector<16x16x32xf32>
    %69 = vector.extract_strided_slice %25 {offsets = [6, 0], sizes = [1, 32], strides = [1, 1]} : vector<9x32xf32> to vector<1x32xf32>
    %70 = vector.shape_cast %69 : vector<1x32xf32> to vector<1x1x32xf32>
    %71 = vector.broadcast %70 : vector<1x1x32xf32> to vector<16x16x32xf32>
    %72 = arith.mulf %68, %71 : vector<16x16x32xf32>
    %73 = arith.addf %66, %72 : vector<16x16x32xf32>
    %c2_46 = arith.constant 2 : index
    %c8_47 = arith.constant 8 : index
    %c0_48 = arith.constant 0 : index
    %74 = vector.load %arg13[%c2_46, %c8_47, %c0_48] : memref<18x32x32xbf16, #tpu.memory_space<vmem>>, vector<16x16x32xbf16>
    %75 = arith.extf %74 : vector<16x16x32xbf16> to vector<16x16x32xf32>
    %76 = vector.extract_strided_slice %25 {offsets = [7, 0], sizes = [1, 32], strides = [1, 1]} : vector<9x32xf32> to vector<1x32xf32>
    %77 = vector.shape_cast %76 : vector<1x32xf32> to vector<1x1x32xf32>
    %78 = vector.broadcast %77 : vector<1x1x32xf32> to vector<16x16x32xf32>
    %79 = arith.mulf %75, %78 : vector<16x16x32xf32>
    %80 = arith.addf %73, %79 : vector<16x16x32xf32>
    %c2_49 = arith.constant 2 : index
    %c9_50 = arith.constant 9 : index
    %c0_51 = arith.constant 0 : index
    %81 = vector.load %arg13[%c2_49, %c9_50, %c0_51] : memref<18x32x32xbf16, #tpu.memory_space<vmem>>, vector<16x16x32xbf16>
    %82 = arith.extf %81 : vector<16x16x32xbf16> to vector<16x16x32xf32>
    %83 = vector.extract_strided_slice %25 {offsets = [8, 0], sizes = [1, 32], strides = [1, 1]} : vector<9x32xf32> to vector<1x32xf32>
    %84 = vector.shape_cast %83 : vector<1x32xf32> to vector<1x1x32xf32>
    %85 = vector.broadcast %84 : vector<1x1x32xf32> to vector<16x16x32xf32>
    %86 = arith.mulf %82, %85 : vector<16x16x32xf32>
    %87 = arith.addf %80, %86 : vector<16x16x32xf32>
    %c0_52 = arith.constant 0 : index
    %c0_53 = arith.constant 0 : index
    %88 = vector.load %arg7[%c0_52, %c0_53] : memref<1x32xf32, #tpu.memory_space<vmem>>, vector<1x32xf32>
    %89 = vector.shape_cast %88 : vector<1x32xf32> to vector<1x1x32xf32>
    %90 = vector.broadcast %89 : vector<1x1x32xf32> to vector<16x16x32xf32>
    %91 = arith.addf %87, %90 : vector<16x16x32xf32>
    %cst_54 = arith.constant 0.000000e+00 : f32
    %92 = vector.broadcast %cst_54 : f32 to vector<16x16x32xf32>
    %93 = arith.maximumf %91, %92 : vector<16x16x32xf32>
    %94 = arith.truncf %93 : vector<16x16x32xf32> to vector<16x16x32xbf16>
    %c1_55 = arith.constant 1 : index
    %c8_56 = arith.constant 8 : index
    %c0_57 = arith.constant 0 : index
    %95 = vector.load %arg13[%c1_55, %c8_56, %c0_57] : memref<18x32x32xbf16, #tpu.memory_space<vmem>>, vector<16x16x32xbf16>
    tpu.vector_store %arg13[%c1_55, %c8_56, %c0_57], %94 {strides = array<i32>} : memref<18x32x32xbf16, #tpu.memory_space<vmem>>, vector<16x16x32xbf16>,
    %c0_58 = arith.constant 0 : index
    %c7_59 = arith.constant 7 : index
    %c0_60 = arith.constant 0 : index
    %96 = vector.load %arg13[%c0_58, %c7_59, %c0_60] : memref<18x32x32xbf16, #tpu.memory_space<vmem>>, vector<16x16x32xbf16>
    %97 = vector.shape_cast %96 : vector<16x16x32xbf16> to vector<256x32xbf16>
    %c0_61 = arith.constant 0 : index
    %c0_62 = arith.constant 0 : index
    %c0_63 = arith.constant 0 : index
    %98 = vector.load %arg8[%c0_61, %c0_62, %c0_63] : memref<9x32x32xbf16, #tpu.memory_space<vmem>>, vector<1x32x32xbf16>
    %99 = vector.shape_cast %98 : vector<1x32x32xbf16> to vector<32x32xbf16>
    %cst_64 = arith.constant dense<0.000000e+00> : vector<256x32xf32>
    %100 = tpu.matmul %97, %99, %cst_64 {dimension_numbers = #tpu.dot_dimension_numbers<[1], [0], [0], [1], [0, 0, 1, 1], [], []>} : vector<256x32xbf16>, vector<32x32xbf16>, vector<256x32xf32> -> vector<256x32xf32>
    %c0_65 = arith.constant 0 : index
    %c8_66 = arith.constant 8 : index
    %c0_67 = arith.constant 0 : index
    %101 = vector.load %arg13[%c0_65, %c8_66, %c0_67] : memref<18x32x32xbf16, #tpu.memory_space<vmem>>, vector<16x16x32xbf16>
    %102 = vector.shape_cast %101 : vector<16x16x32xbf16> to vector<256x32xbf16>
    %c1_68 = arith.constant 1 : index
    %c0_69 = arith.constant 0 : index
    %c0_70 = arith.constant 0 : index
    %103 = vector.load %arg8[%c1_68, %c0_69, %c0_70] : memref<9x32x32xbf16, #tpu.memory_space<vmem>>, vector<1x32x32xbf16>
    %104 = vector.shape_cast %103 : vector<1x32x32xbf16> to vector<32x32xbf16>
    %cst_71 = arith.constant dense<0.000000e+00> : vector<256x32xf32>
    %105 = tpu.matmul %102, %104, %cst_71 {dimension_numbers = #tpu.dot_dimension_numbers<[1], [0], [0], [1], [0, 0, 1, 1], [], []>} : vector<256x32xbf16>, vector<32x32xbf16>, vector<256x32xf32> -> vector<256x32xf32>
    %106 = arith.addf %100, %105 : vector<256x32xf32>
    %c0_72 = arith.constant 0 : index
    %c9_73 = arith.constant 9 : index
    %c0_74 = arith.constant 0 : index
    %107 = vector.load %arg13[%c0_72, %c9_73, %c0_74] : memref<18x32x32xbf16, #tpu.memory_space<vmem>>, vector<16x16x32xbf16>
    %108 = vector.shape_cast %107 : vector<16x16x32xbf16> to vector<256x32xbf16>
    %c2_75 = arith.constant 2 : index
    %c0_76 = arith.constant 0 : index
    %c0_77 = arith.constant 0 : index
    %109 = vector.load %arg8[%c2_75, %c0_76, %c0_77] : memref<9x32x32xbf16, #tpu.memory_space<vmem>>, vector<1x32x32xbf16>
    %110 = vector.shape_cast %109 : vector<1x32x32xbf16> to vector<32x32xbf16>
    %cst_78 = arith.constant dense<0.000000e+00> : vector<256x32xf32>
    %111 = tpu.matmul %108, %110, %cst_78 {dimension_numbers = #tpu.dot_dimension_numbers<[1], [0], [0], [1], [0, 0, 1, 1], [], []>} : vector<256x32xbf16>, vector<32x32xbf16>, vector<256x32xf32> -> vector<256x32xf32>
    %112 = arith.addf %106, %111 : vector<256x32xf32>
    %c1_79 = arith.constant 1 : index
    %c7_80 = arith.constant 7 : index
    %c0_81 = arith.constant 0 : index
    %113 = vector.load %arg13[%c1_79, %c7_80, %c0_81] : memref<18x32x32xbf16, #tpu.memory_space<vmem>>, vector<16x16x32xbf16>
    %114 = vector.shape_cast %113 : vector<16x16x32xbf16> to vector<256x32xbf16>
    %c3 = arith.constant 3 : index
    %c0_82 = arith.constant 0 : index
    %c0_83 = arith.constant 0 : index
    %115 = vector.load %arg8[%c3, %c0_82, %c0_83] : memref<9x32x32xbf16, #tpu.memory_space<vmem>>, vector<1x32x32xbf16>
    %116 = vector.shape_cast %115 : vector<1x32x32xbf16> to vector<32x32xbf16>
    %cst_84 = arith.constant dense<0.000000e+00> : vector<256x32xf32>
    %117 = tpu.matmul %114, %116, %cst_84 {dimension_numbers = #tpu.dot_dimension_numbers<[1], [0], [0], [1], [0, 0, 1, 1], [], []>} : vector<256x32xbf16>, vector<32x32xbf16>, vector<256x32xf32> -> vector<256x32xf32>
    %118 = arith.addf %112, %117 : vector<256x32xf32>
    %c1_85 = arith.constant 1 : index
    %c8_86 = arith.constant 8 : index
    %c0_87 = arith.constant 0 : index
    %119 = vector.load %arg13[%c1_85, %c8_86, %c0_87] : memref<18x32x32xbf16, #tpu.memory_space<vmem>>, vector<16x16x32xbf16>
    %120 = vector.shape_cast %119 : vector<16x16x32xbf16> to vector<256x32xbf16>
    %c4 = arith.constant 4 : index
    %c0_88 = arith.constant 0 : index
    %c0_89 = arith.constant 0 : index
    %121 = vector.load %arg8[%c4, %c0_88, %c0_89] : memref<9x32x32xbf16, #tpu.memory_space<vmem>>, vector<1x32x32xbf16>
    %122 = vector.shape_cast %121 : vector<1x32x32xbf16> to vector<32x32xbf16>
    %cst_90 = arith.constant dense<0.000000e+00> : vector<256x32xf32>
    %123 = tpu.matmul %120, %122, %cst_90 {dimension_numbers = #tpu.dot_dimension_numbers<[1], [0], [0], [1], [0, 0, 1, 1], [], []>} : vector<256x32xbf16>, vector<32x32xbf16>, vector<256x32xf32> -> vector<256x32xf32>
    %124 = arith.addf %118, %123 : vector<256x32xf32>
    %c1_91 = arith.constant 1 : index
    %c9_92 = arith.constant 9 : index
    %c0_93 = arith.constant 0 : index
    %125 = vector.load %arg13[%c1_91, %c9_92, %c0_93] : memref<18x32x32xbf16, #tpu.memory_space<vmem>>, vector<16x16x32xbf16>
    %126 = vector.shape_cast %125 : vector<16x16x32xbf16> to vector<256x32xbf16>
    %c5 = arith.constant 5 : index
    %c0_94 = arith.constant 0 : index
    %c0_95 = arith.constant 0 : index
    %127 = vector.load %arg8[%c5, %c0_94, %c0_95] : memref<9x32x32xbf16, #tpu.memory_space<vmem>>, vector<1x32x32xbf16>
    %128 = vector.shape_cast %127 : vector<1x32x32xbf16> to vector<32x32xbf16>
    %cst_96 = arith.constant dense<0.000000e+00> : vector<256x32xf32>
    %129 = tpu.matmul %126, %128, %cst_96 {dimension_numbers = #tpu.dot_dimension_numbers<[1], [0], [0], [1], [0, 0, 1, 1], [], []>} : vector<256x32xbf16>, vector<32x32xbf16>, vector<256x32xf32> -> vector<256x32xf32>
    %130 = arith.addf %124, %129 : vector<256x32xf32>
    %c2_97 = arith.constant 2 : index
    %c7_98 = arith.constant 7 : index
    %c0_99 = arith.constant 0 : index
    %131 = vector.load %arg13[%c2_97, %c7_98, %c0_99] : memref<18x32x32xbf16, #tpu.memory_space<vmem>>, vector<16x16x32xbf16>
    %132 = vector.shape_cast %131 : vector<16x16x32xbf16> to vector<256x32xbf16>
    %c6 = arith.constant 6 : index
    %c0_100 = arith.constant 0 : index
    %c0_101 = arith.constant 0 : index
    %133 = vector.load %arg8[%c6, %c0_100, %c0_101] : memref<9x32x32xbf16, #tpu.memory_space<vmem>>, vector<1x32x32xbf16>
    %134 = vector.shape_cast %133 : vector<1x32x32xbf16> to vector<32x32xbf16>
    %cst_102 = arith.constant dense<0.000000e+00> : vector<256x32xf32>
    %135 = tpu.matmul %132, %134, %cst_102 {dimension_numbers = #tpu.dot_dimension_numbers<[1], [0], [0], [1], [0, 0, 1, 1], [], []>} : vector<256x32xbf16>, vector<32x32xbf16>, vector<256x32xf32> -> vector<256x32xf32>
    %136 = arith.addf %130, %135 : vector<256x32xf32>
    %c2_103 = arith.constant 2 : index
    %c8_104 = arith.constant 8 : index
    %c0_105 = arith.constant 0 : index
    %137 = vector.load %arg13[%c2_103, %c8_104, %c0_105] : memref<18x32x32xbf16, #tpu.memory_space<vmem>>, vector<16x16x32xbf16>
    %138 = vector.shape_cast %137 : vector<16x16x32xbf16> to vector<256x32xbf16>
    %c7_106 = arith.constant 7 : index
    %c0_107 = arith.constant 0 : index
    %c0_108 = arith.constant 0 : index
    %139 = vector.load %arg8[%c7_106, %c0_107, %c0_108] : memref<9x32x32xbf16, #tpu.memory_space<vmem>>, vector<1x32x32xbf16>
    %140 = vector.shape_cast %139 : vector<1x32x32xbf16> to vector<32x32xbf16>
    %cst_109 = arith.constant dense<0.000000e+00> : vector<256x32xf32>
    %141 = tpu.matmul %138, %140, %cst_109 {dimension_numbers = #tpu.dot_dimension_numbers<[1], [0], [0], [1], [0, 0, 1, 1], [], []>} : vector<256x32xbf16>, vector<32x32xbf16>, vector<256x32xf32> -> vector<256x32xf32>
    %142 = arith.addf %136, %141 : vector<256x32xf32>
    %c2_110 = arith.constant 2 : index
    %c9_111 = arith.constant 9 : index
    %c0_112 = arith.constant 0 : index
    %143 = vector.load %arg13[%c2_110, %c9_111, %c0_112] : memref<18x32x32xbf16, #tpu.memory_space<vmem>>, vector<16x16x32xbf16>
    %144 = vector.shape_cast %143 : vector<16x16x32xbf16> to vector<256x32xbf16>
    %c8_113 = arith.constant 8 : index
    %c0_114 = arith.constant 0 : index
    %c0_115 = arith.constant 0 : index
    %145 = vector.load %arg8[%c8_113, %c0_114, %c0_115] : memref<9x32x32xbf16, #tpu.memory_space<vmem>>, vector<1x32x32xbf16>
    %146 = vector.shape_cast %145 : vector<1x32x32xbf16> to vector<32x32xbf16>
    %cst_116 = arith.constant dense<0.000000e+00> : vector<256x32xf32>
    %147 = tpu.matmul %144, %146, %cst_116 {dimension_numbers = #tpu.dot_dimension_numbers<[1], [0], [0], [1], [0, 0, 1, 1], [], []>} : vector<256x32xbf16>, vector<32x32xbf16>, vector<256x32xf32> -> vector<256x32xf32>
    %148 = arith.addf %142, %147 : vector<256x32xf32>
    %c0_117 = arith.constant 0 : index
    %c0_118 = arith.constant 0 : index
    %149 = vector.load %arg9[%c0_117, %c0_118] : memref<1x32xf32, #tpu.memory_space<vmem>>, vector<1x32xf32>
    %150 = vector.broadcast %149 : vector<1x32xf32> to vector<256x32xf32>
    %151 = arith.addf %148, %150 : vector<256x32xf32>
    %cst_119 = arith.constant dense<0.000000e+00> : vector<32xf32>
    %152 = vector.multi_reduction <add>, %151, %cst_119 [0] : vector<256x32xf32> to vector<32xf32>
    %153 = vector.shape_cast %152 : vector<32xf32> to vector<1x32xf32>
    %cst_120 = arith.constant 2.560000e+02 : f32
    %154 = vector.broadcast %cst_120 : f32 to vector<1x32xf32>
    %155 = arith.divf %153, %154 : vector<1x32xf32>
    %c0_121 = arith.constant 0 : index
    %c0_122 = arith.constant 0 : index
    %156 = vector.load %arg10[%c0_121, %c0_122] : memref<32x2xf32, #tpu.memory_space<vmem>>, vector<32x2xf32>
    %cst_123 = arith.constant dense<0.000000e+00> : vector<1x2xf32>
    %157 = tpu.matmul %155, %156, %cst_123 {dimension_numbers = #tpu.dot_dimension_numbers<[1], [0], [0], [1], [0, 0, 1, 1], [], []>} : vector<1x32xf32>, vector<32x2xf32>, vector<1x2xf32> -> vector<1x2xf32>
    %cst_124 = arith.constant 0.000000e+00 : f32
    %158 = vector.broadcast %cst_124 : f32 to vector<1x2xf32>
    %159 = arith.maximumf %157, %158 : vector<1x2xf32>
    %c0_125 = arith.constant 0 : index
    %c0_126 = arith.constant 0 : index
    %160 = vector.load %arg11[%c0_125, %c0_126] : memref<2x32xf32, #tpu.memory_space<vmem>>, vector<2x32xf32>
    %cst_127 = arith.constant dense<0.000000e+00> : vector<1x32xf32>
    %161 = tpu.matmul %159, %160, %cst_127 {dimension_numbers = #tpu.dot_dimension_numbers<[1], [0], [0], [1], [0, 0, 1, 1], [], []>} : vector<1x2xf32>, vector<2x32xf32>, vector<1x32xf32> -> vector<1x32xf32>
    %162 = arith.negf %161 : vector<1x32xf32>
    %163 = math.exp %162 : vector<1x32xf32>
    %cst_128 = arith.constant 1.000000e+00 : f32
    %164 = vector.broadcast %cst_128 : f32 to vector<1x32xf32>
    %165 = arith.addf %164, %163 : vector<1x32xf32>
    %166 = arith.divf %164, %165 : vector<1x32xf32>
    %167 = vector.broadcast %166 : vector<1x32xf32> to vector<256x32xf32>
    %168 = arith.mulf %151, %167 : vector<256x32xf32>
    %169 = arith.addf %168, %21 : vector<256x32xf32>
    %cst_129 = arith.constant 0.000000e+00 : f32
    %170 = vector.broadcast %cst_129 : f32 to vector<256x32xf32>
    %171 = arith.maximumf %169, %170 : vector<256x32xf32>
    %172 = vector.shape_cast %171 : vector<256x32xf32> to vector<16x16x32xf32>
    %c0_130 = arith.constant 0 : index
    %c0_131 = arith.constant 0 : index
    %c0_132 = arith.constant 0 : index
    %c0_133 = arith.constant 0 : index
    %173 = vector.load %arg12[%c0_130, %c0_131, %c0_132, %c0_133] : memref<1x16x16x32xf32, #tpu.memory_space<vmem>>, vector<1x16x16x32xf32>
    %174 = vector.shape_cast %173 : vector<1x16x16x32xf32> to vector<16x16x32xf32>
    %175 = vector.shape_cast %172 : vector<16x16x32xf32> to vector<1x16x16x32xf32>
    tpu.vector_store %arg12[%c0_130, %c0_131, %c0_132, %c0_133], %175 {strides = array<i32>} : memref<1x16x16x32xf32, #tpu.memory_space<vmem>>, vector<1x16x16x32xf32>,
    return
  }
  func.func @transform_0(%arg0: i32) -> (i32, i32, i32, i32) {
    %c0_i32 = arith.constant 0 : i32
    %c0_i32_0 = arith.constant 0 : i32
    %c0_i32_1 = arith.constant 0 : i32
    %c0_i32_2 = arith.constant 0 : i32
    return %arg0, %c0_i32, %c0_i32_0, %c0_i32_1 : i32, i32, i32, i32
  }
  func.func @transform_1(%arg0: i32) -> (i32, i32) {
    %c0_i32 = arith.constant 0 : i32
    %c0_i32_0 = arith.constant 0 : i32
    %c0_i32_1 = arith.constant 0 : i32
    return %c0_i32, %c0_i32_0 : i32, i32
  }
  func.func @transform_2(%arg0: i32) -> (i32, i32) {
    %c0_i32 = arith.constant 0 : i32
    %c0_i32_0 = arith.constant 0 : i32
    %c0_i32_1 = arith.constant 0 : i32
    return %c0_i32, %c0_i32_0 : i32, i32
  }
  func.func @transform_3(%arg0: i32) -> (i32, i32) {
    %c0_i32 = arith.constant 0 : i32
    %c0_i32_0 = arith.constant 0 : i32
    %c0_i32_1 = arith.constant 0 : i32
    return %c0_i32, %c0_i32_0 : i32, i32
  }
  func.func @transform_4(%arg0: i32) -> (i32, i32) {
    %c0_i32 = arith.constant 0 : i32
    %c0_i32_0 = arith.constant 0 : i32
    %c0_i32_1 = arith.constant 0 : i32
    return %c0_i32, %c0_i32_0 : i32, i32
  }
  func.func @transform_5(%arg0: i32) -> (i32, i32) {
    %c0_i32 = arith.constant 0 : i32
    %c0_i32_0 = arith.constant 0 : i32
    %c0_i32_1 = arith.constant 0 : i32
    return %c0_i32, %c0_i32_0 : i32, i32
  }
  func.func @transform_6(%arg0: i32) -> (i32, i32) {
    %c0_i32 = arith.constant 0 : i32
    %c0_i32_0 = arith.constant 0 : i32
    %c0_i32_1 = arith.constant 0 : i32
    return %c0_i32, %c0_i32_0 : i32, i32
  }
  func.func @transform_7(%arg0: i32) -> (i32, i32, i32) {
    %c0_i32 = arith.constant 0 : i32
    %c0_i32_0 = arith.constant 0 : i32
    %c0_i32_1 = arith.constant 0 : i32
    %c0_i32_2 = arith.constant 0 : i32
    return %c0_i32, %c0_i32_0, %c0_i32_1 : i32, i32, i32
  }
  func.func @transform_8(%arg0: i32) -> (i32, i32) {
    %c0_i32 = arith.constant 0 : i32
    %c0_i32_0 = arith.constant 0 : i32
    %c0_i32_1 = arith.constant 0 : i32
    return %c0_i32, %c0_i32_0 : i32, i32
  }
  func.func @transform_9(%arg0: i32) -> (i32, i32) {
    %c0_i32 = arith.constant 0 : i32
    %c0_i32_0 = arith.constant 0 : i32
    %c0_i32_1 = arith.constant 0 : i32
    return %c0_i32, %c0_i32_0 : i32, i32
  }
  func.func @transform_10(%arg0: i32) -> (i32, i32) {
    %c0_i32 = arith.constant 0 : i32
    %c0_i32_0 = arith.constant 0 : i32
    %c0_i32_1 = arith.constant 0 : i32
    return %c0_i32, %c0_i32_0 : i32, i32
  }
  func.func @transform_11(%arg0: i32) -> (i32, i32, i32, i32) {
    %c0_i32 = arith.constant 0 : i32
    %c0_i32_0 = arith.constant 0 : i32
    %c0_i32_1 = arith.constant 0 : i32
    %c0_i32_2 = arith.constant 0 : i32
    return %arg0, %c0_i32, %c0_i32_0, %c0_i32_1 : i32, i32, i32, i32
  }
}

</mosaic_0001>

<llo_original>
// kernel: tpu_custom_call.1
$region0: #{tpu_custom_call.1}
  #allocation0 [shape = 'u32[]', space=smem, size = 0x4, offset = 0x4, fixed_abs, tag = 'smem constant byte address 0x4 - core index']
  #allocation1 [shape = 'u32[72,128]{1,0:T(1,128)}', space=vmem, size = 0x9000, scoped, tag = 'internal scratch']
  #allocation2 [shape = 'bf16[18,32,32]{2,1,0:T(8,128)(2,1)}', space=vmem, size = 0x24000, scoped, tag = 'scratch operand']
  %s0 = inlined_call_operand.vmem [shape: f32[2,16,16,4], index: 0, kind: input, shape index: {}]
  %s1 = inlined_call_operand.vmem [shape: bf16[4,32], index: 1, kind: input, shape index: {}]
  %s2 = inlined_call_operand.vmem [shape: f32[1,32], index: 2, kind: input, shape index: {}]
  %s3 = inlined_call_operand.vmem [shape: bf16[4,32], index: 3, kind: input, shape index: {}]
  %s4 = inlined_call_operand.vmem [shape: f32[1,32], index: 4, kind: input, shape index: {}]
  %s5 = inlined_call_operand.vmem [shape: f32[9,32], index: 5, kind: input, shape index: {}]
  %s6 = inlined_call_operand.vmem [shape: f32[1,32], index: 6, kind: input, shape index: {}]
  %s7 = inlined_call_operand.vmem [shape: bf16[9,32,32], index: 7, kind: input, shape index: {}]
  %s8 = inlined_call_operand.vmem [shape: f32[1,32], index: 8, kind: input, shape index: {}]
  %s9 = inlined_call_operand.vmem [shape: f32[32,2], index: 9, kind: input, shape index: {}]
  %s10 = inlined_call_operand.vmem [shape: f32[2,32], index: 10, kind: input, shape index: {}]
  %s11 = inlined_call_operand.hbm [shape: f32[2,16,16,32], index: 11, kind: output, shape index: {}]
  %s12 = sld [smem:[#allocation0]]
  $region77: #{tpu_custom_call.1} parent=0
    _
  %s14 = ssub.s32 1, %s12
  %s15 = scalar_select 0, %s14, %s12
  $region1: #{tpu_custom_call.1} parent=0
    #allocation3 [shape = 'u8[262144]{0}', space=vmem, size = 0x40000, scoped, tag = 'output window, operand 0']
    #allocation4 [shape = 's32[2]{0}', space=sflag, size = 0x8, scoped, tag = 'scoped memory for tpu_custom_call.1']
    %16 = vsyncpa [#allocation4], 0
    %s17 = scalar_lea.sflag [#allocation4], 1
    %18 = vsyncpa %s17, 0
    loop: start=0, step=1, limit=4
    $region2: #{tpu_custom_call.1} parent=1 // loop_pre_header
      _
    $region3: #{tpu_custom_call.1} parent=1 // loop_header
      %s20 = sphi 0, %s24
      %p21 = scmp.ge.s32.totalorder %s20, 4
      %s30 = sphi 0, %s32
      %s33 = sphi 0, %s30
      %s34 = sphi 0, %s33
      %s50 = sphi 0, %s34
      %s54 = sphi 0, %s54
      %s56 = sphi 0, %s54
      %s57 = sphi 0, %s56
      %s71 = sphi 0, %s57
      %s75 = sphi 0, %s75
      %s77 = sphi 0, %s75
      %s78 = sphi 0, %s77
      %s92 = sphi 0, %s78
      %s96 = sphi 0, %s96
      %s98 = sphi 0, %s96
      %s99 = sphi 0, %s98
      %s113 = sphi 0, %s99
      %s117 = sphi 0, %s117
      %s119 = sphi 0, %s117
      %s120 = sphi 0, %s119
      %s134 = sphi 0, %s120
      %s138 = sphi 0, %s138
      %s140 = sphi 0, %s138
      %s141 = sphi 0, %s140
      %s155 = sphi 0, %s141
      %s159 = sphi 0, %s159
      %s161 = sphi 0, %s159
      %s162 = sphi 0, %s161
      %s176 = sphi 0, %s162
      %s180 = sphi 0, %s180
      %s182 = sphi 0, %s180
      %s183 = sphi 0, %s182
      %s197 = sphi 0, %s183
      %s201 = sphi 0, %s201
      %s203 = sphi 0, %s201
      %s204 = sphi 0, %s203
      %s218 = sphi 0, %s204
      %s222 = sphi 0, %s222
      %s224 = sphi 0, %s222
      %s225 = sphi 0, %s224
      %s239 = sphi 0, %s225
      %s243 = sphi 0, %s243
      %s245 = sphi 0, %s243
      %s246 = sphi 0, %s245
      %s260 = sphi 0, %s246
      %s266 = sphi 0, %s268
      %s269 = sphi 0, %s266
      %s270 = sphi 0, %s269
      %s286 = sphi 0, %s270
    $region4: #{tpu_custom_call.1} parent=1 // loop_header_branch
      %23 = sbr.rel (%p21) target = $region8
    $region5: #{tpu_custom_call.1} parent=1 // loop_body
      %s25 = ssub.s32 %s20, 1
      %s26 = ssub.s32 %s20, 2
      %s27 = sadd.s32 %s20, 1
      %s28 = ssub.s32 %s20, %s27
      %p29 = scmp.eq.s32.totalorder %s28, 0
      %s31 = sadd.s32 %s30, 1
      %s32 = scalar_select %p29, %s30, %s31
      %p35 = pneg %p29
      %p36 = scmp.eq.s32.totalorder %s20, 1
      %p37 = por %p35, %p36
      %p38 = scmp.ne.s32.totalorder %s30, %s33
      %p39 = scmp.eq.s32.totalorder %s20, 0
      %p40 = por %p38, %p39
      %p41 = scmp.ne.s32.totalorder %s30, %s33
      %p42 = scmp.eq.s32.totalorder %s25, 1
      %p43 = por %p41, %p42
      %p44 = scmp.ne.s32.totalorder %s33, %s34
      %p45 = scmp.eq.s32.totalorder %s25, 0
      %p46 = por %p44, %p45
      %p47 = scmp.ne.s32.totalorder %s33, %s34
      %p48 = scmp.eq.s32.totalorder %s26, 1
      %p49 = por %p47, %p48
      %p51 = scmp.ne.s32.totalorder %s34, %s50
      %p52 = scmp.eq.s32.totalorder %s26, 0
      %p53 = por %p51, %p52
      %s55 = sadd.s32 %s54, 1
      %p58 = scmp.eq.s32.totalorder %s20, 1
      %p59 = scmp.ne.s32.totalorder %s54, %s56
      %p60 = scmp.eq.s32.totalorder %s20, 0
      %p61 = por %p59, %p60
      %p62 = scmp.ne.s32.totalorder %s54, %s56
      %p63 = scmp.eq.s32.totalorder %s25, 1
      %p64 = por %p62, %p63
      %p65 = scmp.ne.s32.totalorder %s56, %s57
      %p66 = scmp.eq.s32.totalorder %s25, 0
      %p67 = por %p65, %p66
      %p68 = scmp.ne.s32.totalorder %s56, %s57
      %p69 = scmp.eq.s32.totalorder %s26, 1
      %p70 = por %p68, %p69
      %p72 = scmp.ne.s32.totalorder %s57, %s71
      %p73 = scmp.eq.s32.totalorder %s26, 0
      %p74 = por %p72, %p73
      %s76 = sadd.s32 %s75, 1
      %p79 = scmp.eq.s32.totalorder %s20, 1
      %p80 = scmp.ne.s32.totalorder %s75, %s77
      %p81 = scmp.eq.s32.totalorder %s20, 0
      %p82 = por %p80, %p81
      %p83 = scmp.ne.s32.totalorder %s75, %s77
      %p84 = scmp.eq.s32.totalorder %s25, 1
      %p85 = por %p83, %p84
      %p86 = scmp.ne.s32.totalorder %s77, %s78
      %p87 = scmp.eq.s32.totalorder %s25, 0
      %p88 = por %p86, %p87
      %p89 = scmp.ne.s32.totalorder %s77, %s78
      %p90 = scmp.eq.s32.totalorder %s26, 1
      %p91 = por %p89, %p90
      %p93 = scmp.ne.s32.totalorder %s78, %s92
      %p94 = scmp.eq.s32.totalorder %s26, 0
      %p95 = por %p93, %p94
      %s97 = sadd.s32 %s96, 1
      %p100 = scmp.eq.s32.totalorder %s20, 1
      %p101 = scmp.ne.s32.totalorder %s96, %s98
      %p102 = scmp.eq.s32.totalorder %s20, 0
      %p103 = por %p101, %p102
      %p104 = scmp.ne.s32.totalorder %s96, %s98
      %p105 = scmp.eq.s32.totalorder %s25, 1
      %p106 = por %p104, %p105
      %p107 = scmp.ne.s32.totalorder %s98, %s99
      %p108 = scmp.eq.s32.totalorder %s25, 0
      %p109 = por %p107, %p108
      %p110 = scmp.ne.s32.totalorder %s98, %s99
      %p111 = scmp.eq.s32.totalorder %s26, 1
      %p112 = por %p110, %p111
      %p114 = scmp.ne.s32.totalorder %s99, %s113
      %p115 = scmp.eq.s32.totalorder %s26, 0
      %p116 = por %p114, %p115
      %s118 = sadd.s32 %s117, 1
      %p121 = scmp.eq.s32.totalorder %s20, 1
      %p122 = scmp.ne.s32.totalorder %s117, %s119
      %p123 = scmp.eq.s32.totalorder %s20, 0
      %p124 = por %p122, %p123
      %p125 = scmp.ne.s32.totalorder %s117, %s119
      %p126 = scmp.eq.s32.totalorder %s25, 1
      %p127 = por %p125, %p126
      %p128 = scmp.ne.s32.totalorder %s119, %s120
      %p129 = scmp.eq.s32.totalorder %s25, 0
      %p130 = por %p128, %p129
      %p131 = scmp.ne.s32.totalorder %s119, %s120
      %p132 = scmp.eq.s32.totalorder %s26, 1
      %p133 = por %p131, %p132
      %p135 = scmp.ne.s32.totalorder %s120, %s134
      %p136 = scmp.eq.s32.totalorder %s26, 0
      %p137 = por %p135, %p136
      %s139 = sadd.s32 %s138, 1
      %p142 = scmp.eq.s32.totalorder %s20, 1
      %p143 = scmp.ne.s32.totalorder %s138, %s140
      %p144 = scmp.eq.s32.totalorder %s20, 0
      %p145 = por %p143, %p144
      %p146 = scmp.ne.s32.totalorder %s138, %s140
      %p147 = scmp.eq.s32.totalorder %s25, 1
      %p148 = por %p146, %p147
      %p149 = scmp.ne.s32.totalorder %s140, %s141
      %p150 = scmp.eq.s32.totalorder %s25, 0
      %p151 = por %p149, %p150
      %p152 = scmp.ne.s32.totalorder %s140, %s141
      %p153 = scmp.eq.s32.totalorder %s26, 1
      %p154 = por %p152, %p153
      %p156 = scmp.ne.s32.totalorder %s141, %s155
      %p157 = scmp.eq.s32.totalorder %s26, 0
      %p158 = por %p156, %p157
      %s160 = sadd.s32 %s159, 1
      %p163 = scmp.eq.s32.totalorder %s20, 1
      %p164 = scmp.ne.s32.totalorder %s159, %s161
      %p165 = scmp.eq.s32.totalorder %s20, 0
      %p166 = por %p164, %p165
      %p167 = scmp.ne.s32.totalorder %s159, %s161
      %p168 = scmp.eq.s32.totalorder %s25, 1
      %p169 = por %p167, %p168
      %p170 = scmp.ne.s32.totalorder %s161, %s162
      %p171 = scmp.eq.s32.totalorder %s25, 0
      %p172 = por %p170, %p171
      %p173 = scmp.ne.s32.totalorder %s161, %s162
      %p174 = scmp.eq.s32.totalorder %s26, 1
      %p175 = por %p173, %p174
      %p177 = scmp.ne.s32.totalorder %s162, %s176
      %p178 = scmp.eq.s32.totalorder %s26, 0
      %p179 = por %p177, %p178
      %s181 = sadd.s32 %s180, 1
      %p184 = scmp.eq.s32.totalorder %s20, 1
      %p185 = scmp.ne.s32.totalorder %s180, %s182
      %p186 = scmp.eq.s32.totalorder %s20, 0
      %p187 = por %p185, %p186
      %p188 = scmp.ne.s32.totalorder %s180, %s182
      %p189 = scmp.eq.s32.totalorder %s25, 1
      %p190 = por %p188, %p189
      %p191 = scmp.ne.s32.totalorder %s182, %s183
      %p192 = scmp.eq.s32.totalorder %s25, 0
      %p193 = por %p191, %p192
      %p194 = scmp.ne.s32.totalorder %s182, %s183
      %p195 = scmp.eq.s32.totalorder %s26, 1
      %p196 = por %p194, %p195
      %p198 = scmp.ne.s32.totalorder %s183, %s197
      %p199 = scmp.eq.s32.totalorder %s26, 0
      %p200 = por %p198, %p199
      %s202 = sadd.s32 %s201, 1
      %p205 = scmp.eq.s32.totalorder %s20, 1
      %p206 = scmp.ne.s32.totalorder %s201, %s203
      %p207 = scmp.eq.s32.totalorder %s20, 0
      %p208 = por %p206, %p207
      %p209 = scmp.ne.s32.totalorder %s201, %s203
      %p210 = scmp.eq.s32.totalorder %s25, 1
      %p211 = por %p209, %p210
      %p212 = scmp.ne.s32.totalorder %s203, %s204
      %p213 = scmp.eq.s32.totalorder %s25, 0
      %p214 = por %p212, %p213
      %p215 = scmp.ne.s32.totalorder %s203, %s204
      %p216 = scmp.eq.s32.totalorder %s26, 1
      %p217 = por %p215, %p216
      %p219 = scmp.ne.s32.totalorder %s204, %s218
      %p220 = scmp.eq.s32.totalorder %s26, 0
      %p221 = por %p219, %p220
      %s223 = sadd.s32 %s222, 1
      %p226 = scmp.eq.s32.totalorder %s20, 1
      %p227 = scmp.ne.s32.totalorder %s222, %s224
      %p228 = scmp.eq.s32.totalorder %s20, 0
      %p229 = por %p227, %p228
      %p230 = scmp.ne.s32.totalorder %s222, %s224
      %p231 = scmp.eq.s32.totalorder %s25, 1
      %p232 = por %p230, %p231
      %p233 = scmp.ne.s32.totalorder %s224, %s225
      %p234 = scmp.eq.s32.totalorder %s25, 0
      %p235 = por %p233, %p234
      %p236 = scmp.ne.s32.totalorder %s224, %s225
      %p237 = scmp.eq.s32.totalorder %s26, 1
      %p238 = por %p236, %p237
      %p240 = scmp.ne.s32.totalorder %s225, %s239
      %p241 = scmp.eq.s32.totalorder %s26, 0
      %p242 = por %p240, %p241
      %s244 = sadd.s32 %s243, 1
      %p247 = scmp.eq.s32.totalorder %s20, 1
      %p248 = scmp.ne.s32.totalorder %s243, %s245
      %p249 = scmp.eq.s32.totalorder %s20, 0
      %p250 = por %p248, %p249
      %p251 = scmp.ne.s32.totalorder %s243, %s245
      %p252 = scmp.eq.s32.totalorder %s25, 1
      %p253 = por %p251, %p252
      %p254 = scmp.ne.s32.totalorder %s245, %s246
      %p255 = scmp.eq.s32.totalorder %s25, 0
      %p256 = por %p254, %p255
      %p257 = scmp.ne.s32.totalorder %s245, %s246
      %p258 = scmp.eq.s32.totalorder %s26, 1
      %p259 = por %p257, %p258
      %p261 = scmp.ne.s32.totalorder %s246, %s260
      %p262 = scmp.eq.s32.totalorder %s26, 0
      %p263 = por %p261, %p262
      %s264 = ssub.s32 %s20, %s27
      %p265 = scmp.eq.s32.totalorder %s264, 0
      %s267 = sadd.s32 %s266, 1
      %s268 = scalar_select %p265, %s266, %s267
      %p271 = pneg %p265
      %p272 = scmp.eq.s32.totalorder %s20, 1
      %p273 = por %p271, %p272
      %p274 = scmp.ne.s32.totalorder %s266, %s269
      %p275 = scmp.eq.s32.totalorder %s20, 0
      %p276 = por %p274, %p275
      %p277 = scmp.ne.s32.totalorder %s266, %s269
      %p278 = scmp.eq.s32.totalorder %s25, 1
      %p279 = por %p277, %p278
      %p280 = scmp.ne.s32.totalorder %s269, %s270
      %p281 = scmp.eq.s32.totalorder %s25, 0
      %p282 = por %p280, %p281
      %p283 = scmp.ne.s32.totalorder %s269, %s270
      %p284 = scmp.eq.s32.totalorder %s26, 1
      %p285 = por %p283, %p284
      %p287 = scmp.ne.s32.totalorder %s270, %s286
      %p288 = scmp.eq.s32.totalorder %s26, 0
      %p289 = por %p287, %p288
      %p290 = scmp.le.s32.totalorder 1, %s20
      %p291 = scmp.lt.s32.totalorder %s20, 3
      %p292 = pnand %p290, %p291
      %p293 = pneg %p292
      // Predicated region
      $region9: #{tpu_custom_call.1} parent=5 // pred_check
        _
      $region10: #{tpu_custom_call.1} parent=5 // pred_check_branch
        %295 = sbr.rel (%p292) target = $region12
      $region11: #{tpu_custom_call.1} parent=5 // pred_region
        %s296 = ssub.s32 %s20, 1
        // Predicated region
        $region13: #{tpu_custom_call.1} parent=11 // pred_check
          %p297 = pneg %p67
        $region14: #{tpu_custom_call.1} parent=11 // pred_check_branch
          %299 = sbr.rel (%p297) target = $region16
        $region15: #{tpu_custom_call.1} parent=11 // pred_region
          _
        $region16: #{tpu_custom_call.1} parent=11 // pred_fallthru
          _
        // Predicated region
        $region17: #{tpu_custom_call.1} parent=11 // pred_check
          %p300 = pneg %p88
        $region18: #{tpu_custom_call.1} parent=11 // pred_check_branch
          %302 = sbr.rel (%p300) target = $region20
        $region19: #{tpu_custom_call.1} parent=11 // pred_region
          _
        $region20: #{tpu_custom_call.1} parent=11 // pred_fallthru
          _
        // Predicated region
        $region21: #{tpu_custom_call.1} parent=11 // pred_check
          %p303 = pneg %p109
        $region22: #{tpu_custom_call.1} parent=11 // pred_check_branch
          %305 = sbr.rel (%p303) target = $region24
        $region23: #{tpu_custom_call.1} parent=11 // pred_region
          _
        $region24: #{tpu_custom_call.1} parent=11 // pred_fallthru
          _
        // Predicated region
        $region25: #{tpu_custom_call.1} parent=11 // pred_check
          %p306 = pneg %p130
        $region26: #{tpu_custom_call.1} parent=11 // pred_check_branch
          %308 = sbr.rel (%p306) target = $region28
        $region27: #{tpu_custom_call.1} parent=11 // pred_region
          _
        $region28: #{tpu_custom_call.1} parent=11 // pred_fallthru
          _
        // Predicated region
        $region29: #{tpu_custom_call.1} parent=11 // pred_check
          %p309 = pneg %p151
        $region30: #{tpu_custom_call.1} parent=11 // pred_check_branch
          %311 = sbr.rel (%p309) target = $region32
        $region31: #{tpu_custom_call.1} parent=11 // pred_region
          _
        $region32: #{tpu_custom_call.1} parent=11 // pred_fallthru
          _
        // Predicated region
        $region33: #{tpu_custom_call.1} parent=11 // pred_check
          %p312 = pneg %p172
        $region34: #{tpu_custom_call.1} parent=11 // pred_check_branch
          %314 = sbr.rel (%p312) target = $region36
        $region35: #{tpu_custom_call.1} parent=11 // pred_region
          _
        $region36: #{tpu_custom_call.1} parent=11 // pred_fallthru
          _
        // Predicated region
        $region37: #{tpu_custom_call.1} parent=11 // pred_check
          %p315 = pneg %p193
        $region38: #{tpu_custom_call.1} parent=11 // pred_check_branch
          %317 = sbr.rel (%p315) target = $region40
        $region39: #{tpu_custom_call.1} parent=11 // pred_region
          _
        $region40: #{tpu_custom_call.1} parent=11 // pred_fallthru
          _
        // Predicated region
        $region41: #{tpu_custom_call.1} parent=11 // pred_check
          %p318 = pneg %p214
        $region42: #{tpu_custom_call.1} parent=11 // pred_check_branch
          %320 = sbr.rel (%p318) target = $region44
        $region43: #{tpu_custom_call.1} parent=11 // pred_region
          _
        $region44: #{tpu_custom_call.1} parent=11 // pred_fallthru
          _
        // Predicated region
        $region45: #{tpu_custom_call.1} parent=11 // pred_check
          %p321 = pneg %p235
        $region46: #{tpu_custom_call.1} parent=11 // pred_check_branch
          %323 = sbr.rel (%p321) target = $region48
        $region47: #{tpu_custom_call.1} parent=11 // pred_region
          _
        $region48: #{tpu_custom_call.1} parent=11 // pred_fallthru
          _
        // Predicated region
        $region49: #{tpu_custom_call.1} parent=11 // pred_check
          %p324 = pneg %p256
        $region50: #{tpu_custom_call.1} parent=11 // pred_check_branch
          %326 = sbr.rel (%p324) target = $region52
        $region51: #{tpu_custom_call.1} parent=11 // pred_region
          _
        $region52: #{tpu_custom_call.1} parent=11 // pred_fallthru
          _
      $region12: #{tpu_custom_call.1} parent=5 // pred_fallthru
        _
      %p327 = scmp.lt.s32.totalorder %s20, 2
      // Predicated region
      $region53: #{tpu_custom_call.1} parent=5 // pred_check
        %p328 = pneg %p327
      $region54: #{tpu_custom_call.1} parent=5 // pred_check_branch
        %330 = sbr.rel (%p328) target = $region56
      $region55: #{tpu_custom_call.1} parent=5 // pred_region
        // Predicated region
        $region57: #{tpu_custom_call.1} parent=55 // pred_check
          %p331 = pneg %p40
        $region58: #{tpu_custom_call.1} parent=55 // pred_check_branch
          %333 = sbr.rel (%p331) target = $region60
        $region59: #{tpu_custom_call.1} parent=55 // pred_region
          %p334 = scmp.lt.s32.totalorder %s20, 1
          %s335 = scalar_select %p334, %s20, 1
          %s336 = smul.addr %s335, 32
          %s337 = smul.addr %s336, 8
          %s338 = scalar_lea.vmem %s0, %s337
        $region60: #{tpu_custom_call.1} parent=55 // pred_fallthru
          _
      $region56: #{tpu_custom_call.1} parent=5 // pred_fallthru
        _
      %p339 = scmp.le.s32.totalorder 1, %s20
      %p340 = scmp.lt.s32.totalorder %s20, 3
      %p341 = pnand %p339, %p340
      %p342 = pneg %p341
      // Predicated region
      $region61: #{tpu_custom_call.1} parent=5 // pred_check
        _
      $region62: #{tpu_custom_call.1} parent=5 // pred_check_branch
        %344 = sbr.rel (%p341) target = $region64
      $region63: #{tpu_custom_call.1} parent=5 // pred_region
        %s345 = ssub.s32 %s20, 1
        %p346 = scmp.lt.s32.totalorder %s25, 1
        %s347 = scalar_select %p346, %s25, 1
        %s348 = smul.addr %s347, 32
        %s349 = smul.addr %s348, 8
        %s350 = scalar_lea.vmem %s0, %s349
        %p351 = pneg %p46
        %p352 = pneg %p43
        %p353 = pneg %p67
        %p354 = pneg %p64
        %p355 = pneg %p88
        %p356 = pneg %p85
        %p357 = pneg %p109
        %p358 = pneg %p106
        %p359 = pneg %p130
        %p360 = pneg %p127
        %p361 = pneg %p151
        %p362 = pneg %p148
        %p363 = pneg %p172
        %p364 = pneg %p169
        %p365 = pneg %p193
        %p366 = pneg %p190
        %p367 = pneg %p214
        %p368 = pneg %p211
        %p369 = pneg %p235
        %p370 = pneg %p232
        %p371 = pneg %p256
        %p372 = pneg %p253
        %p373 = pneg %p282
        %p374 = pneg %p279
        %s375 = sand.u32 %s269, 1
        %s376 = scalar_lea.sflag [#allocation4], %s375
        %s377 = sand.u32 %s269, 1
        %s378 = smul.addr %s377, 256
        %s379 = scalar_lea.vmem [#allocation3], %s378
        %p380 = scmp.lt.s32.totalorder %s25, 1
        %s381 = scalar_select %p380, %s25, 1
        %s382 = smul.addr %s381, 32
        %s383 = smul.addr %s382, 8
        %s384 = scalar_lea.vmem %s0, %s383
        %vm386 = vcmask 257027
        %vm387 = vsmask.f32 7950
        %vm388 = vmand %vm386, %vm387
        %v389 = vld [vmem:[#allocation2] sm:$0x8]
        %v390 = vsel %vm388, 0, %v389
        %391 = vst [vmem:[#allocation2] sm:$0x8] %v390
        %vm392 = vcmask 257024
        %393 = vst.msk [vmem:[#allocation2 + $0x4] sm:$0xf] %vm392, 0
        %394 = vst.msk [vmem:[#allocation2 + $0x8] sm:$0xf] %vm392, 0
        %vm395 = vcmask 253952
        %vm396 = vsmask.f32 256
        %vm397 = vmand %vm395, %vm396
        %v398 = vld [vmem:[#allocation2 + $0xc] sm:$0x1]
        %v399 = vsel %vm397, 0, %v398
        %400 = vst [vmem:[#allocation2 + $0xc] sm:$0x1] %v399
        %s401 = scalar_lea.vmem [#allocation2], 272
        %v402 = vld [vmem:[%s401] sm:$0x8]
        %v403 = vsel %vm388, 0, %v402
        %404 = vst [vmem:[%s401] sm:$0x8] %v403
        %405 = vst.msk [vmem:[%s401 + $0x4] sm:$0xf] %vm392, 0
        %406 = vst.msk [vmem:[%s401 + $0x8] sm:$0xf] %vm392, 0
        %v407 = vld [vmem:[%s401 + $0xc] sm:$0x1]
        %v408 = vsel %vm397, 0, %v407
        %409 = vst [vmem:[%s401 + $0xc] sm:$0x1] %v408
        %s410 = scalar_lea.vmem [#allocation2], 16
        %v411 = vld [vmem:[%s410] sm:$0x8]
        %v412 = vsel %vm388, 0, %v411
        %413 = vst [vmem:[%s410] sm:$0x8] %v412
        %v414 = vld [vmem:[%s410 + $0x10] sm:$0x8]
        %v415 = vsel %vm388, 0, %v414
        %416 = vst [vmem:[%s410 + $0x10] sm:$0x8] %v415
        %v417 = vld [vmem:[%s410 + $0x20] sm:$0x8]
        %v418 = vsel %vm388, 0, %v417
        %419 = vst [vmem:[%s410 + $0x20] sm:$0x8] %v418
        %v420 = vld [vmem:[%s410 + $0x30] sm:$0x8]
        %v421 = vsel %vm388, 0, %v420
        %422 = vst [vmem:[%s410 + $0x30] sm:$0x8] %v421
        %v423 = vld [vmem:[%s410 + $0x40] sm:$0x8]
        %v424 = vsel %vm388, 0, %v423
        %425 = vst [vmem:[%s410 + $0x40] sm:$0x8] %v424
        %v426 = vld [vmem:[%s410 + $0x50] sm:$0x8]
        %v427 = vsel %vm388, 0, %v426
        %428 = vst [vmem:[%s410 + $0x50] sm:$0x8] %v427
        %v429 = vld [vmem:[%s410 + $0x60] sm:$0x8]
        %v430 = vsel %vm388, 0, %v429
        %431 = vst [vmem:[%s410 + $0x60] sm:$0x8] %v430
        %v432 = vld [vmem:[%s410 + $0x70] sm:$0x8]
        %v433 = vsel %vm388, 0, %v432
        %434 = vst [vmem:[%s410 + $0x70] sm:$0x8] %v433
        %v435 = vld [vmem:[%s410 + $0x80] sm:$0x8]
        %v436 = vsel %vm388, 0, %v435
        %437 = vst [vmem:[%s410 + $0x80] sm:$0x8] %v436
        %v438 = vld [vmem:[%s410 + $0x90] sm:$0x8]
        %v439 = vsel %vm388, 0, %v438
        %440 = vst [vmem:[%s410 + $0x90] sm:$0x8] %v439
        %v441 = vld [vmem:[%s410 + $0xa0] sm:$0x8]
        %v442 = vsel %vm388, 0, %v441
        %443 = vst [vmem:[%s410 + $0xa0] sm:$0x8] %v442
        %v444 = vld [vmem:[%s410 + $0xb0] sm:$0x8]
        %v445 = vsel %vm388, 0, %v444
        %446 = vst [vmem:[%s410 + $0xb0] sm:$0x8] %v445
        %v447 = vld [vmem:[%s410 + $0xc0] sm:$0x8]
        %v448 = vsel %vm388, 0, %v447
        %449 = vst [vmem:[%s410 + $0xc0] sm:$0x8] %v448
        %v450 = vld [vmem:[%s410 + $0xd0] sm:$0x8]
        %v451 = vsel %vm388, 0, %v450
        %452 = vst [vmem:[%s410 + $0xd0] sm:$0x8] %v451
        %v453 = vld [vmem:[%s410 + $0xe0] sm:$0x8]
        %v454 = vsel %vm388, 0, %v453
        %455 = vst [vmem:[%s410 + $0xe0] sm:$0x8] %v454
        %v456 = vld [vmem:[%s410 + $0xf0] sm:$0x8]
        %v457 = vsel %vm388, 0, %v456
        %458 = vst [vmem:[%s410 + $0xf0] sm:$0x8] %v457
        %v459 = vld [vmem:[%s410 + $0xc] sm:$0x1]
        %v460 = vsel %vm397, 0, %v459
        %461 = vst [vmem:[%s410 + $0xc] sm:$0x1] %v460
        %v462 = vld [vmem:[%s410 + $0x1c] sm:$0x1]
        %v463 = vsel %vm397, 0, %v462
        %464 = vst [vmem:[%s410 + $0x1c] sm:$0x1] %v463
        %v465 = vld [vmem:[%s410 + $0x2c] sm:$0x1]
        %v466 = vsel %vm397, 0, %v465
        %467 = vst [vmem:[%s410 + $0x2c] sm:$0x1] %v466
        %v468 = vld [vmem:[%s410 + $0x3c] sm:$0x1]
        %v469 = vsel %vm397, 0, %v468
        %470 = vst [vmem:[%s410 + $0x3c] sm:$0x1] %v469
        %v471 = vld [vmem:[%s410 + $0x4c] sm:$0x1]
        %v472 = vsel %vm397, 0, %v471
        %473 = vst [vmem:[%s410 + $0x4c] sm:$0x1] %v472
        %v474 = vld [vmem:[%s410 + $0x5c] sm:$0x1]
        %v475 = vsel %vm397, 0, %v474
        %476 = vst [vmem:[%s410 + $0x5c] sm:$0x1] %v475
        %v477 = vld [vmem:[%s410 + $0x6c] sm:$0x1]
        %v478 = vsel %vm397, 0, %v477
        %479 = vst [vmem:[%s410 + $0x6c] sm:$0x1] %v478
        %v480 = vld [vmem:[%s410 + $0x7c] sm:$0x1]
        %v481 = vsel %vm397, 0, %v480
        %482 = vst [vmem:[%s410 + $0x7c] sm:$0x1] %v481
        %v483 = vld [vmem:[%s410 + $0x8c] sm:$0x1]
        %v484 = vsel %vm397, 0, %v483
        %485 = vst [vmem:[%s410 + $0x8c] sm:$0x1] %v484
        %v486 = vld [vmem:[%s410 + $0x9c] sm:$0x1]
        %v487 = vsel %vm397, 0, %v486
        %488 = vst [vmem:[%s410 + $0x9c] sm:$0x1] %v487
        %v489 = vld [vmem:[%s410 + $0xac] sm:$0x1]
        %v490 = vsel %vm397, 0, %v489
        %491 = vst [vmem:[%s410 + $0xac] sm:$0x1] %v490
        %v492 = vld [vmem:[%s410 + $0xbc] sm:$0x1]
        %v493 = vsel %vm397, 0, %v492
        %494 = vst [vmem:[%s410 + $0xbc] sm:$0x1] %v493
        %v495 = vld [vmem:[%s410 + $0xcc] sm:$0x1]
        %v496 = vsel %vm397, 0, %v495
        %497 = vst [vmem:[%s410 + $0xcc] sm:$0x1] %v496
        %v498 = vld [vmem:[%s410 + $0xdc] sm:$0x1]
        %v499 = vsel %vm397, 0, %v498
        %500 = vst [vmem:[%s410 + $0xdc] sm:$0x1] %v499
        %v501 = vld [vmem:[%s410 + $0xec] sm:$0x1]
        %v502 = vsel %vm397, 0, %v501
        %503 = vst [vmem:[%s410 + $0xec] sm:$0x1] %v502
        %v504 = vld [vmem:[%s410 + $0xfc] sm:$0x1]
        %v505 = vsel %vm397, 0, %v504
        %506 = vst [vmem:[%s410 + $0xfc] sm:$0x1] %v505
        %v507 = vld [vmem:[%s384] sm:$0xff]
        %v508 = vld [vmem:[%s384 + $0x8] sm:$0xff]
        %v509 = vld [vmem:[%s384 + $0x10] sm:$0xff]
        %v510 = vld [vmem:[%s384 + $0x18] sm:$0xff]
        %v511 = vld [vmem:[%s384 + $0x20] sm:$0xff]
        %v512 = vld [vmem:[%s384 + $0x28] sm:$0xff]
        %v513 = vld [vmem:[%s384 + $0x30] sm:$0xff]
        %v514 = vld [vmem:[%s384 + $0x38] sm:$0xff]
        %v515 = vld [vmem:[%s384 + $0x40] sm:$0xff]
        %v516 = vld [vmem:[%s384 + $0x48] sm:$0xff]
        %v517 = vld [vmem:[%s384 + $0x50] sm:$0xff]
        %v518 = vld [vmem:[%s384 + $0x58] sm:$0xff]
        %v519 = vld [vmem:[%s384 + $0x60] sm:$0xff]
        %v520 = vld [vmem:[%s384 + $0x68] sm:$0xff]
        %v521 = vld [vmem:[%s384 + $0x70] sm:$0xff]
        %v522 = vld [vmem:[%s384 + $0x78] sm:$0xff]
        %v523 = vld [vmem:[%s384 + $0x80] sm:$0xff]
        %v524 = vld [vmem:[%s384 + $0x88] sm:$0xff]
        %v525 = vld [vmem:[%s384 + $0x90] sm:$0xff]
        %v526 = vld [vmem:[%s384 + $0x98] sm:$0xff]
        %v527 = vld [vmem:[%s384 + $0xa0] sm:$0xff]
        %v528 = vld [vmem:[%s384 + $0xa8] sm:$0xff]
        %v529 = vld [vmem:[%s384 + $0xb0] sm:$0xff]
        %v530 = vld [vmem:[%s384 + $0xb8] sm:$0xff]
        %v531 = vld [vmem:[%s384 + $0xc0] sm:$0xff]
        %v532 = vld [vmem:[%s384 + $0xc8] sm:$0xff]
        %v533 = vld [vmem:[%s384 + $0xd0] sm:$0xff]
        %v534 = vld [vmem:[%s384 + $0xd8] sm:$0xff]
        %v535 = vld [vmem:[%s384 + $0xe0] sm:$0xff]
        %v536 = vld [vmem:[%s384 + $0xe8] sm:$0xff]
        %v537 = vld [vmem:[%s384 + $0xf0] sm:$0xff]
        %v538 = vld [vmem:[%s384 + $0xf8] sm:$0xff]
        %v539 = vpack.c.bf16 %v508, %v507
        %v540 = vpack.c.bf16 %v510, %v509
        %v541 = vpack.c.bf16 %v512, %v511
        %v542 = vpack.c.bf16 %v514, %v513
        %v543 = vpack.c.bf16 %v516, %v515
        %v544 = vpack.c.bf16 %v518, %v517
        %v545 = vpack.c.bf16 %v520, %v519
        %v546 = vpack.c.bf16 %v522, %v521
        %v547 = vpack.c.bf16 %v524, %v523
        %v548 = vpack.c.bf16 %v526, %v525
        %v549 = vpack.c.bf16 %v528, %v527
        %v550 = vpack.c.bf16 %v530, %v529
        %v551 = vpack.c.bf16 %v532, %v531
        %v552 = vpack.c.bf16 %v534, %v533
        %v553 = vpack.c.bf16 %v536, %v535
        %v554 = vpack.c.bf16 %v538, %v537
        %v555 = vld [vmem:[%s1] sm:$0x3]
        %v556 = vld [vmem:[%s2] sm:$0x1]
        %v558 = vperm.slane %v556, 0
        %vm560 = vcmask 31744
        %v562 = vsel %vm560, %v539, 0
        %v565 = vsel %vm560, %v540, 0
        %v568 = vsel %vm560, %v541, 0
        %v571 = vsel %vm560, %v542, 0
        %v574 = vsel %vm560, %v543, 0
        %v577 = vsel %vm560, %v544, 0
        %v580 = vsel %vm560, %v545, 0
        %v583 = vsel %vm560, %v546, 0
        %v586 = vsel %vm560, %v547, 0
        %v589 = vsel %vm560, %v548, 0
        %v592 = vsel %vm560, %v549, 0
        %v595 = vsel %vm560, %v550, 0
        %v598 = vsel %vm560, %v551, 0
        %v601 = vsel %vm560, %v552, 0
        %v604 = vsel %vm560, %v553, 0
        %v607 = vsel %vm560, %v554, 0
        %vm609 = vcmask 1041408
        %v611 = vsel %vm609, %v555, 0
        %613 = vmatpush.bf16.msra.mxu0 0
        %614 = vmatpush.bf16.msra.mxu0 0
        %615 = vmatpush.bf16.msra.mxu0 0
        %616 = vmatpush.bf16.msra.mxu0 0
        %617 = vmatpush.bf16.msra.mxu0 0
        %618 = vmatpush.bf16.msra.mxu0 0
        %619 = vmatpush.bf16.msra.mxu0 0
        %620 = vmatpush.bf16.msra.mxu0 %v611
        %621 = vmatmul.bf16.gmra.mxu0 %v562
        %v622 = vpop.f32.mrf.mxu0
        %v623 = vadd.f32 %v558, %v622
        %v624 = vpop.f32.mrf.mxu0
        %v625 = vadd.f32 %v558, %v624
        %626 = vmatmul.bf16.gmra.mxu0 %v565
        %v627 = vpop.f32.mrf.mxu0
        %v628 = vadd.f32 %v558, %v627
        %v629 = vpop.f32.mrf.mxu0
        %v630 = vadd.f32 %v558, %v629
        %631 = vmatmul.bf16.gmra.mxu0 %v568
        %v632 = vpop.f32.mrf.mxu0
        %v633 = vadd.f32 %v558, %v632
        %v634 = vpop.f32.mrf.mxu0
        %v635 = vadd.f32 %v558, %v634
        %636 = vmatmul.bf16.gmra.mxu0 %v571
        %v637 = vpop.f32.mrf.mxu0
        %v638 = vadd.f32 %v558, %v637
        %v639 = vpop.f32.mrf.mxu0
        %v640 = vadd.f32 %v558, %v639
        %641 = vmatmul.bf16.gmra.mxu0 %v574
        %v642 = vpop.f32.mrf.mxu0
        %v643 = vadd.f32 %v558, %v642
        %v644 = vpop.f32.mrf.mxu0
        %v645 = vadd.f32 %v558, %v644
        %646 = vmatmul.bf16.gmra.mxu0 %v577
        %v647 = vpop.f32.mrf.mxu0
        %v648 = vadd.f32 %v558, %v647
        %v649 = vpop.f32.mrf.mxu0
        %v650 = vadd.f32 %v558, %v649
        %651 = vmatmul.bf16.gmra.mxu0 %v580
        %v652 = vpop.f32.mrf.mxu0
        %v653 = vadd.f32 %v558, %v652
        %v654 = vpop.f32.mrf.mxu0
        %v655 = vadd.f32 %v558, %v654
        %656 = vmatmul.bf16.gmra.mxu0 %v583
        %v657 = vpop.f32.mrf.mxu0
        %v658 = vadd.f32 %v558, %v657
        %v659 = vpop.f32.mrf.mxu0
        %v660 = vadd.f32 %v558, %v659
        %661 = vmatmul.bf16.gmra.mxu0 %v586
        %v662 = vpop.f32.mrf.mxu0
        %v663 = vadd.f32 %v558, %v662
        %v664 = vpop.f32.mrf.mxu0
        %v665 = vadd.f32 %v558, %v664
        %666 = vmatmul.bf16.gmra.mxu0 %v589
        %v667 = vpop.f32.mrf.mxu0
        %v668 = vadd.f32 %v558, %v667
        %v669 = vpop.f32.mrf.mxu0
        %v670 = vadd.f32 %v558, %v669
        %671 = vmatmul.bf16.gmra.mxu0 %v592
        %v672 = vpop.f32.mrf.mxu0
        %v673 = vadd.f32 %v558, %v672
        %v674 = vpop.f32.mrf.mxu0
        %v675 = vadd.f32 %v558, %v674
        %676 = vmatmul.bf16.gmra.mxu0 %v595
        %v677 = vpop.f32.mrf.mxu0
        %v678 = vadd.f32 %v558, %v677
        %v679 = vpop.f32.mrf.mxu0
        %v680 = vadd.f32 %v558, %v679
        %681 = vmatmul.bf16.gmra.mxu0 %v598
        %v682 = vpop.f32.mrf.mxu0
        %v683 = vadd.f32 %v558, %v682
        %v684 = vpop.f32.mrf.mxu0
        %v685 = vadd.f32 %v558, %v684
        %686 = vmatmul.bf16.gmra.mxu0 %v601
        %v687 = vpop.f32.mrf.mxu0
        %v688 = vadd.f32 %v558, %v687
        %v689 = vpop.f32.mrf.mxu0
        %v690 = vadd.f32 %v558, %v689
        %691 = vmatmul.bf16.gmra.mxu0 %v604
        %v692 = vpop.f32.mrf.mxu0
        %v693 = vadd.f32 %v558, %v692
        %v694 = vpop.f32.mrf.mxu0
        %v695 = vadd.f32 %v558, %v694
        %696 = vmatmul.bf16.gmra.mxu0 %v607
        %v697 = vpop.f32.mrf.mxu0
        %v698 = vadd.f32 %v558, %v697
        %v699 = vpop.f32.mrf.mxu0
        %v700 = vadd.f32 %v558, %v699
        %701 = vdwg.mxu0
        %v702 = vmax.f32 %v623, 0.0
        %v703 = vmax.f32 %v625, 0.0
        %v704 = vmax.f32 %v628, 0.0
        %v705 = vmax.f32 %v630, 0.0
        %v706 = vmax.f32 %v633, 0.0
        %v707 = vmax.f32 %v635, 0.0
        %v708 = vmax.f32 %v638, 0.0
        %v709 = vmax.f32 %v640, 0.0
        %v710 = vmax.f32 %v643, 0.0
        %v711 = vmax.f32 %v645, 0.0
        %v712 = vmax.f32 %v648, 0.0
        %v713 = vmax.f32 %v650, 0.0
        %v714 = vmax.f32 %v653, 0.0
        %v715 = vmax.f32 %v655, 0.0
        %v716 = vmax.f32 %v658, 0.0
        %v717 = vmax.f32 %v660, 0.0
        %v718 = vmax.f32 %v663, 0.0
        %v719 = vmax.f32 %v665, 0.0
        %v720 = vmax.f32 %v668, 0.0
        %v721 = vmax.f32 %v670, 0.0
        %v722 = vmax.f32 %v673, 0.0
        %v723 = vmax.f32 %v675, 0.0
        %v724 = vmax.f32 %v678, 0.0
        %v725 = vmax.f32 %v680, 0.0
        %v726 = vmax.f32 %v683, 0.0
        %v727 = vmax.f32 %v685, 0.0
        %v728 = vmax.f32 %v688, 0.0
        %v729 = vmax.f32 %v690, 0.0
        %v730 = vmax.f32 %v693, 0.0
        %v731 = vmax.f32 %v695, 0.0
        %v732 = vmax.f32 %v698, 0.0
        %v733 = vmax.f32 %v700, 0.0
        %v734 = vld [vmem:[%s3] sm:$0x3]
        %v735 = vld [vmem:[%s4] sm:$0x1]
        %v737 = vperm.slane %v735, 0
        %v740 = vsel %vm609, %v734, 0
        %742 = vmatpush.bf16.msra.mxu0 0
        %743 = vmatpush.bf16.msra.mxu0 0
        %744 = vmatpush.bf16.msra.mxu0 0
        %745 = vmatpush.bf16.msra.mxu0 0
        %746 = vmatpush.bf16.msra.mxu0 0
        %747 = vmatpush.bf16.msra.mxu0 0
        %748 = vmatpush.bf16.msra.mxu0 0
        %749 = vmatpush.bf16.msra.mxu0 %v740
        %750 = vmatmul.bf16.gmra.mxu0 %v562
        %v751 = vpop.f32.mrf.mxu0
        %v752 = vadd.f32 %v737, %v751
        %v753 = vpop.f32.mrf.mxu0
        %v754 = vadd.f32 %v737, %v753
        %755 = vmatmul.bf16.gmra.mxu0 %v565
        %v756 = vpop.f32.mrf.mxu0
        %v757 = vadd.f32 %v737, %v756
        %v758 = vpop.f32.mrf.mxu0
        %v759 = vadd.f32 %v737, %v758
        %760 = vmatmul.bf16.gmra.mxu0 %v568
        %v761 = vpop.f32.mrf.mxu0
        %v762 = vadd.f32 %v737, %v761
        %v763 = vpop.f32.mrf.mxu0
        %v764 = vadd.f32 %v737, %v763
        %765 = vmatmul.bf16.gmra.mxu0 %v571
        %v766 = vpop.f32.mrf.mxu0
        %v767 = vadd.f32 %v737, %v766
        %v768 = vpop.f32.mrf.mxu0
        %v769 = vadd.f32 %v737, %v768
        %770 = vmatmul.bf16.gmra.mxu0 %v574
        %v771 = vpop.f32.mrf.mxu0
        %v772 = vadd.f32 %v737, %v771
        %v773 = vpop.f32.mrf.mxu0
        %v774 = vadd.f32 %v737, %v773
        %775 = vmatmul.bf16.gmra.mxu0 %v577
        %v776 = vpop.f32.mrf.mxu0
        %v777 = vadd.f32 %v737, %v776
        %v778 = vpop.f32.mrf.mxu0
        %v779 = vadd.f32 %v737, %v778
        %780 = vmatmul.bf16.gmra.mxu0 %v580
        %v781 = vpop.f32.mrf.mxu0
        %v782 = vadd.f32 %v737, %v781
        %v783 = vpop.f32.mrf.mxu0
        %v784 = vadd.f32 %v737, %v783
        %785 = vmatmul.bf16.gmra.mxu0 %v583
        %v786 = vpop.f32.mrf.mxu0
        %v787 = vadd.f32 %v737, %v786
        %v788 = vpop.f32.mrf.mxu0
        %v789 = vadd.f32 %v737, %v788
        %790 = vmatmul.bf16.gmra.mxu0 %v586
        %v791 = vpop.f32.mrf.mxu0
        %v792 = vadd.f32 %v737, %v791
        %v793 = vpop.f32.mrf.mxu0
        %v794 = vadd.f32 %v737, %v793
        %795 = vmatmul.bf16.gmra.mxu0 %v589
        %v796 = vpop.f32.mrf.mxu0
        %v797 = vadd.f32 %v737, %v796
        %v798 = vpop.f32.mrf.mxu0
        %v799 = vadd.f32 %v737, %v798
        %800 = vmatmul.bf16.gmra.mxu0 %v592
        %v801 = vpop.f32.mrf.mxu0
        %v802 = vadd.f32 %v737, %v801
        %v803 = vpop.f32.mrf.mxu0
        %v804 = vadd.f32 %v737, %v803
        %805 = vmatmul.bf16.gmra.mxu0 %v595
        %v806 = vpop.f32.mrf.mxu0
        %v807 = vadd.f32 %v737, %v806
        %v808 = vpop.f32.mrf.mxu0
        %v809 = vadd.f32 %v737, %v808
        %810 = vmatmul.bf16.gmra.mxu0 %v598
        %v811 = vpop.f32.mrf.mxu0
        %v812 = vadd.f32 %v737, %v811
        %v813 = vpop.f32.mrf.mxu0
        %v814 = vadd.f32 %v737, %v813
        %815 = vmatmul.bf16.gmra.mxu0 %v601
        %v816 = vpop.f32.mrf.mxu0
        %v817 = vadd.f32 %v737, %v816
        %v818 = vpop.f32.mrf.mxu0
        %v819 = vadd.f32 %v737, %v818
        %820 = vmatmul.bf16.gmra.mxu0 %v604
        %v821 = vpop.f32.mrf.mxu0
        %v822 = vadd.f32 %v737, %v821
        %v823 = vpop.f32.mrf.mxu0
        %v824 = vadd.f32 %v737, %v823
        %825 = vmatmul.bf16.gmra.mxu0 %v607
        %v826 = vpop.f32.mrf.mxu0
        %v827 = vadd.f32 %v737, %v826
        %v828 = vpop.f32.mrf.mxu0
        %v829 = vadd.f32 %v737, %v828
        %830 = vdwg.mxu0
        %v831 = vpack.c.bf16 %v702, %v702
        %v832 = vpack.c.bf16 %v703, %v703
        %v833 = vpack.c.bf16 %v704, %v704
        %v834 = vpack.c.bf16 %v705, %v705
        %v835 = vpack.c.bf16 %v706, %v706
        %v836 = vpack.c.bf16 %v707, %v707
        %v837 = vpack.c.bf16 %v708, %v708
        %v838 = vpack.c.bf16 %v709, %v709
        %v839 = vpack.c.bf16 %v710, %v710
        %v840 = vpack.c.bf16 %v711, %v711
        %v841 = vpack.c.bf16 %v712, %v712
        %v842 = vpack.c.bf16 %v713, %v713
        %v843 = vpack.c.bf16 %v714, %v714
        %v844 = vpack.c.bf16 %v715, %v715
        %v845 = vpack.c.bf16 %v716, %v716
        %v846 = vpack.c.bf16 %v717, %v717
        %v847 = vpack.c.bf16 %v718, %v718
        %v848 = vpack.c.bf16 %v719, %v719
        %v849 = vpack.c.bf16 %v720, %v720
        %v850 = vpack.c.bf16 %v721, %v721
        %v851 = vpack.c.bf16 %v722, %v722
        %v852 = vpack.c.bf16 %v723, %v723
        %v853 = vpack.c.bf16 %v724, %v724
        %v854 = vpack.c.bf16 %v725, %v725
        %v855 = vpack.c.bf16 %v726, %v726
        %v856 = vpack.c.bf16 %v727, %v727
        %v857 = vpack.c.bf16 %v728, %v728
        %v858 = vpack.c.bf16 %v729, %v729
        %v859 = vpack.c.bf16 %v730, %v730
        %v860 = vpack.c.bf16 %v731, %v731
        %v861 = vpack.c.bf16 %v732, %v732
        %v862 = vpack.c.bf16 %v733, %v733
        %863 = vst.msk [vmem:[%s410 + $0x4] sm:$0xf] %vm392, %v831
        %864 = vst.msk [vmem:[%s410 + $0x8] sm:$0xf] %vm392, %v832
        %865 = vst.msk [vmem:[%s410 + $0x14] sm:$0xf] %vm392, %v833
        %866 = vst.msk [vmem:[%s410 + $0x18] sm:$0xf] %vm392, %v834
        %867 = vst.msk [vmem:[%s410 + $0x24] sm:$0xf] %vm392, %v835
        %868 = vst.msk [vmem:[%s410 + $0x28] sm:$0xf] %vm392, %v836
        %869 = vst.msk [vmem:[%s410 + $0x34] sm:$0xf] %vm392, %v837
        %870 = vst.msk [vmem:[%s410 + $0x38] sm:$0xf] %vm392, %v838
        %871 = vst.msk [vmem:[%s410 + $0x44] sm:$0xf] %vm392, %v839
        %872 = vst.msk [vmem:[%s410 + $0x48] sm:$0xf] %vm392, %v840
        %873 = vst.msk [vmem:[%s410 + $0x54] sm:$0xf] %vm392, %v841
        %874 = vst.msk [vmem:[%s410 + $0x58] sm:$0xf] %vm392, %v842
        %875 = vst.msk [vmem:[%s410 + $0x64] sm:$0xf] %vm392, %v843
        %876 = vst.msk [vmem:[%s410 + $0x68] sm:$0xf] %vm392, %v844
        %877 = vst.msk [vmem:[%s410 + $0x74] sm:$0xf] %vm392, %v845
        %878 = vst.msk [vmem:[%s410 + $0x78] sm:$0xf] %vm392, %v846
        %879 = vst.msk [vmem:[%s410 + $0x84] sm:$0xf] %vm392, %v847
        %880 = vst.msk [vmem:[%s410 + $0x88] sm:$0xf] %vm392, %v848
        %881 = vst.msk [vmem:[%s410 + $0x94] sm:$0xf] %vm392, %v849
        %882 = vst.msk [vmem:[%s410 + $0x98] sm:$0xf] %vm392, %v850
        %883 = vst.msk [vmem:[%s410 + $0xa4] sm:$0xf] %vm392, %v851
        %884 = vst.msk [vmem:[%s410 + $0xa8] sm:$0xf] %vm392, %v852
        %885 = vst.msk [vmem:[%s410 + $0xb4] sm:$0xf] %vm392, %v853
        %886 = vst.msk [vmem:[%s410 + $0xb8] sm:$0xf] %vm392, %v854
        %887 = vst.msk [vmem:[%s410 + $0xc4] sm:$0xf] %vm392, %v855
        %888 = vst.msk [vmem:[%s410 + $0xc8] sm:$0xf] %vm392, %v856
        %889 = vst.msk [vmem:[%s410 + $0xd4] sm:$0xf] %vm392, %v857
        %890 = vst.msk [vmem:[%s410 + $0xd8] sm:$0xf] %vm392, %v858
        %891 = vst.msk [vmem:[%s410 + $0xe4] sm:$0xf] %vm392, %v859
        %892 = vst.msk [vmem:[%s410 + $0xe8] sm:$0xf] %vm392, %v860
        %893 = vst.msk [vmem:[%s410 + $0xf4] sm:$0xf] %vm392, %v861
        %894 = vst.msk [vmem:[%s410 + $0xf8] sm:$0xf] %vm392, %v862
        %v895 = vld [vmem:[%s5] sm:$0xff]
        %v896 = vld [vmem:[%s5 + $0x8] sm:$0x1]
        %v897 = vld [vmem:[#allocation2] sm:$0x8]
        %v898 = vld [vmem:[#allocation2 + $0x4] sm:$0xf]
        %v899 = vld [vmem:[#allocation2 + $0x8] sm:$0xf]
        %v900 = vld [vmem:[#allocation2 + $0x10] sm:$0x8]
        %v901 = vld [vmem:[#allocation2 + $0x14] sm:$0xf]
        %v902 = vld [vmem:[#allocation2 + $0x18] sm:$0xf]
        %v903 = vld [vmem:[#allocation2 + $0x20] sm:$0x8]
        %v904 = vld [vmem:[#allocation2 + $0x24] sm:$0xf]
        %v905 = vld [vmem:[#allocation2 + $0x28] sm:$0xf]
        %v906 = vld [vmem:[#allocation2 + $0x30] sm:$0x8]
        %v907 = vld [vmem:[#allocation2 + $0x34] sm:$0xf]
        %v908 = vld [vmem:[#allocation2 + $0x38] sm:$0xf]
        %v909 = vld [vmem:[#allocation2 + $0x40] sm:$0x8]
        %v910 = vld [vmem:[#allocation2 + $0x44] sm:$0xf]
        %v911 = vld [vmem:[#allocation2 + $0x48] sm:$0xf]
        %v912 = vld [vmem:[#allocation2 + $0x50] sm:$0x8]
        %v913 = vld [vmem:[#allocation2 + $0x54] sm:$0xf]
        %v914 = vld [vmem:[#allocation2 + $0x58] sm:$0xf]
        %v915 = vld [vmem:[#allocation2 + $0x60] sm:$0x8]
        %v916 = vld [vmem:[#allocation2 + $0x64] sm:$0xf]
        %v917 = vld [vmem:[#allocation2 + $0x68] sm:$0xf]
        %v918 = vld [vmem:[#allocation2 + $0x70] sm:$0x8]
        %v919 = vld [vmem:[#allocation2 + $0x74] sm:$0xf]
        %v920 = vld [vmem:[#allocation2 + $0x78] sm:$0xf]
        %v921 = vld [vmem:[#allocation2 + $0x80] sm:$0x8]
        %v922 = vld [vmem:[#allocation2 + $0x84] sm:$0xf]
        %v923 = vld [vmem:[#allocation2 + $0x88] sm:$0xf]
        %v924 = vld [vmem:[#allocation2 + $0x90] sm:$0x8]
        %v925 = vld [vmem:[#allocation2 + $0x94] sm:$0xf]
        %v926 = vld [vmem:[#allocation2 + $0x98] sm:$0xf]
        %v927 = vld [vmem:[#allocation2 + $0xa0] sm:$0x8]
        %v928 = vld [vmem:[#allocation2 + $0xa4] sm:$0xf]
        %v929 = vld [vmem:[#allocation2 + $0xa8] sm:$0xf]
        %v930 = vld [vmem:[#allocation2 + $0xb0] sm:$0x8]
        %v931 = vld [vmem:[#allocation2 + $0xb4] sm:$0xf]
        %v932 = vld [vmem:[#allocation2 + $0xb8] sm:$0xf]
        %v933 = vld [vmem:[#allocation2 + $0xc0] sm:$0x8]
        %v934 = vld [vmem:[#allocation2 + $0xc4] sm:$0xf]
        %v935 = vld [vmem:[#allocation2 + $0xc8] sm:$0xf]
        %v936 = vld [vmem:[#allocation2 + $0xd0] sm:$0x8]
        %v937 = vld [vmem:[#allocation2 + $0xd4] sm:$0xf]
        %v938 = vld [vmem:[#allocation2 + $0xd8] sm:$0xf]
        %v939 = vld [vmem:[#allocation2 + $0xe0] sm:$0x8]
        %v940 = vld [vmem:[#allocation2 + $0xe4] sm:$0xf]
        %v941 = vld [vmem:[#allocation2 + $0xe8] sm:$0xf]
        %v942 = vld [vmem:[#allocation2 + $0xf0] sm:$0x8]
        %v943 = vld [vmem:[#allocation2 + $0xf4] sm:$0xf]
        %v944 = vld [vmem:[#allocation2 + $0xf8] sm:$0xf]
        %v945 = vunpack.c.l.bf16 %v897
        %v946 = vunpack.c.l.bf16 %v898
        %v947 = vunpack.c.l.bf16 %v899
        %v948 = vunpack.c.l.bf16 %v900
        %v949 = vunpack.c.l.bf16 %v901
        %v950 = vunpack.c.l.bf16 %v902
        %v951 = vunpack.c.l.bf16 %v903
        %v952 = vunpack.c.l.bf16 %v904
        %v953 = vunpack.c.l.bf16 %v905
        %v954 = vunpack.c.l.bf16 %v906
        %v955 = vunpack.c.l.bf16 %v907
        %v956 = vunpack.c.l.bf16 %v908
        %v957 = vunpack.c.l.bf16 %v909
        %v958 = vunpack.c.l.bf16 %v910
        %v959 = vunpack.c.l.bf16 %v911
        %v960 = vunpack.c.l.bf16 %v912
        %v961 = vunpack.c.l.bf16 %v913
        %v962 = vunpack.c.l.bf16 %v914
        %v963 = vunpack.c.l.bf16 %v915
        %v964 = vunpack.c.l.bf16 %v916
        %v965 = vunpack.c.l.bf16 %v917
        %v966 = vunpack.c.l.bf16 %v918
        %v967 = vunpack.c.l.bf16 %v919
        %v968 = vunpack.c.l.bf16 %v920
        %v969 = vunpack.c.l.bf16 %v921
        %v970 = vunpack.c.l.bf16 %v922
        %v971 = vunpack.c.l.bf16 %v923
        %v972 = vunpack.c.l.bf16 %v924
        %v973 = vunpack.c.l.bf16 %v925
        %v974 = vunpack.c.l.bf16 %v926
        %v975 = vunpack.c.l.bf16 %v927
        %v976 = vunpack.c.l.bf16 %v928
        %v977 = vunpack.c.l.bf16 %v929
        %v978 = vunpack.c.l.bf16 %v930
        %v979 = vunpack.c.l.bf16 %v931
        %v980 = vunpack.c.l.bf16 %v932
        %v981 = vunpack.c.l.bf16 %v933
        %v982 = vunpack.c.l.bf16 %v934
        %v983 = vunpack.c.l.bf16 %v935
        %v984 = vunpack.c.l.bf16 %v936
        %v985 = vunpack.c.l.bf16 %v937
        %v986 = vunpack.c.l.bf16 %v938
        %v987 = vunpack.c.l.bf16 %v939
        %v988 = vunpack.c.l.bf16 %v940
        %v989 = vunpack.c.l.bf16 %v941
        %v990 = vunpack.c.l.bf16 %v942
        %v991 = vunpack.c.l.bf16 %v943
        %v992 = vunpack.c.l.bf16 %v944
        %v993 = vperm.slane %v895, 0
        %v994 = vmul.f32 %v945, %v993
        %v995 = vmul.f32 %v946, %v993
        %v996 = vmul.f32 %v947, %v993
        %v997 = vmul.f32 %v948, %v993
        %v998 = vmul.f32 %v949, %v993
        %v999 = vmul.f32 %v950, %v993
        %v1000 = vmul.f32 %v951, %v993
        %v1001 = vmul.f32 %v952, %v993
        %v1002 = vmul.f32 %v953, %v993
        %v1003 = vmul.f32 %v954, %v993
        %v1004 = vmul.f32 %v955, %v993
        %v1005 = vmul.f32 %v956, %v993
        %v1006 = vmul.f32 %v957, %v993
        %v1007 = vmul.f32 %v958, %v993
        %v1008 = vmul.f32 %v959, %v993
        %v1009 = vmul.f32 %v960, %v993
        %v1010 = vmul.f32 %v961, %v993
        %v1011 = vmul.f32 %v962, %v993
        %v1012 = vmul.f32 %v963, %v993
        %v1013 = vmul.f32 %v964, %v993
        %v1014 = vmul.f32 %v965, %v993
        %v1015 = vmul.f32 %v966, %v993
        %v1016 = vmul.f32 %v967, %v993
        %v1017 = vmul.f32 %v968, %v993
        %v1018 = vmul.f32 %v969, %v993
        %v1019 = vmul.f32 %v970, %v993
        %v1020 = vmul.f32 %v971, %v993
        %v1021 = vmul.f32 %v972, %v993
        %v1022 = vmul.f32 %v973, %v993
        %v1023 = vmul.f32 %v974, %v993
        %v1024 = vmul.f32 %v975, %v993
        %v1025 = vmul.f32 %v976, %v993
        %v1026 = vmul.f32 %v977, %v993
        %v1027 = vmul.f32 %v978, %v993
        %v1028 = vmul.f32 %v979, %v993
        %v1029 = vmul.f32 %v980, %v993
        %v1030 = vmul.f32 %v981, %v993
        %v1031 = vmul.f32 %v982, %v993
        %v1032 = vmul.f32 %v983, %v993
        %v1033 = vmul.f32 %v984, %v993
        %v1034 = vmul.f32 %v985, %v993
        %v1035 = vmul.f32 %v986, %v993
        %v1036 = vmul.f32 %v987, %v993
        %v1037 = vmul.f32 %v988, %v993
        %v1038 = vmul.f32 %v989, %v993
        %v1039 = vmul.f32 %v990, %v993
        %v1040 = vmul.f32 %v991, %v993
        %v1041 = vmul.f32 %v992, %v993
        %v1042 = vperm.slane %v895, 1
        %v1043 = vmul.f32 %v946, %v1042
        %v1044 = vmul.f32 %v947, %v1042
        %v1045 = vmul.f32 %v949, %v1042
        %v1046 = vmul.f32 %v950, %v1042
        %v1047 = vmul.f32 %v952, %v1042
        %v1048 = vmul.f32 %v953, %v1042
        %v1049 = vmul.f32 %v955, %v1042
        %v1050 = vmul.f32 %v956, %v1042
        %v1051 = vmul.f32 %v958, %v1042
        %v1052 = vmul.f32 %v959, %v1042
        %v1053 = vmul.f32 %v961, %v1042
        %v1054 = vmul.f32 %v962, %v1042
        %v1055 = vmul.f32 %v964, %v1042
        %v1056 = vmul.f32 %v965, %v1042
        %v1057 = vmul.f32 %v967, %v1042
        %v1058 = vmul.f32 %v968, %v1042
        %v1059 = vmul.f32 %v970, %v1042
        %v1060 = vmul.f32 %v971, %v1042
        %v1061 = vmul.f32 %v973, %v1042
        %v1062 = vmul.f32 %v974, %v1042
        %v1063 = vmul.f32 %v976, %v1042
        %v1064 = vmul.f32 %v977, %v1042
        %v1065 = vmul.f32 %v979, %v1042
        %v1066 = vmul.f32 %v980, %v1042
        %v1067 = vmul.f32 %v982, %v1042
        %v1068 = vmul.f32 %v983, %v1042
        %v1069 = vmul.f32 %v985, %v1042
        %v1070 = vmul.f32 %v986, %v1042
        %v1071 = vmul.f32 %v988, %v1042
        %v1072 = vmul.f32 %v989, %v1042
        %v1073 = vmul.f32 %v991, %v1042
        %v1074 = vmul.f32 %v992, %v1042
        %vm1107 = vcmask 1046528
        %v1108 = vrot.slane %v1043, 1
        %v1109 = vrot.slane %v1044, 1
        %v1110 = vsel %vm1107, %v1108, %v1109
        %v1111 = vrot.slane %v1045, 1
        %v1112 = vrot.slane %v1046, 1
        %v1113 = vsel %vm1107, %v1111, %v1112
        %v1114 = vrot.slane %v1047, 1
        %v1115 = vrot.slane %v1048, 1
        %v1116 = vsel %vm1107, %v1114, %v1115
        %v1117 = vrot.slane %v1049, 1
        %v1118 = vrot.slane %v1050, 1
        %v1119 = vsel %vm1107, %v1117, %v1118
        %v1120 = vrot.slane %v1051, 1
        %v1121 = vrot.slane %v1052, 1
        %v1122 = vsel %vm1107, %v1120, %v1121
        %v1123 = vrot.slane %v1053, 1
        %v1124 = vrot.slane %v1054, 1
        %v1125 = vsel %vm1107, %v1123, %v1124
        %v1126 = vrot.slane %v1055, 1
        %v1127 = vrot.slane %v1056, 1
        %v1128 = vsel %vm1107, %v1126, %v1127
        %v1129 = vrot.slane %v1057, 1
        %v1130 = vrot.slane %v1058, 1
        %v1131 = vsel %vm1107, %v1129, %v1130
        %v1132 = vrot.slane %v1059, 1
        %v1133 = vrot.slane %v1060, 1
        %v1134 = vsel %vm1107, %v1132, %v1133
        %v1135 = vrot.slane %v1061, 1
        %v1136 = vrot.slane %v1062, 1
        %v1137 = vsel %vm1107, %v1135, %v1136
        %v1138 = vrot.slane %v1063, 1
        %v1139 = vrot.slane %v1064, 1
        %v1140 = vsel %vm1107, %v1138, %v1139
        %v1141 = vrot.slane %v1065, 1
        %v1142 = vrot.slane %v1066, 1
        %v1143 = vsel %vm1107, %v1141, %v1142
        %v1144 = vrot.slane %v1067, 1
        %v1145 = vrot.slane %v1068, 1
        %v1146 = vsel %vm1107, %v1144, %v1145
        %v1147 = vrot.slane %v1069, 1
        %v1148 = vrot.slane %v1070, 1
        %v1149 = vsel %vm1107, %v1147, %v1148
        %v1150 = vrot.slane %v1071, 1
        %v1151 = vrot.slane %v1072, 1
        %v1152 = vsel %vm1107, %v1150, %v1151
        %v1153 = vrot.slane %v1073, 1
        %v1154 = vrot.slane %v1074, 1
        %v1155 = vsel %vm1107, %v1153, %v1154
        %v1204 = vadd.f32 %v994, %v1108
        %v1205 = vadd.f32 %v995, %v1110
        %v1206 = vadd.f32 %v996, %v1109
        %v1207 = vadd.f32 %v997, %v1111
        %v1208 = vadd.f32 %v998, %v1113
        %v1209 = vadd.f32 %v999, %v1112
        %v1210 = vadd.f32 %v1000, %v1114
        %v1211 = vadd.f32 %v1001, %v1116
        %v1212 = vadd.f32 %v1002, %v1115
        %v1213 = vadd.f32 %v1003, %v1117
        %v1214 = vadd.f32 %v1004, %v1119
        %v1215 = vadd.f32 %v1005, %v1118
        %v1216 = vadd.f32 %v1006, %v1120
        %v1217 = vadd.f32 %v1007, %v1122
        %v1218 = vadd.f32 %v1008, %v1121
        %v1219 = vadd.f32 %v1009, %v1123
        %v1220 = vadd.f32 %v1010, %v1125
        %v1221 = vadd.f32 %v1011, %v1124
        %v1222 = vadd.f32 %v1012, %v1126
        %v1223 = vadd.f32 %v1013, %v1128
        %v1224 = vadd.f32 %v1014, %v1127
        %v1225 = vadd.f32 %v1015, %v1129
        %v1226 = vadd.f32 %v1016, %v1131
        %v1227 = vadd.f32 %v1017, %v1130
        %v1228 = vadd.f32 %v1018, %v1132
        %v1229 = vadd.f32 %v1019, %v1134
        %v1230 = vadd.f32 %v1020, %v1133
        %v1231 = vadd.f32 %v1021, %v1135
        %v1232 = vadd.f32 %v1022, %v1137
        %v1233 = vadd.f32 %v1023, %v1136
        %v1234 = vadd.f32 %v1024, %v1138
        %v1235 = vadd.f32 %v1025, %v1140
        %v1236 = vadd.f32 %v1026, %v1139
        %v1237 = vadd.f32 %v1027, %v1141
        %v1238 = vadd.f32 %v1028, %v1143
        %v1239 = vadd.f32 %v1029, %v1142
        %v1240 = vadd.f32 %v1030, %v1144
        %v1241 = vadd.f32 %v1031, %v1146
        %v1242 = vadd.f32 %v1032, %v1145
        %v1243 = vadd.f32 %v1033, %v1147
        %v1244 = vadd.f32 %v1034, %v1149
        %v1245 = vadd.f32 %v1035, %v1148
        %v1246 = vadd.f32 %v1036, %v1150
        %v1247 = vadd.f32 %v1037, %v1152
        %v1248 = vadd.f32 %v1038, %v1151
        %v1249 = vadd.f32 %v1039, %v1153
        %v1250 = vadd.f32 %v1040, %v1155
        %v1251 = vadd.f32 %v1041, %v1154
        %v1252 = vld [vmem:[#allocation2 + $0xc] sm:$0x1]
        %v1253 = vld [vmem:[#allocation2 + $0x1c] sm:$0x1]
        %v1254 = vld [vmem:[#allocation2 + $0x2c] sm:$0x1]
        %v1255 = vld [vmem:[#allocation2 + $0x3c] sm:$0x1]
        %v1256 = vld [vmem:[#allocation2 + $0x4c] sm:$0x1]
        %v1257 = vld [vmem:[#allocation2 + $0x5c] sm:$0x1]
        %v1258 = vld [vmem:[#allocation2 + $0x6c] sm:$0x1]
        %v1259 = vld [vmem:[#allocation2 + $0x7c] sm:$0x1]
        %v1260 = vld [vmem:[#allocation2 + $0x8c] sm:$0x1]
        %v1261 = vld [vmem:[#allocation2 + $0x9c] sm:$0x1]
        %v1262 = vld [vmem:[#allocation2 + $0xac] sm:$0x1]
        %v1263 = vld [vmem:[#allocation2 + $0xbc] sm:$0x1]
        %v1264 = vld [vmem:[#allocation2 + $0xcc] sm:$0x1]
        %v1265 = vld [vmem:[#allocation2 + $0xdc] sm:$0x1]
        %v1266 = vld [vmem:[#allocation2 + $0xec] sm:$0x1]
        %v1267 = vld [vmem:[#allocation2 + $0xfc] sm:$0x1]
        %v1268 = vunpack.c.l.bf16 %v1252
        %v1269 = vunpack.c.l.bf16 %v1253
        %v1270 = vunpack.c.l.bf16 %v1254
        %v1271 = vunpack.c.l.bf16 %v1255
        %v1272 = vunpack.c.l.bf16 %v1256
        %v1273 = vunpack.c.l.bf16 %v1257
        %v1274 = vunpack.c.l.bf16 %v1258
        %v1275 = vunpack.c.l.bf16 %v1259
        %v1276 = vunpack.c.l.bf16 %v1260
        %v1277 = vunpack.c.l.bf16 %v1261
        %v1278 = vunpack.c.l.bf16 %v1262
        %v1279 = vunpack.c.l.bf16 %v1263
        %v1280 = vunpack.c.l.bf16 %v1264
        %v1281 = vunpack.c.l.bf16 %v1265
        %v1282 = vunpack.c.l.bf16 %v1266
        %v1283 = vunpack.c.l.bf16 %v1267
        %v1284 = vperm.slane %v895, 2
        %v1285 = vmul.f32 %v946, %v1284
        %v1286 = vmul.f32 %v947, %v1284
        %v1287 = vmul.f32 %v1268, %v1284
        %v1288 = vmul.f32 %v949, %v1284
        %v1289 = vmul.f32 %v950, %v1284
        %v1290 = vmul.f32 %v1269, %v1284
        %v1291 = vmul.f32 %v952, %v1284
        %v1292 = vmul.f32 %v953, %v1284
        %v1293 = vmul.f32 %v1270, %v1284
        %v1294 = vmul.f32 %v955, %v1284
        %v1295 = vmul.f32 %v956, %v1284
        %v1296 = vmul.f32 %v1271, %v1284
        %v1297 = vmul.f32 %v958, %v1284
        %v1298 = vmul.f32 %v959, %v1284
        %v1299 = vmul.f32 %v1272, %v1284
        %v1300 = vmul.f32 %v961, %v1284
        %v1301 = vmul.f32 %v962, %v1284
        %v1302 = vmul.f32 %v1273, %v1284
        %v1303 = vmul.f32 %v964, %v1284
        %v1304 = vmul.f32 %v965, %v1284
        %v1305 = vmul.f32 %v1274, %v1284
        %v1306 = vmul.f32 %v967, %v1284
        %v1307 = vmul.f32 %v968, %v1284
        %v1308 = vmul.f32 %v1275, %v1284
        %v1309 = vmul.f32 %v970, %v1284
        %v1310 = vmul.f32 %v971, %v1284
        %v1311 = vmul.f32 %v1276, %v1284
        %v1312 = vmul.f32 %v973, %v1284
        %v1313 = vmul.f32 %v974, %v1284
        %v1314 = vmul.f32 %v1277, %v1284
        %v1315 = vmul.f32 %v976, %v1284
        %v1316 = vmul.f32 %v977, %v1284
        %v1317 = vmul.f32 %v1278, %v1284
        %v1318 = vmul.f32 %v979, %v1284
        %v1319 = vmul.f32 %v980, %v1284
        %v1320 = vmul.f32 %v1279, %v1284
        %v1321 = vmul.f32 %v982, %v1284
        %v1322 = vmul.f32 %v983, %v1284
        %v1323 = vmul.f32 %v1280, %v1284
        %v1324 = vmul.f32 %v985, %v1284
        %v1325 = vmul.f32 %v986, %v1284
        %v1326 = vmul.f32 %v1281, %v1284
        %v1327 = vmul.f32 %v988, %v1284
        %v1328 = vmul.f32 %v989, %v1284
        %v1329 = vmul.f32 %v1282, %v1284
        %v1330 = vmul.f32 %v991, %v1284
        %v1331 = vmul.f32 %v992, %v1284
        %v1332 = vmul.f32 %v1283, %v1284
        %vm1381 = vcmask 1045504
        %v1382 = vrot.slane %v1285, 2
        %v1383 = vrot.slane %v1286, 2
        %v1384 = vsel %vm1381, %v1382, %v1383
        %v1385 = vrot.slane %v1287, 2
        %v1386 = vsel %vm1381, %v1383, %v1385
        %v1387 = vrot.slane %v1288, 2
        %v1388 = vrot.slane %v1289, 2
        %v1389 = vsel %vm1381, %v1387, %v1388
        %v1390 = vrot.slane %v1290, 2
        %v1391 = vsel %vm1381, %v1388, %v1390
        %v1392 = vrot.slane %v1291, 2
        %v1393 = vrot.slane %v1292, 2
        %v1394 = vsel %vm1381, %v1392, %v1393
        %v1395 = vrot.slane %v1293, 2
        %v1396 = vsel %vm1381, %v1393, %v1395
        %v1397 = vrot.slane %v1294, 2
        %v1398 = vrot.slane %v1295, 2
        %v1399 = vsel %vm1381, %v1397, %v1398
        %v1400 = vrot.slane %v1296, 2
        %v1401 = vsel %vm1381, %v1398, %v1400
        %v1402 = vrot.slane %v1297, 2
        %v1403 = vrot.slane %v1298, 2
        %v1404 = vsel %vm1381, %v1402, %v1403
        %v1405 = vrot.slane %v1299, 2
        %v1406 = vsel %vm1381, %v1403, %v1405
        %v1407 = vrot.slane %v1300, 2
        %v1408 = vrot.slane %v1301, 2
        %v1409 = vsel %vm1381, %v1407, %v1408
        %v1410 = vrot.slane %v1302, 2
        %v1411 = vsel %vm1381, %v1408, %v1410
        %v1412 = vrot.slane %v1303, 2
        %v1413 = vrot.slane %v1304, 2
        %v1414 = vsel %vm1381, %v1412, %v1413
        %v1415 = vrot.slane %v1305, 2
        %v1416 = vsel %vm1381, %v1413, %v1415
        %v1417 = vrot.slane %v1306, 2
        %v1418 = vrot.slane %v1307, 2
        %v1419 = vsel %vm1381, %v1417, %v1418
        %v1420 = vrot.slane %v1308, 2
        %v1421 = vsel %vm1381, %v1418, %v1420
        %v1422 = vrot.slane %v1309, 2
        %v1423 = vrot.slane %v1310, 2
        %v1424 = vsel %vm1381, %v1422, %v1423
        %v1425 = vrot.slane %v1311, 2
        %v1426 = vsel %vm1381, %v1423, %v1425
        %v1427 = vrot.slane %v1312, 2
        %v1428 = vrot.slane %v1313, 2
        %v1429 = vsel %vm1381, %v1427, %v1428
        %v1430 = vrot.slane %v1314, 2
        %v1431 = vsel %vm1381, %v1428, %v1430
        %v1432 = vrot.slane %v1315, 2
        %v1433 = vrot.slane %v1316, 2
        %v1434 = vsel %vm1381, %v1432, %v1433
        %v1435 = vrot.slane %v1317, 2
        %v1436 = vsel %vm1381, %v1433, %v1435
        %v1437 = vrot.slane %v1318, 2
        %v1438 = vrot.slane %v1319, 2
        %v1439 = vsel %vm1381, %v1437, %v1438
        %v1440 = vrot.slane %v1320, 2
        %v1441 = vsel %vm1381, %v1438, %v1440
        %v1442 = vrot.slane %v1321, 2
        %v1443 = vrot.slane %v1322, 2
        %v1444 = vsel %vm1381, %v1442, %v1443
        %v1445 = vrot.slane %v1323, 2
        %v1446 = vsel %vm1381, %v1443, %v1445
        %v1447 = vrot.slane %v1324, 2
        %v1448 = vrot.slane %v1325, 2
        %v1449 = vsel %vm1381, %v1447, %v1448
        %v1450 = vrot.slane %v1326, 2
        %v1451 = vsel %vm1381, %v1448, %v1450
        %v1452 = vrot.slane %v1327, 2
        %v1453 = vrot.slane %v1328, 2
        %v1454 = vsel %vm1381, %v1452, %v1453
        %v1455 = vrot.slane %v1329, 2
        %v1456 = vsel %vm1381, %v1453, %v1455
        %v1457 = vrot.slane %v1330, 2
        %v1458 = vrot.slane %v1331, 2
        %v1459 = vsel %vm1381, %v1457, %v1458
        %v1460 = vrot.slane %v1332, 2
        %v1461 = vsel %vm1381, %v1458, %v1460
        %v1510 = vadd.f32 %v1204, %v1382
        %v1511 = vadd.f32 %v1205, %v1384
        %v1512 = vadd.f32 %v1206, %v1386
        %v1513 = vadd.f32 %v1207, %v1387
        %v1514 = vadd.f32 %v1208, %v1389
        %v1515 = vadd.f32 %v1209, %v1391
        %v1516 = vadd.f32 %v1210, %v1392
        %v1517 = vadd.f32 %v1211, %v1394
        %v1518 = vadd.f32 %v1212, %v1396
        %v1519 = vadd.f32 %v1213, %v1397
        %v1520 = vadd.f32 %v1214, %v1399
        %v1521 = vadd.f32 %v1215, %v1401
        %v1522 = vadd.f32 %v1216, %v1402
        %v1523 = vadd.f32 %v1217, %v1404
        %v1524 = vadd.f32 %v1218, %v1406
        %v1525 = vadd.f32 %v1219, %v1407
        %v1526 = vadd.f32 %v1220, %v1409
        %v1527 = vadd.f32 %v1221, %v1411
        %v1528 = vadd.f32 %v1222, %v1412
        %v1529 = vadd.f32 %v1223, %v1414
        %v1530 = vadd.f32 %v1224, %v1416
        %v1531 = vadd.f32 %v1225, %v1417
        %v1532 = vadd.f32 %v1226, %v1419
        %v1533 = vadd.f32 %v1227, %v1421
        %v1534 = vadd.f32 %v1228, %v1422
        %v1535 = vadd.f32 %v1229, %v1424
        %v1536 = vadd.f32 %v1230, %v1426
        %v1537 = vadd.f32 %v1231, %v1427
        %v1538 = vadd.f32 %v1232, %v1429
        %v1539 = vadd.f32 %v1233, %v1431
        %v1540 = vadd.f32 %v1234, %v1432
        %v1541 = vadd.f32 %v1235, %v1434
        %v1542 = vadd.f32 %v1236, %v1436
        %v1543 = vadd.f32 %v1237, %v1437
        %v1544 = vadd.f32 %v1238, %v1439
        %v1545 = vadd.f32 %v1239, %v1441
        %v1546 = vadd.f32 %v1240, %v1442
        %v1547 = vadd.f32 %v1241, %v1444
        %v1548 = vadd.f32 %v1242, %v1446
        %v1549 = vadd.f32 %v1243, %v1447
        %v1550 = vadd.f32 %v1244, %v1449
        %v1551 = vadd.f32 %v1245, %v1451
        %v1552 = vadd.f32 %v1246, %v1452
        %v1553 = vadd.f32 %v1247, %v1454
        %v1554 = vadd.f32 %v1248, %v1456
        %v1555 = vadd.f32 %v1249, %v1457
        %v1556 = vadd.f32 %v1250, %v1459
        %v1557 = vadd.f32 %v1251, %v1461
        %v1558 = vld [vmem:[%s410] sm:$0x8]
        %v1559 = vld [vmem:[%s410 + $0x4] sm:$0xf]
        %v1560 = vld [vmem:[%s410 + $0x8] sm:$0xf]
        %v1561 = vld [vmem:[%s410 + $0x10] sm:$0x8]
        %v1562 = vld [vmem:[%s410 + $0x14] sm:$0xf]
        %v1563 = vld [vmem:[%s410 + $0x18] sm:$0xf]
        %v1564 = vld [vmem:[%s410 + $0x20] sm:$0x8]
        %v1565 = vld [vmem:[%s410 + $0x24] sm:$0xf]
        %v1566 = vld [vmem:[%s410 + $0x28] sm:$0xf]
        %v1567 = vld [vmem:[%s410 + $0x30] sm:$0x8]
        %v1568 = vld [vmem:[%s410 + $0x34] sm:$0xf]
        %v1569 = vld [vmem:[%s410 + $0x38] sm:$0xf]
        %v1570 = vld [vmem:[%s410 + $0x40] sm:$0x8]
        %v1571 = vld [vmem:[%s410 + $0x44] sm:$0xf]
        %v1572 = vld [vmem:[%s410 + $0x48] sm:$0xf]
        %v1573 = vld [vmem:[%s410 + $0x50] sm:$0x8]
        %v1574 = vld [vmem:[%s410 + $0x54] sm:$0xf]
        %v1575 = vld [vmem:[%s410 + $0x58] sm:$0xf]
        %v1576 = vld [vmem:[%s410 + $0x60] sm:$0x8]
        %v1577 = vld [vmem:[%s410 + $0x64] sm:$0xf]
        %v1578 = vld [vmem:[%s410 + $0x68] sm:$0xf]
        %v1579 = vld [vmem:[%s410 + $0x70] sm:$0x8]
        %v1580 = vld [vmem:[%s410 + $0x74] sm:$0xf]
        %v1581 = vld [vmem:[%s410 + $0x78] sm:$0xf]
        %v1582 = vld [vmem:[%s410 + $0x80] sm:$0x8]
        %v1583 = vld [vmem:[%s410 + $0x84] sm:$0xf]
        %v1584 = vld [vmem:[%s410 + $0x88] sm:$0xf]
        %v1585 = vld [vmem:[%s410 + $0x90] sm:$0x8]
        %v1586 = vld [vmem:[%s410 + $0x94] sm:$0xf]
        %v1587 = vld [vmem:[%s410 + $0x98] sm:$0xf]
        %v1588 = vld [vmem:[%s410 + $0xa0] sm:$0x8]
        %v1589 = vld [vmem:[%s410 + $0xa4] sm:$0xf]
        %v1590 = vld [vmem:[%s410 + $0xa8] sm:$0xf]
        %v1591 = vld [vmem:[%s410 + $0xb0] sm:$0x8]
        %v1592 = vld [vmem:[%s410 + $0xb4] sm:$0xf]
        %v1593 = vld [vmem:[%s410 + $0xb8] sm:$0xf]
        %v1594 = vld [vmem:[%s410 + $0xc0] sm:$0x8]
        %v1595 = vld [vmem:[%s410 + $0xc4] sm:$0xf]
        %v1596 = vld [vmem:[%s410 + $0xc8] sm:$0xf]
        %v1597 = vld [vmem:[%s410 + $0xd0] sm:$0x8]
        %v1598 = vld [vmem:[%s410 + $0xd4] sm:$0xf]
        %v1599 = vld [vmem:[%s410 + $0xd8] sm:$0xf]
        %v1600 = vld [vmem:[%s410 + $0xe0] sm:$0x8]
        %v1601 = vld [vmem:[%s410 + $0xe4] sm:$0xf]
        %v1602 = vld [vmem:[%s410 + $0xe8] sm:$0xf]
        %v1603 = vld [vmem:[%s410 + $0xf0] sm:$0x8]
        %v1604 = vld [vmem:[%s410 + $0xf4] sm:$0xf]
        %v1605 = vld [vmem:[%s410 + $0xf8] sm:$0xf]
        %v1606 = vunpack.c.l.bf16 %v1558
        %v1607 = vunpack.c.l.bf16 %v1559
        %v1608 = vunpack.c.l.bf16 %v1560
        %v1609 = vunpack.c.l.bf16 %v1561
        %v1610 = vunpack.c.l.bf16 %v1562
        %v1611 = vunpack.c.l.bf16 %v1563
        %v1612 = vunpack.c.l.bf16 %v1564
        %v1613 = vunpack.c.l.bf16 %v1565
        %v1614 = vunpack.c.l.bf16 %v1566
        %v1615 = vunpack.c.l.bf16 %v1567
        %v1616 = vunpack.c.l.bf16 %v1568
        %v1617 = vunpack.c.l.bf16 %v1569
        %v1618 = vunpack.c.l.bf16 %v1570
        %v1619 = vunpack.c.l.bf16 %v1571
        %v1620 = vunpack.c.l.bf16 %v1572
        %v1621 = vunpack.c.l.bf16 %v1573
        %v1622 = vunpack.c.l.bf16 %v1574
        %v1623 = vunpack.c.l.bf16 %v1575
        %v1624 = vunpack.c.l.bf16 %v1576
        %v1625 = vunpack.c.l.bf16 %v1577
        %v1626 = vunpack.c.l.bf16 %v1578
        %v1627 = vunpack.c.l.bf16 %v1579
        %v1628 = vunpack.c.l.bf16 %v1580
        %v1629 = vunpack.c.l.bf16 %v1581
        %v1630 = vunpack.c.l.bf16 %v1582
        %v1631 = vunpack.c.l.bf16 %v1583
        %v1632 = vunpack.c.l.bf16 %v1584
        %v1633 = vunpack.c.l.bf16 %v1585
        %v1634 = vunpack.c.l.bf16 %v1586
        %v1635 = vunpack.c.l.bf16 %v1587
        %v1636 = vunpack.c.l.bf16 %v1588
        %v1637 = vunpack.c.l.bf16 %v1589
        %v1638 = vunpack.c.l.bf16 %v1590
        %v1639 = vunpack.c.l.bf16 %v1591
        %v1640 = vunpack.c.l.bf16 %v1592
        %v1641 = vunpack.c.l.bf16 %v1593
        %v1642 = vunpack.c.l.bf16 %v1594
        %v1643 = vunpack.c.l.bf16 %v1595
        %v1644 = vunpack.c.l.bf16 %v1596
        %v1645 = vunpack.c.l.bf16 %v1597
        %v1646 = vunpack.c.l.bf16 %v1598
        %v1647 = vunpack.c.l.bf16 %v1599
        %v1648 = vunpack.c.l.bf16 %v1600
        %v1649 = vunpack.c.l.bf16 %v1601
        %v1650 = vunpack.c.l.bf16 %v1602
        %v1651 = vunpack.c.l.bf16 %v1603
        %v1652 = vunpack.c.l.bf16 %v1604
        %v1653 = vunpack.c.l.bf16 %v1605
        %v1654 = vperm.slane %v895, 3
        %v1655 = vmul.f32 %v1606, %v1654
        %v1656 = vmul.f32 %v1607, %v1654
        %v1657 = vmul.f32 %v1608, %v1654
        %v1658 = vmul.f32 %v1609, %v1654
        %v1659 = vmul.f32 %v1610, %v1654
        %v1660 = vmul.f32 %v1611, %v1654
        %v1661 = vmul.f32 %v1612, %v1654
        %v1662 = vmul.f32 %v1613, %v1654
        %v1663 = vmul.f32 %v1614, %v1654
        %v1664 = vmul.f32 %v1615, %v1654
        %v1665 = vmul.f32 %v1616, %v1654
        %v1666 = vmul.f32 %v1617, %v1654
        %v1667 = vmul.f32 %v1618, %v1654
        %v1668 = vmul.f32 %v1619, %v1654
        %v1669 = vmul.f32 %v1620, %v1654
        %v1670 = vmul.f32 %v1621, %v1654
        %v1671 = vmul.f32 %v1622, %v1654
        %v1672 = vmul.f32 %v1623, %v1654
        %v1673 = vmul.f32 %v1624, %v1654
        %v1674 = vmul.f32 %v1625, %v1654
        %v1675 = vmul.f32 %v1626, %v1654
        %v1676 = vmul.f32 %v1627, %v1654
        %v1677 = vmul.f32 %v1628, %v1654
        %v1678 = vmul.f32 %v1629, %v1654
        %v1679 = vmul.f32 %v1630, %v1654
        %v1680 = vmul.f32 %v1631, %v1654
        %v1681 = vmul.f32 %v1632, %v1654
        %v1682 = vmul.f32 %v1633, %v1654
        %v1683 = vmul.f32 %v1634, %v1654
        %v1684 = vmul.f32 %v1635, %v1654
        %v1685 = vmul.f32 %v1636, %v1654
        %v1686 = vmul.f32 %v1637, %v1654
        %v1687 = vmul.f32 %v1638, %v1654
        %v1688 = vmul.f32 %v1639, %v1654
        %v1689 = vmul.f32 %v1640, %v1654
        %v1690 = vmul.f32 %v1641, %v1654
        %v1691 = vmul.f32 %v1642, %v1654
        %v1692 = vmul.f32 %v1643, %v1654
        %v1693 = vmul.f32 %v1644, %v1654
        %v1694 = vmul.f32 %v1645, %v1654
        %v1695 = vmul.f32 %v1646, %v1654
        %v1696 = vmul.f32 %v1647, %v1654
        %v1697 = vmul.f32 %v1648, %v1654
        %v1698 = vmul.f32 %v1649, %v1654
        %v1699 = vmul.f32 %v1650, %v1654
        %v1700 = vmul.f32 %v1651, %v1654
        %v1701 = vmul.f32 %v1652, %v1654
        %v1702 = vmul.f32 %v1653, %v1654
        %v1703 = vadd.f32 %v1510, %v1655
        %v1704 = vadd.f32 %v1511, %v1656
        %v1705 = vadd.f32 %v1512, %v1657
        %v1706 = vadd.f32 %v1513, %v1658
        %v1707 = vadd.f32 %v1514, %v1659
        %v1708 = vadd.f32 %v1515, %v1660
        %v1709 = vadd.f32 %v1516, %v1661
        %v1710 = vadd.f32 %v1517, %v1662
        %v1711 = vadd.f32 %v1518, %v1663
        %v1712 = vadd.f32 %v1519, %v1664
        %v1713 = vadd.f32 %v1520, %v1665
        %v1714 = vadd.f32 %v1521, %v1666
        %v1715 = vadd.f32 %v1522, %v1667
        %v1716 = vadd.f32 %v1523, %v1668
        %v1717 = vadd.f32 %v1524, %v1669
        %v1718 = vadd.f32 %v1525, %v1670
        %v1719 = vadd.f32 %v1526, %v1671
        %v1720 = vadd.f32 %v1527, %v1672
        %v1721 = vadd.f32 %v1528, %v1673
        %v1722 = vadd.f32 %v1529, %v1674
        %v1723 = vadd.f32 %v1530, %v1675
        %v1724 = vadd.f32 %v1531, %v1676
        %v1725 = vadd.f32 %v1532, %v1677
        %v1726 = vadd.f32 %v1533, %v1678
        %v1727 = vadd.f32 %v1534, %v1679
        %v1728 = vadd.f32 %v1535, %v1680
        %v1729 = vadd.f32 %v1536, %v1681
        %v1730 = vadd.f32 %v1537, %v1682
        %v1731 = vadd.f32 %v1538, %v1683
        %v1732 = vadd.f32 %v1539, %v1684
        %v1733 = vadd.f32 %v1540, %v1685
        %v1734 = vadd.f32 %v1541, %v1686
        %v1735 = vadd.f32 %v1542, %v1687
        %v1736 = vadd.f32 %v1543, %v1688
        %v1737 = vadd.f32 %v1544, %v1689
        %v1738 = vadd.f32 %v1545, %v1690
        %v1739 = vadd.f32 %v1546, %v1691
        %v1740 = vadd.f32 %v1547, %v1692
        %v1741 = vadd.f32 %v1548, %v1693
        %v1742 = vadd.f32 %v1549, %v1694
        %v1743 = vadd.f32 %v1550, %v1695
        %v1744 = vadd.f32 %v1551, %v1696
        %v1745 = vadd.f32 %v1552, %v1697
        %v1746 = vadd.f32 %v1553, %v1698
        %v1747 = vadd.f32 %v1554, %v1699
        %v1748 = vadd.f32 %v1555, %v1700
        %v1749 = vadd.f32 %v1556, %v1701
        %v1750 = vadd.f32 %v1557, %v1702
        %v1751 = vperm.slane %v895, 4
        %v1752 = vmul.f32 %v1607, %v1751
        %v1753 = vmul.f32 %v1608, %v1751
        %v1754 = vmul.f32 %v1610, %v1751
        %v1755 = vmul.f32 %v1611, %v1751
        %v1756 = vmul.f32 %v1613, %v1751
        %v1757 = vmul.f32 %v1614, %v1751
        %v1758 = vmul.f32 %v1616, %v1751
        %v1759 = vmul.f32 %v1617, %v1751
        %v1760 = vmul.f32 %v1619, %v1751
        %v1761 = vmul.f32 %v1620, %v1751
        %v1762 = vmul.f32 %v1622, %v1751
        %v1763 = vmul.f32 %v1623, %v1751
        %v1764 = vmul.f32 %v1625, %v1751
        %v1765 = vmul.f32 %v1626, %v1751
        %v1766 = vmul.f32 %v1628, %v1751
        %v1767 = vmul.f32 %v1629, %v1751
        %v1768 = vmul.f32 %v1631, %v1751
        %v1769 = vmul.f32 %v1632, %v1751
        %v1770 = vmul.f32 %v1634, %v1751
        %v1771 = vmul.f32 %v1635, %v1751
        %v1772 = vmul.f32 %v1637, %v1751
        %v1773 = vmul.f32 %v1638, %v1751
        %v1774 = vmul.f32 %v1640, %v1751
        %v1775 = vmul.f32 %v1641, %v1751
        %v1776 = vmul.f32 %v1643, %v1751
        %v1777 = vmul.f32 %v1644, %v1751
        %v1778 = vmul.f32 %v1646, %v1751
        %v1779 = vmul.f32 %v1647, %v1751
        %v1780 = vmul.f32 %v1649, %v1751
        %v1781 = vmul.f32 %v1650, %v1751
        %v1782 = vmul.f32 %v1652, %v1751
        %v1783 = vmul.f32 %v1653, %v1751
        %v1816 = vrot.slane %v1752, 1
        %v1817 = vrot.slane %v1753, 1
        %v1818 = vsel %vm1107, %v1816, %v1817
        %v1819 = vrot.slane %v1754, 1
        %v1820 = vrot.slane %v1755, 1
        %v1821 = vsel %vm1107, %v1819, %v1820
        %v1822 = vrot.slane %v1756, 1
        %v1823 = vrot.slane %v1757, 1
        %v1824 = vsel %vm1107, %v1822, %v1823
        %v1825 = vrot.slane %v1758, 1
        %v1826 = vrot.slane %v1759, 1
        %v1827 = vsel %vm1107, %v1825, %v1826
        %v1828 = vrot.slane %v1760, 1
        %v1829 = vrot.slane %v1761, 1
        %v1830 = vsel %vm1107, %v1828, %v1829
        %v1831 = vrot.slane %v1762, 1
        %v1832 = vrot.slane %v1763, 1
        %v1833 = vsel %vm1107, %v1831, %v1832
        %v1834 = vrot.slane %v1764, 1
        %v1835 = vrot.slane %v1765, 1
        %v1836 = vsel %vm1107, %v1834, %v1835
        %v1837 = vrot.slane %v1766, 1
        %v1838 = vrot.slane %v1767, 1
        %v1839 = vsel %vm1107, %v1837, %v1838
        %v1840 = vrot.slane %v1768, 1
        %v1841 = vrot.slane %v1769, 1
        %v1842 = vsel %vm1107, %v1840, %v1841
        %v1843 = vrot.slane %v1770, 1
        %v1844 = vrot.slane %v1771, 1
        %v1845 = vsel %vm1107, %v1843, %v1844
        %v1846 = vrot.slane %v1772, 1
        %v1847 = vrot.slane %v1773, 1
        %v1848 = vsel %vm1107, %v1846, %v1847
        %v1849 = vrot.slane %v1774, 1
        %v1850 = vrot.slane %v1775, 1
        %v1851 = vsel %vm1107, %v1849, %v1850
        %v1852 = vrot.slane %v1776, 1
        %v1853 = vrot.slane %v1777, 1
        %v1854 = vsel %vm1107, %v1852, %v1853
        %v1855 = vrot.slane %v1778, 1
        %v1856 = vrot.slane %v1779, 1
        %v1857 = vsel %vm1107, %v1855, %v1856
        %v1858 = vrot.slane %v1780, 1
        %v1859 = vrot.slane %v1781, 1
        %v1860 = vsel %vm1107, %v1858, %v1859
        %v1861 = vrot.slane %v1782, 1
        %v1862 = vrot.slane %v1783, 1
        %v1863 = vsel %vm1107, %v1861, %v1862
        %v1912 = vadd.f32 %v1703, %v1816
        %v1913 = vadd.f32 %v1704, %v1818
        %v1914 = vadd.f32 %v1705, %v1817
        %v1915 = vadd.f32 %v1706, %v1819
        %v1916 = vadd.f32 %v1707, %v1821
        %v1917 = vadd.f32 %v1708, %v1820
        %v1918 = vadd.f32 %v1709, %v1822
        %v1919 = vadd.f32 %v1710, %v1824
        %v1920 = vadd.f32 %v1711, %v1823
        %v1921 = vadd.f32 %v1712, %v1825
        %v1922 = vadd.f32 %v1713, %v1827
        %v1923 = vadd.f32 %v1714, %v1826
        %v1924 = vadd.f32 %v1715, %v1828
        %v1925 = vadd.f32 %v1716, %v1830
        %v1926 = vadd.f32 %v1717, %v1829
        %v1927 = vadd.f32 %v1718, %v1831
        %v1928 = vadd.f32 %v1719, %v1833
        %v1929 = vadd.f32 %v1720, %v1832
        %v1930 = vadd.f32 %v1721, %v1834
        %v1931 = vadd.f32 %v1722, %v1836
        %v1932 = vadd.f32 %v1723, %v1835
        %v1933 = vadd.f32 %v1724, %v1837
        %v1934 = vadd.f32 %v1725, %v1839
        %v1935 = vadd.f32 %v1726, %v1838
        %v1936 = vadd.f32 %v1727, %v1840
        %v1937 = vadd.f32 %v1728, %v1842
        %v1938 = vadd.f32 %v1729, %v1841
        %v1939 = vadd.f32 %v1730, %v1843
        %v1940 = vadd.f32 %v1731, %v1845
        %v1941 = vadd.f32 %v1732, %v1844
        %v1942 = vadd.f32 %v1733, %v1846
        %v1943 = vadd.f32 %v1734, %v1848
        %v1944 = vadd.f32 %v1735, %v1847
        %v1945 = vadd.f32 %v1736, %v1849
        %v1946 = vadd.f32 %v1737, %v1851
        %v1947 = vadd.f32 %v1738, %v1850
        %v1948 = vadd.f32 %v1739, %v1852
        %v1949 = vadd.f32 %v1740, %v1854
        %v1950 = vadd.f32 %v1741, %v1853
        %v1951 = vadd.f32 %v1742, %v1855
        %v1952 = vadd.f32 %v1743, %v1857
        %v1953 = vadd.f32 %v1744, %v1856
        %v1954 = vadd.f32 %v1745, %v1858
        %v1955 = vadd.f32 %v1746, %v1860
        %v1956 = vadd.f32 %v1747, %v1859
        %v1957 = vadd.f32 %v1748, %v1861
        %v1958 = vadd.f32 %v1749, %v1863
        %v1959 = vadd.f32 %v1750, %v1862
        %v1960 = vld [vmem:[%s410 + $0xc] sm:$0x1]
        %v1961 = vld [vmem:[%s410 + $0x1c] sm:$0x1]
        %v1962 = vld [vmem:[%s410 + $0x2c] sm:$0x1]
        %v1963 = vld [vmem:[%s410 + $0x3c] sm:$0x1]
        %v1964 = vld [vmem:[%s410 + $0x4c] sm:$0x1]
        %v1965 = vld [vmem:[%s410 + $0x5c] sm:$0x1]
        %v1966 = vld [vmem:[%s410 + $0x6c] sm:$0x1]
        %v1967 = vld [vmem:[%s410 + $0x7c] sm:$0x1]
        %v1968 = vld [vmem:[%s410 + $0x8c] sm:$0x1]
        %v1969 = vld [vmem:[%s410 + $0x9c] sm:$0x1]
        %v1970 = vld [vmem:[%s410 + $0xac] sm:$0x1]
        %v1971 = vld [vmem:[%s410 + $0xbc] sm:$0x1]
        %v1972 = vld [vmem:[%s410 + $0xcc] sm:$0x1]
        %v1973 = vld [vmem:[%s410 + $0xdc] sm:$0x1]
        %v1974 = vld [vmem:[%s410 + $0xec] sm:$0x1]
        %v1975 = vld [vmem:[%s410 + $0xfc] sm:$0x1]
        %v1976 = vunpack.c.l.bf16 %v1960
        %v1977 = vunpack.c.l.bf16 %v1961
        %v1978 = vunpack.c.l.bf16 %v1962
        %v1979 = vunpack.c.l.bf16 %v1963
        %v1980 = vunpack.c.l.bf16 %v1964
        %v1981 = vunpack.c.l.bf16 %v1965
        %v1982 = vunpack.c.l.bf16 %v1966
        %v1983 = vunpack.c.l.bf16 %v1967
        %v1984 = vunpack.c.l.bf16 %v1968
        %v1985 = vunpack.c.l.bf16 %v1969
        %v1986 = vunpack.c.l.bf16 %v1970
        %v1987 = vunpack.c.l.bf16 %v1971
        %v1988 = vunpack.c.l.bf16 %v1972
        %v1989 = vunpack.c.l.bf16 %v1973
        %v1990 = vunpack.c.l.bf16 %v1974
        %v1991 = vunpack.c.l.bf16 %v1975
        %v1992 = vperm.slane %v895, 5
        %v1993 = vmul.f32 %v1607, %v1992
        %v1994 = vmul.f32 %v1608, %v1992
        %v1995 = vmul.f32 %v1976, %v1992
        %v1996 = vmul.f32 %v1610, %v1992
        %v1997 = vmul.f32 %v1611, %v1992
        %v1998 = vmul.f32 %v1977, %v1992
        %v1999 = vmul.f32 %v1613, %v1992
        %v2000 = vmul.f32 %v1614, %v1992
        %v2001 = vmul.f32 %v1978, %v1992
        %v2002 = vmul.f32 %v1616, %v1992
        %v2003 = vmul.f32 %v1617, %v1992
        %v2004 = vmul.f32 %v1979, %v1992
        %v2005 = vmul.f32 %v1619, %v1992
        %v2006 = vmul.f32 %v1620, %v1992
        %v2007 = vmul.f32 %v1980, %v1992
        %v2008 = vmul.f32 %v1622, %v1992
        %v2009 = vmul.f32 %v1623, %v1992
        %v2010 = vmul.f32 %v1981, %v1992
        %v2011 = vmul.f32 %v1625, %v1992
        %v2012 = vmul.f32 %v1626, %v1992
        %v2013 = vmul.f32 %v1982, %v1992
        %v2014 = vmul.f32 %v1628, %v1992
        %v2015 = vmul.f32 %v1629, %v1992
        %v2016 = vmul.f32 %v1983, %v1992
        %v2017 = vmul.f32 %v1631, %v1992
        %v2018 = vmul.f32 %v1632, %v1992
        %v2019 = vmul.f32 %v1984, %v1992
        %v2020 = vmul.f32 %v1634, %v1992
        %v2021 = vmul.f32 %v1635, %v1992
        %v2022 = vmul.f32 %v1985, %v1992
        %v2023 = vmul.f32 %v1637, %v1992
        %v2024 = vmul.f32 %v1638, %v1992
        %v2025 = vmul.f32 %v1986, %v1992
        %v2026 = vmul.f32 %v1640, %v1992
        %v2027 = vmul.f32 %v1641, %v1992
        %v2028 = vmul.f32 %v1987, %v1992
        %v2029 = vmul.f32 %v1643, %v1992
        %v2030 = vmul.f32 %v1644, %v1992
        %v2031 = vmul.f32 %v1988, %v1992
        %v2032 = vmul.f32 %v1646, %v1992
        %v2033 = vmul.f32 %v1647, %v1992
        %v2034 = vmul.f32 %v1989, %v1992
        %v2035 = vmul.f32 %v1649, %v1992
        %v2036 = vmul.f32 %v1650, %v1992
        %v2037 = vmul.f32 %v1990, %v1992
        %v2038 = vmul.f32 %v1652, %v1992
        %v2039 = vmul.f32 %v1653, %v1992
        %v2040 = vmul.f32 %v1991, %v1992
        %v2089 = vrot.slane %v1993, 2
        %v2090 = vrot.slane %v1994, 2
        %v2091 = vsel %vm1381, %v2089, %v2090
        %v2092 = vrot.slane %v1995, 2
        %v2093 = vsel %vm1381, %v2090, %v2092
        %v2094 = vrot.slane %v1996, 2
        %v2095 = vrot.slane %v1997, 2
        %v2096 = vsel %vm1381, %v2094, %v2095
        %v2097 = vrot.slane %v1998, 2
        %v2098 = vsel %vm1381, %v2095, %v2097
        %v2099 = vrot.slane %v1999, 2
        %v2100 = vrot.slane %v2000, 2
        %v2101 = vsel %vm1381, %v2099, %v2100
        %v2102 = vrot.slane %v2001, 2
        %v2103 = vsel %vm1381, %v2100, %v2102
        %v2104 = vrot.slane %v2002, 2
        %v2105 = vrot.slane %v2003, 2
        %v2106 = vsel %vm1381, %v2104, %v2105
        %v2107 = vrot.slane %v2004, 2
        %v2108 = vsel %vm1381, %v2105, %v2107
        %v2109 = vrot.slane %v2005, 2
        %v2110 = vrot.slane %v2006, 2
        %v2111 = vsel %vm1381, %v2109, %v2110
        %v2112 = vrot.slane %v2007, 2
        %v2113 = vsel %vm1381, %v2110, %v2112
        %v2114 = vrot.slane %v2008, 2
        %v2115 = vrot.slane %v2009, 2
        %v2116 = vsel %vm1381, %v2114, %v2115
        %v2117 = vrot.slane %v2010, 2
        %v2118 = vsel %vm1381, %v2115, %v2117
        %v2119 = vrot.slane %v2011, 2
        %v2120 = vrot.slane %v2012, 2
        %v2121 = vsel %vm1381, %v2119, %v2120
        %v2122 = vrot.slane %v2013, 2
        %v2123 = vsel %vm1381, %v2120, %v2122
        %v2124 = vrot.slane %v2014, 2
        %v2125 = vrot.slane %v2015, 2
        %v2126 = vsel %vm1381, %v2124, %v2125
        %v2127 = vrot.slane %v2016, 2
        %v2128 = vsel %vm1381, %v2125, %v2127
        %v2129 = vrot.slane %v2017, 2
        %v2130 = vrot.slane %v2018, 2
        %v2131 = vsel %vm1381, %v2129, %v2130
        %v2132 = vrot.slane %v2019, 2
        %v2133 = vsel %vm1381, %v2130, %v2132
        %v2134 = vrot.slane %v2020, 2
        %v2135 = vrot.slane %v2021, 2
        %v2136 = vsel %vm1381, %v2134, %v2135
        %v2137 = vrot.slane %v2022, 2
        %v2138 = vsel %vm1381, %v2135, %v2137
        %v2139 = vrot.slane %v2023, 2
        %v2140 = vrot.slane %v2024, 2
        %v2141 = vsel %vm1381, %v2139, %v2140
        %v2142 = vrot.slane %v2025, 2
        %v2143 = vsel %vm1381, %v2140, %v2142
        %v2144 = vrot.slane %v2026, 2
        %v2145 = vrot.slane %v2027, 2
        %v2146 = vsel %vm1381, %v2144, %v2145
        %v2147 = vrot.slane %v2028, 2
        %v2148 = vsel %vm1381, %v2145, %v2147
        %v2149 = vrot.slane %v2029, 2
        %v2150 = vrot.slane %v2030, 2
        %v2151 = vsel %vm1381, %v2149, %v2150
        %v2152 = vrot.slane %v2031, 2
        %v2153 = vsel %vm1381, %v2150, %v2152
        %v2154 = vrot.slane %v2032, 2
        %v2155 = vrot.slane %v2033, 2
        %v2156 = vsel %vm1381, %v2154, %v2155
        %v2157 = vrot.slane %v2034, 2
        %v2158 = vsel %vm1381, %v2155, %v2157
        %v2159 = vrot.slane %v2035, 2
        %v2160 = vrot.slane %v2036, 2
        %v2161 = vsel %vm1381, %v2159, %v2160
        %v2162 = vrot.slane %v2037, 2
        %v2163 = vsel %vm1381, %v2160, %v2162
        %v2164 = vrot.slane %v2038, 2
        %v2165 = vrot.slane %v2039, 2
        %v2166 = vsel %vm1381, %v2164, %v2165
        %v2167 = vrot.slane %v2040, 2
        %v2168 = vsel %vm1381, %v2165, %v2167
        %v2217 = vadd.f32 %v1912, %v2089
        %v2218 = vadd.f32 %v1913, %v2091
        %v2219 = vadd.f32 %v1914, %v2093
        %v2220 = vadd.f32 %v1915, %v2094
        %v2221 = vadd.f32 %v1916, %v2096
        %v2222 = vadd.f32 %v1917, %v2098
        %v2223 = vadd.f32 %v1918, %v2099
        %v2224 = vadd.f32 %v1919, %v2101
        %v2225 = vadd.f32 %v1920, %v2103
        %v2226 = vadd.f32 %v1921, %v2104
        %v2227 = vadd.f32 %v1922, %v2106
        %v2228 = vadd.f32 %v1923, %v2108
        %v2229 = vadd.f32 %v1924, %v2109
        %v2230 = vadd.f32 %v1925, %v2111
        %v2231 = vadd.f32 %v1926, %v2113
        %v2232 = vadd.f32 %v1927, %v2114
        %v2233 = vadd.f32 %v1928, %v2116
        %v2234 = vadd.f32 %v1929, %v2118
        %v2235 = vadd.f32 %v1930, %v2119
        %v2236 = vadd.f32 %v1931, %v2121
        %v2237 = vadd.f32 %v1932, %v2123
        %v2238 = vadd.f32 %v1933, %v2124
        %v2239 = vadd.f32 %v1934, %v2126
        %v2240 = vadd.f32 %v1935, %v2128
        %v2241 = vadd.f32 %v1936, %v2129
        %v2242 = vadd.f32 %v1937, %v2131
        %v2243 = vadd.f32 %v1938, %v2133
        %v2244 = vadd.f32 %v1939, %v2134
        %v2245 = vadd.f32 %v1940, %v2136
        %v2246 = vadd.f32 %v1941, %v2138
        %v2247 = vadd.f32 %v1942, %v2139
        %v2248 = vadd.f32 %v1943, %v2141
        %v2249 = vadd.f32 %v1944, %v2143
        %v2250 = vadd.f32 %v1945, %v2144
        %v2251 = vadd.f32 %v1946, %v2146
        %v2252 = vadd.f32 %v1947, %v2148
        %v2253 = vadd.f32 %v1948, %v2149
        %v2254 = vadd.f32 %v1949, %v2151
        %v2255 = vadd.f32 %v1950, %v2153
        %v2256 = vadd.f32 %v1951, %v2154
        %v2257 = vadd.f32 %v1952, %v2156
        %v2258 = vadd.f32 %v1953, %v2158
        %v2259 = vadd.f32 %v1954, %v2159
        %v2260 = vadd.f32 %v1955, %v2161
        %v2261 = vadd.f32 %v1956, %v2163
        %v2262 = vadd.f32 %v1957, %v2164
        %v2263 = vadd.f32 %v1958, %v2166
        %v2264 = vadd.f32 %v1959, %v2168
        %s2265 = scalar_lea.vmem [#allocation2], 32
        %v2266 = vld [vmem:[%s2265] sm:$0x8]
        %v2267 = vld [vmem:[%s2265 + $0x4] sm:$0xf]
        %v2268 = vld [vmem:[%s2265 + $0x8] sm:$0xf]
        %v2269 = vld [vmem:[%s2265 + $0x10] sm:$0x8]
        %v2270 = vld [vmem:[%s2265 + $0x14] sm:$0xf]
        %v2271 = vld [vmem:[%s2265 + $0x18] sm:$0xf]
        %v2272 = vld [vmem:[%s2265 + $0x20] sm:$0x8]
        %v2273 = vld [vmem:[%s2265 + $0x24] sm:$0xf]
        %v2274 = vld [vmem:[%s2265 + $0x28] sm:$0xf]
        %v2275 = vld [vmem:[%s2265 + $0x30] sm:$0x8]
        %v2276 = vld [vmem:[%s2265 + $0x34] sm:$0xf]
        %v2277 = vld [vmem:[%s2265 + $0x38] sm:$0xf]
        %v2278 = vld [vmem:[%s2265 + $0x40] sm:$0x8]
        %v2279 = vld [vmem:[%s2265 + $0x44] sm:$0xf]
        %v2280 = vld [vmem:[%s2265 + $0x48] sm:$0xf]
        %v2281 = vld [vmem:[%s2265 + $0x50] sm:$0x8]
        %v2282 = vld [vmem:[%s2265 + $0x54] sm:$0xf]
        %v2283 = vld [vmem:[%s2265 + $0x58] sm:$0xf]
        %v2284 = vld [vmem:[%s2265 + $0x60] sm:$0x8]
        %v2285 = vld [vmem:[%s2265 + $0x64] sm:$0xf]
        %v2286 = vld [vmem:[%s2265 + $0x68] sm:$0xf]
        %v2287 = vld [vmem:[%s2265 + $0x70] sm:$0x8]
        %v2288 = vld [vmem:[%s2265 + $0x74] sm:$0xf]
        %v2289 = vld [vmem:[%s2265 + $0x78] sm:$0xf]
        %v2290 = vld [vmem:[%s2265 + $0x80] sm:$0x8]
        %v2291 = vld [vmem:[%s2265 + $0x84] sm:$0xf]
        %v2292 = vld [vmem:[%s2265 + $0x88] sm:$0xf]
        %v2293 = vld [vmem:[%s2265 + $0x90] sm:$0x8]
        %v2294 = vld [vmem:[%s2265 + $0x94] sm:$0xf]
        %v2295 = vld [vmem:[%s2265 + $0x98] sm:$0xf]
        %v2296 = vld [vmem:[%s2265 + $0xa0] sm:$0x8]
        %v2297 = vld [vmem:[%s2265 + $0xa4] sm:$0xf]
        %v2298 = vld [vmem:[%s2265 + $0xa8] sm:$0xf]
        %v2299 = vld [vmem:[%s2265 + $0xb0] sm:$0x8]
        %v2300 = vld [vmem:[%s2265 + $0xb4] sm:$0xf]
        %v2301 = vld [vmem:[%s2265 + $0xb8] sm:$0xf]
        %v2302 = vld [vmem:[%s2265 + $0xc0] sm:$0x8]
        %v2303 = vld [vmem:[%s2265 + $0xc4] sm:$0xf]
        %v2304 = vld [vmem:[%s2265 + $0xc8] sm:$0xf]
        %v2305 = vld [vmem:[%s2265 + $0xd0] sm:$0x8]
        %v2306 = vld [vmem:[%s2265 + $0xd4] sm:$0xf]
        %v2307 = vld [vmem:[%s2265 + $0xd8] sm:$0xf]
        %v2308 = vld [vmem:[%s2265 + $0xe0] sm:$0x8]
        %v2309 = vld [vmem:[%s2265 + $0xe4] sm:$0xf]
        %v2310 = vld [vmem:[%s2265 + $0xe8] sm:$0xf]
        %v2311 = vld [vmem:[%s2265 + $0xf0] sm:$0x8]
        %v2312 = vld [vmem:[%s2265 + $0xf4] sm:$0xf]
        %v2313 = vld [vmem:[%s2265 + $0xf8] sm:$0xf]
        %v2314 = vunpack.c.l.bf16 %v2266
        %v2315 = vunpack.c.l.bf16 %v2267
        %v2316 = vunpack.c.l.bf16 %v2268
        %v2317 = vunpack.c.l.bf16 %v2269
        %v2318 = vunpack.c.l.bf16 %v2270
        %v2319 = vunpack.c.l.bf16 %v2271
        %v2320 = vunpack.c.l.bf16 %v2272
        %v2321 = vunpack.c.l.bf16 %v2273
        %v2322 = vunpack.c.l.bf16 %v2274
        %v2323 = vunpack.c.l.bf16 %v2275
        %v2324 = vunpack.c.l.bf16 %v2276
        %v2325 = vunpack.c.l.bf16 %v2277
        %v2326 = vunpack.c.l.bf16 %v2278
        %v2327 = vunpack.c.l.bf16 %v2279
        %v2328 = vunpack.c.l.bf16 %v2280
        %v2329 = vunpack.c.l.bf16 %v2281
        %v2330 = vunpack.c.l.bf16 %v2282
        %v2331 = vunpack.c.l.bf16 %v2283
        %v2332 = vunpack.c.l.bf16 %v2284
        %v2333 = vunpack.c.l.bf16 %v2285
        %v2334 = vunpack.c.l.bf16 %v2286
        %v2335 = vunpack.c.l.bf16 %v2287
        %v2336 = vunpack.c.l.bf16 %v2288
        %v2337 = vunpack.c.l.bf16 %v2289
        %v2338 = vunpack.c.l.bf16 %v2290
        %v2339 = vunpack.c.l.bf16 %v2291
        %v2340 = vunpack.c.l.bf16 %v2292
        %v2341 = vunpack.c.l.bf16 %v2293
        %v2342 = vunpack.c.l.bf16 %v2294
        %v2343 = vunpack.c.l.bf16 %v2295
        %v2344 = vunpack.c.l.bf16 %v2296
        %v2345 = vunpack.c.l.bf16 %v2297
        %v2346 = vunpack.c.l.bf16 %v2298
        %v2347 = vunpack.c.l.bf16 %v2299
        %v2348 = vunpack.c.l.bf16 %v2300
        %v2349 = vunpack.c.l.bf16 %v2301
        %v2350 = vunpack.c.l.bf16 %v2302
        %v2351 = vunpack.c.l.bf16 %v2303
        %v2352 = vunpack.c.l.bf16 %v2304
        %v2353 = vunpack.c.l.bf16 %v2305
        %v2354 = vunpack.c.l.bf16 %v2306
        %v2355 = vunpack.c.l.bf16 %v2307
        %v2356 = vunpack.c.l.bf16 %v2308
        %v2357 = vunpack.c.l.bf16 %v2309
        %v2358 = vunpack.c.l.bf16 %v2310
        %v2359 = vunpack.c.l.bf16 %v2311
        %v2360 = vunpack.c.l.bf16 %v2312
        %v2361 = vunpack.c.l.bf16 %v2313
        %v2362 = vperm.slane %v895, 6
        %v2363 = vmul.f32 %v2314, %v2362
        %v2364 = vmul.f32 %v2315, %v2362
        %v2365 = vmul.f32 %v2316, %v2362
        %v2366 = vmul.f32 %v2317, %v2362
        %v2367 = vmul.f32 %v2318, %v2362
        %v2368 = vmul.f32 %v2319, %v2362
        %v2369 = vmul.f32 %v2320, %v2362
        %v2370 = vmul.f32 %v2321, %v2362
        %v2371 = vmul.f32 %v2322, %v2362
        %v2372 = vmul.f32 %v2323, %v2362
        %v2373 = vmul.f32 %v2324, %v2362
        %v2374 = vmul.f32 %v2325, %v2362
        %v2375 = vmul.f32 %v2326, %v2362
        %v2376 = vmul.f32 %v2327, %v2362
        %v2377 = vmul.f32 %v2328, %v2362
        %v2378 = vmul.f32 %v2329, %v2362
        %v2379 = vmul.f32 %v2330, %v2362
        %v2380 = vmul.f32 %v2331, %v2362
        %v2381 = vmul.f32 %v2332, %v2362
        %v2382 = vmul.f32 %v2333, %v2362
        %v2383 = vmul.f32 %v2334, %v2362
        %v2384 = vmul.f32 %v2335, %v2362
        %v2385 = vmul.f32 %v2336, %v2362
        %v2386 = vmul.f32 %v2337, %v2362
        %v2387 = vmul.f32 %v2338, %v2362
        %v2388 = vmul.f32 %v2339, %v2362
        %v2389 = vmul.f32 %v2340, %v2362
        %v2390 = vmul.f32 %v2341, %v2362
        %v2391 = vmul.f32 %v2342, %v2362
        %v2392 = vmul.f32 %v2343, %v2362
        %v2393 = vmul.f32 %v2344, %v2362
        %v2394 = vmul.f32 %v2345, %v2362
        %v2395 = vmul.f32 %v2346, %v2362
        %v2396 = vmul.f32 %v2347, %v2362
        %v2397 = vmul.f32 %v2348, %v2362
        %v2398 = vmul.f32 %v2349, %v2362
        %v2399 = vmul.f32 %v2350, %v2362
        %v2400 = vmul.f32 %v2351, %v2362
        %v2401 = vmul.f32 %v2352, %v2362
        %v2402 = vmul.f32 %v2353, %v2362
        %v2403 = vmul.f32 %v2354, %v2362
        %v2404 = vmul.f32 %v2355, %v2362
        %v2405 = vmul.f32 %v2356, %v2362
        %v2406 = vmul.f32 %v2357, %v2362
        %v2407 = vmul.f32 %v2358, %v2362
        %v2408 = vmul.f32 %v2359, %v2362
        %v2409 = vmul.f32 %v2360, %v2362
        %v2410 = vmul.f32 %v2361, %v2362
        %v2411 = vadd.f32 %v2217, %v2363
        %v2412 = vadd.f32 %v2218, %v2364
        %v2413 = vadd.f32 %v2219, %v2365
        %v2414 = vadd.f32 %v2220, %v2366
        %v2415 = vadd.f32 %v2221, %v2367
        %v2416 = vadd.f32 %v2222, %v2368
        %v2417 = vadd.f32 %v2223, %v2369
        %v2418 = vadd.f32 %v2224, %v2370
        %v2419 = vadd.f32 %v2225, %v2371
        %v2420 = vadd.f32 %v2226, %v2372
        %v2421 = vadd.f32 %v2227, %v2373
        %v2422 = vadd.f32 %v2228, %v2374
        %v2423 = vadd.f32 %v2229, %v2375
        %v2424 = vadd.f32 %v2230, %v2376
        %v2425 = vadd.f32 %v2231, %v2377
        %v2426 = vadd.f32 %v2232, %v2378
        %v2427 = vadd.f32 %v2233, %v2379
        %v2428 = vadd.f32 %v2234, %v2380
        %v2429 = vadd.f32 %v2235, %v2381
        %v2430 = vadd.f32 %v2236, %v2382
        %v2431 = vadd.f32 %v2237, %v2383
        %v2432 = vadd.f32 %v2238, %v2384
        %v2433 = vadd.f32 %v2239, %v2385
        %v2434 = vadd.f32 %v2240, %v2386
        %v2435 = vadd.f32 %v2241, %v2387
        %v2436 = vadd.f32 %v2242, %v2388
        %v2437 = vadd.f32 %v2243, %v2389
        %v2438 = vadd.f32 %v2244, %v2390
        %v2439 = vadd.f32 %v2245, %v2391
        %v2440 = vadd.f32 %v2246, %v2392
        %v2441 = vadd.f32 %v2247, %v2393
        %v2442 = vadd.f32 %v2248, %v2394
        %v2443 = vadd.f32 %v2249, %v2395
        %v2444 = vadd.f32 %v2250, %v2396
        %v2445 = vadd.f32 %v2251, %v2397
        %v2446 = vadd.f32 %v2252, %v2398
        %v2447 = vadd.f32 %v2253, %v2399
        %v2448 = vadd.f32 %v2254, %v2400
        %v2449 = vadd.f32 %v2255, %v2401
        %v2450 = vadd.f32 %v2256, %v2402
        %v2451 = vadd.f32 %v2257, %v2403
        %v2452 = vadd.f32 %v2258, %v2404
        %v2453 = vadd.f32 %v2259, %v2405
        %v2454 = vadd.f32 %v2260, %v2406
        %v2455 = vadd.f32 %v2261, %v2407
        %v2456 = vadd.f32 %v2262, %v2408
        %v2457 = vadd.f32 %v2263, %v2409
        %v2458 = vadd.f32 %v2264, %v2410
        %v2459 = vperm.slane %v895, 7
        %v2460 = vmul.f32 %v2315, %v2459
        %v2461 = vmul.f32 %v2316, %v2459
        %v2462 = vmul.f32 %v2318, %v2459
        %v2463 = vmul.f32 %v2319, %v2459
        %v2464 = vmul.f32 %v2321, %v2459
        %v2465 = vmul.f32 %v2322, %v2459
        %v2466 = vmul.f32 %v2324, %v2459
        %v2467 = vmul.f32 %v2325, %v2459
        %v2468 = vmul.f32 %v2327, %v2459
        %v2469 = vmul.f32 %v2328, %v2459
        %v2470 = vmul.f32 %v2330, %v2459
        %v2471 = vmul.f32 %v2331, %v2459
        %v2472 = vmul.f32 %v2333, %v2459
        %v2473 = vmul.f32 %v2334, %v2459
        %v2474 = vmul.f32 %v2336, %v2459
        %v2475 = vmul.f32 %v2337, %v2459
        %v2476 = vmul.f32 %v2339, %v2459
        %v2477 = vmul.f32 %v2340, %v2459
        %v2478 = vmul.f32 %v2342, %v2459
        %v2479 = vmul.f32 %v2343, %v2459
        %v2480 = vmul.f32 %v2345, %v2459
        %v2481 = vmul.f32 %v2346, %v2459
        %v2482 = vmul.f32 %v2348, %v2459
        %v2483 = vmul.f32 %v2349, %v2459
        %v2484 = vmul.f32 %v2351, %v2459
        %v2485 = vmul.f32 %v2352, %v2459
        %v2486 = vmul.f32 %v2354, %v2459
        %v2487 = vmul.f32 %v2355, %v2459
        %v2488 = vmul.f32 %v2357, %v2459
        %v2489 = vmul.f32 %v2358, %v2459
        %v2490 = vmul.f32 %v2360, %v2459
        %v2491 = vmul.f32 %v2361, %v2459
        %v2524 = vrot.slane %v2460, 1
        %v2525 = vrot.slane %v2461, 1
        %v2526 = vsel %vm1107, %v2524, %v2525
        %v2527 = vrot.slane %v2462, 1
        %v2528 = vrot.slane %v2463, 1
        %v2529 = vsel %vm1107, %v2527, %v2528
        %v2530 = vrot.slane %v2464, 1
        %v2531 = vrot.slane %v2465, 1
        %v2532 = vsel %vm1107, %v2530, %v2531
        %v2533 = vrot.slane %v2466, 1
        %v2534 = vrot.slane %v2467, 1
        %v2535 = vsel %vm1107, %v2533, %v2534
        %v2536 = vrot.slane %v2468, 1
        %v2537 = vrot.slane %v2469, 1
        %v2538 = vsel %vm1107, %v2536, %v2537
        %v2539 = vrot.slane %v2470, 1
        %v2540 = vrot.slane %v2471, 1
        %v2541 = vsel %vm1107, %v2539, %v2540
        %v2542 = vrot.slane %v2472, 1
        %v2543 = vrot.slane %v2473, 1
        %v2544 = vsel %vm1107, %v2542, %v2543
        %v2545 = vrot.slane %v2474, 1
        %v2546 = vrot.slane %v2475, 1
        %v2547 = vsel %vm1107, %v2545, %v2546
        %v2548 = vrot.slane %v2476, 1
        %v2549 = vrot.slane %v2477, 1
        %v2550 = vsel %vm1107, %v2548, %v2549
        %v2551 = vrot.slane %v2478, 1
        %v2552 = vrot.slane %v2479, 1
        %v2553 = vsel %vm1107, %v2551, %v2552
        %v2554 = vrot.slane %v2480, 1
        %v2555 = vrot.slane %v2481, 1
        %v2556 = vsel %vm1107, %v2554, %v2555
        %v2557 = vrot.slane %v2482, 1
        %v2558 = vrot.slane %v2483, 1
        %v2559 = vsel %vm1107, %v2557, %v2558
        %v2560 = vrot.slane %v2484, 1
        %v2561 = vrot.slane %v2485, 1
        %v2562 = vsel %vm1107, %v2560, %v2561
        %v2563 = vrot.slane %v2486, 1
        %v2564 = vrot.slane %v2487, 1
        %v2565 = vsel %vm1107, %v2563, %v2564
        %v2566 = vrot.slane %v2488, 1
        %v2567 = vrot.slane %v2489, 1
        %v2568 = vsel %vm1107, %v2566, %v2567
        %v2569 = vrot.slane %v2490, 1
        %v2570 = vrot.slane %v2491, 1
        %v2571 = vsel %vm1107, %v2569, %v2570
        %v2620 = vadd.f32 %v2411, %v2524
        %v2621 = vadd.f32 %v2412, %v2526
        %v2622 = vadd.f32 %v2413, %v2525
        %v2623 = vadd.f32 %v2414, %v2527
        %v2624 = vadd.f32 %v2415, %v2529
        %v2625 = vadd.f32 %v2416, %v2528
        %v2626 = vadd.f32 %v2417, %v2530
        %v2627 = vadd.f32 %v2418, %v2532
        %v2628 = vadd.f32 %v2419, %v2531
        %v2629 = vadd.f32 %v2420, %v2533
        %v2630 = vadd.f32 %v2421, %v2535
        %v2631 = vadd.f32 %v2422, %v2534
        %v2632 = vadd.f32 %v2423, %v2536
        %v2633 = vadd.f32 %v2424, %v2538
        %v2634 = vadd.f32 %v2425, %v2537
        %v2635 = vadd.f32 %v2426, %v2539
        %v2636 = vadd.f32 %v2427, %v2541
        %v2637 = vadd.f32 %v2428, %v2540
        %v2638 = vadd.f32 %v2429, %v2542
        %v2639 = vadd.f32 %v2430, %v2544
        %v2640 = vadd.f32 %v2431, %v2543
        %v2641 = vadd.f32 %v2432, %v2545
        %v2642 = vadd.f32 %v2433, %v2547
        %v2643 = vadd.f32 %v2434, %v2546
        %v2644 = vadd.f32 %v2435, %v2548
        %v2645 = vadd.f32 %v2436, %v2550
        %v2646 = vadd.f32 %v2437, %v2549
        %v2647 = vadd.f32 %v2438, %v2551
        %v2648 = vadd.f32 %v2439, %v2553
        %v2649 = vadd.f32 %v2440, %v2552
        %v2650 = vadd.f32 %v2441, %v2554
        %v2651 = vadd.f32 %v2442, %v2556
        %v2652 = vadd.f32 %v2443, %v2555
        %v2653 = vadd.f32 %v2444, %v2557
        %v2654 = vadd.f32 %v2445, %v2559
        %v2655 = vadd.f32 %v2446, %v2558
        %v2656 = vadd.f32 %v2447, %v2560
        %v2657 = vadd.f32 %v2448, %v2562
        %v2658 = vadd.f32 %v2449, %v2561
        %v2659 = vadd.f32 %v2450, %v2563
        %v2660 = vadd.f32 %v2451, %v2565
        %v2661 = vadd.f32 %v2452, %v2564
        %v2662 = vadd.f32 %v2453, %v2566
        %v2663 = vadd.f32 %v2454, %v2568
        %v2664 = vadd.f32 %v2455, %v2567
        %v2665 = vadd.f32 %v2456, %v2569
        %v2666 = vadd.f32 %v2457, %v2571
        %v2667 = vadd.f32 %v2458, %v2570
        %v2668 = vld [vmem:[%s2265 + $0xc] sm:$0x1]
        %v2669 = vld [vmem:[%s2265 + $0x1c] sm:$0x1]
        %v2670 = vld [vmem:[%s2265 + $0x2c] sm:$0x1]
        %v2671 = vld [vmem:[%s2265 + $0x3c] sm:$0x1]
        %v2672 = vld [vmem:[%s2265 + $0x4c] sm:$0x1]
        %v2673 = vld [vmem:[%s2265 + $0x5c] sm:$0x1]
        %v2674 = vld [vmem:[%s2265 + $0x6c] sm:$0x1]
        %v2675 = vld [vmem:[%s2265 + $0x7c] sm:$0x1]
        %v2676 = vld [vmem:[%s2265 + $0x8c] sm:$0x1]
        %v2677 = vld [vmem:[%s2265 + $0x9c] sm:$0x1]
        %v2678 = vld [vmem:[%s2265 + $0xac] sm:$0x1]
        %v2679 = vld [vmem:[%s2265 + $0xbc] sm:$0x1]
        %v2680 = vld [vmem:[%s2265 + $0xcc] sm:$0x1]
        %v2681 = vld [vmem:[%s2265 + $0xdc] sm:$0x1]
        %v2682 = vld [vmem:[%s2265 + $0xec] sm:$0x1]
        %v2683 = vld [vmem:[%s2265 + $0xfc] sm:$0x1]
        %v2684 = vunpack.c.l.bf16 %v2668
        %v2685 = vunpack.c.l.bf16 %v2669
        %v2686 = vunpack.c.l.bf16 %v2670
        %v2687 = vunpack.c.l.bf16 %v2671
        %v2688 = vunpack.c.l.bf16 %v2672
        %v2689 = vunpack.c.l.bf16 %v2673
        %v2690 = vunpack.c.l.bf16 %v2674
        %v2691 = vunpack.c.l.bf16 %v2675
        %v2692 = vunpack.c.l.bf16 %v2676
        %v2693 = vunpack.c.l.bf16 %v2677
        %v2694 = vunpack.c.l.bf16 %v2678
        %v2695 = vunpack.c.l.bf16 %v2679
        %v2696 = vunpack.c.l.bf16 %v2680
        %v2697 = vunpack.c.l.bf16 %v2681
        %v2698 = vunpack.c.l.bf16 %v2682
        %v2699 = vunpack.c.l.bf16 %v2683
        %v2700 = vperm.slane %v896, 0
        %v2701 = vmul.f32 %v2315, %v2700
        %v2702 = vmul.f32 %v2316, %v2700
        %v2703 = vmul.f32 %v2684, %v2700
        %v2704 = vmul.f32 %v2318, %v2700
        %v2705 = vmul.f32 %v2319, %v2700
        %v2706 = vmul.f32 %v2685, %v2700
        %v2707 = vmul.f32 %v2321, %v2700
        %v2708 = vmul.f32 %v2322, %v2700
        %v2709 = vmul.f32 %v2686, %v2700
        %v2710 = vmul.f32 %v2324, %v2700
        %v2711 = vmul.f32 %v2325, %v2700
        %v2712 = vmul.f32 %v2687, %v2700
        %v2713 = vmul.f32 %v2327, %v2700
        %v2714 = vmul.f32 %v2328, %v2700
        %v2715 = vmul.f32 %v2688, %v2700
        %v2716 = vmul.f32 %v2330, %v2700
        %v2717 = vmul.f32 %v2331, %v2700
        %v2718 = vmul.f32 %v2689, %v2700
        %v2719 = vmul.f32 %v2333, %v2700
        %v2720 = vmul.f32 %v2334, %v2700
        %v2721 = vmul.f32 %v2690, %v2700
        %v2722 = vmul.f32 %v2336, %v2700
        %v2723 = vmul.f32 %v2337, %v2700
        %v2724 = vmul.f32 %v2691, %v2700
        %v2725 = vmul.f32 %v2339, %v2700
        %v2726 = vmul.f32 %v2340, %v2700
        %v2727 = vmul.f32 %v2692, %v2700
        %v2728 = vmul.f32 %v2342, %v2700
        %v2729 = vmul.f32 %v2343, %v2700
        %v2730 = vmul.f32 %v2693, %v2700
        %v2731 = vmul.f32 %v2345, %v2700
        %v2732 = vmul.f32 %v2346, %v2700
        %v2733 = vmul.f32 %v2694, %v2700
        %v2734 = vmul.f32 %v2348, %v2700
        %v2735 = vmul.f32 %v2349, %v2700
        %v2736 = vmul.f32 %v2695, %v2700
        %v2737 = vmul.f32 %v2351, %v2700
        %v2738 = vmul.f32 %v2352, %v2700
        %v2739 = vmul.f32 %v2696, %v2700
        %v2740 = vmul.f32 %v2354, %v2700
        %v2741 = vmul.f32 %v2355, %v2700
        %v2742 = vmul.f32 %v2697, %v2700
        %v2743 = vmul.f32 %v2357, %v2700
        %v2744 = vmul.f32 %v2358, %v2700
        %v2745 = vmul.f32 %v2698, %v2700
        %v2746 = vmul.f32 %v2360, %v2700
        %v2747 = vmul.f32 %v2361, %v2700
        %v2748 = vmul.f32 %v2699, %v2700
        %v2797 = vrot.slane %v2701, 2
        %v2798 = vrot.slane %v2702, 2
        %v2799 = vsel %vm1381, %v2797, %v2798
        %v2800 = vrot.slane %v2703, 2
        %v2801 = vsel %vm1381, %v2798, %v2800
        %v2802 = vrot.slane %v2704, 2
        %v2803 = vrot.slane %v2705, 2
        %v2804 = vsel %vm1381, %v2802, %v2803
        %v2805 = vrot.slane %v2706, 2
        %v2806 = vsel %vm1381, %v2803, %v2805
        %v2807 = vrot.slane %v2707, 2
        %v2808 = vrot.slane %v2708, 2
        %v2809 = vsel %vm1381, %v2807, %v2808
        %v2810 = vrot.slane %v2709, 2
        %v2811 = vsel %vm1381, %v2808, %v2810
        %v2812 = vrot.slane %v2710, 2
        %v2813 = vrot.slane %v2711, 2
        %v2814 = vsel %vm1381, %v2812, %v2813
        %v2815 = vrot.slane %v2712, 2
        %v2816 = vsel %vm1381, %v2813, %v2815
        %v2817 = vrot.slane %v2713, 2
        %v2818 = vrot.slane %v2714, 2
        %v2819 = vsel %vm1381, %v2817, %v2818
        %v2820 = vrot.slane %v2715, 2
        %v2821 = vsel %vm1381, %v2818, %v2820
        %v2822 = vrot.slane %v2716, 2
        %v2823 = vrot.slane %v2717, 2
        %v2824 = vsel %vm1381, %v2822, %v2823
        %v2825 = vrot.slane %v2718, 2
        %v2826 = vsel %vm1381, %v2823, %v2825
        %v2827 = vrot.slane %v2719, 2
        %v2828 = vrot.slane %v2720, 2
        %v2829 = vsel %vm1381, %v2827, %v2828
        %v2830 = vrot.slane %v2721, 2
        %v2831 = vsel %vm1381, %v2828, %v2830
        %v2832 = vrot.slane %v2722, 2
        %v2833 = vrot.slane %v2723, 2
        %v2834 = vsel %vm1381, %v2832, %v2833
        %v2835 = vrot.slane %v2724, 2
        %v2836 = vsel %vm1381, %v2833, %v2835
        %v2837 = vrot.slane %v2725, 2
        %v2838 = vrot.slane %v2726, 2
        %v2839 = vsel %vm1381, %v2837, %v2838
        %v2840 = vrot.slane %v2727, 2
        %v2841 = vsel %vm1381, %v2838, %v2840
        %v2842 = vrot.slane %v2728, 2
        %v2843 = vrot.slane %v2729, 2
        %v2844 = vsel %vm1381, %v2842, %v2843
        %v2845 = vrot.slane %v2730, 2
        %v2846 = vsel %vm1381, %v2843, %v2845
        %v2847 = vrot.slane %v2731, 2
        %v2848 = vrot.slane %v2732, 2
        %v2849 = vsel %vm1381, %v2847, %v2848
        %v2850 = vrot.slane %v2733, 2
        %v2851 = vsel %vm1381, %v2848, %v2850
        %v2852 = vrot.slane %v2734, 2
        %v2853 = vrot.slane %v2735, 2
        %v2854 = vsel %vm1381, %v2852, %v2853
        %v2855 = vrot.slane %v2736, 2
        %v2856 = vsel %vm1381, %v2853, %v2855
        %v2857 = vrot.slane %v2737, 2
        %v2858 = vrot.slane %v2738, 2
        %v2859 = vsel %vm1381, %v2857, %v2858
        %v2860 = vrot.slane %v2739, 2
        %v2861 = vsel %vm1381, %v2858, %v2860
        %v2862 = vrot.slane %v2740, 2
        %v2863 = vrot.slane %v2741, 2
        %v2864 = vsel %vm1381, %v2862, %v2863
        %v2865 = vrot.slane %v2742, 2
        %v2866 = vsel %vm1381, %v2863, %v2865
        %v2867 = vrot.slane %v2743, 2
        %v2868 = vrot.slane %v2744, 2
        %v2869 = vsel %vm1381, %v2867, %v2868
        %v2870 = vrot.slane %v2745, 2
        %v2871 = vsel %vm1381, %v2868, %v2870
        %v2872 = vrot.slane %v2746, 2
        %v2873 = vrot.slane %v2747, 2
        %v2874 = vsel %vm1381, %v2872, %v2873
        %v2875 = vrot.slane %v2748, 2
        %v2876 = vsel %vm1381, %v2873, %v2875
        %v2925 = vadd.f32 %v2620, %v2797
        %v2926 = vadd.f32 %v2621, %v2799
        %v2927 = vadd.f32 %v2622, %v2801
        %v2928 = vadd.f32 %v2623, %v2802
        %v2929 = vadd.f32 %v2624, %v2804
        %v2930 = vadd.f32 %v2625, %v2806
        %v2931 = vadd.f32 %v2626, %v2807
        %v2932 = vadd.f32 %v2627, %v2809
        %v2933 = vadd.f32 %v2628, %v2811
        %v2934 = vadd.f32 %v2629, %v2812
        %v2935 = vadd.f32 %v2630, %v2814
        %v2936 = vadd.f32 %v2631, %v2816
        %v2937 = vadd.f32 %v2632, %v2817
        %v2938 = vadd.f32 %v2633, %v2819
        %v2939 = vadd.f32 %v2634, %v2821
        %v2940 = vadd.f32 %v2635, %v2822
        %v2941 = vadd.f32 %v2636, %v2824
        %v2942 = vadd.f32 %v2637, %v2826
        %v2943 = vadd.f32 %v2638, %v2827
        %v2944 = vadd.f32 %v2639, %v2829
        %v2945 = vadd.f32 %v2640, %v2831
        %v2946 = vadd.f32 %v2641, %v2832
        %v2947 = vadd.f32 %v2642, %v2834
        %v2948 = vadd.f32 %v2643, %v2836
        %v2949 = vadd.f32 %v2644, %v2837
        %v2950 = vadd.f32 %v2645, %v2839
        %v2951 = vadd.f32 %v2646, %v2841
        %v2952 = vadd.f32 %v2647, %v2842
        %v2953 = vadd.f32 %v2648, %v2844
        %v2954 = vadd.f32 %v2649, %v2846
        %v2955 = vadd.f32 %v2650, %v2847
        %v2956 = vadd.f32 %v2651, %v2849
        %v2957 = vadd.f32 %v2652, %v2851
        %v2958 = vadd.f32 %v2653, %v2852
        %v2959 = vadd.f32 %v2654, %v2854
        %v2960 = vadd.f32 %v2655, %v2856
        %v2961 = vadd.f32 %v2656, %v2857
        %v2962 = vadd.f32 %v2657, %v2859
        %v2963 = vadd.f32 %v2658, %v2861
        %v2964 = vadd.f32 %v2659, %v2862
        %v2965 = vadd.f32 %v2660, %v2864
        %v2966 = vadd.f32 %v2661, %v2866
        %v2967 = vadd.f32 %v2662, %v2867
        %v2968 = vadd.f32 %v2663, %v2869
        %v2969 = vadd.f32 %v2664, %v2871
        %v2970 = vadd.f32 %v2665, %v2872
        %v2971 = vadd.f32 %v2666, %v2874
        %v2972 = vadd.f32 %v2667, %v2876
        %v2973 = vld [vmem:[%s6] sm:$0x1]
        %v2975 = vperm.slane %v2973, 0
        %v2977 = vadd.f32 %v2925, %v2975
        %v2978 = vadd.f32 %v2926, %v2975
        %v2979 = vadd.f32 %v2927, %v2975
        %v2980 = vadd.f32 %v2928, %v2975
        %v2981 = vadd.f32 %v2929, %v2975
        %v2982 = vadd.f32 %v2930, %v2975
        %v2983 = vadd.f32 %v2931, %v2975
        %v2984 = vadd.f32 %v2932, %v2975
        %v2985 = vadd.f32 %v2933, %v2975
        %v2986 = vadd.f32 %v2934, %v2975
        %v2987 = vadd.f32 %v2935, %v2975
        %v2988 = vadd.f32 %v2936, %v2975
        %v2989 = vadd.f32 %v2937, %v2975
        %v2990 = vadd.f32 %v2938, %v2975
        %v2991 = vadd.f32 %v2939, %v2975
        %v2992 = vadd.f32 %v2940, %v2975
        %v2993 = vadd.f32 %v2941, %v2975
        %v2994 = vadd.f32 %v2942, %v2975
        %v2995 = vadd.f32 %v2943, %v2975
        %v2996 = vadd.f32 %v2944, %v2975
        %v2997 = vadd.f32 %v2945, %v2975
        %v2998 = vadd.f32 %v2946, %v2975
        %v2999 = vadd.f32 %v2947, %v2975
        %v3000 = vadd.f32 %v2948, %v2975
        %v3001 = vadd.f32 %v2949, %v2975
        %v3002 = vadd.f32 %v2950, %v2975
        %v3003 = vadd.f32 %v2951, %v2975
        %v3004 = vadd.f32 %v2952, %v2975
        %v3005 = vadd.f32 %v2953, %v2975
        %v3006 = vadd.f32 %v2954, %v2975
        %v3007 = vadd.f32 %v2955, %v2975
        %v3008 = vadd.f32 %v2956, %v2975
        %v3009 = vadd.f32 %v2957, %v2975
        %v3010 = vadd.f32 %v2958, %v2975
        %v3011 = vadd.f32 %v2959, %v2975
        %v3012 = vadd.f32 %v2960, %v2975
        %v3013 = vadd.f32 %v2961, %v2975
        %v3014 = vadd.f32 %v2962, %v2975
        %v3015 = vadd.f32 %v2963, %v2975
        %v3016 = vadd.f32 %v2964, %v2975
        %v3017 = vadd.f32 %v2965, %v2975
        %v3018 = vadd.f32 %v2966, %v2975
        %v3019 = vadd.f32 %v2967, %v2975
        %v3020 = vadd.f32 %v2968, %v2975
        %v3021 = vadd.f32 %v2969, %v2975
        %v3022 = vadd.f32 %v2970, %v2975
        %v3023 = vadd.f32 %v2971, %v2975
        %v3024 = vadd.f32 %v2972, %v2975
        %v3025 = vmax.f32 %v2977, 0.0
        %v3026 = vmax.f32 %v2978, 0.0
        %v3027 = vmax.f32 %v2979, 0.0
        %v3028 = vmax.f32 %v2980, 0.0
        %v3029 = vmax.f32 %v2981, 0.0
        %v3030 = vmax.f32 %v2982, 0.0
        %v3031 = vmax.f32 %v2983, 0.0
        %v3032 = vmax.f32 %v2984, 0.0
        %v3033 = vmax.f32 %v2985, 0.0
        %v3034 = vmax.f32 %v2986, 0.0
        %v3035 = vmax.f32 %v2987, 0.0
        %v3036 = vmax.f32 %v2988, 0.0
        %v3037 = vmax.f32 %v2989, 0.0
        %v3038 = vmax.f32 %v2990, 0.0
        %v3039 = vmax.f32 %v2991, 0.0
        %v3040 = vmax.f32 %v2992, 0.0
        %v3041 = vmax.f32 %v2993, 0.0
        %v3042 = vmax.f32 %v2994, 0.0
        %v3043 = vmax.f32 %v2995, 0.0
        %v3044 = vmax.f32 %v2996, 0.0
        %v3045 = vmax.f32 %v2997, 0.0
        %v3046 = vmax.f32 %v2998, 0.0
        %v3047 = vmax.f32 %v2999, 0.0
        %v3048 = vmax.f32 %v3000, 0.0
        %v3049 = vmax.f32 %v3001, 0.0
        %v3050 = vmax.f32 %v3002, 0.0
        %v3051 = vmax.f32 %v3003, 0.0
        %v3052 = vmax.f32 %v3004, 0.0
        %v3053 = vmax.f32 %v3005, 0.0
        %v3054 = vmax.f32 %v3006, 0.0
        %v3055 = vmax.f32 %v3007, 0.0
        %v3056 = vmax.f32 %v3008, 0.0
        %v3057 = vmax.f32 %v3009, 0.0
        %v3058 = vmax.f32 %v3010, 0.0
        %v3059 = vmax.f32 %v3011, 0.0
        %v3060 = vmax.f32 %v3012, 0.0
        %v3061 = vmax.f32 %v3013, 0.0
        %v3062 = vmax.f32 %v3014, 0.0
        %v3063 = vmax.f32 %v3015, 0.0
        %v3064 = vmax.f32 %v3016, 0.0
        %v3065 = vmax.f32 %v3017, 0.0
        %v3066 = vmax.f32 %v3018, 0.0
        %v3067 = vmax.f32 %v3019, 0.0
        %v3068 = vmax.f32 %v3020, 0.0
        %v3069 = vmax.f32 %v3021, 0.0
        %v3070 = vmax.f32 %v3022, 0.0
        %v3071 = vmax.f32 %v3023, 0.0
        %v3072 = vmax.f32 %v3024, 0.0
        %v3073 = vpack.c.bf16 %v3025, %v3025
        %v3074 = vpack.c.bf16 %v3026, %v3026
        %v3075 = vpack.c.bf16 %v3027, %v3027
        %v3076 = vpack.c.bf16 %v3028, %v3028
        %v3077 = vpack.c.bf16 %v3029, %v3029
        %v3078 = vpack.c.bf16 %v3030, %v3030
        %v3079 = vpack.c.bf16 %v3031, %v3031
        %v3080 = vpack.c.bf16 %v3032, %v3032
        %v3081 = vpack.c.bf16 %v3033, %v3033
        %v3082 = vpack.c.bf16 %v3034, %v3034
        %v3083 = vpack.c.bf16 %v3035, %v3035
        %v3084 = vpack.c.bf16 %v3036, %v3036
        %v3085 = vpack.c.bf16 %v3037, %v3037
        %v3086 = vpack.c.bf16 %v3038, %v3038
        %v3087 = vpack.c.bf16 %v3039, %v3039
        %v3088 = vpack.c.bf16 %v3040, %v3040
        %v3089 = vpack.c.bf16 %v3041, %v3041
        %v3090 = vpack.c.bf16 %v3042, %v3042
        %v3091 = vpack.c.bf16 %v3043, %v3043
        %v3092 = vpack.c.bf16 %v3044, %v3044
        %v3093 = vpack.c.bf16 %v3045, %v3045
        %v3094 = vpack.c.bf16 %v3046, %v3046
        %v3095 = vpack.c.bf16 %v3047, %v3047
        %v3096 = vpack.c.bf16 %v3048, %v3048
        %v3097 = vpack.c.bf16 %v3049, %v3049
        %v3098 = vpack.c.bf16 %v3050, %v3050
        %v3099 = vpack.c.bf16 %v3051, %v3051
        %v3100 = vpack.c.bf16 %v3052, %v3052
        %v3101 = vpack.c.bf16 %v3053, %v3053
        %v3102 = vpack.c.bf16 %v3054, %v3054
        %v3103 = vpack.c.bf16 %v3055, %v3055
        %v3104 = vpack.c.bf16 %v3056, %v3056
        %v3105 = vpack.c.bf16 %v3057, %v3057
        %v3106 = vpack.c.bf16 %v3058, %v3058
        %v3107 = vpack.c.bf16 %v3059, %v3059
        %v3108 = vpack.c.bf16 %v3060, %v3060
        %v3109 = vpack.c.bf16 %v3061, %v3061
        %v3110 = vpack.c.bf16 %v3062, %v3062
        %v3111 = vpack.c.bf16 %v3063, %v3063
        %v3112 = vpack.c.bf16 %v3064, %v3064
        %v3113 = vpack.c.bf16 %v3065, %v3065
        %v3114 = vpack.c.bf16 %v3066, %v3066
        %v3115 = vpack.c.bf16 %v3067, %v3067
        %v3116 = vpack.c.bf16 %v3068, %v3068
        %v3117 = vpack.c.bf16 %v3069, %v3069
        %v3118 = vpack.c.bf16 %v3070, %v3070
        %v3119 = vpack.c.bf16 %v3071, %v3071
        %v3120 = vpack.c.bf16 %v3072, %v3072
        %vm3121 = vsmask.f32 4368
        %vm3122 = vmor %vm396, %vm3121
        %v3124 = vshrl.u32 %v3073, 16
        %v3126 = vrot.slane %v3124, 7
        %v3127 = vrot.slane %v3126, 4
        %v3129 = vshrl.u32 %v3074, 16
        %v3131 = vrot.slane %v3129, 7
        %v3132 = vshll.u32 %v3074, 16
        %v3134 = vor.u32 %v3131, %v3132
        %v3135 = vsel %vm3122, %v3127, %v3134
        %v3136 = vrot.slane %v3131, 4
        %v3138 = vshrl.u32 %v3075, 16
        %v3140 = vrot.slane %v3138, 7
        %v3141 = vshll.u32 %v3075, 16
        %v3143 = vor.u32 %v3140, %v3141
        %v3144 = vsel %vm3122, %v3136, %v3143
        %v3146 = vshrl.u32 %v3076, 16
        %v3148 = vrot.slane %v3146, 7
        %v3149 = vrot.slane %v3148, 4
        %v3151 = vshrl.u32 %v3077, 16
        %v3153 = vrot.slane %v3151, 7
        %v3154 = vshll.u32 %v3077, 16
        %v3156 = vor.u32 %v3153, %v3154
        %v3157 = vsel %vm3122, %v3149, %v3156
        %v3158 = vrot.slane %v3153, 4
        %v3160 = vshrl.u32 %v3078, 16
        %v3162 = vrot.slane %v3160, 7
        %v3163 = vshll.u32 %v3078, 16
        %v3165 = vor.u32 %v3162, %v3163
        %v3166 = vsel %vm3122, %v3158, %v3165
        %v3168 = vshrl.u32 %v3079, 16
        %v3170 = vrot.slane %v3168, 7
        %v3171 = vrot.slane %v3170, 4
        %v3173 = vshrl.u32 %v3080, 16
        %v3175 = vrot.slane %v3173, 7
        %v3176 = vshll.u32 %v3080, 16
        %v3178 = vor.u32 %v3175, %v3176
        %v3179 = vsel %vm3122, %v3171, %v3178
        %v3180 = vrot.slane %v3175, 4
        %v3182 = vshrl.u32 %v3081, 16
        %v3184 = vrot.slane %v3182, 7
        %v3185 = vshll.u32 %v3081, 16
        %v3187 = vor.u32 %v3184, %v3185
        %v3188 = vsel %vm3122, %v3180, %v3187
        %v3190 = vshrl.u32 %v3082, 16
        %v3192 = vrot.slane %v3190, 7
        %v3193 = vrot.slane %v3192, 4
        %v3195 = vshrl.u32 %v3083, 16
        %v3197 = vrot.slane %v3195, 7
        %v3198 = vshll.u32 %v3083, 16
        %v3200 = vor.u32 %v3197, %v3198
        %v3201 = vsel %vm3122, %v3193, %v3200
        %v3202 = vrot.slane %v3197, 4
        %v3204 = vshrl.u32 %v3084, 16
        %v3206 = vrot.slane %v3204, 7
        %v3207 = vshll.u32 %v3084, 16
        %v3209 = vor.u32 %v3206, %v3207
        %v3210 = vsel %vm3122, %v3202, %v3209
        %v3212 = vshrl.u32 %v3085, 16
        %v3214 = vrot.slane %v3212, 7
        %v3215 = vrot.slane %v3214, 4
        %v3217 = vshrl.u32 %v3086, 16
        %v3219 = vrot.slane %v3217, 7
        %v3220 = vshll.u32 %v3086, 16
        %v3222 = vor.u32 %v3219, %v3220
        %v3223 = vsel %vm3122, %v3215, %v3222
        %v3224 = vrot.slane %v3219, 4
        %v3226 = vshrl.u32 %v3087, 16
        %v3228 = vrot.slane %v3226, 7
        %v3229 = vshll.u32 %v3087, 16
        %v3231 = vor.u32 %v3228, %v3229
        %v3232 = vsel %vm3122, %v3224, %v3231
        %v3234 = vshrl.u32 %v3088, 16
        %v3236 = vrot.slane %v3234, 7
        %v3237 = vrot.slane %v3236, 4
        %v3239 = vshrl.u32 %v3089, 16
        %v3241 = vrot.slane %v3239, 7
        %v3242 = vshll.u32 %v3089, 16
        %v3244 = vor.u32 %v3241, %v3242
        %v3245 = vsel %vm3122, %v3237, %v3244
        %v3246 = vrot.slane %v3241, 4
        %v3248 = vshrl.u32 %v3090, 16
        %v3250 = vrot.slane %v3248, 7
        %v3251 = vshll.u32 %v3090, 16
        %v3253 = vor.u32 %v3250, %v3251
        %v3254 = vsel %vm3122, %v3246, %v3253
        %v3256 = vshrl.u32 %v3091, 16
        %v3258 = vrot.slane %v3256, 7
        %v3259 = vrot.slane %v3258, 4
        %v3261 = vshrl.u32 %v3092, 16
        %v3263 = vrot.slane %v3261, 7
        %v3264 = vshll.u32 %v3092, 16
        %v3266 = vor.u32 %v3263, %v3264
        %v3267 = vsel %vm3122, %v3259, %v3266
        %v3268 = vrot.slane %v3263, 4
        %v3270 = vshrl.u32 %v3093, 16
        %v3272 = vrot.slane %v3270, 7
        %v3273 = vshll.u32 %v3093, 16
        %v3275 = vor.u32 %v3272, %v3273
        %v3276 = vsel %vm3122, %v3268, %v3275
        %v3278 = vshrl.u32 %v3094, 16
        %v3280 = vrot.slane %v3278, 7
        %v3281 = vrot.slane %v3280, 4
        %v3283 = vshrl.u32 %v3095, 16
        %v3285 = vrot.slane %v3283, 7
        %v3286 = vshll.u32 %v3095, 16
        %v3288 = vor.u32 %v3285, %v3286
        %v3289 = vsel %vm3122, %v3281, %v3288
        %v3290 = vrot.slane %v3285, 4
        %v3292 = vshrl.u32 %v3096, 16
        %v3294 = vrot.slane %v3292, 7
        %v3295 = vshll.u32 %v3096, 16
        %v3297 = vor.u32 %v3294, %v3295
        %v3298 = vsel %vm3122, %v3290, %v3297
        %v3300 = vshrl.u32 %v3097, 16
        %v3302 = vrot.slane %v3300, 7
        %v3303 = vrot.slane %v3302, 4
        %v3305 = vshrl.u32 %v3098, 16
        %v3307 = vrot.slane %v3305, 7
        %v3308 = vshll.u32 %v3098, 16
        %v3310 = vor.u32 %v3307, %v3308
        %v3311 = vsel %vm3122, %v3303, %v3310
        %v3312 = vrot.slane %v3307, 4
        %v3314 = vshrl.u32 %v3099, 16
        %v3316 = vrot.slane %v3314, 7
        %v3317 = vshll.u32 %v3099, 16
        %v3319 = vor.u32 %v3316, %v3317
        %v3320 = vsel %vm3122, %v3312, %v3319
        %v3322 = vshrl.u32 %v3100, 16
        %v3324 = vrot.slane %v3322, 7
        %v3325 = vrot.slane %v3324, 4
        %v3327 = vshrl.u32 %v3101, 16
        %v3329 = vrot.slane %v3327, 7
        %v3330 = vshll.u32 %v3101, 16
        %v3332 = vor.u32 %v3329, %v3330
        %v3333 = vsel %vm3122, %v3325, %v3332
        %v3334 = vrot.slane %v3329, 4
        %v3336 = vshrl.u32 %v3102, 16
        %v3338 = vrot.slane %v3336, 7
        %v3339 = vshll.u32 %v3102, 16
        %v3341 = vor.u32 %v3338, %v3339
        %v3342 = vsel %vm3122, %v3334, %v3341
        %v3344 = vshrl.u32 %v3103, 16
        %v3346 = vrot.slane %v3344, 7
        %v3347 = vrot.slane %v3346, 4
        %v3349 = vshrl.u32 %v3104, 16
        %v3351 = vrot.slane %v3349, 7
        %v3352 = vshll.u32 %v3104, 16
        %v3354 = vor.u32 %v3351, %v3352
        %v3355 = vsel %vm3122, %v3347, %v3354
        %v3356 = vrot.slane %v3351, 4
        %v3358 = vshrl.u32 %v3105, 16
        %v3360 = vrot.slane %v3358, 7
        %v3361 = vshll.u32 %v3105, 16
        %v3363 = vor.u32 %v3360, %v3361
        %v3364 = vsel %vm3122, %v3356, %v3363
        %v3366 = vshrl.u32 %v3106, 16
        %v3368 = vrot.slane %v3366, 7
        %v3369 = vrot.slane %v3368, 4
        %v3371 = vshrl.u32 %v3107, 16
        %v3373 = vrot.slane %v3371, 7
        %v3374 = vshll.u32 %v3107, 16
        %v3376 = vor.u32 %v3373, %v3374
        %v3377 = vsel %vm3122, %v3369, %v3376
        %v3378 = vrot.slane %v3373, 4
        %v3380 = vshrl.u32 %v3108, 16
        %v3382 = vrot.slane %v3380, 7
        %v3383 = vshll.u32 %v3108, 16
        %v3385 = vor.u32 %v3382, %v3383
        %v3386 = vsel %vm3122, %v3378, %v3385
        %v3388 = vshrl.u32 %v3109, 16
        %v3390 = vrot.slane %v3388, 7
        %v3391 = vrot.slane %v3390, 4
        %v3393 = vshrl.u32 %v3110, 16
        %v3395 = vrot.slane %v3393, 7
        %v3396 = vshll.u32 %v3110, 16
        %v3398 = vor.u32 %v3395, %v3396
        %v3399 = vsel %vm3122, %v3391, %v3398
        %v3400 = vrot.slane %v3395, 4
        %v3402 = vshrl.u32 %v3111, 16
        %v3404 = vrot.slane %v3402, 7
        %v3405 = vshll.u32 %v3111, 16
        %v3407 = vor.u32 %v3404, %v3405
        %v3408 = vsel %vm3122, %v3400, %v3407
        %v3410 = vshrl.u32 %v3112, 16
        %v3412 = vrot.slane %v3410, 7
        %v3413 = vrot.slane %v3412, 4
        %v3415 = vshrl.u32 %v3113, 16
        %v3417 = vrot.slane %v3415, 7
        %v3418 = vshll.u32 %v3113, 16
        %v3420 = vor.u32 %v3417, %v3418
        %v3421 = vsel %vm3122, %v3413, %v3420
        %v3422 = vrot.slane %v3417, 4
        %v3424 = vshrl.u32 %v3114, 16
        %v3426 = vrot.slane %v3424, 7
        %v3427 = vshll.u32 %v3114, 16
        %v3429 = vor.u32 %v3426, %v3427
        %v3430 = vsel %vm3122, %v3422, %v3429
        %v3432 = vshrl.u32 %v3115, 16
        %v3434 = vrot.slane %v3432, 7
        %v3435 = vrot.slane %v3434, 4
        %v3437 = vshrl.u32 %v3116, 16
        %v3439 = vrot.slane %v3437, 7
        %v3440 = vshll.u32 %v3116, 16
        %v3442 = vor.u32 %v3439, %v3440
        %v3443 = vsel %vm3122, %v3435, %v3442
        %v3444 = vrot.slane %v3439, 4
        %v3446 = vshrl.u32 %v3117, 16
        %v3448 = vrot.slane %v3446, 7
        %v3449 = vshll.u32 %v3117, 16
        %v3451 = vor.u32 %v3448, %v3449
        %v3452 = vsel %vm3122, %v3444, %v3451
        %v3454 = vshrl.u32 %v3118, 16
        %v3456 = vrot.slane %v3454, 7
        %v3457 = vrot.slane %v3456, 4
        %v3459 = vshrl.u32 %v3119, 16
        %v3461 = vrot.slane %v3459, 7
        %v3462 = vshll.u32 %v3119, 16
        %v3464 = vor.u32 %v3461, %v3462
        %v3465 = vsel %vm3122, %v3457, %v3464
        %v3466 = vrot.slane %v3461, 4
        %v3468 = vshrl.u32 %v3120, 16
        %v3470 = vrot.slane %v3468, 7
        %v3471 = vshll.u32 %v3120, 16
        %v3473 = vor.u32 %v3470, %v3471
        %v3474 = vsel %vm3122, %v3466, %v3473
        %3507 = vst.msk [vmem:[%s410 + $0x4] sm:$0xf] %vm392, %v3135
        %3508 = vst.msk [vmem:[%s410 + $0x8] sm:$0xf] %vm392, %v3144
        %3509 = vst.msk [vmem:[%s410 + $0x14] sm:$0xf] %vm392, %v3157
        %3510 = vst.msk [vmem:[%s410 + $0x18] sm:$0xf] %vm392, %v3166
        %3511 = vst.msk [vmem:[%s410 + $0x24] sm:$0xf] %vm392, %v3179
        %3512 = vst.msk [vmem:[%s410 + $0x28] sm:$0xf] %vm392, %v3188
        %3513 = vst.msk [vmem:[%s410 + $0x34] sm:$0xf] %vm392, %v3201
        %3514 = vst.msk [vmem:[%s410 + $0x38] sm:$0xf] %vm392, %v3210
        %3515 = vst.msk [vmem:[%s410 + $0x44] sm:$0xf] %vm392, %v3223
        %3516 = vst.msk [vmem:[%s410 + $0x48] sm:$0xf] %vm392, %v3232
        %3517 = vst.msk [vmem:[%s410 + $0x54] sm:$0xf] %vm392, %v3245
        %3518 = vst.msk [vmem:[%s410 + $0x58] sm:$0xf] %vm392, %v3254
        %3519 = vst.msk [vmem:[%s410 + $0x64] sm:$0xf] %vm392, %v3267
        %3520 = vst.msk [vmem:[%s410 + $0x68] sm:$0xf] %vm392, %v3276
        %3521 = vst.msk [vmem:[%s410 + $0x74] sm:$0xf] %vm392, %v3289
        %3522 = vst.msk [vmem:[%s410 + $0x78] sm:$0xf] %vm392, %v3298
        %3523 = vst.msk [vmem:[%s410 + $0x84] sm:$0xf] %vm392, %v3311
        %3524 = vst.msk [vmem:[%s410 + $0x88] sm:$0xf] %vm392, %v3320
        %3525 = vst.msk [vmem:[%s410 + $0x94] sm:$0xf] %vm392, %v3333
        %3526 = vst.msk [vmem:[%s410 + $0x98] sm:$0xf] %vm392, %v3342
        %3527 = vst.msk [vmem:[%s410 + $0xa4] sm:$0xf] %vm392, %v3355
        %3528 = vst.msk [vmem:[%s410 + $0xa8] sm:$0xf] %vm392, %v3364
        %3529 = vst.msk [vmem:[%s410 + $0xb4] sm:$0xf] %vm392, %v3377
        %3530 = vst.msk [vmem:[%s410 + $0xb8] sm:$0xf] %vm392, %v3386
        %3531 = vst.msk [vmem:[%s410 + $0xc4] sm:$0xf] %vm392, %v3399
        %3532 = vst.msk [vmem:[%s410 + $0xc8] sm:$0xf] %vm392, %v3408
        %3533 = vst.msk [vmem:[%s410 + $0xd4] sm:$0xf] %vm392, %v3421
        %3534 = vst.msk [vmem:[%s410 + $0xd8] sm:$0xf] %vm392, %v3430
        %3535 = vst.msk [vmem:[%s410 + $0xe4] sm:$0xf] %vm392, %v3443
        %3536 = vst.msk [vmem:[%s410 + $0xe8] sm:$0xf] %vm392, %v3452
        %3537 = vst.msk [vmem:[%s410 + $0xf4] sm:$0xf] %vm392, %v3465
        %3538 = vst.msk [vmem:[%s410 + $0xf8] sm:$0xf] %vm392, %v3474
        %v3539 = vld [vmem:[#allocation2] sm:$0x8]
        %v3540 = vld [vmem:[#allocation2 + $0x4] sm:$0xf]
        %v3541 = vld [vmem:[#allocation2 + $0x8] sm:$0xf]
        %v3542 = vld [vmem:[#allocation2 + $0x10] sm:$0x8]
        %v3543 = vld [vmem:[#allocation2 + $0x14] sm:$0xf]
        %v3544 = vld [vmem:[#allocation2 + $0x18] sm:$0xf]
        %v3545 = vld [vmem:[#allocation2 + $0x20] sm:$0x8]
        %v3546 = vld [vmem:[#allocation2 + $0x24] sm:$0xf]
        %v3547 = vld [vmem:[#allocation2 + $0x28] sm:$0xf]
        %v3548 = vld [vmem:[#allocation2 + $0x30] sm:$0x8]
        %v3549 = vld [vmem:[#allocation2 + $0x34] sm:$0xf]
        %v3550 = vld [vmem:[#allocation2 + $0x38] sm:$0xf]
        %v3551 = vld [vmem:[#allocation2 + $0x40] sm:$0x8]
        %v3552 = vld [vmem:[#allocation2 + $0x44] sm:$0xf]
        %v3553 = vld [vmem:[#allocation2 + $0x48] sm:$0xf]
        %v3554 = vld [vmem:[#allocation2 + $0x50] sm:$0x8]
        %v3555 = vld [vmem:[#allocation2 + $0x54] sm:$0xf]
        %v3556 = vld [vmem:[#allocation2 + $0x58] sm:$0xf]
        %v3557 = vld [vmem:[#allocation2 + $0x60] sm:$0x8]
        %v3558 = vld [vmem:[#allocation2 + $0x64] sm:$0xf]
        %v3559 = vld [vmem:[#allocation2 + $0x68] sm:$0xf]
        %v3560 = vld [vmem:[#allocation2 + $0x70] sm:$0x8]
        %v3561 = vld [vmem:[#allocation2 + $0x74] sm:$0xf]
        %v3562 = vld [vmem:[#allocation2 + $0x78] sm:$0xf]
        %v3563 = vld [vmem:[#allocation2 + $0x80] sm:$0x8]
        %v3564 = vld [vmem:[#allocation2 + $0x84] sm:$0xf]
        %v3565 = vld [vmem:[#allocation2 + $0x88] sm:$0xf]
        %v3566 = vld [vmem:[#allocation2 + $0x90] sm:$0x8]
        %v3567 = vld [vmem:[#allocation2 + $0x94] sm:$0xf]
        %v3568 = vld [vmem:[#allocation2 + $0x98] sm:$0xf]
        %v3569 = vld [vmem:[#allocation2 + $0xa0] sm:$0x8]
        %v3570 = vld [vmem:[#allocation2 + $0xa4] sm:$0xf]
        %v3571 = vld [vmem:[#allocation2 + $0xa8] sm:$0xf]
        %v3572 = vld [vmem:[#allocation2 + $0xb0] sm:$0x8]
        %v3573 = vld [vmem:[#allocation2 + $0xb4] sm:$0xf]
        %v3574 = vld [vmem:[#allocation2 + $0xb8] sm:$0xf]
        %v3575 = vld [vmem:[#allocation2 + $0xc0] sm:$0x8]
        %v3576 = vld [vmem:[#allocation2 + $0xc4] sm:$0xf]
        %v3577 = vld [vmem:[#allocation2 + $0xc8] sm:$0xf]
        %v3578 = vld [vmem:[#allocation2 + $0xd0] sm:$0x8]
        %v3579 = vld [vmem:[#allocation2 + $0xd4] sm:$0xf]
        %v3580 = vld [vmem:[#allocation2 + $0xd8] sm:$0xf]
        %v3581 = vld [vmem:[#allocation2 + $0xe0] sm:$0x8]
        %v3582 = vld [vmem:[#allocation2 + $0xe4] sm:$0xf]
        %v3583 = vld [vmem:[#allocation2 + $0xe8] sm:$0xf]
        %v3584 = vld [vmem:[#allocation2 + $0xf0] sm:$0x8]
        %v3585 = vld [vmem:[#allocation2 + $0xf4] sm:$0xf]
        %v3586 = vld [vmem:[#allocation2 + $0xf8] sm:$0xf]
        %v3588 = vshrl.u32 %v3539, 16
        %v3590 = vrot.slane %v3588, 7
        %v3591 = vrot.slane %v3590, 4
        %v3593 = vshrl.u32 %v3540, 16
        %v3595 = vrot.slane %v3593, 7
        %v3596 = vshll.u32 %v3540, 16
        %v3598 = vor.u32 %v3595, %v3596
        %v3599 = vsel %vm3122, %v3591, %v3598
        %v3600 = vrot.slane %v3595, 4
        %v3602 = vshrl.u32 %v3541, 16
        %v3604 = vrot.slane %v3602, 7
        %v3605 = vshll.u32 %v3541, 16
        %v3607 = vor.u32 %v3604, %v3605
        %v3608 = vsel %vm3122, %v3600, %v3607
        %v3610 = vshrl.u32 %v3542, 16
        %v3612 = vrot.slane %v3610, 7
        %v3613 = vrot.slane %v3612, 4
        %v3615 = vshrl.u32 %v3543, 16
        %v3617 = vrot.slane %v3615, 7
        %v3618 = vshll.u32 %v3543, 16
        %v3620 = vor.u32 %v3617, %v3618
        %v3621 = vsel %vm3122, %v3613, %v3620
        %v3622 = vrot.slane %v3617, 4
        %v3624 = vshrl.u32 %v3544, 16
        %v3626 = vrot.slane %v3624, 7
        %v3627 = vshll.u32 %v3544, 16
        %v3629 = vor.u32 %v3626, %v3627
        %v3630 = vsel %vm3122, %v3622, %v3629
        %v3632 = vshrl.u32 %v3545, 16
        %v3634 = vrot.slane %v3632, 7
        %v3635 = vrot.slane %v3634, 4
        %v3637 = vshrl.u32 %v3546, 16
        %v3639 = vrot.slane %v3637, 7
        %v3640 = vshll.u32 %v3546, 16
        %v3642 = vor.u32 %v3639, %v3640
        %v3643 = vsel %vm3122, %v3635, %v3642
        %v3644 = vrot.slane %v3639, 4
        %v3646 = vshrl.u32 %v3547, 16
        %v3648 = vrot.slane %v3646, 7
        %v3649 = vshll.u32 %v3547, 16
        %v3651 = vor.u32 %v3648, %v3649
        %v3652 = vsel %vm3122, %v3644, %v3651
        %v3654 = vshrl.u32 %v3548, 16
        %v3656 = vrot.slane %v3654, 7
        %v3657 = vrot.slane %v3656, 4
        %v3659 = vshrl.u32 %v3549, 16
        %v3661 = vrot.slane %v3659, 7
        %v3662 = vshll.u32 %v3549, 16
        %v3664 = vor.u32 %v3661, %v3662
        %v3665 = vsel %vm3122, %v3657, %v3664
        %v3666 = vrot.slane %v3661, 4
        %v3668 = vshrl.u32 %v3550, 16
        %v3670 = vrot.slane %v3668, 7
        %v3671 = vshll.u32 %v3550, 16
        %v3673 = vor.u32 %v3670, %v3671
        %v3674 = vsel %vm3122, %v3666, %v3673
        %v3676 = vshrl.u32 %v3551, 16
        %v3678 = vrot.slane %v3676, 7
        %v3679 = vrot.slane %v3678, 4
        %v3681 = vshrl.u32 %v3552, 16
        %v3683 = vrot.slane %v3681, 7
        %v3684 = vshll.u32 %v3552, 16
        %v3686 = vor.u32 %v3683, %v3684
        %v3687 = vsel %vm3122, %v3679, %v3686
        %v3688 = vrot.slane %v3683, 4
        %v3690 = vshrl.u32 %v3553, 16
        %v3692 = vrot.slane %v3690, 7
        %v3693 = vshll.u32 %v3553, 16
        %v3695 = vor.u32 %v3692, %v3693
        %v3696 = vsel %vm3122, %v3688, %v3695
        %v3698 = vshrl.u32 %v3554, 16
        %v3700 = vrot.slane %v3698, 7
        %v3701 = vrot.slane %v3700, 4
        %v3703 = vshrl.u32 %v3555, 16
        %v3705 = vrot.slane %v3703, 7
        %v3706 = vshll.u32 %v3555, 16
        %v3708 = vor.u32 %v3705, %v3706
        %v3709 = vsel %vm3122, %v3701, %v3708
        %v3710 = vrot.slane %v3705, 4
        %v3712 = vshrl.u32 %v3556, 16
        %v3714 = vrot.slane %v3712, 7
        %v3715 = vshll.u32 %v3556, 16
        %v3717 = vor.u32 %v3714, %v3715
        %v3718 = vsel %vm3122, %v3710, %v3717
        %v3720 = vshrl.u32 %v3557, 16
        %v3722 = vrot.slane %v3720, 7
        %v3723 = vrot.slane %v3722, 4
        %v3725 = vshrl.u32 %v3558, 16
        %v3727 = vrot.slane %v3725, 7
        %v3728 = vshll.u32 %v3558, 16
        %v3730 = vor.u32 %v3727, %v3728
        %v3731 = vsel %vm3122, %v3723, %v3730
        %v3732 = vrot.slane %v3727, 4
        %v3734 = vshrl.u32 %v3559, 16
        %v3736 = vrot.slane %v3734, 7
        %v3737 = vshll.u32 %v3559, 16
        %v3739 = vor.u32 %v3736, %v3737
        %v3740 = vsel %vm3122, %v3732, %v3739
        %v3742 = vshrl.u32 %v3560, 16
        %v3744 = vrot.slane %v3742, 7
        %v3745 = vrot.slane %v3744, 4
        %v3747 = vshrl.u32 %v3561, 16
        %v3749 = vrot.slane %v3747, 7
        %v3750 = vshll.u32 %v3561, 16
        %v3752 = vor.u32 %v3749, %v3750
        %v3753 = vsel %vm3122, %v3745, %v3752
        %v3754 = vrot.slane %v3749, 4
        %v3756 = vshrl.u32 %v3562, 16
        %v3758 = vrot.slane %v3756, 7
        %v3759 = vshll.u32 %v3562, 16
        %v3761 = vor.u32 %v3758, %v3759
        %v3762 = vsel %vm3122, %v3754, %v3761
        %v3764 = vshrl.u32 %v3563, 16
        %v3766 = vrot.slane %v3764, 7
        %v3767 = vrot.slane %v3766, 4
        %v3769 = vshrl.u32 %v3564, 16
        %v3771 = vrot.slane %v3769, 7
        %v3772 = vshll.u32 %v3564, 16
        %v3774 = vor.u32 %v3771, %v3772
        %v3775 = vsel %vm3122, %v3767, %v3774
        %v3776 = vrot.slane %v3771, 4
        %v3778 = vshrl.u32 %v3565, 16
        %v3780 = vrot.slane %v3778, 7
        %v3781 = vshll.u32 %v3565, 16
        %v3783 = vor.u32 %v3780, %v3781
        %v3784 = vsel %vm3122, %v3776, %v3783
        %v3786 = vshrl.u32 %v3566, 16
        %v3788 = vrot.slane %v3786, 7
        %v3789 = vrot.slane %v3788, 4
        %v3791 = vshrl.u32 %v3567, 16
        %v3793 = vrot.slane %v3791, 7
        %v3794 = vshll.u32 %v3567, 16
        %v3796 = vor.u32 %v3793, %v3794
        %v3797 = vsel %vm3122, %v3789, %v3796
        %v3798 = vrot.slane %v3793, 4
        %v3800 = vshrl.u32 %v3568, 16
        %v3802 = vrot.slane %v3800, 7
        %v3803 = vshll.u32 %v3568, 16
        %v3805 = vor.u32 %v3802, %v3803
        %v3806 = vsel %vm3122, %v3798, %v3805
        %v3808 = vshrl.u32 %v3569, 16
        %v3810 = vrot.slane %v3808, 7
        %v3811 = vrot.slane %v3810, 4
        %v3813 = vshrl.u32 %v3570, 16
        %v3815 = vrot.slane %v3813, 7
        %v3816 = vshll.u32 %v3570, 16
        %v3818 = vor.u32 %v3815, %v3816
        %v3819 = vsel %vm3122, %v3811, %v3818
        %v3820 = vrot.slane %v3815, 4
        %v3822 = vshrl.u32 %v3571, 16
        %v3824 = vrot.slane %v3822, 7
        %v3825 = vshll.u32 %v3571, 16
        %v3827 = vor.u32 %v3824, %v3825
        %v3828 = vsel %vm3122, %v3820, %v3827
        %v3830 = vshrl.u32 %v3572, 16
        %v3832 = vrot.slane %v3830, 7
        %v3833 = vrot.slane %v3832, 4
        %v3835 = vshrl.u32 %v3573, 16
        %v3837 = vrot.slane %v3835, 7
        %v3838 = vshll.u32 %v3573, 16
        %v3840 = vor.u32 %v3837, %v3838
        %v3841 = vsel %vm3122, %v3833, %v3840
        %v3842 = vrot.slane %v3837, 4
        %v3844 = vshrl.u32 %v3574, 16
        %v3846 = vrot.slane %v3844, 7
        %v3847 = vshll.u32 %v3574, 16
        %v3849 = vor.u32 %v3846, %v3847
        %v3850 = vsel %vm3122, %v3842, %v3849
        %v3852 = vshrl.u32 %v3575, 16
        %v3854 = vrot.slane %v3852, 7
        %v3855 = vrot.slane %v3854, 4
        %v3857 = vshrl.u32 %v3576, 16
        %v3859 = vrot.slane %v3857, 7
        %v3860 = vshll.u32 %v3576, 16
        %v3862 = vor.u32 %v3859, %v3860
        %v3863 = vsel %vm3122, %v3855, %v3862
        %v3864 = vrot.slane %v3859, 4
        %v3866 = vshrl.u32 %v3577, 16
        %v3868 = vrot.slane %v3866, 7
        %v3869 = vshll.u32 %v3577, 16
        %v3871 = vor.u32 %v3868, %v3869
        %v3872 = vsel %vm3122, %v3864, %v3871
        %v3874 = vshrl.u32 %v3578, 16
        %v3876 = vrot.slane %v3874, 7
        %v3877 = vrot.slane %v3876, 4
        %v3879 = vshrl.u32 %v3579, 16
        %v3881 = vrot.slane %v3879, 7
        %v3882 = vshll.u32 %v3579, 16
        %v3884 = vor.u32 %v3881, %v3882
        %v3885 = vsel %vm3122, %v3877, %v3884
        %v3886 = vrot.slane %v3881, 4
        %v3888 = vshrl.u32 %v3580, 16
        %v3890 = vrot.slane %v3888, 7
        %v3891 = vshll.u32 %v3580, 16
        %v3893 = vor.u32 %v3890, %v3891
        %v3894 = vsel %vm3122, %v3886, %v3893
        %v3896 = vshrl.u32 %v3581, 16
        %v3898 = vrot.slane %v3896, 7
        %v3899 = vrot.slane %v3898, 4
        %v3901 = vshrl.u32 %v3582, 16
        %v3903 = vrot.slane %v3901, 7
        %v3904 = vshll.u32 %v3582, 16
        %v3906 = vor.u32 %v3903, %v3904
        %v3907 = vsel %vm3122, %v3899, %v3906
        %v3908 = vrot.slane %v3903, 4
        %v3910 = vshrl.u32 %v3583, 16
        %v3912 = vrot.slane %v3910, 7
        %v3913 = vshll.u32 %v3583, 16
        %v3915 = vor.u32 %v3912, %v3913
        %v3916 = vsel %vm3122, %v3908, %v3915
        %v3918 = vshrl.u32 %v3584, 16
        %v3920 = vrot.slane %v3918, 7
        %v3921 = vrot.slane %v3920, 4
        %v3923 = vshrl.u32 %v3585, 16
        %v3925 = vrot.slane %v3923, 7
        %v3926 = vshll.u32 %v3585, 16
        %v3928 = vor.u32 %v3925, %v3926
        %v3929 = vsel %vm3122, %v3921, %v3928
        %v3930 = vrot.slane %v3925, 4
        %v3932 = vshrl.u32 %v3586, 16
        %v3934 = vrot.slane %v3932, 7
        %v3935 = vshll.u32 %v3586, 16
        %v3937 = vor.u32 %v3934, %v3935
        %v3938 = vsel %vm3122, %v3930, %v3937
        %v3939 = vld [vmem:[%s7] sm:$0xf]
        %v3940 = vld [vmem:[%s7 + $0x4] sm:$0xf]
        %v3941 = vld [vmem:[%s7 + $0x8] sm:$0xf]
        %v3942 = vld [vmem:[%s7 + $0xc] sm:$0xf]
        %s3943 = scalar_lea.vmem %s7, 16
        %v3944 = vld [vmem:[%s3943] sm:$0xf]
        %v3945 = vld [vmem:[%s3943 + $0x4] sm:$0xf]
        %v3946 = vld [vmem:[%s3943 + $0x8] sm:$0xf]
        %v3947 = vld [vmem:[%s3943 + $0xc] sm:$0xf]
        %v3980 = vunpack.c.l.b16 %v3540
        %v3981 = vunpack.c.l.b16 %v3541
        %v3982 = vunpack.c.l.b16 %v3543
        %v3983 = vunpack.c.l.b16 %v3544
        %v3984 = vunpack.c.l.b16 %v3546
        %v3985 = vunpack.c.l.b16 %v3547
        %v3986 = vunpack.c.l.b16 %v3549
        %v3987 = vunpack.c.l.b16 %v3550
        %v3988 = vunpack.c.l.b16 %v3552
        %v3989 = vunpack.c.l.b16 %v3553
        %v3990 = vunpack.c.l.b16 %v3555
        %v3991 = vunpack.c.l.b16 %v3556
        %v3992 = vunpack.c.l.b16 %v3558
        %v3993 = vunpack.c.l.b16 %v3559
        %v3994 = vunpack.c.l.b16 %v3561
        %v3995 = vunpack.c.l.b16 %v3562
        %v3996 = vunpack.c.l.b16 %v3564
        %v3997 = vunpack.c.l.b16 %v3565
        %v3998 = vunpack.c.l.b16 %v3567
        %v3999 = vunpack.c.l.b16 %v3568
        %v4000 = vunpack.c.l.b16 %v3570
        %v4001 = vunpack.c.l.b16 %v3571
        %v4002 = vunpack.c.l.b16 %v3573
        %v4003 = vunpack.c.l.b16 %v3574
        %v4004 = vunpack.c.l.b16 %v3576
        %v4005 = vunpack.c.l.b16 %v3577
        %v4006 = vunpack.c.l.b16 %v3579
        %v4007 = vunpack.c.l.b16 %v3580
        %v4008 = vunpack.c.l.b16 %v3582
        %v4009 = vunpack.c.l.b16 %v3583
        %v4010 = vunpack.c.l.b16 %v3585
        %v4011 = vunpack.c.l.b16 %v3586
        %v4012 = vpack.c.b16 %v3981, %v3980
        %v4013 = vpack.c.b16 %v3983, %v3982
        %v4014 = vpack.c.b16 %v3985, %v3984
        %v4015 = vpack.c.b16 %v3987, %v3986
        %v4016 = vpack.c.b16 %v3989, %v3988
        %v4017 = vpack.c.b16 %v3991, %v3990
        %v4018 = vpack.c.b16 %v3993, %v3992
        %v4019 = vpack.c.b16 %v3995, %v3994
        %v4020 = vpack.c.b16 %v3997, %v3996
        %v4021 = vpack.c.b16 %v3999, %v3998
        %v4022 = vpack.c.b16 %v4001, %v4000
        %v4023 = vpack.c.b16 %v4003, %v4002
        %v4024 = vpack.c.b16 %v4005, %v4004
        %v4025 = vpack.c.b16 %v4007, %v4006
        %v4026 = vpack.c.b16 %v4009, %v4008
        %v4027 = vpack.c.b16 %v4011, %v4010
        %v4032 = vunpack.c.l.b16 %v3944
        %v4033 = vunpack.c.l.b16 %v3945
        %v4034 = vunpack.c.l.b16 %v3946
        %v4035 = vunpack.c.l.b16 %v3947
        %v4036 = vpack.c.b16 %v4033, %v4032
        %v4037 = vpack.c.b16 %v4035, %v4034
        %vm4040 = vcmask 261120
        %v4042 = vsel %vm4040, %v4012, 0
        %v4045 = vsel %vm4040, %v4013, 0
        %v4048 = vsel %vm4040, %v4014, 0
        %v4051 = vsel %vm4040, %v4015, 0
        %v4054 = vsel %vm4040, %v4016, 0
        %v4057 = vsel %vm4040, %v4017, 0
        %v4060 = vsel %vm4040, %v4018, 0
        %v4063 = vsel %vm4040, %v4019, 0
        %v4066 = vsel %vm4040, %v4020, 0
        %v4069 = vsel %vm4040, %v4021, 0
        %v4072 = vsel %vm4040, %v4022, 0
        %v4075 = vsel %vm4040, %v4023, 0
        %v4078 = vsel %vm4040, %v4024, 0
        %v4081 = vsel %vm4040, %v4025, 0
        %v4084 = vsel %vm4040, %v4026, 0
        %v4087 = vsel %vm4040, %v4027, 0
        %4089 = vmatpush.bf16.msra.mxu0 0
        %4090 = vmatpush.bf16.msra.mxu0 0
        %4091 = vmatpush.bf16.msra.mxu0 0
        %4092 = vmatpush.bf16.msra.mxu0 0
        %4093 = vmatpush.bf16.msra.mxu0 0
        %4094 = vmatpush.bf16.msra.mxu0 0
        %4095 = vmatpush.bf16.msra.mxu0 %v4037
        %4096 = vmatpush.bf16.msra.mxu0 %v4036
        %4097 = vmatmul.bf16.gmra.mxu0 %v4042
        %v4098 = vpop.f32.mrf.mxu0
        %v4099 = vadd.f32 0.0, %v4098
        %v4100 = vpop.f32.mrf.mxu0
        %v4101 = vadd.f32 0.0, %v4100
        %4102 = vmatmul.bf16.gmra.mxu0 %v4045
        %v4103 = vpop.f32.mrf.mxu0
        %v4104 = vadd.f32 0.0, %v4103
        %v4105 = vpop.f32.mrf.mxu0
        %v4106 = vadd.f32 0.0, %v4105
        %4107 = vmatmul.bf16.gmra.mxu0 %v4048
        %v4108 = vpop.f32.mrf.mxu0
        %v4109 = vadd.f32 0.0, %v4108
        %v4110 = vpop.f32.mrf.mxu0
        %v4111 = vadd.f32 0.0, %v4110
        %4112 = vmatmul.bf16.gmra.mxu0 %v4051
        %v4113 = vpop.f32.mrf.mxu0
        %v4114 = vadd.f32 0.0, %v4113
        %v4115 = vpop.f32.mrf.mxu0
        %v4116 = vadd.f32 0.0, %v4115
        %4117 = vmatmul.bf16.gmra.mxu0 %v4054
        %v4118 = vpop.f32.mrf.mxu0
        %v4119 = vadd.f32 0.0, %v4118
        %v4120 = vpop.f32.mrf.mxu0
        %v4121 = vadd.f32 0.0, %v4120
        %4122 = vmatmul.bf16.gmra.mxu0 %v4057
        %v4123 = vpop.f32.mrf.mxu0
        %v4124 = vadd.f32 0.0, %v4123
        %v4125 = vpop.f32.mrf.mxu0
        %v4126 = vadd.f32 0.0, %v4125
        %4127 = vmatmul.bf16.gmra.mxu0 %v4060
        %v4128 = vpop.f32.mrf.mxu0
        %v4129 = vadd.f32 0.0, %v4128
        %v4130 = vpop.f32.mrf.mxu0
        %v4131 = vadd.f32 0.0, %v4130
        %4132 = vmatmul.bf16.gmra.mxu0 %v4063
        %v4133 = vpop.f32.mrf.mxu0
        %v4134 = vadd.f32 0.0, %v4133
        %v4135 = vpop.f32.mrf.mxu0
        %v4136 = vadd.f32 0.0, %v4135
        %4137 = vmatmul.bf16.gmra.mxu0 %v4066
        %v4138 = vpop.f32.mrf.mxu0
        %v4139 = vadd.f32 0.0, %v4138
        %v4140 = vpop.f32.mrf.mxu0
        %v4141 = vadd.f32 0.0, %v4140
        %4142 = vmatmul.bf16.gmra.mxu0 %v4069
        %v4143 = vpop.f32.mrf.mxu0
        %v4144 = vadd.f32 0.0, %v4143
        %v4145 = vpop.f32.mrf.mxu0
        %v4146 = vadd.f32 0.0, %v4145
        %4147 = vmatmul.bf16.gmra.mxu0 %v4072
        %v4148 = vpop.f32.mrf.mxu0
        %v4149 = vadd.f32 0.0, %v4148
        %v4150 = vpop.f32.mrf.mxu0
        %v4151 = vadd.f32 0.0, %v4150
        %4152 = vmatmul.bf16.gmra.mxu0 %v4075
        %v4153 = vpop.f32.mrf.mxu0
        %v4154 = vadd.f32 0.0, %v4153
        %v4155 = vpop.f32.mrf.mxu0
        %v4156 = vadd.f32 0.0, %v4155
        %4157 = vmatmul.bf16.gmra.mxu0 %v4078
        %v4158 = vpop.f32.mrf.mxu0
        %v4159 = vadd.f32 0.0, %v4158
        %v4160 = vpop.f32.mrf.mxu0
        %v4161 = vadd.f32 0.0, %v4160
        %4162 = vmatmul.bf16.gmra.mxu0 %v4081
        %v4163 = vpop.f32.mrf.mxu0
        %v4164 = vadd.f32 0.0, %v4163
        %v4165 = vpop.f32.mrf.mxu0
        %v4166 = vadd.f32 0.0, %v4165
        %4167 = vmatmul.bf16.gmra.mxu0 %v4084
        %v4168 = vpop.f32.mrf.mxu0
        %v4169 = vadd.f32 0.0, %v4168
        %v4170 = vpop.f32.mrf.mxu0
        %v4171 = vadd.f32 0.0, %v4170
        %4172 = vmatmul.bf16.gmra.mxu0 %v4087
        %v4173 = vpop.f32.mrf.mxu0
        %v4174 = vadd.f32 0.0, %v4173
        %v4175 = vpop.f32.mrf.mxu0
        %v4176 = vadd.f32 0.0, %v4175
        %4177 = vdwg.mxu0
        %v4178 = vunpack.c.l.b16 %v3599
        %v4179 = vunpack.c.l.b16 %v3608
        %v4180 = vunpack.c.l.b16 %v3621
        %v4181 = vunpack.c.l.b16 %v3630
        %v4182 = vunpack.c.l.b16 %v3643
        %v4183 = vunpack.c.l.b16 %v3652
        %v4184 = vunpack.c.l.b16 %v3665
        %v4185 = vunpack.c.l.b16 %v3674
        %v4186 = vunpack.c.l.b16 %v3687
        %v4187 = vunpack.c.l.b16 %v3696
        %v4188 = vunpack.c.l.b16 %v3709
        %v4189 = vunpack.c.l.b16 %v3718
        %v4190 = vunpack.c.l.b16 %v3731
        %v4191 = vunpack.c.l.b16 %v3740
        %v4192 = vunpack.c.l.b16 %v3753
        %v4193 = vunpack.c.l.b16 %v3762
        %v4194 = vunpack.c.l.b16 %v3775
        %v4195 = vunpack.c.l.b16 %v3784
        %v4196 = vunpack.c.l.b16 %v3797
        %v4197 = vunpack.c.l.b16 %v3806
        %v4198 = vunpack.c.l.b16 %v3819
        %v4199 = vunpack.c.l.b16 %v3828
        %v4200 = vunpack.c.l.b16 %v3841
        %v4201 = vunpack.c.l.b16 %v3850
        %v4202 = vunpack.c.l.b16 %v3863
        %v4203 = vunpack.c.l.b16 %v3872
        %v4204 = vunpack.c.l.b16 %v3885
        %v4205 = vunpack.c.l.b16 %v3894
        %v4206 = vunpack.c.l.b16 %v3907
        %v4207 = vunpack.c.l.b16 %v3916
        %v4208 = vunpack.c.l.b16 %v3929
        %v4209 = vunpack.c.l.b16 %v3938
        %v4210 = vpack.c.b16 %v4179, %v4178
        %v4211 = vpack.c.b16 %v4181, %v4180
        %v4212 = vpack.c.b16 %v4183, %v4182
        %v4213 = vpack.c.b16 %v4185, %v4184
        %v4214 = vpack.c.b16 %v4187, %v4186
        %v4215 = vpack.c.b16 %v4189, %v4188
        %v4216 = vpack.c.b16 %v4191, %v4190
        %v4217 = vpack.c.b16 %v4193, %v4192
        %v4218 = vpack.c.b16 %v4195, %v4194
        %v4219 = vpack.c.b16 %v4197, %v4196
        %v4220 = vpack.c.b16 %v4199, %v4198
        %v4221 = vpack.c.b16 %v4201, %v4200
        %v4222 = vpack.c.b16 %v4203, %v4202
        %v4223 = vpack.c.b16 %v4205, %v4204
        %v4224 = vpack.c.b16 %v4207, %v4206
        %v4225 = vpack.c.b16 %v4209, %v4208
        %v4230 = vunpack.c.l.b16 %v3939
        %v4231 = vunpack.c.l.b16 %v3940
        %v4232 = vunpack.c.l.b16 %v3941
        %v4233 = vunpack.c.l.b16 %v3942
        %v4234 = vpack.c.b16 %v4231, %v4230
        %v4235 = vpack.c.b16 %v4233, %v4232
        %v4239 = vsel %vm4040, %v4210, 0
        %v4242 = vsel %vm4040, %v4211, 0
        %v4245 = vsel %vm4040, %v4212, 0
        %v4248 = vsel %vm4040, %v4213, 0
        %v4251 = vsel %vm4040, %v4214, 0
        %v4254 = vsel %vm4040, %v4215, 0
        %v4257 = vsel %vm4040, %v4216, 0
        %v4260 = vsel %vm4040, %v4217, 0
        %v4263 = vsel %vm4040, %v4218, 0
        %v4266 = vsel %vm4040, %v4219, 0
        %v4269 = vsel %vm4040, %v4220, 0
        %v4272 = vsel %vm4040, %v4221, 0
        %v4275 = vsel %vm4040, %v4222, 0
        %v4278 = vsel %vm4040, %v4223, 0
        %v4281 = vsel %vm4040, %v4224, 0
        %v4284 = vsel %vm4040, %v4225, 0
        %4286 = vmatpush.bf16.msra.mxu0 0
        %4287 = vmatpush.bf16.msra.mxu0 0
        %4288 = vmatpush.bf16.msra.mxu0 0
        %4289 = vmatpush.bf16.msra.mxu0 0
        %4290 = vmatpush.bf16.msra.mxu0 0
        %4291 = vmatpush.bf16.msra.mxu0 0
        %4292 = vmatpush.bf16.msra.mxu0 %v4235
        %4293 = vmatpush.bf16.msra.mxu0 %v4234
        %4294 = vmatmul.bf16.gmra.mxu0 %v4239
        %v4295 = vpop.f32.mrf.mxu0
        %v4296 = vadd.f32 %v4099, %v4295
        %v4297 = vpop.f32.mrf.mxu0
        %v4298 = vadd.f32 %v4101, %v4297
        %4299 = vmatmul.bf16.gmra.mxu0 %v4242
        %v4300 = vpop.f32.mrf.mxu0
        %v4301 = vadd.f32 %v4104, %v4300
        %v4302 = vpop.f32.mrf.mxu0
        %v4303 = vadd.f32 %v4106, %v4302
        %4304 = vmatmul.bf16.gmra.mxu0 %v4245
        %v4305 = vpop.f32.mrf.mxu0
        %v4306 = vadd.f32 %v4109, %v4305
        %v4307 = vpop.f32.mrf.mxu0
        %v4308 = vadd.f32 %v4111, %v4307
        %4309 = vmatmul.bf16.gmra.mxu0 %v4248
        %v4310 = vpop.f32.mrf.mxu0
        %v4311 = vadd.f32 %v4114, %v4310
        %v4312 = vpop.f32.mrf.mxu0
        %v4313 = vadd.f32 %v4116, %v4312
        %4314 = vmatmul.bf16.gmra.mxu0 %v4251
        %v4315 = vpop.f32.mrf.mxu0
        %v4316 = vadd.f32 %v4119, %v4315
        %v4317 = vpop.f32.mrf.mxu0
        %v4318 = vadd.f32 %v4121, %v4317
        %4319 = vmatmul.bf16.gmra.mxu0 %v4254
        %v4320 = vpop.f32.mrf.mxu0
        %v4321 = vadd.f32 %v4124, %v4320
        %v4322 = vpop.f32.mrf.mxu0
        %v4323 = vadd.f32 %v4126, %v4322
        %4324 = vmatmul.bf16.gmra.mxu0 %v4257
        %v4325 = vpop.f32.mrf.mxu0
        %v4326 = vadd.f32 %v4129, %v4325
        %v4327 = vpop.f32.mrf.mxu0
        %v4328 = vadd.f32 %v4131, %v4327
        %4329 = vmatmul.bf16.gmra.mxu0 %v4260
        %v4330 = vpop.f32.mrf.mxu0
        %v4331 = vadd.f32 %v4134, %v4330
        %v4332 = vpop.f32.mrf.mxu0
        %v4333 = vadd.f32 %v4136, %v4332
        %4334 = vmatmul.bf16.gmra.mxu0 %v4263
        %v4335 = vpop.f32.mrf.mxu0
        %v4336 = vadd.f32 %v4139, %v4335
        %v4337 = vpop.f32.mrf.mxu0
        %v4338 = vadd.f32 %v4141, %v4337
        %4339 = vmatmul.bf16.gmra.mxu0 %v4266
        %v4340 = vpop.f32.mrf.mxu0
        %v4341 = vadd.f32 %v4144, %v4340
        %v4342 = vpop.f32.mrf.mxu0
        %v4343 = vadd.f32 %v4146, %v4342
        %4344 = vmatmul.bf16.gmra.mxu0 %v4269
        %v4345 = vpop.f32.mrf.mxu0
        %v4346 = vadd.f32 %v4149, %v4345
        %v4347 = vpop.f32.mrf.mxu0
        %v4348 = vadd.f32 %v4151, %v4347
        %4349 = vmatmul.bf16.gmra.mxu0 %v4272
        %v4350 = vpop.f32.mrf.mxu0
        %v4351 = vadd.f32 %v4154, %v4350
        %v4352 = vpop.f32.mrf.mxu0
        %v4353 = vadd.f32 %v4156, %v4352
        %4354 = vmatmul.bf16.gmra.mxu0 %v4275
        %v4355 = vpop.f32.mrf.mxu0
        %v4356 = vadd.f32 %v4159, %v4355
        %v4357 = vpop.f32.mrf.mxu0
        %v4358 = vadd.f32 %v4161, %v4357
        %4359 = vmatmul.bf16.gmra.mxu0 %v4278
        %v4360 = vpop.f32.mrf.mxu0
        %v4361 = vadd.f32 %v4164, %v4360
        %v4362 = vpop.f32.mrf.mxu0
        %v4363 = vadd.f32 %v4166, %v4362
        %4364 = vmatmul.bf16.gmra.mxu0 %v4281
        %v4365 = vpop.f32.mrf.mxu0
        %v4366 = vadd.f32 %v4169, %v4365
        %v4367 = vpop.f32.mrf.mxu0
        %v4368 = vadd.f32 %v4171, %v4367
        %4369 = vmatmul.bf16.gmra.mxu0 %v4284
        %v4370 = vpop.f32.mrf.mxu0
        %v4371 = vadd.f32 %v4174, %v4370
        %v4372 = vpop.f32.mrf.mxu0
        %v4373 = vadd.f32 %v4176, %v4372
        %4374 = vdwg.mxu0
        %v4375 = vld [vmem:[#allocation2 + $0x4] sm:$0xf]
        %v4376 = vld [vmem:[#allocation2 + $0x8] sm:$0xf]
        %v4377 = vld [vmem:[#allocation2 + $0xc] sm:$0x1]
        %v4378 = vld [vmem:[#allocation2 + $0x14] sm:$0xf]
        %v4379 = vld [vmem:[#allocation2 + $0x18] sm:$0xf]
        %v4380 = vld [vmem:[#allocation2 + $0x1c] sm:$0x1]
        %v4381 = vld [vmem:[#allocation2 + $0x24] sm:$0xf]
        %v4382 = vld [vmem:[#allocation2 + $0x28] sm:$0xf]
        %v4383 = vld [vmem:[#allocation2 + $0x2c] sm:$0x1]
        %v4384 = vld [vmem:[#allocation2 + $0x34] sm:$0xf]
        %v4385 = vld [vmem:[#allocation2 + $0x38] sm:$0xf]
        %v4386 = vld [vmem:[#allocation2 + $0x3c] sm:$0x1]
        %v4387 = vld [vmem:[#allocation2 + $0x44] sm:$0xf]
        %v4388 = vld [vmem:[#allocation2 + $0x48] sm:$0xf]
        %v4389 = vld [vmem:[#allocation2 + $0x4c] sm:$0x1]
        %v4390 = vld [vmem:[#allocation2 + $0x54] sm:$0xf]
        %v4391 = vld [vmem:[#allocation2 + $0x58] sm:$0xf]
        %v4392 = vld [vmem:[#allocation2 + $0x5c] sm:$0x1]
        %v4393 = vld [vmem:[#allocation2 + $0x64] sm:$0xf]
        %v4394 = vld [vmem:[#allocation2 + $0x68] sm:$0xf]
        %v4395 = vld [vmem:[#allocation2 + $0x6c] sm:$0x1]
        %v4396 = vld [vmem:[#allocation2 + $0x74] sm:$0xf]
        %v4397 = vld [vmem:[#allocation2 + $0x78] sm:$0xf]
        %v4398 = vld [vmem:[#allocation2 + $0x7c] sm:$0x1]
        %v4399 = vld [vmem:[#allocation2 + $0x84] sm:$0xf]
        %v4400 = vld [vmem:[#allocation2 + $0x88] sm:$0xf]
        %v4401 = vld [vmem:[#allocation2 + $0x8c] sm:$0x1]
        %v4402 = vld [vmem:[#allocation2 + $0x94] sm:$0xf]
        %v4403 = vld [vmem:[#allocation2 + $0x98] sm:$0xf]
        %v4404 = vld [vmem:[#allocation2 + $0x9c] sm:$0x1]
        %v4405 = vld [vmem:[#allocation2 + $0xa4] sm:$0xf]
        %v4406 = vld [vmem:[#allocation2 + $0xa8] sm:$0xf]
        %v4407 = vld [vmem:[#allocation2 + $0xac] sm:$0x1]
        %v4408 = vld [vmem:[#allocation2 + $0xb4] sm:$0xf]
        %v4409 = vld [vmem:[#allocation2 + $0xb8] sm:$0xf]
        %v4410 = vld [vmem:[#allocation2 + $0xbc] sm:$0x1]
        %v4411 = vld [vmem:[#allocation2 + $0xc4] sm:$0xf]
        %v4412 = vld [vmem:[#allocation2 + $0xc8] sm:$0xf]
        %v4413 = vld [vmem:[#allocation2 + $0xcc] sm:$0x1]
        %v4414 = vld [vmem:[#allocation2 + $0xd4] sm:$0xf]
        %v4415 = vld [vmem:[#allocation2 + $0xd8] sm:$0xf]
        %v4416 = vld [vmem:[#allocation2 + $0xdc] sm:$0x1]
        %v4417 = vld [vmem:[#allocation2 + $0xe4] sm:$0xf]
        %v4418 = vld [vmem:[#allocation2 + $0xe8] sm:$0xf]
        %v4419 = vld [vmem:[#allocation2 + $0xec] sm:$0x1]
        %v4420 = vld [vmem:[#allocation2 + $0xf4] sm:$0xf]
        %v4421 = vld [vmem:[#allocation2 + $0xf8] sm:$0xf]
        %v4422 = vld [vmem:[#allocation2 + $0xfc] sm:$0x1]
        %vm4423 = vsmask.f32 3328
        %vm4424 = vsmask.f32 7440
        %vm4425 = vmor %vm4423, %vm4424
        %v4427 = vshrl.u32 %v4375, 16
        %v4429 = vrot.slane %v4427, 4
        %v4430 = vshll.u32 %v4375, 16
        %v4432 = vrot.slane %v4430, 5
        %v4433 = vor.u32 %v4429, %v4432
        %v4434 = vrot.slane %v4433, 4
        %v4436 = vshll.u32 %v4376, 16
        %v4438 = vrot.slane %v4436, 5
        %v4439 = vsel %vm4425, %v4434, %v4438
        %v4440 = vshrl.u32 %v4376, 16
        %v4442 = vrot.slane %v4440, 4
        %v4443 = vor.u32 %v4442, %v4438
        %v4444 = vrot.slane %v4443, 4
        %v4446 = vshll.u32 %v4377, 16
        %v4448 = vrot.slane %v4446, 5
        %v4449 = vsel %vm4425, %v4444, %v4448
        %v4451 = vshrl.u32 %v4378, 16
        %v4453 = vrot.slane %v4451, 4
        %v4454 = vshll.u32 %v4378, 16
        %v4456 = vrot.slane %v4454, 5
        %v4457 = vor.u32 %v4453, %v4456
        %v4458 = vrot.slane %v4457, 4
        %v4460 = vshll.u32 %v4379, 16
        %v4462 = vrot.slane %v4460, 5
        %v4463 = vsel %vm4425, %v4458, %v4462
        %v4464 = vshrl.u32 %v4379, 16
        %v4466 = vrot.slane %v4464, 4
        %v4467 = vor.u32 %v4466, %v4462
        %v4468 = vrot.slane %v4467, 4
        %v4470 = vshll.u32 %v4380, 16
        %v4472 = vrot.slane %v4470, 5
        %v4473 = vsel %vm4425, %v4468, %v4472
        %v4475 = vshrl.u32 %v4381, 16
        %v4477 = vrot.slane %v4475, 4
        %v4478 = vshll.u32 %v4381, 16
        %v4480 = vrot.slane %v4478, 5
        %v4481 = vor.u32 %v4477, %v4480
        %v4482 = vrot.slane %v4481, 4
        %v4484 = vshll.u32 %v4382, 16
        %v4486 = vrot.slane %v4484, 5
        %v4487 = vsel %vm4425, %v4482, %v4486
        %v4488 = vshrl.u32 %v4382, 16
        %v4490 = vrot.slane %v4488, 4
        %v4491 = vor.u32 %v4490, %v4486
        %v4492 = vrot.slane %v4491, 4
        %v4494 = vshll.u32 %v4383, 16
        %v4496 = vrot.slane %v4494, 5
        %v4497 = vsel %vm4425, %v4492, %v4496
        %v4499 = vshrl.u32 %v4384, 16
        %v4501 = vrot.slane %v4499, 4
        %v4502 = vshll.u32 %v4384, 16
        %v4504 = vrot.slane %v4502, 5
        %v4505 = vor.u32 %v4501, %v4504
        %v4506 = vrot.slane %v4505, 4
        %v4508 = vshll.u32 %v4385, 16
        %v4510 = vrot.slane %v4508, 5
        %v4511 = vsel %vm4425, %v4506, %v4510
        %v4512 = vshrl.u32 %v4385, 16
        %v4514 = vrot.slane %v4512, 4
        %v4515 = vor.u32 %v4514, %v4510
        %v4516 = vrot.slane %v4515, 4
        %v4518 = vshll.u32 %v4386, 16
        %v4520 = vrot.slane %v4518, 5
        %v4521 = vsel %vm4425, %v4516, %v4520
        %v4523 = vshrl.u32 %v4387, 16
        %v4525 = vrot.slane %v4523, 4
        %v4526 = vshll.u32 %v4387, 16
        %v4528 = vrot.slane %v4526, 5
        %v4529 = vor.u32 %v4525, %v4528
        %v4530 = vrot.slane %v4529, 4
        %v4532 = vshll.u32 %v4388, 16
        %v4534 = vrot.slane %v4532, 5
        %v4535 = vsel %vm4425, %v4530, %v4534
        %v4536 = vshrl.u32 %v4388, 16
        %v4538 = vrot.slane %v4536, 4
        %v4539 = vor.u32 %v4538, %v4534
        %v4540 = vrot.slane %v4539, 4
        %v4542 = vshll.u32 %v4389, 16
        %v4544 = vrot.slane %v4542, 5
        %v4545 = vsel %vm4425, %v4540, %v4544
        %v4547 = vshrl.u32 %v4390, 16
        %v4549 = vrot.slane %v4547, 4
        %v4550 = vshll.u32 %v4390, 16
        %v4552 = vrot.slane %v4550, 5
        %v4553 = vor.u32 %v4549, %v4552
        %v4554 = vrot.slane %v4553, 4
        %v4556 = vshll.u32 %v4391, 16
        %v4558 = vrot.slane %v4556, 5
        %v4559 = vsel %vm4425, %v4554, %v4558
        %v4560 = vshrl.u32 %v4391, 16
        %v4562 = vrot.slane %v4560, 4
        %v4563 = vor.u32 %v4562, %v4558
        %v4564 = vrot.slane %v4563, 4
        %v4566 = vshll.u32 %v4392, 16
        %v4568 = vrot.slane %v4566, 5
        %v4569 = vsel %vm4425, %v4564, %v4568
        %v4571 = vshrl.u32 %v4393, 16
        %v4573 = vrot.slane %v4571, 4
        %v4574 = vshll.u32 %v4393, 16
        %v4576 = vrot.slane %v4574, 5
        %v4577 = vor.u32 %v4573, %v4576
        %v4578 = vrot.slane %v4577, 4
        %v4580 = vshll.u32 %v4394, 16
        %v4582 = vrot.slane %v4580, 5
        %v4583 = vsel %vm4425, %v4578, %v4582
        %v4584 = vshrl.u32 %v4394, 16
        %v4586 = vrot.slane %v4584, 4
        %v4587 = vor.u32 %v4586, %v4582
        %v4588 = vrot.slane %v4587, 4
        %v4590 = vshll.u32 %v4395, 16
        %v4592 = vrot.slane %v4590, 5
        %v4593 = vsel %vm4425, %v4588, %v4592
        %v4595 = vshrl.u32 %v4396, 16
        %v4597 = vrot.slane %v4595, 4
        %v4598 = vshll.u32 %v4396, 16
        %v4600 = vrot.slane %v4598, 5
        %v4601 = vor.u32 %v4597, %v4600
        %v4602 = vrot.slane %v4601, 4
        %v4604 = vshll.u32 %v4397, 16
        %v4606 = vrot.slane %v4604, 5
        %v4607 = vsel %vm4425, %v4602, %v4606
        %v4608 = vshrl.u32 %v4397, 16
        %v4610 = vrot.slane %v4608, 4
        %v4611 = vor.u32 %v4610, %v4606
        %v4612 = vrot.slane %v4611, 4
        %v4614 = vshll.u32 %v4398, 16
        %v4616 = vrot.slane %v4614, 5
        %v4617 = vsel %vm4425, %v4612, %v4616
        %v4619 = vshrl.u32 %v4399, 16
        %v4621 = vrot.slane %v4619, 4
        %v4622 = vshll.u32 %v4399, 16
        %v4624 = vrot.slane %v4622, 5
        %v4625 = vor.u32 %v4621, %v4624
        %v4626 = vrot.slane %v4625, 4
        %v4628 = vshll.u32 %v4400, 16
        %v4630 = vrot.slane %v4628, 5
        %v4631 = vsel %vm4425, %v4626, %v4630
        %v4632 = vshrl.u32 %v4400, 16
        %v4634 = vrot.slane %v4632, 4
        %v4635 = vor.u32 %v4634, %v4630
        %v4636 = vrot.slane %v4635, 4
        %v4638 = vshll.u32 %v4401, 16
        %v4640 = vrot.slane %v4638, 5
        %v4641 = vsel %vm4425, %v4636, %v4640
        %v4643 = vshrl.u32 %v4402, 16
        %v4645 = vrot.slane %v4643, 4
        %v4646 = vshll.u32 %v4402, 16
        %v4648 = vrot.slane %v4646, 5
        %v4649 = vor.u32 %v4645, %v4648
        %v4650 = vrot.slane %v4649, 4
        %v4652 = vshll.u32 %v4403, 16
        %v4654 = vrot.slane %v4652, 5
        %v4655 = vsel %vm4425, %v4650, %v4654
        %v4656 = vshrl.u32 %v4403, 16
        %v4658 = vrot.slane %v4656, 4
        %v4659 = vor.u32 %v4658, %v4654
        %v4660 = vrot.slane %v4659, 4
        %v4662 = vshll.u32 %v4404, 16
        %v4664 = vrot.slane %v4662, 5
        %v4665 = vsel %vm4425, %v4660, %v4664
        %v4667 = vshrl.u32 %v4405, 16
        %v4669 = vrot.slane %v4667, 4
        %v4670 = vshll.u32 %v4405, 16
        %v4672 = vrot.slane %v4670, 5
        %v4673 = vor.u32 %v4669, %v4672
        %v4674 = vrot.slane %v4673, 4
        %v4676 = vshll.u32 %v4406, 16
        %v4678 = vrot.slane %v4676, 5
        %v4679 = vsel %vm4425, %v4674, %v4678
        %v4680 = vshrl.u32 %v4406, 16
        %v4682 = vrot.slane %v4680, 4
        %v4683 = vor.u32 %v4682, %v4678
        %v4684 = vrot.slane %v4683, 4
        %v4686 = vshll.u32 %v4407, 16
        %v4688 = vrot.slane %v4686, 5
        %v4689 = vsel %vm4425, %v4684, %v4688
        %v4691 = vshrl.u32 %v4408, 16
        %v4693 = vrot.slane %v4691, 4
        %v4694 = vshll.u32 %v4408, 16
        %v4696 = vrot.slane %v4694, 5
        %v4697 = vor.u32 %v4693, %v4696
        %v4698 = vrot.slane %v4697, 4
        %v4700 = vshll.u32 %v4409, 16
        %v4702 = vrot.slane %v4700, 5
        %v4703 = vsel %vm4425, %v4698, %v4702
        %v4704 = vshrl.u32 %v4409, 16
        %v4706 = vrot.slane %v4704, 4
        %v4707 = vor.u32 %v4706, %v4702
        %v4708 = vrot.slane %v4707, 4
        %v4710 = vshll.u32 %v4410, 16
        %v4712 = vrot.slane %v4710, 5
        %v4713 = vsel %vm4425, %v4708, %v4712
        %v4715 = vshrl.u32 %v4411, 16
        %v4717 = vrot.slane %v4715, 4
        %v4718 = vshll.u32 %v4411, 16
        %v4720 = vrot.slane %v4718, 5
        %v4721 = vor.u32 %v4717, %v4720
        %v4722 = vrot.slane %v4721, 4
        %v4724 = vshll.u32 %v4412, 16
        %v4726 = vrot.slane %v4724, 5
        %v4727 = vsel %vm4425, %v4722, %v4726
        %v4728 = vshrl.u32 %v4412, 16
        %v4730 = vrot.slane %v4728, 4
        %v4731 = vor.u32 %v4730, %v4726
        %v4732 = vrot.slane %v4731, 4
        %v4734 = vshll.u32 %v4413, 16
        %v4736 = vrot.slane %v4734, 5
        %v4737 = vsel %vm4425, %v4732, %v4736
        %v4739 = vshrl.u32 %v4414, 16
        %v4741 = vrot.slane %v4739, 4
        %v4742 = vshll.u32 %v4414, 16
        %v4744 = vrot.slane %v4742, 5
        %v4745 = vor.u32 %v4741, %v4744
        %v4746 = vrot.slane %v4745, 4
        %v4748 = vshll.u32 %v4415, 16
        %v4750 = vrot.slane %v4748, 5
        %v4751 = vsel %vm4425, %v4746, %v4750
        %v4752 = vshrl.u32 %v4415, 16
        %v4754 = vrot.slane %v4752, 4
        %v4755 = vor.u32 %v4754, %v4750
        %v4756 = vrot.slane %v4755, 4
        %v4758 = vshll.u32 %v4416, 16
        %v4760 = vrot.slane %v4758, 5
        %v4761 = vsel %vm4425, %v4756, %v4760
        %v4763 = vshrl.u32 %v4417, 16
        %v4765 = vrot.slane %v4763, 4
        %v4766 = vshll.u32 %v4417, 16
        %v4768 = vrot.slane %v4766, 5
        %v4769 = vor.u32 %v4765, %v4768
        %v4770 = vrot.slane %v4769, 4
        %v4772 = vshll.u32 %v4418, 16
        %v4774 = vrot.slane %v4772, 5
        %v4775 = vsel %vm4425, %v4770, %v4774
        %v4776 = vshrl.u32 %v4418, 16
        %v4778 = vrot.slane %v4776, 4
        %v4779 = vor.u32 %v4778, %v4774
        %v4780 = vrot.slane %v4779, 4
        %v4782 = vshll.u32 %v4419, 16
        %v4784 = vrot.slane %v4782, 5
        %v4785 = vsel %vm4425, %v4780, %v4784
        %v4787 = vshrl.u32 %v4420, 16
        %v4789 = vrot.slane %v4787, 4
        %v4790 = vshll.u32 %v4420, 16
        %v4792 = vrot.slane %v4790, 5
        %v4793 = vor.u32 %v4789, %v4792
        %v4794 = vrot.slane %v4793, 4
        %v4796 = vshll.u32 %v4421, 16
        %v4798 = vrot.slane %v4796, 5
        %v4799 = vsel %vm4425, %v4794, %v4798
        %v4800 = vshrl.u32 %v4421, 16
        %v4802 = vrot.slane %v4800, 4
        %v4803 = vor.u32 %v4802, %v4798
        %v4804 = vrot.slane %v4803, 4
        %v4806 = vshll.u32 %v4422, 16
        %v4808 = vrot.slane %v4806, 5
        %v4809 = vsel %vm4425, %v4804, %v4808
        %s4810 = scalar_lea.vmem %s7, 32
        %v4811 = vld [vmem:[%s4810] sm:$0xf]
        %v4812 = vld [vmem:[%s4810 + $0x4] sm:$0xf]
        %v4813 = vld [vmem:[%s4810 + $0x8] sm:$0xf]
        %v4814 = vld [vmem:[%s4810 + $0xc] sm:$0xf]
        %v4815 = vunpack.c.l.b16 %v4439
        %v4816 = vunpack.c.l.b16 %v4449
        %v4817 = vunpack.c.l.b16 %v4463
        %v4818 = vunpack.c.l.b16 %v4473
        %v4819 = vunpack.c.l.b16 %v4487
        %v4820 = vunpack.c.l.b16 %v4497
        %v4821 = vunpack.c.l.b16 %v4511
        %v4822 = vunpack.c.l.b16 %v4521
        %v4823 = vunpack.c.l.b16 %v4535
        %v4824 = vunpack.c.l.b16 %v4545
        %v4825 = vunpack.c.l.b16 %v4559
        %v4826 = vunpack.c.l.b16 %v4569
        %v4827 = vunpack.c.l.b16 %v4583
        %v4828 = vunpack.c.l.b16 %v4593
        %v4829 = vunpack.c.l.b16 %v4607
        %v4830 = vunpack.c.l.b16 %v4617
        %v4831 = vunpack.c.l.b16 %v4631
        %v4832 = vunpack.c.l.b16 %v4641
        %v4833 = vunpack.c.l.b16 %v4655
        %v4834 = vunpack.c.l.b16 %v4665
        %v4835 = vunpack.c.l.b16 %v4679
        %v4836 = vunpack.c.l.b16 %v4689
        %v4837 = vunpack.c.l.b16 %v4703
        %v4838 = vunpack.c.l.b16 %v4713
        %v4839 = vunpack.c.l.b16 %v4727
        %v4840 = vunpack.c.l.b16 %v4737
        %v4841 = vunpack.c.l.b16 %v4751
        %v4842 = vunpack.c.l.b16 %v4761
        %v4843 = vunpack.c.l.b16 %v4775
        %v4844 = vunpack.c.l.b16 %v4785
        %v4845 = vunpack.c.l.b16 %v4799
        %v4846 = vunpack.c.l.b16 %v4809
        %v4847 = vpack.c.b16 %v4816, %v4815
        %v4848 = vpack.c.b16 %v4818, %v4817
        %v4849 = vpack.c.b16 %v4820, %v4819
        %v4850 = vpack.c.b16 %v4822, %v4821
        %v4851 = vpack.c.b16 %v4824, %v4823
        %v4852 = vpack.c.b16 %v4826, %v4825
        %v4853 = vpack.c.b16 %v4828, %v4827
        %v4854 = vpack.c.b16 %v4830, %v4829
        %v4855 = vpack.c.b16 %v4832, %v4831
        %v4856 = vpack.c.b16 %v4834, %v4833
        %v4857 = vpack.c.b16 %v4836, %v4835
        %v4858 = vpack.c.b16 %v4838, %v4837
        %v4859 = vpack.c.b16 %v4840, %v4839
        %v4860 = vpack.c.b16 %v4842, %v4841
        %v4861 = vpack.c.b16 %v4844, %v4843
        %v4862 = vpack.c.b16 %v4846, %v4845
        %v4867 = vunpack.c.l.b16 %v4811
        %v4868 = vunpack.c.l.b16 %v4812
        %v4869 = vunpack.c.l.b16 %v4813
        %v4870 = vunpack.c.l.b16 %v4814
        %v4871 = vpack.c.b16 %v4868, %v4867
        %v4872 = vpack.c.b16 %v4870, %v4869
        %v4876 = vsel %vm4040, %v4847, 0
        %v4879 = vsel %vm4040, %v4848, 0
        %v4882 = vsel %vm4040, %v4849, 0
        %v4885 = vsel %vm4040, %v4850, 0
        %v4888 = vsel %vm4040, %v4851, 0
        %v4891 = vsel %vm4040, %v4852, 0
        %v4894 = vsel %vm4040, %v4853, 0
        %v4897 = vsel %vm4040, %v4854, 0
        %v4900 = vsel %vm4040, %v4855, 0
        %v4903 = vsel %vm4040, %v4856, 0
        %v4906 = vsel %vm4040, %v4857, 0
        %v4909 = vsel %vm4040, %v4858, 0
        %v4912 = vsel %vm4040, %v4859, 0
        %v4915 = vsel %vm4040, %v4860, 0
        %v4918 = vsel %vm4040, %v4861, 0
        %v4921 = vsel %vm4040, %v4862, 0
        %4923 = vmatpush.bf16.msra.mxu0 0
        %4924 = vmatpush.bf16.msra.mxu0 0
        %4925 = vmatpush.bf16.msra.mxu0 0
        %4926 = vmatpush.bf16.msra.mxu0 0
        %4927 = vmatpush.bf16.msra.mxu0 0
        %4928 = vmatpush.bf16.msra.mxu0 0
        %4929 = vmatpush.bf16.msra.mxu0 %v4872
        %4930 = vmatpush.bf16.msra.mxu0 %v4871
        %4931 = vmatmul.bf16.gmra.mxu0 %v4876
        %v4932 = vpop.f32.mrf.mxu0
        %v4933 = vadd.f32 0.0, %v4932
        %v4934 = vpop.f32.mrf.mxu0
        %v4935 = vadd.f32 0.0, %v4934
        %4936 = vmatmul.bf16.gmra.mxu0 %v4879
        %v4937 = vpop.f32.mrf.mxu0
        %v4938 = vadd.f32 0.0, %v4937
        %v4939 = vpop.f32.mrf.mxu0
        %v4940 = vadd.f32 0.0, %v4939
        %4941 = vmatmul.bf16.gmra.mxu0 %v4882
        %v4942 = vpop.f32.mrf.mxu0
        %v4943 = vadd.f32 0.0, %v4942
        %v4944 = vpop.f32.mrf.mxu0
        %v4945 = vadd.f32 0.0, %v4944
        %4946 = vmatmul.bf16.gmra.mxu0 %v4885
        %v4947 = vpop.f32.mrf.mxu0
        %v4948 = vadd.f32 0.0, %v4947
        %v4949 = vpop.f32.mrf.mxu0
        %v4950 = vadd.f32 0.0, %v4949
        %4951 = vmatmul.bf16.gmra.mxu0 %v4888
        %v4952 = vpop.f32.mrf.mxu0
        %v4953 = vadd.f32 0.0, %v4952
        %v4954 = vpop.f32.mrf.mxu0
        %v4955 = vadd.f32 0.0, %v4954
        %4956 = vmatmul.bf16.gmra.mxu0 %v4891
        %v4957 = vpop.f32.mrf.mxu0
        %v4958 = vadd.f32 0.0, %v4957
        %v4959 = vpop.f32.mrf.mxu0
        %v4960 = vadd.f32 0.0, %v4959
        %4961 = vmatmul.bf16.gmra.mxu0 %v4894
        %v4962 = vpop.f32.mrf.mxu0
        %v4963 = vadd.f32 0.0, %v4962
        %v4964 = vpop.f32.mrf.mxu0
        %v4965 = vadd.f32 0.0, %v4964
        %4966 = vmatmul.bf16.gmra.mxu0 %v4897
        %v4967 = vpop.f32.mrf.mxu0
        %v4968 = vadd.f32 0.0, %v4967
        %v4969 = vpop.f32.mrf.mxu0
        %v4970 = vadd.f32 0.0, %v4969
        %4971 = vmatmul.bf16.gmra.mxu0 %v4900
        %v4972 = vpop.f32.mrf.mxu0
        %v4973 = vadd.f32 0.0, %v4972
        %v4974 = vpop.f32.mrf.mxu0
        %v4975 = vadd.f32 0.0, %v4974
        %4976 = vmatmul.bf16.gmra.mxu0 %v4903
        %v4977 = vpop.f32.mrf.mxu0
        %v4978 = vadd.f32 0.0, %v4977
        %v4979 = vpop.f32.mrf.mxu0
        %v4980 = vadd.f32 0.0, %v4979
        %4981 = vmatmul.bf16.gmra.mxu0 %v4906
        %v4982 = vpop.f32.mrf.mxu0
        %v4983 = vadd.f32 0.0, %v4982
        %v4984 = vpop.f32.mrf.mxu0
        %v4985 = vadd.f32 0.0, %v4984
        %4986 = vmatmul.bf16.gmra.mxu0 %v4909
        %v4987 = vpop.f32.mrf.mxu0
        %v4988 = vadd.f32 0.0, %v4987
        %v4989 = vpop.f32.mrf.mxu0
        %v4990 = vadd.f32 0.0, %v4989
        %4991 = vmatmul.bf16.gmra.mxu0 %v4912
        %v4992 = vpop.f32.mrf.mxu0
        %v4993 = vadd.f32 0.0, %v4992
        %v4994 = vpop.f32.mrf.mxu0
        %v4995 = vadd.f32 0.0, %v4994
        %4996 = vmatmul.bf16.gmra.mxu0 %v4915
        %v4997 = vpop.f32.mrf.mxu0
        %v4998 = vadd.f32 0.0, %v4997
        %v4999 = vpop.f32.mrf.mxu0
        %v5000 = vadd.f32 0.0, %v4999
        %5001 = vmatmul.bf16.gmra.mxu0 %v4918
        %v5002 = vpop.f32.mrf.mxu0
        %v5003 = vadd.f32 0.0, %v5002
        %v5004 = vpop.f32.mrf.mxu0
        %v5005 = vadd.f32 0.0, %v5004
        %5006 = vmatmul.bf16.gmra.mxu0 %v4921
        %v5007 = vpop.f32.mrf.mxu0
        %v5008 = vadd.f32 0.0, %v5007
        %v5009 = vpop.f32.mrf.mxu0
        %v5010 = vadd.f32 0.0, %v5009
        %5011 = vdwg.mxu0
        %v5012 = vadd.f32 %v4296, %v4933
        %v5013 = vadd.f32 %v4298, %v4935
        %v5014 = vadd.f32 %v4301, %v4938
        %v5015 = vadd.f32 %v4303, %v4940
        %v5016 = vadd.f32 %v4306, %v4943
        %v5017 = vadd.f32 %v4308, %v4945
        %v5018 = vadd.f32 %v4311, %v4948
        %v5019 = vadd.f32 %v4313, %v4950
        %v5020 = vadd.f32 %v4316, %v4953
        %v5021 = vadd.f32 %v4318, %v4955
        %v5022 = vadd.f32 %v4321, %v4958
        %v5023 = vadd.f32 %v4323, %v4960
        %v5024 = vadd.f32 %v4326, %v4963
        %v5025 = vadd.f32 %v4328, %v4965
        %v5026 = vadd.f32 %v4331, %v4968
        %v5027 = vadd.f32 %v4333, %v4970
        %v5028 = vadd.f32 %v4336, %v4973
        %v5029 = vadd.f32 %v4338, %v4975
        %v5030 = vadd.f32 %v4341, %v4978
        %v5031 = vadd.f32 %v4343, %v4980
        %v5032 = vadd.f32 %v4346, %v4983
        %v5033 = vadd.f32 %v4348, %v4985
        %v5034 = vadd.f32 %v4351, %v4988
        %v5035 = vadd.f32 %v4353, %v4990
        %v5036 = vadd.f32 %v4356, %v4993
        %v5037 = vadd.f32 %v4358, %v4995
        %v5038 = vadd.f32 %v4361, %v4998
        %v5039 = vadd.f32 %v4363, %v5000
        %v5040 = vadd.f32 %v4366, %v5003
        %v5041 = vadd.f32 %v4368, %v5005
        %v5042 = vadd.f32 %v4371, %v5008
        %v5043 = vadd.f32 %v4373, %v5010
        %v5044 = vld [vmem:[%s410] sm:$0x8]
        %v5045 = vld [vmem:[%s410 + $0x4] sm:$0xf]
        %v5046 = vld [vmem:[%s410 + $0x8] sm:$0xf]
        %v5047 = vld [vmem:[%s410 + $0x10] sm:$0x8]
        %v5048 = vld [vmem:[%s410 + $0x14] sm:$0xf]
        %v5049 = vld [vmem:[%s410 + $0x18] sm:$0xf]
        %v5050 = vld [vmem:[%s410 + $0x20] sm:$0x8]
        %v5051 = vld [vmem:[%s410 + $0x24] sm:$0xf]
        %v5052 = vld [vmem:[%s410 + $0x28] sm:$0xf]
        %v5053 = vld [vmem:[%s410 + $0x30] sm:$0x8]
        %v5054 = vld [vmem:[%s410 + $0x34] sm:$0xf]
        %v5055 = vld [vmem:[%s410 + $0x38] sm:$0xf]
        %v5056 = vld [vmem:[%s410 + $0x40] sm:$0x8]
        %v5057 = vld [vmem:[%s410 + $0x44] sm:$0xf]
        %v5058 = vld [vmem:[%s410 + $0x48] sm:$0xf]
        %v5059 = vld [vmem:[%s410 + $0x50] sm:$0x8]
        %v5060 = vld [vmem:[%s410 + $0x54] sm:$0xf]
        %v5061 = vld [vmem:[%s410 + $0x58] sm:$0xf]
        %v5062 = vld [vmem:[%s410 + $0x60] sm:$0x8]
        %v5063 = vld [vmem:[%s410 + $0x64] sm:$0xf]
        %v5064 = vld [vmem:[%s410 + $0x68] sm:$0xf]
        %v5065 = vld [vmem:[%s410 + $0x70] sm:$0x8]
        %v5066 = vld [vmem:[%s410 + $0x74] sm:$0xf]
        %v5067 = vld [vmem:[%s410 + $0x78] sm:$0xf]
        %v5068 = vld [vmem:[%s410 + $0x80] sm:$0x8]
        %v5069 = vld [vmem:[%s410 + $0x84] sm:$0xf]
        %v5070 = vld [vmem:[%s410 + $0x88] sm:$0xf]
        %v5071 = vld [vmem:[%s410 + $0x90] sm:$0x8]
        %v5072 = vld [vmem:[%s410 + $0x94] sm:$0xf]
        %v5073 = vld [vmem:[%s410 + $0x98] sm:$0xf]
        %v5074 = vld [vmem:[%s410 + $0xa0] sm:$0x8]
        %v5075 = vld [vmem:[%s410 + $0xa4] sm:$0xf]
        %v5076 = vld [vmem:[%s410 + $0xa8] sm:$0xf]
        %v5077 = vld [vmem:[%s410 + $0xb0] sm:$0x8]
        %v5078 = vld [vmem:[%s410 + $0xb4] sm:$0xf]
        %v5079 = vld [vmem:[%s410 + $0xb8] sm:$0xf]
        %v5080 = vld [vmem:[%s410 + $0xc0] sm:$0x8]
        %v5081 = vld [vmem:[%s410 + $0xc4] sm:$0xf]
        %v5082 = vld [vmem:[%s410 + $0xc8] sm:$0xf]
        %v5083 = vld [vmem:[%s410 + $0xd0] sm:$0x8]
        %v5084 = vld [vmem:[%s410 + $0xd4] sm:$0xf]
        %v5085 = vld [vmem:[%s410 + $0xd8] sm:$0xf]
        %v5086 = vld [vmem:[%s410 + $0xe0] sm:$0x8]
        %v5087 = vld [vmem:[%s410 + $0xe4] sm:$0xf]
        %v5088 = vld [vmem:[%s410 + $0xe8] sm:$0xf]
        %v5089 = vld [vmem:[%s410 + $0xf0] sm:$0x8]
        %v5090 = vld [vmem:[%s410 + $0xf4] sm:$0xf]
        %v5091 = vld [vmem:[%s410 + $0xf8] sm:$0xf]
        %v5093 = vshrl.u32 %v5044, 16
        %v5095 = vrot.slane %v5093, 7
        %v5096 = vrot.slane %v5095, 4
        %v5098 = vshrl.u32 %v5045, 16
        %v5100 = vrot.slane %v5098, 7
        %v5101 = vshll.u32 %v5045, 16
        %v5103 = vor.u32 %v5100, %v5101
        %v5104 = vsel %vm3122, %v5096, %v5103
        %v5105 = vrot.slane %v5100, 4
        %v5107 = vshrl.u32 %v5046, 16
        %v5109 = vrot.slane %v5107, 7
        %v5110 = vshll.u32 %v5046, 16
        %v5112 = vor.u32 %v5109, %v5110
        %v5113 = vsel %vm3122, %v5105, %v5112
        %v5115 = vshrl.u32 %v5047, 16
        %v5117 = vrot.slane %v5115, 7
        %v5118 = vrot.slane %v5117, 4
        %v5120 = vshrl.u32 %v5048, 16
        %v5122 = vrot.slane %v5120, 7
        %v5123 = vshll.u32 %v5048, 16
        %v5125 = vor.u32 %v5122, %v5123
        %v5126 = vsel %vm3122, %v5118, %v5125
        %v5127 = vrot.slane %v5122, 4
        %v5129 = vshrl.u32 %v5049, 16
        %v5131 = vrot.slane %v5129, 7
        %v5132 = vshll.u32 %v5049, 16
        %v5134 = vor.u32 %v5131, %v5132
        %v5135 = vsel %vm3122, %v5127, %v5134
        %v5137 = vshrl.u32 %v5050, 16
        %v5139 = vrot.slane %v5137, 7
        %v5140 = vrot.slane %v5139, 4
        %v5142 = vshrl.u32 %v5051, 16
        %v5144 = vrot.slane %v5142, 7
        %v5145 = vshll.u32 %v5051, 16
        %v5147 = vor.u32 %v5144, %v5145
        %v5148 = vsel %vm3122, %v5140, %v5147
        %v5149 = vrot.slane %v5144, 4
        %v5151 = vshrl.u32 %v5052, 16
        %v5153 = vrot.slane %v5151, 7
        %v5154 = vshll.u32 %v5052, 16
        %v5156 = vor.u32 %v5153, %v5154
        %v5157 = vsel %vm3122, %v5149, %v5156
        %v5159 = vshrl.u32 %v5053, 16
        %v5161 = vrot.slane %v5159, 7
        %v5162 = vrot.slane %v5161, 4
        %v5164 = vshrl.u32 %v5054, 16
        %v5166 = vrot.slane %v5164, 7
        %v5167 = vshll.u32 %v5054, 16
        %v5169 = vor.u32 %v5166, %v5167
        %v5170 = vsel %vm3122, %v5162, %v5169
        %v5171 = vrot.slane %v5166, 4
        %v5173 = vshrl.u32 %v5055, 16
        %v5175 = vrot.slane %v5173, 7
        %v5176 = vshll.u32 %v5055, 16
        %v5178 = vor.u32 %v5175, %v5176
        %v5179 = vsel %vm3122, %v5171, %v5178
        %v5181 = vshrl.u32 %v5056, 16
        %v5183 = vrot.slane %v5181, 7
        %v5184 = vrot.slane %v5183, 4
        %v5186 = vshrl.u32 %v5057, 16
        %v5188 = vrot.slane %v5186, 7
        %v5189 = vshll.u32 %v5057, 16
        %v5191 = vor.u32 %v5188, %v5189
        %v5192 = vsel %vm3122, %v5184, %v5191
        %v5193 = vrot.slane %v5188, 4
        %v5195 = vshrl.u32 %v5058, 16
        %v5197 = vrot.slane %v5195, 7
        %v5198 = vshll.u32 %v5058, 16
        %v5200 = vor.u32 %v5197, %v5198
        %v5201 = vsel %vm3122, %v5193, %v5200
        %v5203 = vshrl.u32 %v5059, 16
        %v5205 = vrot.slane %v5203, 7
        %v5206 = vrot.slane %v5205, 4
        %v5208 = vshrl.u32 %v5060, 16
        %v5210 = vrot.slane %v5208, 7
        %v5211 = vshll.u32 %v5060, 16
        %v5213 = vor.u32 %v5210, %v5211
        %v5214 = vsel %vm3122, %v5206, %v5213
        %v5215 = vrot.slane %v5210, 4
        %v5217 = vshrl.u32 %v5061, 16
        %v5219 = vrot.slane %v5217, 7
        %v5220 = vshll.u32 %v5061, 16
        %v5222 = vor.u32 %v5219, %v5220
        %v5223 = vsel %vm3122, %v5215, %v5222
        %v5225 = vshrl.u32 %v5062, 16
        %v5227 = vrot.slane %v5225, 7
        %v5228 = vrot.slane %v5227, 4
        %v5230 = vshrl.u32 %v5063, 16
        %v5232 = vrot.slane %v5230, 7
        %v5233 = vshll.u32 %v5063, 16
        %v5235 = vor.u32 %v5232, %v5233
        %v5236 = vsel %vm3122, %v5228, %v5235
        %v5237 = vrot.slane %v5232, 4
        %v5239 = vshrl.u32 %v5064, 16
        %v5241 = vrot.slane %v5239, 7
        %v5242 = vshll.u32 %v5064, 16
        %v5244 = vor.u32 %v5241, %v5242
        %v5245 = vsel %vm3122, %v5237, %v5244
        %v5247 = vshrl.u32 %v5065, 16
        %v5249 = vrot.slane %v5247, 7
        %v5250 = vrot.slane %v5249, 4
        %v5252 = vshrl.u32 %v5066, 16
        %v5254 = vrot.slane %v5252, 7
        %v5255 = vshll.u32 %v5066, 16
        %v5257 = vor.u32 %v5254, %v5255
        %v5258 = vsel %vm3122, %v5250, %v5257
        %v5259 = vrot.slane %v5254, 4
        %v5261 = vshrl.u32 %v5067, 16
        %v5263 = vrot.slane %v5261, 7
        %v5264 = vshll.u32 %v5067, 16
        %v5266 = vor.u32 %v5263, %v5264
        %v5267 = vsel %vm3122, %v5259, %v5266
        %v5269 = vshrl.u32 %v5068, 16
        %v5271 = vrot.slane %v5269, 7
        %v5272 = vrot.slane %v5271, 4
        %v5274 = vshrl.u32 %v5069, 16
        %v5276 = vrot.slane %v5274, 7
        %v5277 = vshll.u32 %v5069, 16
        %v5279 = vor.u32 %v5276, %v5277
        %v5280 = vsel %vm3122, %v5272, %v5279
        %v5281 = vrot.slane %v5276, 4
        %v5283 = vshrl.u32 %v5070, 16
        %v5285 = vrot.slane %v5283, 7
        %v5286 = vshll.u32 %v5070, 16
        %v5288 = vor.u32 %v5285, %v5286
        %v5289 = vsel %vm3122, %v5281, %v5288
        %v5291 = vshrl.u32 %v5071, 16
        %v5293 = vrot.slane %v5291, 7
        %v5294 = vrot.slane %v5293, 4
        %v5296 = vshrl.u32 %v5072, 16
        %v5298 = vrot.slane %v5296, 7
        %v5299 = vshll.u32 %v5072, 16
        %v5301 = vor.u32 %v5298, %v5299
        %v5302 = vsel %vm3122, %v5294, %v5301
        %v5303 = vrot.slane %v5298, 4
        %v5305 = vshrl.u32 %v5073, 16
        %v5307 = vrot.slane %v5305, 7
        %v5308 = vshll.u32 %v5073, 16
        %v5310 = vor.u32 %v5307, %v5308
        %v5311 = vsel %vm3122, %v5303, %v5310
        %v5313 = vshrl.u32 %v5074, 16
        %v5315 = vrot.slane %v5313, 7
        %v5316 = vrot.slane %v5315, 4
        %v5318 = vshrl.u32 %v5075, 16
        %v5320 = vrot.slane %v5318, 7
        %v5321 = vshll.u32 %v5075, 16
        %v5323 = vor.u32 %v5320, %v5321
        %v5324 = vsel %vm3122, %v5316, %v5323
        %v5325 = vrot.slane %v5320, 4
        %v5327 = vshrl.u32 %v5076, 16
        %v5329 = vrot.slane %v5327, 7
        %v5330 = vshll.u32 %v5076, 16
        %v5332 = vor.u32 %v5329, %v5330
        %v5333 = vsel %vm3122, %v5325, %v5332
        %v5335 = vshrl.u32 %v5077, 16
        %v5337 = vrot.slane %v5335, 7
        %v5338 = vrot.slane %v5337, 4
        %v5340 = vshrl.u32 %v5078, 16
        %v5342 = vrot.slane %v5340, 7
        %v5343 = vshll.u32 %v5078, 16
        %v5345 = vor.u32 %v5342, %v5343
        %v5346 = vsel %vm3122, %v5338, %v5345
        %v5347 = vrot.slane %v5342, 4
        %v5349 = vshrl.u32 %v5079, 16
        %v5351 = vrot.slane %v5349, 7
        %v5352 = vshll.u32 %v5079, 16
        %v5354 = vor.u32 %v5351, %v5352
        %v5355 = vsel %vm3122, %v5347, %v5354
        %v5357 = vshrl.u32 %v5080, 16
        %v5359 = vrot.slane %v5357, 7
        %v5360 = vrot.slane %v5359, 4
        %v5362 = vshrl.u32 %v5081, 16
        %v5364 = vrot.slane %v5362, 7
        %v5365 = vshll.u32 %v5081, 16
        %v5367 = vor.u32 %v5364, %v5365
        %v5368 = vsel %vm3122, %v5360, %v5367
        %v5369 = vrot.slane %v5364, 4
        %v5371 = vshrl.u32 %v5082, 16
        %v5373 = vrot.slane %v5371, 7
        %v5374 = vshll.u32 %v5082, 16
        %v5376 = vor.u32 %v5373, %v5374
        %v5377 = vsel %vm3122, %v5369, %v5376
        %v5379 = vshrl.u32 %v5083, 16
        %v5381 = vrot.slane %v5379, 7
        %v5382 = vrot.slane %v5381, 4
        %v5384 = vshrl.u32 %v5084, 16
        %v5386 = vrot.slane %v5384, 7
        %v5387 = vshll.u32 %v5084, 16
        %v5389 = vor.u32 %v5386, %v5387
        %v5390 = vsel %vm3122, %v5382, %v5389
        %v5391 = vrot.slane %v5386, 4
        %v5393 = vshrl.u32 %v5085, 16
        %v5395 = vrot.slane %v5393, 7
        %v5396 = vshll.u32 %v5085, 16
        %v5398 = vor.u32 %v5395, %v5396
        %v5399 = vsel %vm3122, %v5391, %v5398
        %v5401 = vshrl.u32 %v5086, 16
        %v5403 = vrot.slane %v5401, 7
        %v5404 = vrot.slane %v5403, 4
        %v5406 = vshrl.u32 %v5087, 16
        %v5408 = vrot.slane %v5406, 7
        %v5409 = vshll.u32 %v5087, 16
        %v5411 = vor.u32 %v5408, %v5409
        %v5412 = vsel %vm3122, %v5404, %v5411
        %v5413 = vrot.slane %v5408, 4
        %v5415 = vshrl.u32 %v5088, 16
        %v5417 = vrot.slane %v5415, 7
        %v5418 = vshll.u32 %v5088, 16
        %v5420 = vor.u32 %v5417, %v5418
        %v5421 = vsel %vm3122, %v5413, %v5420
        %v5423 = vshrl.u32 %v5089, 16
        %v5425 = vrot.slane %v5423, 7
        %v5426 = vrot.slane %v5425, 4
        %v5428 = vshrl.u32 %v5090, 16
        %v5430 = vrot.slane %v5428, 7
        %v5431 = vshll.u32 %v5090, 16
        %v5433 = vor.u32 %v5430, %v5431
        %v5434 = vsel %vm3122, %v5426, %v5433
        %v5435 = vrot.slane %v5430, 4
        %v5437 = vshrl.u32 %v5091, 16
        %v5439 = vrot.slane %v5437, 7
        %v5440 = vshll.u32 %v5091, 16
        %v5442 = vor.u32 %v5439, %v5440
        %v5443 = vsel %vm3122, %v5435, %v5442
        %s5444 = scalar_lea.vmem %s7, 48
        %v5445 = vld [vmem:[%s5444] sm:$0xf]
        %v5446 = vld [vmem:[%s5444 + $0x4] sm:$0xf]
        %v5447 = vld [vmem:[%s5444 + $0x8] sm:$0xf]
        %v5448 = vld [vmem:[%s5444 + $0xc] sm:$0xf]
        %v5449 = vunpack.c.l.b16 %v5104
        %v5450 = vunpack.c.l.b16 %v5113
        %v5451 = vunpack.c.l.b16 %v5126
        %v5452 = vunpack.c.l.b16 %v5135
        %v5453 = vunpack.c.l.b16 %v5148
        %v5454 = vunpack.c.l.b16 %v5157
        %v5455 = vunpack.c.l.b16 %v5170
        %v5456 = vunpack.c.l.b16 %v5179
        %v5457 = vunpack.c.l.b16 %v5192
        %v5458 = vunpack.c.l.b16 %v5201
        %v5459 = vunpack.c.l.b16 %v5214
        %v5460 = vunpack.c.l.b16 %v5223
        %v5461 = vunpack.c.l.b16 %v5236
        %v5462 = vunpack.c.l.b16 %v5245
        %v5463 = vunpack.c.l.b16 %v5258
        %v5464 = vunpack.c.l.b16 %v5267
        %v5465 = vunpack.c.l.b16 %v5280
        %v5466 = vunpack.c.l.b16 %v5289
        %v5467 = vunpack.c.l.b16 %v5302
        %v5468 = vunpack.c.l.b16 %v5311
        %v5469 = vunpack.c.l.b16 %v5324
        %v5470 = vunpack.c.l.b16 %v5333
        %v5471 = vunpack.c.l.b16 %v5346
        %v5472 = vunpack.c.l.b16 %v5355
        %v5473 = vunpack.c.l.b16 %v5368
        %v5474 = vunpack.c.l.b16 %v5377
        %v5475 = vunpack.c.l.b16 %v5390
        %v5476 = vunpack.c.l.b16 %v5399
        %v5477 = vunpack.c.l.b16 %v5412
        %v5478 = vunpack.c.l.b16 %v5421
        %v5479 = vunpack.c.l.b16 %v5434
        %v5480 = vunpack.c.l.b16 %v5443
        %v5481 = vpack.c.b16 %v5450, %v5449
        %v5482 = vpack.c.b16 %v5452, %v5451
        %v5483 = vpack.c.b16 %v5454, %v5453
        %v5484 = vpack.c.b16 %v5456, %v5455
        %v5485 = vpack.c.b16 %v5458, %v5457
        %v5486 = vpack.c.b16 %v5460, %v5459
        %v5487 = vpack.c.b16 %v5462, %v5461
        %v5488 = vpack.c.b16 %v5464, %v5463
        %v5489 = vpack.c.b16 %v5466, %v5465
        %v5490 = vpack.c.b16 %v5468, %v5467
        %v5491 = vpack.c.b16 %v5470, %v5469
        %v5492 = vpack.c.b16 %v5472, %v5471
        %v5493 = vpack.c.b16 %v5474, %v5473
        %v5494 = vpack.c.b16 %v5476, %v5475
        %v5495 = vpack.c.b16 %v5478, %v5477
        %v5496 = vpack.c.b16 %v5480, %v5479
        %v5501 = vunpack.c.l.b16 %v5445
        %v5502 = vunpack.c.l.b16 %v5446
        %v5503 = vunpack.c.l.b16 %v5447
        %v5504 = vunpack.c.l.b16 %v5448
        %v5505 = vpack.c.b16 %v5502, %v5501
        %v5506 = vpack.c.b16 %v5504, %v5503
        %v5510 = vsel %vm4040, %v5481, 0
        %v5513 = vsel %vm4040, %v5482, 0
        %v5516 = vsel %vm4040, %v5483, 0
        %v5519 = vsel %vm4040, %v5484, 0
        %v5522 = vsel %vm4040, %v5485, 0
        %v5525 = vsel %vm4040, %v5486, 0
        %v5528 = vsel %vm4040, %v5487, 0
        %v5531 = vsel %vm4040, %v5488, 0
        %v5534 = vsel %vm4040, %v5489, 0
        %v5537 = vsel %vm4040, %v5490, 0
        %v5540 = vsel %vm4040, %v5491, 0
        %v5543 = vsel %vm4040, %v5492, 0
        %v5546 = vsel %vm4040, %v5493, 0
        %v5549 = vsel %vm4040, %v5494, 0
        %v5552 = vsel %vm4040, %v5495, 0
        %v5555 = vsel %vm4040, %v5496, 0
        %5557 = vmatpush.bf16.msra.mxu0 0
        %5558 = vmatpush.bf16.msra.mxu0 0
        %5559 = vmatpush.bf16.msra.mxu0 0
        %5560 = vmatpush.bf16.msra.mxu0 0
        %5561 = vmatpush.bf16.msra.mxu0 0
        %5562 = vmatpush.bf16.msra.mxu0 0
        %5563 = vmatpush.bf16.msra.mxu0 %v5506
        %5564 = vmatpush.bf16.msra.mxu0 %v5505
        %5565 = vmatmul.bf16.gmra.mxu0 %v5510
        %v5566 = vpop.f32.mrf.mxu0
        %v5567 = vadd.f32 0.0, %v5566
        %v5568 = vpop.f32.mrf.mxu0
        %v5569 = vadd.f32 0.0, %v5568
        %5570 = vmatmul.bf16.gmra.mxu0 %v5513
        %v5571 = vpop.f32.mrf.mxu0
        %v5572 = vadd.f32 0.0, %v5571
        %v5573 = vpop.f32.mrf.mxu0
        %v5574 = vadd.f32 0.0, %v5573
        %5575 = vmatmul.bf16.gmra.mxu0 %v5516
        %v5576 = vpop.f32.mrf.mxu0
        %v5577 = vadd.f32 0.0, %v5576
        %v5578 = vpop.f32.mrf.mxu0
        %v5579 = vadd.f32 0.0, %v5578
        %5580 = vmatmul.bf16.gmra.mxu0 %v5519
        %v5581 = vpop.f32.mrf.mxu0
        %v5582 = vadd.f32 0.0, %v5581
        %v5583 = vpop.f32.mrf.mxu0
        %v5584 = vadd.f32 0.0, %v5583
        %5585 = vmatmul.bf16.gmra.mxu0 %v5522
        %v5586 = vpop.f32.mrf.mxu0
        %v5587 = vadd.f32 0.0, %v5586
        %v5588 = vpop.f32.mrf.mxu0
        %v5589 = vadd.f32 0.0, %v5588
        %5590 = vmatmul.bf16.gmra.mxu0 %v5525
        %v5591 = vpop.f32.mrf.mxu0
        %v5592 = vadd.f32 0.0, %v5591
        %v5593 = vpop.f32.mrf.mxu0
        %v5594 = vadd.f32 0.0, %v5593
        %5595 = vmatmul.bf16.gmra.mxu0 %v5528
        %v5596 = vpop.f32.mrf.mxu0
        %v5597 = vadd.f32 0.0, %v5596
        %v5598 = vpop.f32.mrf.mxu0
        %v5599 = vadd.f32 0.0, %v5598
        %5600 = vmatmul.bf16.gmra.mxu0 %v5531
        %v5601 = vpop.f32.mrf.mxu0
        %v5602 = vadd.f32 0.0, %v5601
        %v5603 = vpop.f32.mrf.mxu0
        %v5604 = vadd.f32 0.0, %v5603
        %5605 = vmatmul.bf16.gmra.mxu0 %v5534
        %v5606 = vpop.f32.mrf.mxu0
        %v5607 = vadd.f32 0.0, %v5606
        %v5608 = vpop.f32.mrf.mxu0
        %v5609 = vadd.f32 0.0, %v5608
        %5610 = vmatmul.bf16.gmra.mxu0 %v5537
        %v5611 = vpop.f32.mrf.mxu0
        %v5612 = vadd.f32 0.0, %v5611
        %v5613 = vpop.f32.mrf.mxu0
        %v5614 = vadd.f32 0.0, %v5613
        %5615 = vmatmul.bf16.gmra.mxu0 %v5540
        %v5616 = vpop.f32.mrf.mxu0
        %v5617 = vadd.f32 0.0, %v5616
        %v5618 = vpop.f32.mrf.mxu0
        %v5619 = vadd.f32 0.0, %v5618
        %5620 = vmatmul.bf16.gmra.mxu0 %v5543
        %v5621 = vpop.f32.mrf.mxu0
        %v5622 = vadd.f32 0.0, %v5621
        %v5623 = vpop.f32.mrf.mxu0
        %v5624 = vadd.f32 0.0, %v5623
        %5625 = vmatmul.bf16.gmra.mxu0 %v5546
        %v5626 = vpop.f32.mrf.mxu0
        %v5627 = vadd.f32 0.0, %v5626
        %v5628 = vpop.f32.mrf.mxu0
        %v5629 = vadd.f32 0.0, %v5628
        %5630 = vmatmul.bf16.gmra.mxu0 %v5549
        %v5631 = vpop.f32.mrf.mxu0
        %v5632 = vadd.f32 0.0, %v5631
        %v5633 = vpop.f32.mrf.mxu0
        %v5634 = vadd.f32 0.0, %v5633
        %5635 = vmatmul.bf16.gmra.mxu0 %v5552
        %v5636 = vpop.f32.mrf.mxu0
        %v5637 = vadd.f32 0.0, %v5636
        %v5638 = vpop.f32.mrf.mxu0
        %v5639 = vadd.f32 0.0, %v5638
        %5640 = vmatmul.bf16.gmra.mxu0 %v5555
        %v5641 = vpop.f32.mrf.mxu0
        %v5642 = vadd.f32 0.0, %v5641
        %v5643 = vpop.f32.mrf.mxu0
        %v5644 = vadd.f32 0.0, %v5643
        %5645 = vdwg.mxu0
        %v5646 = vadd.f32 %v5012, %v5567
        %v5647 = vadd.f32 %v5013, %v5569
        %v5648 = vadd.f32 %v5014, %v5572
        %v5649 = vadd.f32 %v5015, %v5574
        %v5650 = vadd.f32 %v5016, %v5577
        %v5651 = vadd.f32 %v5017, %v5579
        %v5652 = vadd.f32 %v5018, %v5582
        %v5653 = vadd.f32 %v5019, %v5584
        %v5654 = vadd.f32 %v5020, %v5587
        %v5655 = vadd.f32 %v5021, %v5589
        %v5656 = vadd.f32 %v5022, %v5592
        %v5657 = vadd.f32 %v5023, %v5594
        %v5658 = vadd.f32 %v5024, %v5597
        %v5659 = vadd.f32 %v5025, %v5599
        %v5660 = vadd.f32 %v5026, %v5602
        %v5661 = vadd.f32 %v5027, %v5604
        %v5662 = vadd.f32 %v5028, %v5607
        %v5663 = vadd.f32 %v5029, %v5609
        %v5664 = vadd.f32 %v5030, %v5612
        %v5665 = vadd.f32 %v5031, %v5614
        %v5666 = vadd.f32 %v5032, %v5617
        %v5667 = vadd.f32 %v5033, %v5619
        %v5668 = vadd.f32 %v5034, %v5622
        %v5669 = vadd.f32 %v5035, %v5624
        %v5670 = vadd.f32 %v5036, %v5627
        %v5671 = vadd.f32 %v5037, %v5629
        %v5672 = vadd.f32 %v5038, %v5632
        %v5673 = vadd.f32 %v5039, %v5634
        %v5674 = vadd.f32 %v5040, %v5637
        %v5675 = vadd.f32 %v5041, %v5639
        %v5676 = vadd.f32 %v5042, %v5642
        %v5677 = vadd.f32 %v5043, %v5644
        %s5678 = scalar_lea.vmem %s7, 64
        %v5679 = vld [vmem:[%s5678] sm:$0xf]
        %v5680 = vld [vmem:[%s5678 + $0x4] sm:$0xf]
        %v5681 = vld [vmem:[%s5678 + $0x8] sm:$0xf]
        %v5682 = vld [vmem:[%s5678 + $0xc] sm:$0xf]
        %v5715 = vunpack.c.l.b16 %v5045
        %v5716 = vunpack.c.l.b16 %v5046
        %v5717 = vunpack.c.l.b16 %v5048
        %v5718 = vunpack.c.l.b16 %v5049
        %v5719 = vunpack.c.l.b16 %v5051
        %v5720 = vunpack.c.l.b16 %v5052
        %v5721 = vunpack.c.l.b16 %v5054
        %v5722 = vunpack.c.l.b16 %v5055
        %v5723 = vunpack.c.l.b16 %v5057
        %v5724 = vunpack.c.l.b16 %v5058
        %v5725 = vunpack.c.l.b16 %v5060
        %v5726 = vunpack.c.l.b16 %v5061
        %v5727 = vunpack.c.l.b16 %v5063
        %v5728 = vunpack.c.l.b16 %v5064
        %v5729 = vunpack.c.l.b16 %v5066
        %v5730 = vunpack.c.l.b16 %v5067
        %v5731 = vunpack.c.l.b16 %v5069
        %v5732 = vunpack.c.l.b16 %v5070
        %v5733 = vunpack.c.l.b16 %v5072
        %v5734 = vunpack.c.l.b16 %v5073
        %v5735 = vunpack.c.l.b16 %v5075
        %v5736 = vunpack.c.l.b16 %v5076
        %v5737 = vunpack.c.l.b16 %v5078
        %v5738 = vunpack.c.l.b16 %v5079
        %v5739 = vunpack.c.l.b16 %v5081
        %v5740 = vunpack.c.l.b16 %v5082
        %v5741 = vunpack.c.l.b16 %v5084
        %v5742 = vunpack.c.l.b16 %v5085
        %v5743 = vunpack.c.l.b16 %v5087
        %v5744 = vunpack.c.l.b16 %v5088
        %v5745 = vunpack.c.l.b16 %v5090
        %v5746 = vunpack.c.l.b16 %v5091
        %v5747 = vpack.c.b16 %v5716, %v5715
        %v5748 = vpack.c.b16 %v5718, %v5717
        %v5749 = vpack.c.b16 %v5720, %v5719
        %v5750 = vpack.c.b16 %v5722, %v5721
        %v5751 = vpack.c.b16 %v5724, %v5723
        %v5752 = vpack.c.b16 %v5726, %v5725
        %v5753 = vpack.c.b16 %v5728, %v5727
        %v5754 = vpack.c.b16 %v5730, %v5729
        %v5755 = vpack.c.b16 %v5732, %v5731
        %v5756 = vpack.c.b16 %v5734, %v5733
        %v5757 = vpack.c.b16 %v5736, %v5735
        %v5758 = vpack.c.b16 %v5738, %v5737
        %v5759 = vpack.c.b16 %v5740, %v5739
        %v5760 = vpack.c.b16 %v5742, %v5741
        %v5761 = vpack.c.b16 %v5744, %v5743
        %v5762 = vpack.c.b16 %v5746, %v5745
        %v5767 = vunpack.c.l.b16 %v5679
        %v5768 = vunpack.c.l.b16 %v5680
        %v5769 = vunpack.c.l.b16 %v5681
        %v5770 = vunpack.c.l.b16 %v5682
        %v5771 = vpack.c.b16 %v5768, %v5767
        %v5772 = vpack.c.b16 %v5770, %v5769
        %v5776 = vsel %vm4040, %v5747, 0
        %v5779 = vsel %vm4040, %v5748, 0
        %v5782 = vsel %vm4040, %v5749, 0
        %v5785 = vsel %vm4040, %v5750, 0
        %v5788 = vsel %vm4040, %v5751, 0
        %v5791 = vsel %vm4040, %v5752, 0
        %v5794 = vsel %vm4040, %v5753, 0
        %v5797 = vsel %vm4040, %v5754, 0
        %v5800 = vsel %vm4040, %v5755, 0
        %v5803 = vsel %vm4040, %v5756, 0
        %v5806 = vsel %vm4040, %v5757, 0
        %v5809 = vsel %vm4040, %v5758, 0
        %v5812 = vsel %vm4040, %v5759, 0
        %v5815 = vsel %vm4040, %v5760, 0
        %v5818 = vsel %vm4040, %v5761, 0
        %v5821 = vsel %vm4040, %v5762, 0
        %5823 = vmatpush.bf16.msra.mxu0 0
        %5824 = vmatpush.bf16.msra.mxu0 0
        %5825 = vmatpush.bf16.msra.mxu0 0
        %5826 = vmatpush.bf16.msra.mxu0 0
        %5827 = vmatpush.bf16.msra.mxu0 0
        %5828 = vmatpush.bf16.msra.mxu0 0
        %5829 = vmatpush.bf16.msra.mxu0 %v5772
        %5830 = vmatpush.bf16.msra.mxu0 %v5771
        %5831 = vmatmul.bf16.gmra.mxu0 %v5776
        %v5832 = vpop.f32.mrf.mxu0
        %v5833 = vadd.f32 0.0, %v5832
        %v5834 = vpop.f32.mrf.mxu0
        %v5835 = vadd.f32 0.0, %v5834
        %5836 = vmatmul.bf16.gmra.mxu0 %v5779
        %v5837 = vpop.f32.mrf.mxu0
        %v5838 = vadd.f32 0.0, %v5837
        %v5839 = vpop.f32.mrf.mxu0
        %v5840 = vadd.f32 0.0, %v5839
        %5841 = vmatmul.bf16.gmra.mxu0 %v5782
        %v5842 = vpop.f32.mrf.mxu0
        %v5843 = vadd.f32 0.0, %v5842
        %v5844 = vpop.f32.mrf.mxu0
        %v5845 = vadd.f32 0.0, %v5844
        %5846 = vmatmul.bf16.gmra.mxu0 %v5785
        %v5847 = vpop.f32.mrf.mxu0
        %v5848 = vadd.f32 0.0, %v5847
        %v5849 = vpop.f32.mrf.mxu0
        %v5850 = vadd.f32 0.0, %v5849
        %5851 = vmatmul.bf16.gmra.mxu0 %v5788
        %v5852 = vpop.f32.mrf.mxu0
        %v5853 = vadd.f32 0.0, %v5852
        %v5854 = vpop.f32.mrf.mxu0
        %v5855 = vadd.f32 0.0, %v5854
        %5856 = vmatmul.bf16.gmra.mxu0 %v5791
        %v5857 = vpop.f32.mrf.mxu0
        %v5858 = vadd.f32 0.0, %v5857
        %v5859 = vpop.f32.mrf.mxu0
        %v5860 = vadd.f32 0.0, %v5859
        %5861 = vmatmul.bf16.gmra.mxu0 %v5794
        %v5862 = vpop.f32.mrf.mxu0
        %v5863 = vadd.f32 0.0, %v5862
        %v5864 = vpop.f32.mrf.mxu0
        %v5865 = vadd.f32 0.0, %v5864
        %5866 = vmatmul.bf16.gmra.mxu0 %v5797
        %v5867 = vpop.f32.mrf.mxu0
        %v5868 = vadd.f32 0.0, %v5867
        %v5869 = vpop.f32.mrf.mxu0
        %v5870 = vadd.f32 0.0, %v5869
        %5871 = vmatmul.bf16.gmra.mxu0 %v5800
        %v5872 = vpop.f32.mrf.mxu0
        %v5873 = vadd.f32 0.0, %v5872
        %v5874 = vpop.f32.mrf.mxu0
        %v5875 = vadd.f32 0.0, %v5874
        %5876 = vmatmul.bf16.gmra.mxu0 %v5803
        %v5877 = vpop.f32.mrf.mxu0
        %v5878 = vadd.f32 0.0, %v5877
        %v5879 = vpop.f32.mrf.mxu0
        %v5880 = vadd.f32 0.0, %v5879
        %5881 = vmatmul.bf16.gmra.mxu0 %v5806
        %v5882 = vpop.f32.mrf.mxu0
        %v5883 = vadd.f32 0.0, %v5882
        %v5884 = vpop.f32.mrf.mxu0
        %v5885 = vadd.f32 0.0, %v5884
        %5886 = vmatmul.bf16.gmra.mxu0 %v5809
        %v5887 = vpop.f32.mrf.mxu0
        %v5888 = vadd.f32 0.0, %v5887
        %v5889 = vpop.f32.mrf.mxu0
        %v5890 = vadd.f32 0.0, %v5889
        %5891 = vmatmul.bf16.gmra.mxu0 %v5812
        %v5892 = vpop.f32.mrf.mxu0
        %v5893 = vadd.f32 0.0, %v5892
        %v5894 = vpop.f32.mrf.mxu0
        %v5895 = vadd.f32 0.0, %v5894
        %5896 = vmatmul.bf16.gmra.mxu0 %v5815
        %v5897 = vpop.f32.mrf.mxu0
        %v5898 = vadd.f32 0.0, %v5897
        %v5899 = vpop.f32.mrf.mxu0
        %v5900 = vadd.f32 0.0, %v5899
        %5901 = vmatmul.bf16.gmra.mxu0 %v5818
        %v5902 = vpop.f32.mrf.mxu0
        %v5903 = vadd.f32 0.0, %v5902
        %v5904 = vpop.f32.mrf.mxu0
        %v5905 = vadd.f32 0.0, %v5904
        %5906 = vmatmul.bf16.gmra.mxu0 %v5821
        %v5907 = vpop.f32.mrf.mxu0
        %v5908 = vadd.f32 0.0, %v5907
        %v5909 = vpop.f32.mrf.mxu0
        %v5910 = vadd.f32 0.0, %v5909
        %5911 = vdwg.mxu0
        %v5912 = vadd.f32 %v5646, %v5833
        %v5913 = vadd.f32 %v5647, %v5835
        %v5914 = vadd.f32 %v5648, %v5838
        %v5915 = vadd.f32 %v5649, %v5840
        %v5916 = vadd.f32 %v5650, %v5843
        %v5917 = vadd.f32 %v5651, %v5845
        %v5918 = vadd.f32 %v5652, %v5848
        %v5919 = vadd.f32 %v5653, %v5850
        %v5920 = vadd.f32 %v5654, %v5853
        %v5921 = vadd.f32 %v5655, %v5855
        %v5922 = vadd.f32 %v5656, %v5858
        %v5923 = vadd.f32 %v5657, %v5860
        %v5924 = vadd.f32 %v5658, %v5863
        %v5925 = vadd.f32 %v5659, %v5865
        %v5926 = vadd.f32 %v5660, %v5868
        %v5927 = vadd.f32 %v5661, %v5870
        %v5928 = vadd.f32 %v5662, %v5873
        %v5929 = vadd.f32 %v5663, %v5875
        %v5930 = vadd.f32 %v5664, %v5878
        %v5931 = vadd.f32 %v5665, %v5880
        %v5932 = vadd.f32 %v5666, %v5883
        %v5933 = vadd.f32 %v5667, %v5885
        %v5934 = vadd.f32 %v5668, %v5888
        %v5935 = vadd.f32 %v5669, %v5890
        %v5936 = vadd.f32 %v5670, %v5893
        %v5937 = vadd.f32 %v5671, %v5895
        %v5938 = vadd.f32 %v5672, %v5898
        %v5939 = vadd.f32 %v5673, %v5900
        %v5940 = vadd.f32 %v5674, %v5903
        %v5941 = vadd.f32 %v5675, %v5905
        %v5942 = vadd.f32 %v5676, %v5908
        %v5943 = vadd.f32 %v5677, %v5910
        %v5944 = vld [vmem:[%s410 + $0x4] sm:$0xf]
        %v5945 = vld [vmem:[%s410 + $0x8] sm:$0xf]
        %v5946 = vld [vmem:[%s410 + $0xc] sm:$0x1]
        %v5947 = vld [vmem:[%s410 + $0x14] sm:$0xf]
        %v5948 = vld [vmem:[%s410 + $0x18] sm:$0xf]
        %v5949 = vld [vmem:[%s410 + $0x1c] sm:$0x1]
        %v5950 = vld [vmem:[%s410 + $0x24] sm:$0xf]
        %v5951 = vld [vmem:[%s410 + $0x28] sm:$0xf]
        %v5952 = vld [vmem:[%s410 + $0x2c] sm:$0x1]
        %v5953 = vld [vmem:[%s410 + $0x34] sm:$0xf]
        %v5954 = vld [vmem:[%s410 + $0x38] sm:$0xf]
        %v5955 = vld [vmem:[%s410 + $0x3c] sm:$0x1]
        %v5956 = vld [vmem:[%s410 + $0x44] sm:$0xf]
        %v5957 = vld [vmem:[%s410 + $0x48] sm:$0xf]
        %v5958 = vld [vmem:[%s410 + $0x4c] sm:$0x1]
        %v5959 = vld [vmem:[%s410 + $0x54] sm:$0xf]
        %v5960 = vld [vmem:[%s410 + $0x58] sm:$0xf]
        %v5961 = vld [vmem:[%s410 + $0x5c] sm:$0x1]
        %v5962 = vld [vmem:[%s410 + $0x64] sm:$0xf]
        %v5963 = vld [vmem:[%s410 + $0x68] sm:$0xf]
        %v5964 = vld [vmem:[%s410 + $0x6c] sm:$0x1]
        %v5965 = vld [vmem:[%s410 + $0x74] sm:$0xf]
        %v5966 = vld [vmem:[%s410 + $0x78] sm:$0xf]
        %v5967 = vld [vmem:[%s410 + $0x7c] sm:$0x1]
        %v5968 = vld [vmem:[%s410 + $0x84] sm:$0xf]
        %v5969 = vld [vmem:[%s410 + $0x88] sm:$0xf]
        %v5970 = vld [vmem:[%s410 + $0x8c] sm:$0x1]
        %v5971 = vld [vmem:[%s410 + $0x94] sm:$0xf]
        %v5972 = vld [vmem:[%s410 + $0x98] sm:$0xf]
        %v5973 = vld [vmem:[%s410 + $0x9c] sm:$0x1]
        %v5974 = vld [vmem:[%s410 + $0xa4] sm:$0xf]
        %v5975 = vld [vmem:[%s410 + $0xa8] sm:$0xf]
        %v5976 = vld [vmem:[%s410 + $0xac] sm:$0x1]
        %v5977 = vld [vmem:[%s410 + $0xb4] sm:$0xf]
        %v5978 = vld [vmem:[%s410 + $0xb8] sm:$0xf]
        %v5979 = vld [vmem:[%s410 + $0xbc] sm:$0x1]
        %v5980 = vld [vmem:[%s410 + $0xc4] sm:$0xf]
        %v5981 = vld [vmem:[%s410 + $0xc8] sm:$0xf]
        %v5982 = vld [vmem:[%s410 + $0xcc] sm:$0x1]
        %v5983 = vld [vmem:[%s410 + $0xd4] sm:$0xf]
        %v5984 = vld [vmem:[%s410 + $0xd8] sm:$0xf]
        %v5985 = vld [vmem:[%s410 + $0xdc] sm:$0x1]
        %v5986 = vld [vmem:[%s410 + $0xe4] sm:$0xf]
        %v5987 = vld [vmem:[%s410 + $0xe8] sm:$0xf]
        %v5988 = vld [vmem:[%s410 + $0xec] sm:$0x1]
        %v5989 = vld [vmem:[%s410 + $0xf4] sm:$0xf]
        %v5990 = vld [vmem:[%s410 + $0xf8] sm:$0xf]
        %v5991 = vld [vmem:[%s410 + $0xfc] sm:$0x1]
        %v5993 = vshrl.u32 %v5944, 16
        %v5995 = vrot.slane %v5993, 4
        %v5996 = vshll.u32 %v5944, 16
        %v5998 = vrot.slane %v5996, 5
        %v5999 = vor.u32 %v5995, %v5998
        %v6000 = vrot.slane %v5999, 4
        %v6002 = vshll.u32 %v5945, 16
        %v6004 = vrot.slane %v6002, 5
        %v6005 = vsel %vm4425, %v6000, %v6004
        %v6006 = vshrl.u32 %v5945, 16
        %v6008 = vrot.slane %v6006, 4
        %v6009 = vor.u32 %v6008, %v6004
        %v6010 = vrot.slane %v6009, 4
        %v6012 = vshll.u32 %v5946, 16
        %v6014 = vrot.slane %v6012, 5
        %v6015 = vsel %vm4425, %v6010, %v6014
        %v6017 = vshrl.u32 %v5947, 16
        %v6019 = vrot.slane %v6017, 4
        %v6020 = vshll.u32 %v5947, 16
        %v6022 = vrot.slane %v6020, 5
        %v6023 = vor.u32 %v6019, %v6022
        %v6024 = vrot.slane %v6023, 4
        %v6026 = vshll.u32 %v5948, 16
        %v6028 = vrot.slane %v6026, 5
        %v6029 = vsel %vm4425, %v6024, %v6028
        %v6030 = vshrl.u32 %v5948, 16
        %v6032 = vrot.slane %v6030, 4
        %v6033 = vor.u32 %v6032, %v6028
        %v6034 = vrot.slane %v6033, 4
        %v6036 = vshll.u32 %v5949, 16
        %v6038 = vrot.slane %v6036, 5
        %v6039 = vsel %vm4425, %v6034, %v6038
        %v6041 = vshrl.u32 %v5950, 16
        %v6043 = vrot.slane %v6041, 4
        %v6044 = vshll.u32 %v5950, 16
        %v6046 = vrot.slane %v6044, 5
        %v6047 = vor.u32 %v6043, %v6046
        %v6048 = vrot.slane %v6047, 4
        %v6050 = vshll.u32 %v5951, 16
        %v6052 = vrot.slane %v6050, 5
        %v6053 = vsel %vm4425, %v6048, %v6052
        %v6054 = vshrl.u32 %v5951, 16
        %v6056 = vrot.slane %v6054, 4
        %v6057 = vor.u32 %v6056, %v6052
        %v6058 = vrot.slane %v6057, 4
        %v6060 = vshll.u32 %v5952, 16
        %v6062 = vrot.slane %v6060, 5
        %v6063 = vsel %vm4425, %v6058, %v6062
        %v6065 = vshrl.u32 %v5953, 16
        %v6067 = vrot.slane %v6065, 4
        %v6068 = vshll.u32 %v5953, 16
        %v6070 = vrot.slane %v6068, 5
        %v6071 = vor.u32 %v6067, %v6070
        %v6072 = vrot.slane %v6071, 4
        %v6074 = vshll.u32 %v5954, 16
        %v6076 = vrot.slane %v6074, 5
        %v6077 = vsel %vm4425, %v6072, %v6076
        %v6078 = vshrl.u32 %v5954, 16
        %v6080 = vrot.slane %v6078, 4
        %v6081 = vor.u32 %v6080, %v6076
        %v6082 = vrot.slane %v6081, 4
        %v6084 = vshll.u32 %v5955, 16
        %v6086 = vrot.slane %v6084, 5
        %v6087 = vsel %vm4425, %v6082, %v6086
        %v6089 = vshrl.u32 %v5956, 16
        %v6091 = vrot.slane %v6089, 4
        %v6092 = vshll.u32 %v5956, 16
        %v6094 = vrot.slane %v6092, 5
        %v6095 = vor.u32 %v6091, %v6094
        %v6096 = vrot.slane %v6095, 4
        %v6098 = vshll.u32 %v5957, 16
        %v6100 = vrot.slane %v6098, 5
        %v6101 = vsel %vm4425, %v6096, %v6100
        %v6102 = vshrl.u32 %v5957, 16
        %v6104 = vrot.slane %v6102, 4
        %v6105 = vor.u32 %v6104, %v6100
        %v6106 = vrot.slane %v6105, 4
        %v6108 = vshll.u32 %v5958, 16
        %v6110 = vrot.slane %v6108, 5
        %v6111 = vsel %vm4425, %v6106, %v6110
        %v6113 = vshrl.u32 %v5959, 16
        %v6115 = vrot.slane %v6113, 4
        %v6116 = vshll.u32 %v5959, 16
        %v6118 = vrot.slane %v6116, 5
        %v6119 = vor.u32 %v6115, %v6118
        %v6120 = vrot.slane %v6119, 4
        %v6122 = vshll.u32 %v5960, 16
        %v6124 = vrot.slane %v6122, 5
        %v6125 = vsel %vm4425, %v6120, %v6124
        %v6126 = vshrl.u32 %v5960, 16
        %v6128 = vrot.slane %v6126, 4
        %v6129 = vor.u32 %v6128, %v6124
        %v6130 = vrot.slane %v6129, 4
        %v6132 = vshll.u32 %v5961, 16
        %v6134 = vrot.slane %v6132, 5
        %v6135 = vsel %vm4425, %v6130, %v6134
        %v6137 = vshrl.u32 %v5962, 16
        %v6139 = vrot.slane %v6137, 4
        %v6140 = vshll.u32 %v5962, 16
        %v6142 = vrot.slane %v6140, 5
        %v6143 = vor.u32 %v6139, %v6142
        %v6144 = vrot.slane %v6143, 4
        %v6146 = vshll.u32 %v5963, 16
        %v6148 = vrot.slane %v6146, 5
        %v6149 = vsel %vm4425, %v6144, %v6148
        %v6150 = vshrl.u32 %v5963, 16
        %v6152 = vrot.slane %v6150, 4
        %v6153 = vor.u32 %v6152, %v6148
        %v6154 = vrot.slane %v6153, 4
        %v6156 = vshll.u32 %v5964, 16
        %v6158 = vrot.slane %v6156, 5
        %v6159 = vsel %vm4425, %v6154, %v6158
        %v6161 = vshrl.u32 %v5965, 16
        %v6163 = vrot.slane %v6161, 4
        %v6164 = vshll.u32 %v5965, 16
        %v6166 = vrot.slane %v6164, 5
        %v6167 = vor.u32 %v6163, %v6166
        %v6168 = vrot.slane %v6167, 4
        %v6170 = vshll.u32 %v5966, 16
        %v6172 = vrot.slane %v6170, 5
        %v6173 = vsel %vm4425, %v6168, %v6172
        %v6174 = vshrl.u32 %v5966, 16
        %v6176 = vrot.slane %v6174, 4
        %v6177 = vor.u32 %v6176, %v6172
        %v6178 = vrot.slane %v6177, 4
        %v6180 = vshll.u32 %v5967, 16
        %v6182 = vrot.slane %v6180, 5
        %v6183 = vsel %vm4425, %v6178, %v6182
        %v6185 = vshrl.u32 %v5968, 16
        %v6187 = vrot.slane %v6185, 4
        %v6188 = vshll.u32 %v5968, 16
        %v6190 = vrot.slane %v6188, 5
        %v6191 = vor.u32 %v6187, %v6190
        %v6192 = vrot.slane %v6191, 4
        %v6194 = vshll.u32 %v5969, 16
        %v6196 = vrot.slane %v6194, 5
        %v6197 = vsel %vm4425, %v6192, %v6196
        %v6198 = vshrl.u32 %v5969, 16
        %v6200 = vrot.slane %v6198, 4
        %v6201 = vor.u32 %v6200, %v6196
        %v6202 = vrot.slane %v6201, 4
        %v6204 = vshll.u32 %v5970, 16
        %v6206 = vrot.slane %v6204, 5
        %v6207 = vsel %vm4425, %v6202, %v6206
        %v6209 = vshrl.u32 %v5971, 16
        %v6211 = vrot.slane %v6209, 4
        %v6212 = vshll.u32 %v5971, 16
        %v6214 = vrot.slane %v6212, 5
        %v6215 = vor.u32 %v6211, %v6214
        %v6216 = vrot.slane %v6215, 4
        %v6218 = vshll.u32 %v5972, 16
        %v6220 = vrot.slane %v6218, 5
        %v6221 = vsel %vm4425, %v6216, %v6220
        %v6222 = vshrl.u32 %v5972, 16
        %v6224 = vrot.slane %v6222, 4
        %v6225 = vor.u32 %v6224, %v6220
        %v6226 = vrot.slane %v6225, 4
        %v6228 = vshll.u32 %v5973, 16
        %v6230 = vrot.slane %v6228, 5
        %v6231 = vsel %vm4425, %v6226, %v6230
        %v6233 = vshrl.u32 %v5974, 16
        %v6235 = vrot.slane %v6233, 4
        %v6236 = vshll.u32 %v5974, 16
        %v6238 = vrot.slane %v6236, 5
        %v6239 = vor.u32 %v6235, %v6238
        %v6240 = vrot.slane %v6239, 4
        %v6242 = vshll.u32 %v5975, 16
        %v6244 = vrot.slane %v6242, 5
        %v6245 = vsel %vm4425, %v6240, %v6244
        %v6246 = vshrl.u32 %v5975, 16
        %v6248 = vrot.slane %v6246, 4
        %v6249 = vor.u32 %v6248, %v6244
        %v6250 = vrot.slane %v6249, 4
        %v6252 = vshll.u32 %v5976, 16
        %v6254 = vrot.slane %v6252, 5
        %v6255 = vsel %vm4425, %v6250, %v6254
        %v6257 = vshrl.u32 %v5977, 16
        %v6259 = vrot.slane %v6257, 4
        %v6260 = vshll.u32 %v5977, 16
        %v6262 = vrot.slane %v6260, 5
        %v6263 = vor.u32 %v6259, %v6262
        %v6264 = vrot.slane %v6263, 4
        %v6266 = vshll.u32 %v5978, 16
        %v6268 = vrot.slane %v6266, 5
        %v6269 = vsel %vm4425, %v6264, %v6268
        %v6270 = vshrl.u32 %v5978, 16
        %v6272 = vrot.slane %v6270, 4
        %v6273 = vor.u32 %v6272, %v6268
        %v6274 = vrot.slane %v6273, 4
        %v6276 = vshll.u32 %v5979, 16
        %v6278 = vrot.slane %v6276, 5
        %v6279 = vsel %vm4425, %v6274, %v6278
        %v6281 = vshrl.u32 %v5980, 16
        %v6283 = vrot.slane %v6281, 4
        %v6284 = vshll.u32 %v5980, 16
        %v6286 = vrot.slane %v6284, 5
        %v6287 = vor.u32 %v6283, %v6286
        %v6288 = vrot.slane %v6287, 4
        %v6290 = vshll.u32 %v5981, 16
        %v6292 = vrot.slane %v6290, 5
        %v6293 = vsel %vm4425, %v6288, %v6292
        %v6294 = vshrl.u32 %v5981, 16
        %v6296 = vrot.slane %v6294, 4
        %v6297 = vor.u32 %v6296, %v6292
        %v6298 = vrot.slane %v6297, 4
        %v6300 = vshll.u32 %v5982, 16
        %v6302 = vrot.slane %v6300, 5
        %v6303 = vsel %vm4425, %v6298, %v6302
        %v6305 = vshrl.u32 %v5983, 16
        %v6307 = vrot.slane %v6305, 4
        %v6308 = vshll.u32 %v5983, 16
        %v6310 = vrot.slane %v6308, 5
        %v6311 = vor.u32 %v6307, %v6310
        %v6312 = vrot.slane %v6311, 4
        %v6314 = vshll.u32 %v5984, 16
        %v6316 = vrot.slane %v6314, 5
        %v6317 = vsel %vm4425, %v6312, %v6316
        %v6318 = vshrl.u32 %v5984, 16
        %v6320 = vrot.slane %v6318, 4
        %v6321 = vor.u32 %v6320, %v6316
        %v6322 = vrot.slane %v6321, 4
        %v6324 = vshll.u32 %v5985, 16
        %v6326 = vrot.slane %v6324, 5
        %v6327 = vsel %vm4425, %v6322, %v6326
        %v6329 = vshrl.u32 %v5986, 16
        %v6331 = vrot.slane %v6329, 4
        %v6332 = vshll.u32 %v5986, 16
        %v6334 = vrot.slane %v6332, 5
        %v6335 = vor.u32 %v6331, %v6334
        %v6336 = vrot.slane %v6335, 4
        %v6338 = vshll.u32 %v5987, 16
        %v6340 = vrot.slane %v6338, 5
        %v6341 = vsel %vm4425, %v6336, %v6340
        %v6342 = vshrl.u32 %v5987, 16
        %v6344 = vrot.slane %v6342, 4
        %v6345 = vor.u32 %v6344, %v6340
        %v6346 = vrot.slane %v6345, 4
        %v6348 = vshll.u32 %v5988, 16
        %v6350 = vrot.slane %v6348, 5
        %v6351 = vsel %vm4425, %v6346, %v6350
        %v6353 = vshrl.u32 %v5989, 16
        %v6355 = vrot.slane %v6353, 4
        %v6356 = vshll.u32 %v5989, 16
        %v6358 = vrot.slane %v6356, 5
        %v6359 = vor.u32 %v6355, %v6358
        %v6360 = vrot.slane %v6359, 4
        %v6362 = vshll.u32 %v5990, 16
        %v6364 = vrot.slane %v6362, 5
        %v6365 = vsel %vm4425, %v6360, %v6364
        %v6366 = vshrl.u32 %v5990, 16
        %v6368 = vrot.slane %v6366, 4
        %v6369 = vor.u32 %v6368, %v6364
        %v6370 = vrot.slane %v6369, 4
        %v6372 = vshll.u32 %v5991, 16
        %v6374 = vrot.slane %v6372, 5
        %v6375 = vsel %vm4425, %v6370, %v6374
        %s6376 = scalar_lea.vmem %s7, 80
        %v6377 = vld [vmem:[%s6376] sm:$0xf]
        %v6378 = vld [vmem:[%s6376 + $0x4] sm:$0xf]
        %v6379 = vld [vmem:[%s6376 + $0x8] sm:$0xf]
        %v6380 = vld [vmem:[%s6376 + $0xc] sm:$0xf]
        %v6381 = vunpack.c.l.b16 %v6005
        %v6382 = vunpack.c.l.b16 %v6015
        %v6383 = vunpack.c.l.b16 %v6029
        %v6384 = vunpack.c.l.b16 %v6039
        %v6385 = vunpack.c.l.b16 %v6053
        %v6386 = vunpack.c.l.b16 %v6063
        %v6387 = vunpack.c.l.b16 %v6077
        %v6388 = vunpack.c.l.b16 %v6087
        %v6389 = vunpack.c.l.b16 %v6101
        %v6390 = vunpack.c.l.b16 %v6111
        %v6391 = vunpack.c.l.b16 %v6125
        %v6392 = vunpack.c.l.b16 %v6135
        %v6393 = vunpack.c.l.b16 %v6149
        %v6394 = vunpack.c.l.b16 %v6159
        %v6395 = vunpack.c.l.b16 %v6173
        %v6396 = vunpack.c.l.b16 %v6183
        %v6397 = vunpack.c.l.b16 %v6197
        %v6398 = vunpack.c.l.b16 %v6207
        %v6399 = vunpack.c.l.b16 %v6221
        %v6400 = vunpack.c.l.b16 %v6231
        %v6401 = vunpack.c.l.b16 %v6245
        %v6402 = vunpack.c.l.b16 %v6255
        %v6403 = vunpack.c.l.b16 %v6269
        %v6404 = vunpack.c.l.b16 %v6279
        %v6405 = vunpack.c.l.b16 %v6293
        %v6406 = vunpack.c.l.b16 %v6303
        %v6407 = vunpack.c.l.b16 %v6317
        %v6408 = vunpack.c.l.b16 %v6327
        %v6409 = vunpack.c.l.b16 %v6341
        %v6410 = vunpack.c.l.b16 %v6351
        %v6411 = vunpack.c.l.b16 %v6365
        %v6412 = vunpack.c.l.b16 %v6375
        %v6413 = vpack.c.b16 %v6382, %v6381
        %v6414 = vpack.c.b16 %v6384, %v6383
        %v6415 = vpack.c.b16 %v6386, %v6385
        %v6416 = vpack.c.b16 %v6388, %v6387
        %v6417 = vpack.c.b16 %v6390, %v6389
        %v6418 = vpack.c.b16 %v6392, %v6391
        %v6419 = vpack.c.b16 %v6394, %v6393
        %v6420 = vpack.c.b16 %v6396, %v6395
        %v6421 = vpack.c.b16 %v6398, %v6397
        %v6422 = vpack.c.b16 %v6400, %v6399
        %v6423 = vpack.c.b16 %v6402, %v6401
        %v6424 = vpack.c.b16 %v6404, %v6403
        %v6425 = vpack.c.b16 %v6406, %v6405
        %v6426 = vpack.c.b16 %v6408, %v6407
        %v6427 = vpack.c.b16 %v6410, %v6409
        %v6428 = vpack.c.b16 %v6412, %v6411
        %v6433 = vunpack.c.l.b16 %v6377
        %v6434 = vunpack.c.l.b16 %v6378
        %v6435 = vunpack.c.l.b16 %v6379
        %v6436 = vunpack.c.l.b16 %v6380
        %v6437 = vpack.c.b16 %v6434, %v6433
        %v6438 = vpack.c.b16 %v6436, %v6435
        %v6442 = vsel %vm4040, %v6413, 0
        %v6445 = vsel %vm4040, %v6414, 0
        %v6448 = vsel %vm4040, %v6415, 0
        %v6451 = vsel %vm4040, %v6416, 0
        %v6454 = vsel %vm4040, %v6417, 0
        %v6457 = vsel %vm4040, %v6418, 0
        %v6460 = vsel %vm4040, %v6419, 0
        %v6463 = vsel %vm4040, %v6420, 0
        %v6466 = vsel %vm4040, %v6421, 0
        %v6469 = vsel %vm4040, %v6422, 0
        %v6472 = vsel %vm4040, %v6423, 0
        %v6475 = vsel %vm4040, %v6424, 0
        %v6478 = vsel %vm4040, %v6425, 0
        %v6481 = vsel %vm4040, %v6426, 0
        %v6484 = vsel %vm4040, %v6427, 0
        %v6487 = vsel %vm4040, %v6428, 0
        %6489 = vmatpush.bf16.msra.mxu0 0
        %6490 = vmatpush.bf16.msra.mxu0 0
        %6491 = vmatpush.bf16.msra.mxu0 0
        %6492 = vmatpush.bf16.msra.mxu0 0
        %6493 = vmatpush.bf16.msra.mxu0 0
        %6494 = vmatpush.bf16.msra.mxu0 0
        %6495 = vmatpush.bf16.msra.mxu0 %v6438
        %6496 = vmatpush.bf16.msra.mxu0 %v6437
        %6497 = vmatmul.bf16.gmra.mxu0 %v6442
        %v6498 = vpop.f32.mrf.mxu0
        %v6499 = vadd.f32 0.0, %v6498
        %v6500 = vpop.f32.mrf.mxu0
        %v6501 = vadd.f32 0.0, %v6500
        %6502 = vmatmul.bf16.gmra.mxu0 %v6445
        %v6503 = vpop.f32.mrf.mxu0
        %v6504 = vadd.f32 0.0, %v6503
        %v6505 = vpop.f32.mrf.mxu0
        %v6506 = vadd.f32 0.0, %v6505
        %6507 = vmatmul.bf16.gmra.mxu0 %v6448
        %v6508 = vpop.f32.mrf.mxu0
        %v6509 = vadd.f32 0.0, %v6508
        %v6510 = vpop.f32.mrf.mxu0
        %v6511 = vadd.f32 0.0, %v6510
        %6512 = vmatmul.bf16.gmra.mxu0 %v6451
        %v6513 = vpop.f32.mrf.mxu0
        %v6514 = vadd.f32 0.0, %v6513
        %v6515 = vpop.f32.mrf.mxu0
        %v6516 = vadd.f32 0.0, %v6515
        %6517 = vmatmul.bf16.gmra.mxu0 %v6454
        %v6518 = vpop.f32.mrf.mxu0
        %v6519 = vadd.f32 0.0, %v6518
        %v6520 = vpop.f32.mrf.mxu0
        %v6521 = vadd.f32 0.0, %v6520
        %6522 = vmatmul.bf16.gmra.mxu0 %v6457
        %v6523 = vpop.f32.mrf.mxu0
        %v6524 = vadd.f32 0.0, %v6523
        %v6525 = vpop.f32.mrf.mxu0
        %v6526 = vadd.f32 0.0, %v6525
        %6527 = vmatmul.bf16.gmra.mxu0 %v6460
        %v6528 = vpop.f32.mrf.mxu0
        %v6529 = vadd.f32 0.0, %v6528
        %v6530 = vpop.f32.mrf.mxu0
        %v6531 = vadd.f32 0.0, %v6530
        %6532 = vmatmul.bf16.gmra.mxu0 %v6463
        %v6533 = vpop.f32.mrf.mxu0
        %v6534 = vadd.f32 0.0, %v6533
        %v6535 = vpop.f32.mrf.mxu0
        %v6536 = vadd.f32 0.0, %v6535
        %6537 = vmatmul.bf16.gmra.mxu0 %v6466
        %v6538 = vpop.f32.mrf.mxu0
        %v6539 = vadd.f32 0.0, %v6538
        %v6540 = vpop.f32.mrf.mxu0
        %v6541 = vadd.f32 0.0, %v6540
        %6542 = vmatmul.bf16.gmra.mxu0 %v6469
        %v6543 = vpop.f32.mrf.mxu0
        %v6544 = vadd.f32 0.0, %v6543
        %v6545 = vpop.f32.mrf.mxu0
        %v6546 = vadd.f32 0.0, %v6545
        %6547 = vmatmul.bf16.gmra.mxu0 %v6472
        %v6548 = vpop.f32.mrf.mxu0
        %v6549 = vadd.f32 0.0, %v6548
        %v6550 = vpop.f32.mrf.mxu0
        %v6551 = vadd.f32 0.0, %v6550
        %6552 = vmatmul.bf16.gmra.mxu0 %v6475
        %v6553 = vpop.f32.mrf.mxu0
        %v6554 = vadd.f32 0.0, %v6553
        %v6555 = vpop.f32.mrf.mxu0
        %v6556 = vadd.f32 0.0, %v6555
        %6557 = vmatmul.bf16.gmra.mxu0 %v6478
        %v6558 = vpop.f32.mrf.mxu0
        %v6559 = vadd.f32 0.0, %v6558
        %v6560 = vpop.f32.mrf.mxu0
        %v6561 = vadd.f32 0.0, %v6560
        %6562 = vmatmul.bf16.gmra.mxu0 %v6481
        %v6563 = vpop.f32.mrf.mxu0
        %v6564 = vadd.f32 0.0, %v6563
        %v6565 = vpop.f32.mrf.mxu0
        %v6566 = vadd.f32 0.0, %v6565
        %6567 = vmatmul.bf16.gmra.mxu0 %v6484
        %v6568 = vpop.f32.mrf.mxu0
        %v6569 = vadd.f32 0.0, %v6568
        %v6570 = vpop.f32.mrf.mxu0
        %v6571 = vadd.f32 0.0, %v6570
        %6572 = vmatmul.bf16.gmra.mxu0 %v6487
        %v6573 = vpop.f32.mrf.mxu0
        %v6574 = vadd.f32 0.0, %v6573
        %v6575 = vpop.f32.mrf.mxu0
        %v6576 = vadd.f32 0.0, %v6575
        %6577 = vdwg.mxu0
        %v6578 = vadd.f32 %v5912, %v6499
        %v6579 = vadd.f32 %v5913, %v6501
        %v6580 = vadd.f32 %v5914, %v6504
        %v6581 = vadd.f32 %v5915, %v6506
        %v6582 = vadd.f32 %v5916, %v6509
        %v6583 = vadd.f32 %v5917, %v6511
        %v6584 = vadd.f32 %v5918, %v6514
        %v6585 = vadd.f32 %v5919, %v6516
        %v6586 = vadd.f32 %v5920, %v6519
        %v6587 = vadd.f32 %v5921, %v6521
        %v6588 = vadd.f32 %v5922, %v6524
        %v6589 = vadd.f32 %v5923, %v6526
        %v6590 = vadd.f32 %v5924, %v6529
        %v6591 = vadd.f32 %v5925, %v6531
        %v6592 = vadd.f32 %v5926, %v6534
        %v6593 = vadd.f32 %v5927, %v6536
        %v6594 = vadd.f32 %v5928, %v6539
        %v6595 = vadd.f32 %v5929, %v6541
        %v6596 = vadd.f32 %v5930, %v6544
        %v6597 = vadd.f32 %v5931, %v6546
        %v6598 = vadd.f32 %v5932, %v6549
        %v6599 = vadd.f32 %v5933, %v6551
        %v6600 = vadd.f32 %v5934, %v6554
        %v6601 = vadd.f32 %v5935, %v6556
        %v6602 = vadd.f32 %v5936, %v6559
        %v6603 = vadd.f32 %v5937, %v6561
        %v6604 = vadd.f32 %v5938, %v6564
        %v6605 = vadd.f32 %v5939, %v6566
        %v6606 = vadd.f32 %v5940, %v6569
        %v6607 = vadd.f32 %v5941, %v6571
        %v6608 = vadd.f32 %v5942, %v6574
        %v6609 = vadd.f32 %v5943, %v6576
        %v6610 = vld [vmem:[%s2265] sm:$0x8]
        %v6611 = vld [vmem:[%s2265 + $0x4] sm:$0xf]
        %v6612 = vld [vmem:[%s2265 + $0x8] sm:$0xf]
        %v6613 = vld [vmem:[%s2265 + $0x10] sm:$0x8]
        %v6614 = vld [vmem:[%s2265 + $0x14] sm:$0xf]
        %v6615 = vld [vmem:[%s2265 + $0x18] sm:$0xf]
        %v6616 = vld [vmem:[%s2265 + $0x20] sm:$0x8]
        %v6617 = vld [vmem:[%s2265 + $0x24] sm:$0xf]
        %v6618 = vld [vmem:[%s2265 + $0x28] sm:$0xf]
        %v6619 = vld [vmem:[%s2265 + $0x30] sm:$0x8]
        %v6620 = vld [vmem:[%s2265 + $0x34] sm:$0xf]
        %v6621 = vld [vmem:[%s2265 + $0x38] sm:$0xf]
        %v6622 = vld [vmem:[%s2265 + $0x40] sm:$0x8]
        %v6623 = vld [vmem:[%s2265 + $0x44] sm:$0xf]
        %v6624 = vld [vmem:[%s2265 + $0x48] sm:$0xf]
        %v6625 = vld [vmem:[%s2265 + $0x50] sm:$0x8]
        %v6626 = vld [vmem:[%s2265 + $0x54] sm:$0xf]
        %v6627 = vld [vmem:[%s2265 + $0x58] sm:$0xf]
        %v6628 = vld [vmem:[%s2265 + $0x60] sm:$0x8]
        %v6629 = vld [vmem:[%s2265 + $0x64] sm:$0xf]
        %v6630 = vld [vmem:[%s2265 + $0x68] sm:$0xf]
        %v6631 = vld [vmem:[%s2265 + $0x70] sm:$0x8]
        %v6632 = vld [vmem:[%s2265 + $0x74] sm:$0xf]
        %v6633 = vld [vmem:[%s2265 + $0x78] sm:$0xf]
        %v6634 = vld [vmem:[%s2265 + $0x80] sm:$0x8]
        %v6635 = vld [vmem:[%s2265 + $0x84] sm:$0xf]
        %v6636 = vld [vmem:[%s2265 + $0x88] sm:$0xf]
        %v6637 = vld [vmem:[%s2265 + $0x90] sm:$0x8]
        %v6638 = vld [vmem:[%s2265 + $0x94] sm:$0xf]
        %v6639 = vld [vmem:[%s2265 + $0x98] sm:$0xf]
        %v6640 = vld [vmem:[%s2265 + $0xa0] sm:$0x8]
        %v6641 = vld [vmem:[%s2265 + $0xa4] sm:$0xf]
        %v6642 = vld [vmem:[%s2265 + $0xa8] sm:$0xf]
        %v6643 = vld [vmem:[%s2265 + $0xb0] sm:$0x8]
        %v6644 = vld [vmem:[%s2265 + $0xb4] sm:$0xf]
        %v6645 = vld [vmem:[%s2265 + $0xb8] sm:$0xf]
        %v6646 = vld [vmem:[%s2265 + $0xc0] sm:$0x8]
        %v6647 = vld [vmem:[%s2265 + $0xc4] sm:$0xf]
        %v6648 = vld [vmem:[%s2265 + $0xc8] sm:$0xf]
        %v6649 = vld [vmem:[%s2265 + $0xd0] sm:$0x8]
        %v6650 = vld [vmem:[%s2265 + $0xd4] sm:$0xf]
        %v6651 = vld [vmem:[%s2265 + $0xd8] sm:$0xf]
        %v6652 = vld [vmem:[%s2265 + $0xe0] sm:$0x8]
        %v6653 = vld [vmem:[%s2265 + $0xe4] sm:$0xf]
        %v6654 = vld [vmem:[%s2265 + $0xe8] sm:$0xf]
        %v6655 = vld [vmem:[%s2265 + $0xf0] sm:$0x8]
        %v6656 = vld [vmem:[%s2265 + $0xf4] sm:$0xf]
        %v6657 = vld [vmem:[%s2265 + $0xf8] sm:$0xf]
        %v6659 = vshrl.u32 %v6610, 16
        %v6661 = vrot.slane %v6659, 7
        %v6662 = vrot.slane %v6661, 4
        %v6664 = vshrl.u32 %v6611, 16
        %v6666 = vrot.slane %v6664, 7
        %v6667 = vshll.u32 %v6611, 16
        %v6669 = vor.u32 %v6666, %v6667
        %v6670 = vsel %vm3122, %v6662, %v6669
        %v6671 = vrot.slane %v6666, 4
        %v6673 = vshrl.u32 %v6612, 16
        %v6675 = vrot.slane %v6673, 7
        %v6676 = vshll.u32 %v6612, 16
        %v6678 = vor.u32 %v6675, %v6676
        %v6679 = vsel %vm3122, %v6671, %v6678
        %v6681 = vshrl.u32 %v6613, 16
        %v6683 = vrot.slane %v6681, 7
        %v6684 = vrot.slane %v6683, 4
        %v6686 = vshrl.u32 %v6614, 16
        %v6688 = vrot.slane %v6686, 7
        %v6689 = vshll.u32 %v6614, 16
        %v6691 = vor.u32 %v6688, %v6689
        %v6692 = vsel %vm3122, %v6684, %v6691
        %v6693 = vrot.slane %v6688, 4
        %v6695 = vshrl.u32 %v6615, 16
        %v6697 = vrot.slane %v6695, 7
        %v6698 = vshll.u32 %v6615, 16
        %v6700 = vor.u32 %v6697, %v6698
        %v6701 = vsel %vm3122, %v6693, %v6700
        %v6703 = vshrl.u32 %v6616, 16
        %v6705 = vrot.slane %v6703, 7
        %v6706 = vrot.slane %v6705, 4
        %v6708 = vshrl.u32 %v6617, 16
        %v6710 = vrot.slane %v6708, 7
        %v6711 = vshll.u32 %v6617, 16
        %v6713 = vor.u32 %v6710, %v6711
        %v6714 = vsel %vm3122, %v6706, %v6713
        %v6715 = vrot.slane %v6710, 4
        %v6717 = vshrl.u32 %v6618, 16
        %v6719 = vrot.slane %v6717, 7
        %v6720 = vshll.u32 %v6618, 16
        %v6722 = vor.u32 %v6719, %v6720
        %v6723 = vsel %vm3122, %v6715, %v6722
        %v6725 = vshrl.u32 %v6619, 16
        %v6727 = vrot.slane %v6725, 7
        %v6728 = vrot.slane %v6727, 4
        %v6730 = vshrl.u32 %v6620, 16
        %v6732 = vrot.slane %v6730, 7
        %v6733 = vshll.u32 %v6620, 16
        %v6735 = vor.u32 %v6732, %v6733
        %v6736 = vsel %vm3122, %v6728, %v6735
        %v6737 = vrot.slane %v6732, 4
        %v6739 = vshrl.u32 %v6621, 16
        %v6741 = vrot.slane %v6739, 7
        %v6742 = vshll.u32 %v6621, 16
        %v6744 = vor.u32 %v6741, %v6742
        %v6745 = vsel %vm3122, %v6737, %v6744
        %v6747 = vshrl.u32 %v6622, 16
        %v6749 = vrot.slane %v6747, 7
        %v6750 = vrot.slane %v6749, 4
        %v6752 = vshrl.u32 %v6623, 16
        %v6754 = vrot.slane %v6752, 7
        %v6755 = vshll.u32 %v6623, 16
        %v6757 = vor.u32 %v6754, %v6755
        %v6758 = vsel %vm3122, %v6750, %v6757
        %v6759 = vrot.slane %v6754, 4
        %v6761 = vshrl.u32 %v6624, 16
        %v6763 = vrot.slane %v6761, 7
        %v6764 = vshll.u32 %v6624, 16
        %v6766 = vor.u32 %v6763, %v6764
        %v6767 = vsel %vm3122, %v6759, %v6766
        %v6769 = vshrl.u32 %v6625, 16
        %v6771 = vrot.slane %v6769, 7
        %v6772 = vrot.slane %v6771, 4
        %v6774 = vshrl.u32 %v6626, 16
        %v6776 = vrot.slane %v6774, 7
        %v6777 = vshll.u32 %v6626, 16
        %v6779 = vor.u32 %v6776, %v6777
        %v6780 = vsel %vm3122, %v6772, %v6779
        %v6781 = vrot.slane %v6776, 4
        %v6783 = vshrl.u32 %v6627, 16
        %v6785 = vrot.slane %v6783, 7
        %v6786 = vshll.u32 %v6627, 16
        %v6788 = vor.u32 %v6785, %v6786
        %v6789 = vsel %vm3122, %v6781, %v6788
        %v6791 = vshrl.u32 %v6628, 16
        %v6793 = vrot.slane %v6791, 7
        %v6794 = vrot.slane %v6793, 4
        %v6796 = vshrl.u32 %v6629, 16
        %v6798 = vrot.slane %v6796, 7
        %v6799 = vshll.u32 %v6629, 16
        %v6801 = vor.u32 %v6798, %v6799
        %v6802 = vsel %vm3122, %v6794, %v6801
        %v6803 = vrot.slane %v6798, 4
        %v6805 = vshrl.u32 %v6630, 16
        %v6807 = vrot.slane %v6805, 7
        %v6808 = vshll.u32 %v6630, 16
        %v6810 = vor.u32 %v6807, %v6808
        %v6811 = vsel %vm3122, %v6803, %v6810
        %v6813 = vshrl.u32 %v6631, 16
        %v6815 = vrot.slane %v6813, 7
        %v6816 = vrot.slane %v6815, 4
        %v6818 = vshrl.u32 %v6632, 16
        %v6820 = vrot.slane %v6818, 7
        %v6821 = vshll.u32 %v6632, 16
        %v6823 = vor.u32 %v6820, %v6821
        %v6824 = vsel %vm3122, %v6816, %v6823
        %v6825 = vrot.slane %v6820, 4
        %v6827 = vshrl.u32 %v6633, 16
        %v6829 = vrot.slane %v6827, 7
        %v6830 = vshll.u32 %v6633, 16
        %v6832 = vor.u32 %v6829, %v6830
        %v6833 = vsel %vm3122, %v6825, %v6832
        %v6835 = vshrl.u32 %v6634, 16
        %v6837 = vrot.slane %v6835, 7
        %v6838 = vrot.slane %v6837, 4
        %v6840 = vshrl.u32 %v6635, 16
        %v6842 = vrot.slane %v6840, 7
        %v6843 = vshll.u32 %v6635, 16
        %v6845 = vor.u32 %v6842, %v6843
        %v6846 = vsel %vm3122, %v6838, %v6845
        %v6847 = vrot.slane %v6842, 4
        %v6849 = vshrl.u32 %v6636, 16
        %v6851 = vrot.slane %v6849, 7
        %v6852 = vshll.u32 %v6636, 16
        %v6854 = vor.u32 %v6851, %v6852
        %v6855 = vsel %vm3122, %v6847, %v6854
        %v6857 = vshrl.u32 %v6637, 16
        %v6859 = vrot.slane %v6857, 7
        %v6860 = vrot.slane %v6859, 4
        %v6862 = vshrl.u32 %v6638, 16
        %v6864 = vrot.slane %v6862, 7
        %v6865 = vshll.u32 %v6638, 16
        %v6867 = vor.u32 %v6864, %v6865
        %v6868 = vsel %vm3122, %v6860, %v6867
        %v6869 = vrot.slane %v6864, 4
        %v6871 = vshrl.u32 %v6639, 16
        %v6873 = vrot.slane %v6871, 7
        %v6874 = vshll.u32 %v6639, 16
        %v6876 = vor.u32 %v6873, %v6874
        %v6877 = vsel %vm3122, %v6869, %v6876
        %v6879 = vshrl.u32 %v6640, 16
        %v6881 = vrot.slane %v6879, 7
        %v6882 = vrot.slane %v6881, 4
        %v6884 = vshrl.u32 %v6641, 16
        %v6886 = vrot.slane %v6884, 7
        %v6887 = vshll.u32 %v6641, 16
        %v6889 = vor.u32 %v6886, %v6887
        %v6890 = vsel %vm3122, %v6882, %v6889
        %v6891 = vrot.slane %v6886, 4
        %v6893 = vshrl.u32 %v6642, 16
        %v6895 = vrot.slane %v6893, 7
        %v6896 = vshll.u32 %v6642, 16
        %v6898 = vor.u32 %v6895, %v6896
        %v6899 = vsel %vm3122, %v6891, %v6898
        %v6901 = vshrl.u32 %v6643, 16
        %v6903 = vrot.slane %v6901, 7
        %v6904 = vrot.slane %v6903, 4
        %v6906 = vshrl.u32 %v6644, 16
        %v6908 = vrot.slane %v6906, 7
        %v6909 = vshll.u32 %v6644, 16
        %v6911 = vor.u32 %v6908, %v6909
        %v6912 = vsel %vm3122, %v6904, %v6911
        %v6913 = vrot.slane %v6908, 4
        %v6915 = vshrl.u32 %v6645, 16
        %v6917 = vrot.slane %v6915, 7
        %v6918 = vshll.u32 %v6645, 16
        %v6920 = vor.u32 %v6917, %v6918
        %v6921 = vsel %vm3122, %v6913, %v6920
        %v6923 = vshrl.u32 %v6646, 16
        %v6925 = vrot.slane %v6923, 7
        %v6926 = vrot.slane %v6925, 4
        %v6928 = vshrl.u32 %v6647, 16
        %v6930 = vrot.slane %v6928, 7
        %v6931 = vshll.u32 %v6647, 16
        %v6933 = vor.u32 %v6930, %v6931
        %v6934 = vsel %vm3122, %v6926, %v6933
        %v6935 = vrot.slane %v6930, 4
        %v6937 = vshrl.u32 %v6648, 16
        %v6939 = vrot.slane %v6937, 7
        %v6940 = vshll.u32 %v6648, 16
        %v6942 = vor.u32 %v6939, %v6940
        %v6943 = vsel %vm3122, %v6935, %v6942
        %v6945 = vshrl.u32 %v6649, 16
        %v6947 = vrot.slane %v6945, 7
        %v6948 = vrot.slane %v6947, 4
        %v6950 = vshrl.u32 %v6650, 16
        %v6952 = vrot.slane %v6950, 7
        %v6953 = vshll.u32 %v6650, 16
        %v6955 = vor.u32 %v6952, %v6953
        %v6956 = vsel %vm3122, %v6948, %v6955
        %v6957 = vrot.slane %v6952, 4
        %v6959 = vshrl.u32 %v6651, 16
        %v6961 = vrot.slane %v6959, 7
        %v6962 = vshll.u32 %v6651, 16
        %v6964 = vor.u32 %v6961, %v6962
        %v6965 = vsel %vm3122, %v6957, %v6964
        %v6967 = vshrl.u32 %v6652, 16
        %v6969 = vrot.slane %v6967, 7
        %v6970 = vrot.slane %v6969, 4
        %v6972 = vshrl.u32 %v6653, 16
        %v6974 = vrot.slane %v6972, 7
        %v6975 = vshll.u32 %v6653, 16
        %v6977 = vor.u32 %v6974, %v6975
        %v6978 = vsel %vm3122, %v6970, %v6977
        %v6979 = vrot.slane %v6974, 4
        %v6981 = vshrl.u32 %v6654, 16
        %v6983 = vrot.slane %v6981, 7
        %v6984 = vshll.u32 %v6654, 16
        %v6986 = vor.u32 %v6983, %v6984
        %v6987 = vsel %vm3122, %v6979, %v6986
        %v6989 = vshrl.u32 %v6655, 16
        %v6991 = vrot.slane %v6989, 7
        %v6992 = vrot.slane %v6991, 4
        %v6994 = vshrl.u32 %v6656, 16
        %v6996 = vrot.slane %v6994, 7
        %v6997 = vshll.u32 %v6656, 16
        %v6999 = vor.u32 %v6996, %v6997
        %v7000 = vsel %vm3122, %v6992, %v6999
        %v7001 = vrot.slane %v6996, 4
        %v7003 = vshrl.u32 %v6657, 16
        %v7005 = vrot.slane %v7003, 7
        %v7006 = vshll.u32 %v6657, 16
        %v7008 = vor.u32 %v7005, %v7006
        %v7009 = vsel %vm3122, %v7001, %v7008
        %s7010 = scalar_lea.vmem %s7, 96
        %v7011 = vld [vmem:[%s7010] sm:$0xf]
        %v7012 = vld [vmem:[%s7010 + $0x4] sm:$0xf]
        %v7013 = vld [vmem:[%s7010 + $0x8] sm:$0xf]
        %v7014 = vld [vmem:[%s7010 + $0xc] sm:$0xf]
        %v7015 = vunpack.c.l.b16 %v6670
        %v7016 = vunpack.c.l.b16 %v6679
        %v7017 = vunpack.c.l.b16 %v6692
        %v7018 = vunpack.c.l.b16 %v6701
        %v7019 = vunpack.c.l.b16 %v6714
        %v7020 = vunpack.c.l.b16 %v6723
        %v7021 = vunpack.c.l.b16 %v6736
        %v7022 = vunpack.c.l.b16 %v6745
        %v7023 = vunpack.c.l.b16 %v6758
        %v7024 = vunpack.c.l.b16 %v6767
        %v7025 = vunpack.c.l.b16 %v6780
        %v7026 = vunpack.c.l.b16 %v6789
        %v7027 = vunpack.c.l.b16 %v6802
        %v7028 = vunpack.c.l.b16 %v6811
        %v7029 = vunpack.c.l.b16 %v6824
        %v7030 = vunpack.c.l.b16 %v6833
        %v7031 = vunpack.c.l.b16 %v6846
        %v7032 = vunpack.c.l.b16 %v6855
        %v7033 = vunpack.c.l.b16 %v6868
        %v7034 = vunpack.c.l.b16 %v6877
        %v7035 = vunpack.c.l.b16 %v6890
        %v7036 = vunpack.c.l.b16 %v6899
        %v7037 = vunpack.c.l.b16 %v6912
        %v7038 = vunpack.c.l.b16 %v6921
        %v7039 = vunpack.c.l.b16 %v6934
        %v7040 = vunpack.c.l.b16 %v6943
        %v7041 = vunpack.c.l.b16 %v6956
        %v7042 = vunpack.c.l.b16 %v6965
        %v7043 = vunpack.c.l.b16 %v6978
        %v7044 = vunpack.c.l.b16 %v6987
        %v7045 = vunpack.c.l.b16 %v7000
        %v7046 = vunpack.c.l.b16 %v7009
        %v7047 = vpack.c.b16 %v7016, %v7015
        %v7048 = vpack.c.b16 %v7018, %v7017
        %v7049 = vpack.c.b16 %v7020, %v7019
        %v7050 = vpack.c.b16 %v7022, %v7021
        %v7051 = vpack.c.b16 %v7024, %v7023
        %v7052 = vpack.c.b16 %v7026, %v7025
        %v7053 = vpack.c.b16 %v7028, %v7027
        %v7054 = vpack.c.b16 %v7030, %v7029
        %v7055 = vpack.c.b16 %v7032, %v7031
        %v7056 = vpack.c.b16 %v7034, %v7033
        %v7057 = vpack.c.b16 %v7036, %v7035
        %v7058 = vpack.c.b16 %v7038, %v7037
        %v7059 = vpack.c.b16 %v7040, %v7039
        %v7060 = vpack.c.b16 %v7042, %v7041
        %v7061 = vpack.c.b16 %v7044, %v7043
        %v7062 = vpack.c.b16 %v7046, %v7045
        %v7067 = vunpack.c.l.b16 %v7011
        %v7068 = vunpack.c.l.b16 %v7012
        %v7069 = vunpack.c.l.b16 %v7013
        %v7070 = vunpack.c.l.b16 %v7014
        %v7071 = vpack.c.b16 %v7068, %v7067
        %v7072 = vpack.c.b16 %v7070, %v7069
        %v7076 = vsel %vm4040, %v7047, 0
        %v7079 = vsel %vm4040, %v7048, 0
        %v7082 = vsel %vm4040, %v7049, 0
        %v7085 = vsel %vm4040, %v7050, 0
        %v7088 = vsel %vm4040, %v7051, 0
        %v7091 = vsel %vm4040, %v7052, 0
        %v7094 = vsel %vm4040, %v7053, 0
        %v7097 = vsel %vm4040, %v7054, 0
        %v7100 = vsel %vm4040, %v7055, 0
        %v7103 = vsel %vm4040, %v7056, 0
        %v7106 = vsel %vm4040, %v7057, 0
        %v7109 = vsel %vm4040, %v7058, 0
        %v7112 = vsel %vm4040, %v7059, 0
        %v7115 = vsel %vm4040, %v7060, 0
        %v7118 = vsel %vm4040, %v7061, 0
        %v7121 = vsel %vm4040, %v7062, 0
        %7123 = vmatpush.bf16.msra.mxu0 0
        %7124 = vmatpush.bf16.msra.mxu0 0
        %7125 = vmatpush.bf16.msra.mxu0 0
        %7126 = vmatpush.bf16.msra.mxu0 0
        %7127 = vmatpush.bf16.msra.mxu0 0
        %7128 = vmatpush.bf16.msra.mxu0 0
        %7129 = vmatpush.bf16.msra.mxu0 %v7072
        %7130 = vmatpush.bf16.msra.mxu0 %v7071
        %7131 = vmatmul.bf16.gmra.mxu0 %v7076
        %v7132 = vpop.f32.mrf.mxu0
        %v7133 = vadd.f32 0.0, %v7132
        %v7134 = vpop.f32.mrf.mxu0
        %v7135 = vadd.f32 0.0, %v7134
        %7136 = vmatmul.bf16.gmra.mxu0 %v7079
        %v7137 = vpop.f32.mrf.mxu0
        %v7138 = vadd.f32 0.0, %v7137
        %v7139 = vpop.f32.mrf.mxu0
        %v7140 = vadd.f32 0.0, %v7139
        %7141 = vmatmul.bf16.gmra.mxu0 %v7082
        %v7142 = vpop.f32.mrf.mxu0
        %v7143 = vadd.f32 0.0, %v7142
        %v7144 = vpop.f32.mrf.mxu0
        %v7145 = vadd.f32 0.0, %v7144
        %7146 = vmatmul.bf16.gmra.mxu0 %v7085
        %v7147 = vpop.f32.mrf.mxu0
        %v7148 = vadd.f32 0.0, %v7147
        %v7149 = vpop.f32.mrf.mxu0
        %v7150 = vadd.f32 0.0, %v7149
        %7151 = vmatmul.bf16.gmra.mxu0 %v7088
        %v7152 = vpop.f32.mrf.mxu0
        %v7153 = vadd.f32 0.0, %v7152
        %v7154 = vpop.f32.mrf.mxu0
        %v7155 = vadd.f32 0.0, %v7154
        %7156 = vmatmul.bf16.gmra.mxu0 %v7091
        %v7157 = vpop.f32.mrf.mxu0
        %v7158 = vadd.f32 0.0, %v7157
        %v7159 = vpop.f32.mrf.mxu0
        %v7160 = vadd.f32 0.0, %v7159
        %7161 = vmatmul.bf16.gmra.mxu0 %v7094
        %v7162 = vpop.f32.mrf.mxu0
        %v7163 = vadd.f32 0.0, %v7162
        %v7164 = vpop.f32.mrf.mxu0
        %v7165 = vadd.f32 0.0, %v7164
        %7166 = vmatmul.bf16.gmra.mxu0 %v7097
        %v7167 = vpop.f32.mrf.mxu0
        %v7168 = vadd.f32 0.0, %v7167
        %v7169 = vpop.f32.mrf.mxu0
        %v7170 = vadd.f32 0.0, %v7169
        %7171 = vmatmul.bf16.gmra.mxu0 %v7100
        %v7172 = vpop.f32.mrf.mxu0
        %v7173 = vadd.f32 0.0, %v7172
        %v7174 = vpop.f32.mrf.mxu0
        %v7175 = vadd.f32 0.0, %v7174
        %7176 = vmatmul.bf16.gmra.mxu0 %v7103
        %v7177 = vpop.f32.mrf.mxu0
        %v7178 = vadd.f32 0.0, %v7177
        %v7179 = vpop.f32.mrf.mxu0
        %v7180 = vadd.f32 0.0, %v7179
        %7181 = vmatmul.bf16.gmra.mxu0 %v7106
        %v7182 = vpop.f32.mrf.mxu0
        %v7183 = vadd.f32 0.0, %v7182
        %v7184 = vpop.f32.mrf.mxu0
        %v7185 = vadd.f32 0.0, %v7184
        %7186 = vmatmul.bf16.gmra.mxu0 %v7109
        %v7187 = vpop.f32.mrf.mxu0
        %v7188 = vadd.f32 0.0, %v7187
        %v7189 = vpop.f32.mrf.mxu0
        %v7190 = vadd.f32 0.0, %v7189
        %7191 = vmatmul.bf16.gmra.mxu0 %v7112
        %v7192 = vpop.f32.mrf.mxu0
        %v7193 = vadd.f32 0.0, %v7192
        %v7194 = vpop.f32.mrf.mxu0
        %v7195 = vadd.f32 0.0, %v7194
        %7196 = vmatmul.bf16.gmra.mxu0 %v7115
        %v7197 = vpop.f32.mrf.mxu0
        %v7198 = vadd.f32 0.0, %v7197
        %v7199 = vpop.f32.mrf.mxu0
        %v7200 = vadd.f32 0.0, %v7199
        %7201 = vmatmul.bf16.gmra.mxu0 %v7118
        %v7202 = vpop.f32.mrf.mxu0
        %v7203 = vadd.f32 0.0, %v7202
        %v7204 = vpop.f32.mrf.mxu0
        %v7205 = vadd.f32 0.0, %v7204
        %7206 = vmatmul.bf16.gmra.mxu0 %v7121
        %v7207 = vpop.f32.mrf.mxu0
        %v7208 = vadd.f32 0.0, %v7207
        %v7209 = vpop.f32.mrf.mxu0
        %v7210 = vadd.f32 0.0, %v7209
        %7211 = vdwg.mxu0
        %v7212 = vadd.f32 %v6578, %v7133
        %v7213 = vadd.f32 %v6579, %v7135
        %v7214 = vadd.f32 %v6580, %v7138
        %v7215 = vadd.f32 %v6581, %v7140
        %v7216 = vadd.f32 %v6582, %v7143
        %v7217 = vadd.f32 %v6583, %v7145
        %v7218 = vadd.f32 %v6584, %v7148
        %v7219 = vadd.f32 %v6585, %v7150
        %v7220 = vadd.f32 %v6586, %v7153
        %v7221 = vadd.f32 %v6587, %v7155
        %v7222 = vadd.f32 %v6588, %v7158
        %v7223 = vadd.f32 %v6589, %v7160
        %v7224 = vadd.f32 %v6590, %v7163
        %v7225 = vadd.f32 %v6591, %v7165
        %v7226 = vadd.f32 %v6592, %v7168
        %v7227 = vadd.f32 %v6593, %v7170
        %v7228 = vadd.f32 %v6594, %v7173
        %v7229 = vadd.f32 %v6595, %v7175
        %v7230 = vadd.f32 %v6596, %v7178
        %v7231 = vadd.f32 %v6597, %v7180
        %v7232 = vadd.f32 %v6598, %v7183
        %v7233 = vadd.f32 %v6599, %v7185
        %v7234 = vadd.f32 %v6600, %v7188
        %v7235 = vadd.f32 %v6601, %v7190
        %v7236 = vadd.f32 %v6602, %v7193
        %v7237 = vadd.f32 %v6603, %v7195
        %v7238 = vadd.f32 %v6604, %v7198
        %v7239 = vadd.f32 %v6605, %v7200
        %v7240 = vadd.f32 %v6606, %v7203
        %v7241 = vadd.f32 %v6607, %v7205
        %v7242 = vadd.f32 %v6608, %v7208
        %v7243 = vadd.f32 %v6609, %v7210
        %s7244 = scalar_lea.vmem %s7, 112
        %v7245 = vld [vmem:[%s7244] sm:$0xf]
        %v7246 = vld [vmem:[%s7244 + $0x4] sm:$0xf]
        %v7247 = vld [vmem:[%s7244 + $0x8] sm:$0xf]
        %v7248 = vld [vmem:[%s7244 + $0xc] sm:$0xf]
        %v7281 = vunpack.c.l.b16 %v6611
        %v7282 = vunpack.c.l.b16 %v6612
        %v7283 = vunpack.c.l.b16 %v6614
        %v7284 = vunpack.c.l.b16 %v6615
        %v7285 = vunpack.c.l.b16 %v6617
        %v7286 = vunpack.c.l.b16 %v6618
        %v7287 = vunpack.c.l.b16 %v6620
        %v7288 = vunpack.c.l.b16 %v6621
        %v7289 = vunpack.c.l.b16 %v6623
        %v7290 = vunpack.c.l.b16 %v6624
        %v7291 = vunpack.c.l.b16 %v6626
        %v7292 = vunpack.c.l.b16 %v6627
        %v7293 = vunpack.c.l.b16 %v6629
        %v7294 = vunpack.c.l.b16 %v6630
        %v7295 = vunpack.c.l.b16 %v6632
        %v7296 = vunpack.c.l.b16 %v6633
        %v7297 = vunpack.c.l.b16 %v6635
        %v7298 = vunpack.c.l.b16 %v6636
        %v7299 = vunpack.c.l.b16 %v6638
        %v7300 = vunpack.c.l.b16 %v6639
        %v7301 = vunpack.c.l.b16 %v6641
        %v7302 = vunpack.c.l.b16 %v6642
        %v7303 = vunpack.c.l.b16 %v6644
        %v7304 = vunpack.c.l.b16 %v6645
        %v7305 = vunpack.c.l.b16 %v6647
        %v7306 = vunpack.c.l.b16 %v6648
        %v7307 = vunpack.c.l.b16 %v6650
        %v7308 = vunpack.c.l.b16 %v6651
        %v7309 = vunpack.c.l.b16 %v6653
        %v7310 = vunpack.c.l.b16 %v6654
        %v7311 = vunpack.c.l.b16 %v6656
        %v7312 = vunpack.c.l.b16 %v6657
        %v7313 = vpack.c.b16 %v7282, %v7281
        %v7314 = vpack.c.b16 %v7284, %v7283
        %v7315 = vpack.c.b16 %v7286, %v7285
        %v7316 = vpack.c.b16 %v7288, %v7287
        %v7317 = vpack.c.b16 %v7290, %v7289
        %v7318 = vpack.c.b16 %v7292, %v7291
        %v7319 = vpack.c.b16 %v7294, %v7293
        %v7320 = vpack.c.b16 %v7296, %v7295
        %v7321 = vpack.c.b16 %v7298, %v7297
        %v7322 = vpack.c.b16 %v7300, %v7299
        %v7323 = vpack.c.b16 %v7302, %v7301
        %v7324 = vpack.c.b16 %v7304, %v7303
        %v7325 = vpack.c.b16 %v7306, %v7305
        %v7326 = vpack.c.b16 %v7308, %v7307
        %v7327 = vpack.c.b16 %v7310, %v7309
        %v7328 = vpack.c.b16 %v7312, %v7311
        %v7333 = vunpack.c.l.b16 %v7245
        %v7334 = vunpack.c.l.b16 %v7246
        %v7335 = vunpack.c.l.b16 %v7247
        %v7336 = vunpack.c.l.b16 %v7248
        %v7337 = vpack.c.b16 %v7334, %v7333
        %v7338 = vpack.c.b16 %v7336, %v7335
        %v7342 = vsel %vm4040, %v7313, 0
        %v7345 = vsel %vm4040, %v7314, 0
        %v7348 = vsel %vm4040, %v7315, 0
        %v7351 = vsel %vm4040, %v7316, 0
        %v7354 = vsel %vm4040, %v7317, 0
        %v7357 = vsel %vm4040, %v7318, 0
        %v7360 = vsel %vm4040, %v7319, 0
        %v7363 = vsel %vm4040, %v7320, 0
        %v7366 = vsel %vm4040, %v7321, 0
        %v7369 = vsel %vm4040, %v7322, 0
        %v7372 = vsel %vm4040, %v7323, 0
        %v7375 = vsel %vm4040, %v7324, 0
        %v7378 = vsel %vm4040, %v7325, 0
        %v7381 = vsel %vm4040, %v7326, 0
        %v7384 = vsel %vm4040, %v7327, 0
        %v7387 = vsel %vm4040, %v7328, 0
        %7389 = vmatpush.bf16.msra.mxu0 0
        %7390 = vmatpush.bf16.msra.mxu0 0
        %7391 = vmatpush.bf16.msra.mxu0 0
        %7392 = vmatpush.bf16.msra.mxu0 0
        %7393 = vmatpush.bf16.msra.mxu0 0
        %7394 = vmatpush.bf16.msra.mxu0 0
        %7395 = vmatpush.bf16.msra.mxu0 %v7338
        %7396 = vmatpush.bf16.msra.mxu0 %v7337
        %7397 = vmatmul.bf16.gmra.mxu0 %v7342
        %v7398 = vpop.f32.mrf.mxu0
        %v7399 = vadd.f32 0.0, %v7398
        %v7400 = vpop.f32.mrf.mxu0
        %v7401 = vadd.f32 0.0, %v7400
        %7402 = vmatmul.bf16.gmra.mxu0 %v7345
        %v7403 = vpop.f32.mrf.mxu0
        %v7404 = vadd.f32 0.0, %v7403
        %v7405 = vpop.f32.mrf.mxu0
        %v7406 = vadd.f32 0.0, %v7405
        %7407 = vmatmul.bf16.gmra.mxu0 %v7348
        %v7408 = vpop.f32.mrf.mxu0
        %v7409 = vadd.f32 0.0, %v7408
        %v7410 = vpop.f32.mrf.mxu0
        %v7411 = vadd.f32 0.0, %v7410
        %7412 = vmatmul.bf16.gmra.mxu0 %v7351
        %v7413 = vpop.f32.mrf.mxu0
        %v7414 = vadd.f32 0.0, %v7413
        %v7415 = vpop.f32.mrf.mxu0
        %v7416 = vadd.f32 0.0, %v7415
        %7417 = vmatmul.bf16.gmra.mxu0 %v7354
        %v7418 = vpop.f32.mrf.mxu0
        %v7419 = vadd.f32 0.0, %v7418
        %v7420 = vpop.f32.mrf.mxu0
        %v7421 = vadd.f32 0.0, %v7420
        %7422 = vmatmul.bf16.gmra.mxu0 %v7357
        %v7423 = vpop.f32.mrf.mxu0
        %v7424 = vadd.f32 0.0, %v7423
        %v7425 = vpop.f32.mrf.mxu0
        %v7426 = vadd.f32 0.0, %v7425
        %7427 = vmatmul.bf16.gmra.mxu0 %v7360
        %v7428 = vpop.f32.mrf.mxu0
        %v7429 = vadd.f32 0.0, %v7428
        %v7430 = vpop.f32.mrf.mxu0
        %v7431 = vadd.f32 0.0, %v7430
        %7432 = vmatmul.bf16.gmra.mxu0 %v7363
        %v7433 = vpop.f32.mrf.mxu0
        %v7434 = vadd.f32 0.0, %v7433
        %v7435 = vpop.f32.mrf.mxu0
        %v7436 = vadd.f32 0.0, %v7435
        %7437 = vmatmul.bf16.gmra.mxu0 %v7366
        %v7438 = vpop.f32.mrf.mxu0
        %v7439 = vadd.f32 0.0, %v7438
        %v7440 = vpop.f32.mrf.mxu0
        %v7441 = vadd.f32 0.0, %v7440
        %7442 = vmatmul.bf16.gmra.mxu0 %v7369
        %v7443 = vpop.f32.mrf.mxu0
        %v7444 = vadd.f32 0.0, %v7443
        %v7445 = vpop.f32.mrf.mxu0
        %v7446 = vadd.f32 0.0, %v7445
        %7447 = vmatmul.bf16.gmra.mxu0 %v7372
        %v7448 = vpop.f32.mrf.mxu0
        %v7449 = vadd.f32 0.0, %v7448
        %v7450 = vpop.f32.mrf.mxu0
        %v7451 = vadd.f32 0.0, %v7450
        %7452 = vmatmul.bf16.gmra.mxu0 %v7375
        %v7453 = vpop.f32.mrf.mxu0
        %v7454 = vadd.f32 0.0, %v7453
        %v7455 = vpop.f32.mrf.mxu0
        %v7456 = vadd.f32 0.0, %v7455
        %7457 = vmatmul.bf16.gmra.mxu0 %v7378
        %v7458 = vpop.f32.mrf.mxu0
        %v7459 = vadd.f32 0.0, %v7458
        %v7460 = vpop.f32.mrf.mxu0
        %v7461 = vadd.f32 0.0, %v7460
        %7462 = vmatmul.bf16.gmra.mxu0 %v7381
        %v7463 = vpop.f32.mrf.mxu0
        %v7464 = vadd.f32 0.0, %v7463
        %v7465 = vpop.f32.mrf.mxu0
        %v7466 = vadd.f32 0.0, %v7465
        %7467 = vmatmul.bf16.gmra.mxu0 %v7384
        %v7468 = vpop.f32.mrf.mxu0
        %v7469 = vadd.f32 0.0, %v7468
        %v7470 = vpop.f32.mrf.mxu0
        %v7471 = vadd.f32 0.0, %v7470
        %7472 = vmatmul.bf16.gmra.mxu0 %v7387
        %v7473 = vpop.f32.mrf.mxu0
        %v7474 = vadd.f32 0.0, %v7473
        %v7475 = vpop.f32.mrf.mxu0
        %v7476 = vadd.f32 0.0, %v7475
        %7477 = vdwg.mxu0
        %v7478 = vadd.f32 %v7212, %v7399
        %v7479 = vadd.f32 %v7213, %v7401
        %v7480 = vadd.f32 %v7214, %v7404
        %v7481 = vadd.f32 %v7215, %v7406
        %v7482 = vadd.f32 %v7216, %v7409
        %v7483 = vadd.f32 %v7217, %v7411
        %v7484 = vadd.f32 %v7218, %v7414
        %v7485 = vadd.f32 %v7219, %v7416
        %v7486 = vadd.f32 %v7220, %v7419
        %v7487 = vadd.f32 %v7221, %v7421
        %v7488 = vadd.f32 %v7222, %v7424
        %v7489 = vadd.f32 %v7223, %v7426
        %v7490 = vadd.f32 %v7224, %v7429
        %v7491 = vadd.f32 %v7225, %v7431
        %v7492 = vadd.f32 %v7226, %v7434
        %v7493 = vadd.f32 %v7227, %v7436
        %v7494 = vadd.f32 %v7228, %v7439
        %v7495 = vadd.f32 %v7229, %v7441
        %v7496 = vadd.f32 %v7230, %v7444
        %v7497 = vadd.f32 %v7231, %v7446
        %v7498 = vadd.f32 %v7232, %v7449
        %v7499 = vadd.f32 %v7233, %v7451
        %v7500 = vadd.f32 %v7234, %v7454
        %v7501 = vadd.f32 %v7235, %v7456
        %v7502 = vadd.f32 %v7236, %v7459
        %v7503 = vadd.f32 %v7237, %v7461
        %v7504 = vadd.f32 %v7238, %v7464
        %v7505 = vadd.f32 %v7239, %v7466
        %v7506 = vadd.f32 %v7240, %v7469
        %v7507 = vadd.f32 %v7241, %v7471
        %v7508 = vadd.f32 %v7242, %v7474
        %v7509 = vadd.f32 %v7243, %v7476
        %v7510 = vld [vmem:[%s2265 + $0x4] sm:$0xf]
        %v7511 = vld [vmem:[%s2265 + $0x8] sm:$0xf]
        %v7512 = vld [vmem:[%s2265 + $0xc] sm:$0x1]
        %v7513 = vld [vmem:[%s2265 + $0x14] sm:$0xf]
        %v7514 = vld [vmem:[%s2265 + $0x18] sm:$0xf]
        %v7515 = vld [vmem:[%s2265 + $0x1c] sm:$0x1]
        %v7516 = vld [vmem:[%s2265 + $0x24] sm:$0xf]
        %v7517 = vld [vmem:[%s2265 + $0x28] sm:$0xf]
        %v7518 = vld [vmem:[%s2265 + $0x2c] sm:$0x1]
        %v7519 = vld [vmem:[%s2265 + $0x34] sm:$0xf]
        %v7520 = vld [vmem:[%s2265 + $0x38] sm:$0xf]
        %v7521 = vld [vmem:[%s2265 + $0x3c] sm:$0x1]
        %v7522 = vld [vmem:[%s2265 + $0x44] sm:$0xf]
        %v7523 = vld [vmem:[%s2265 + $0x48] sm:$0xf]
        %v7524 = vld [vmem:[%s2265 + $0x4c] sm:$0x1]
        %v7525 = vld [vmem:[%s2265 + $0x54] sm:$0xf]
        %v7526 = vld [vmem:[%s2265 + $0x58] sm:$0xf]
        %v7527 = vld [vmem:[%s2265 + $0x5c] sm:$0x1]
        %v7528 = vld [vmem:[%s2265 + $0x64] sm:$0xf]
        %v7529 = vld [vmem:[%s2265 + $0x68] sm:$0xf]
        %v7530 = vld [vmem:[%s2265 + $0x6c] sm:$0x1]
        %v7531 = vld [vmem:[%s2265 + $0x74] sm:$0xf]
        %v7532 = vld [vmem:[%s2265 + $0x78] sm:$0xf]
        %v7533 = vld [vmem:[%s2265 + $0x7c] sm:$0x1]
        %v7534 = vld [vmem:[%s2265 + $0x84] sm:$0xf]
        %v7535 = vld [vmem:[%s2265 + $0x88] sm:$0xf]
        %v7536 = vld [vmem:[%s2265 + $0x8c] sm:$0x1]
        %v7537 = vld [vmem:[%s2265 + $0x94] sm:$0xf]
        %v7538 = vld [vmem:[%s2265 + $0x98] sm:$0xf]
        %v7539 = vld [vmem:[%s2265 + $0x9c] sm:$0x1]
        %v7540 = vld [vmem:[%s2265 + $0xa4] sm:$0xf]
        %v7541 = vld [vmem:[%s2265 + $0xa8] sm:$0xf]
        %v7542 = vld [vmem:[%s2265 + $0xac] sm:$0x1]
        %v7543 = vld [vmem:[%s2265 + $0xb4] sm:$0xf]
        %v7544 = vld [vmem:[%s2265 + $0xb8] sm:$0xf]
        %v7545 = vld [vmem:[%s2265 + $0xbc] sm:$0x1]
        %v7546 = vld [vmem:[%s2265 + $0xc4] sm:$0xf]
        %v7547 = vld [vmem:[%s2265 + $0xc8] sm:$0xf]
        %v7548 = vld [vmem:[%s2265 + $0xcc] sm:$0x1]
        %v7549 = vld [vmem:[%s2265 + $0xd4] sm:$0xf]
        %v7550 = vld [vmem:[%s2265 + $0xd8] sm:$0xf]
        %v7551 = vld [vmem:[%s2265 + $0xdc] sm:$0x1]
        %v7552 = vld [vmem:[%s2265 + $0xe4] sm:$0xf]
        %v7553 = vld [vmem:[%s2265 + $0xe8] sm:$0xf]
        %v7554 = vld [vmem:[%s2265 + $0xec] sm:$0x1]
        %v7555 = vld [vmem:[%s2265 + $0xf4] sm:$0xf]
        %v7556 = vld [vmem:[%s2265 + $0xf8] sm:$0xf]
        %v7557 = vld [vmem:[%s2265 + $0xfc] sm:$0x1]
        %v7559 = vshrl.u32 %v7510, 16
        %v7561 = vrot.slane %v7559, 4
        %v7562 = vshll.u32 %v7510, 16
        %v7564 = vrot.slane %v7562, 5
        %v7565 = vor.u32 %v7561, %v7564
        %v7566 = vrot.slane %v7565, 4
        %v7568 = vshll.u32 %v7511, 16
        %v7570 = vrot.slane %v7568, 5
        %v7571 = vsel %vm4425, %v7566, %v7570
        %v7572 = vshrl.u32 %v7511, 16
        %v7574 = vrot.slane %v7572, 4
        %v7575 = vor.u32 %v7574, %v7570
        %v7576 = vrot.slane %v7575, 4
        %v7578 = vshll.u32 %v7512, 16
        %v7580 = vrot.slane %v7578, 5
        %v7581 = vsel %vm4425, %v7576, %v7580
        %v7583 = vshrl.u32 %v7513, 16
        %v7585 = vrot.slane %v7583, 4
        %v7586 = vshll.u32 %v7513, 16
        %v7588 = vrot.slane %v7586, 5
        %v7589 = vor.u32 %v7585, %v7588
        %v7590 = vrot.slane %v7589, 4
        %v7592 = vshll.u32 %v7514, 16
        %v7594 = vrot.slane %v7592, 5
        %v7595 = vsel %vm4425, %v7590, %v7594
        %v7596 = vshrl.u32 %v7514, 16
        %v7598 = vrot.slane %v7596, 4
        %v7599 = vor.u32 %v7598, %v7594
        %v7600 = vrot.slane %v7599, 4
        %v7602 = vshll.u32 %v7515, 16
        %v7604 = vrot.slane %v7602, 5
        %v7605 = vsel %vm4425, %v7600, %v7604
        %v7607 = vshrl.u32 %v7516, 16
        %v7609 = vrot.slane %v7607, 4
        %v7610 = vshll.u32 %v7516, 16
        %v7612 = vrot.slane %v7610, 5
        %v7613 = vor.u32 %v7609, %v7612
        %v7614 = vrot.slane %v7613, 4
        %v7616 = vshll.u32 %v7517, 16
        %v7618 = vrot.slane %v7616, 5
        %v7619 = vsel %vm4425, %v7614, %v7618
        %v7620 = vshrl.u32 %v7517, 16
        %v7622 = vrot.slane %v7620, 4
        %v7623 = vor.u32 %v7622, %v7618
        %v7624 = vrot.slane %v7623, 4
        %v7626 = vshll.u32 %v7518, 16
        %v7628 = vrot.slane %v7626, 5
        %v7629 = vsel %vm4425, %v7624, %v7628
        %v7631 = vshrl.u32 %v7519, 16
        %v7633 = vrot.slane %v7631, 4
        %v7634 = vshll.u32 %v7519, 16
        %v7636 = vrot.slane %v7634, 5
        %v7637 = vor.u32 %v7633, %v7636
        %v7638 = vrot.slane %v7637, 4
        %v7640 = vshll.u32 %v7520, 16
        %v7642 = vrot.slane %v7640, 5
        %v7643 = vsel %vm4425, %v7638, %v7642
        %v7644 = vshrl.u32 %v7520, 16
        %v7646 = vrot.slane %v7644, 4
        %v7647 = vor.u32 %v7646, %v7642
        %v7648 = vrot.slane %v7647, 4
        %v7650 = vshll.u32 %v7521, 16
        %v7652 = vrot.slane %v7650, 5
        %v7653 = vsel %vm4425, %v7648, %v7652
        %v7655 = vshrl.u32 %v7522, 16
        %v7657 = vrot.slane %v7655, 4
        %v7658 = vshll.u32 %v7522, 16
        %v7660 = vrot.slane %v7658, 5
        %v7661 = vor.u32 %v7657, %v7660
        %v7662 = vrot.slane %v7661, 4
        %v7664 = vshll.u32 %v7523, 16
        %v7666 = vrot.slane %v7664, 5
        %v7667 = vsel %vm4425, %v7662, %v7666
        %v7668 = vshrl.u32 %v7523, 16
        %v7670 = vrot.slane %v7668, 4
        %v7671 = vor.u32 %v7670, %v7666
        %v7672 = vrot.slane %v7671, 4
        %v7674 = vshll.u32 %v7524, 16
        %v7676 = vrot.slane %v7674, 5
        %v7677 = vsel %vm4425, %v7672, %v7676
        %v7679 = vshrl.u32 %v7525, 16
        %v7681 = vrot.slane %v7679, 4
        %v7682 = vshll.u32 %v7525, 16
        %v7684 = vrot.slane %v7682, 5
        %v7685 = vor.u32 %v7681, %v7684
        %v7686 = vrot.slane %v7685, 4
        %v7688 = vshll.u32 %v7526, 16
        %v7690 = vrot.slane %v7688, 5
        %v7691 = vsel %vm4425, %v7686, %v7690
        %v7692 = vshrl.u32 %v7526, 16
        %v7694 = vrot.slane %v7692, 4
        %v7695 = vor.u32 %v7694, %v7690
        %v7696 = vrot.slane %v7695, 4
        %v7698 = vshll.u32 %v7527, 16
        %v7700 = vrot.slane %v7698, 5
        %v7701 = vsel %vm4425, %v7696, %v7700
        %v7703 = vshrl.u32 %v7528, 16
        %v7705 = vrot.slane %v7703, 4
        %v7706 = vshll.u32 %v7528, 16
        %v7708 = vrot.slane %v7706, 5
        %v7709 = vor.u32 %v7705, %v7708
        %v7710 = vrot.slane %v7709, 4
        %v7712 = vshll.u32 %v7529, 16
        %v7714 = vrot.slane %v7712, 5
        %v7715 = vsel %vm4425, %v7710, %v7714
        %v7716 = vshrl.u32 %v7529, 16
        %v7718 = vrot.slane %v7716, 4
        %v7719 = vor.u32 %v7718, %v7714
        %v7720 = vrot.slane %v7719, 4
        %v7722 = vshll.u32 %v7530, 16
        %v7724 = vrot.slane %v7722, 5
        %v7725 = vsel %vm4425, %v7720, %v7724
        %v7727 = vshrl.u32 %v7531, 16
        %v7729 = vrot.slane %v7727, 4
        %v7730 = vshll.u32 %v7531, 16
        %v7732 = vrot.slane %v7730, 5
        %v7733 = vor.u32 %v7729, %v7732
        %v7734 = vrot.slane %v7733, 4
        %v7736 = vshll.u32 %v7532, 16
        %v7738 = vrot.slane %v7736, 5
        %v7739 = vsel %vm4425, %v7734, %v7738
        %v7740 = vshrl.u32 %v7532, 16
        %v7742 = vrot.slane %v7740, 4
        %v7743 = vor.u32 %v7742, %v7738
        %v7744 = vrot.slane %v7743, 4
        %v7746 = vshll.u32 %v7533, 16
        %v7748 = vrot.slane %v7746, 5
        %v7749 = vsel %vm4425, %v7744, %v7748
        %v7751 = vshrl.u32 %v7534, 16
        %v7753 = vrot.slane %v7751, 4
        %v7754 = vshll.u32 %v7534, 16
        %v7756 = vrot.slane %v7754, 5
        %v7757 = vor.u32 %v7753, %v7756
        %v7758 = vrot.slane %v7757, 4
        %v7760 = vshll.u32 %v7535, 16
        %v7762 = vrot.slane %v7760, 5
        %v7763 = vsel %vm4425, %v7758, %v7762
        %v7764 = vshrl.u32 %v7535, 16
        %v7766 = vrot.slane %v7764, 4
        %v7767 = vor.u32 %v7766, %v7762
        %v7768 = vrot.slane %v7767, 4
        %v7770 = vshll.u32 %v7536, 16
        %v7772 = vrot.slane %v7770, 5
        %v7773 = vsel %vm4425, %v7768, %v7772
        %v7775 = vshrl.u32 %v7537, 16
        %v7777 = vrot.slane %v7775, 4
        %v7778 = vshll.u32 %v7537, 16
        %v7780 = vrot.slane %v7778, 5
        %v7781 = vor.u32 %v7777, %v7780
        %v7782 = vrot.slane %v7781, 4
        %v7784 = vshll.u32 %v7538, 16
        %v7786 = vrot.slane %v7784, 5
        %v7787 = vsel %vm4425, %v7782, %v7786
        %v7788 = vshrl.u32 %v7538, 16
        %v7790 = vrot.slane %v7788, 4
        %v7791 = vor.u32 %v7790, %v7786
        %v7792 = vrot.slane %v7791, 4
        %v7794 = vshll.u32 %v7539, 16
        %v7796 = vrot.slane %v7794, 5
        %v7797 = vsel %vm4425, %v7792, %v7796
        %v7799 = vshrl.u32 %v7540, 16
        %v7801 = vrot.slane %v7799, 4
        %v7802 = vshll.u32 %v7540, 16
        %v7804 = vrot.slane %v7802, 5
        %v7805 = vor.u32 %v7801, %v7804
        %v7806 = vrot.slane %v7805, 4
        %v7808 = vshll.u32 %v7541, 16
        %v7810 = vrot.slane %v7808, 5
        %v7811 = vsel %vm4425, %v7806, %v7810
        %v7812 = vshrl.u32 %v7541, 16
        %v7814 = vrot.slane %v7812, 4
        %v7815 = vor.u32 %v7814, %v7810
        %v7816 = vrot.slane %v7815, 4
        %v7818 = vshll.u32 %v7542, 16
        %v7820 = vrot.slane %v7818, 5
        %v7821 = vsel %vm4425, %v7816, %v7820
        %v7823 = vshrl.u32 %v7543, 16
        %v7825 = vrot.slane %v7823, 4
        %v7826 = vshll.u32 %v7543, 16
        %v7828 = vrot.slane %v7826, 5
        %v7829 = vor.u32 %v7825, %v7828
        %v7830 = vrot.slane %v7829, 4
        %v7832 = vshll.u32 %v7544, 16
        %v7834 = vrot.slane %v7832, 5
        %v7835 = vsel %vm4425, %v7830, %v7834
        %v7836 = vshrl.u32 %v7544, 16
        %v7838 = vrot.slane %v7836, 4
        %v7839 = vor.u32 %v7838, %v7834
        %v7840 = vrot.slane %v7839, 4
        %v7842 = vshll.u32 %v7545, 16
        %v7844 = vrot.slane %v7842, 5
        %v7845 = vsel %vm4425, %v7840, %v7844
        %v7847 = vshrl.u32 %v7546, 16
        %v7849 = vrot.slane %v7847, 4
        %v7850 = vshll.u32 %v7546, 16
        %v7852 = vrot.slane %v7850, 5
        %v7853 = vor.u32 %v7849, %v7852
        %v7854 = vrot.slane %v7853, 4
        %v7856 = vshll.u32 %v7547, 16
        %v7858 = vrot.slane %v7856, 5
        %v7859 = vsel %vm4425, %v7854, %v7858
        %v7860 = vshrl.u32 %v7547, 16
        %v7862 = vrot.slane %v7860, 4
        %v7863 = vor.u32 %v7862, %v7858
        %v7864 = vrot.slane %v7863, 4
        %v7866 = vshll.u32 %v7548, 16
        %v7868 = vrot.slane %v7866, 5
        %v7869 = vsel %vm4425, %v7864, %v7868
        %v7871 = vshrl.u32 %v7549, 16
        %v7873 = vrot.slane %v7871, 4
        %v7874 = vshll.u32 %v7549, 16
        %v7876 = vrot.slane %v7874, 5
        %v7877 = vor.u32 %v7873, %v7876
        %v7878 = vrot.slane %v7877, 4
        %v7880 = vshll.u32 %v7550, 16
        %v7882 = vrot.slane %v7880, 5
        %v7883 = vsel %vm4425, %v7878, %v7882
        %v7884 = vshrl.u32 %v7550, 16
        %v7886 = vrot.slane %v7884, 4
        %v7887 = vor.u32 %v7886, %v7882
        %v7888 = vrot.slane %v7887, 4
        %v7890 = vshll.u32 %v7551, 16
        %v7892 = vrot.slane %v7890, 5
        %v7893 = vsel %vm4425, %v7888, %v7892
        %v7895 = vshrl.u32 %v7552, 16
        %v7897 = vrot.slane %v7895, 4
        %v7898 = vshll.u32 %v7552, 16
        %v7900 = vrot.slane %v7898, 5
        %v7901 = vor.u32 %v7897, %v7900
        %v7902 = vrot.slane %v7901, 4
        %v7904 = vshll.u32 %v7553, 16
        %v7906 = vrot.slane %v7904, 5
        %v7907 = vsel %vm4425, %v7902, %v7906
        %v7908 = vshrl.u32 %v7553, 16
        %v7910 = vrot.slane %v7908, 4
        %v7911 = vor.u32 %v7910, %v7906
        %v7912 = vrot.slane %v7911, 4
        %v7914 = vshll.u32 %v7554, 16
        %v7916 = vrot.slane %v7914, 5
        %v7917 = vsel %vm4425, %v7912, %v7916
        %v7919 = vshrl.u32 %v7555, 16
        %v7921 = vrot.slane %v7919, 4
        %v7922 = vshll.u32 %v7555, 16
        %v7924 = vrot.slane %v7922, 5
        %v7925 = vor.u32 %v7921, %v7924
        %v7926 = vrot.slane %v7925, 4
        %v7928 = vshll.u32 %v7556, 16
        %v7930 = vrot.slane %v7928, 5
        %v7931 = vsel %vm4425, %v7926, %v7930
        %v7932 = vshrl.u32 %v7556, 16
        %v7934 = vrot.slane %v7932, 4
        %v7935 = vor.u32 %v7934, %v7930
        %v7936 = vrot.slane %v7935, 4
        %v7938 = vshll.u32 %v7557, 16
        %v7940 = vrot.slane %v7938, 5
        %v7941 = vsel %vm4425, %v7936, %v7940
        %s7942 = scalar_lea.vmem %s7, 128
        %v7943 = vld [vmem:[%s7942] sm:$0xf]
        %v7944 = vld [vmem:[%s7942 + $0x4] sm:$0xf]
        %v7945 = vld [vmem:[%s7942 + $0x8] sm:$0xf]
        %v7946 = vld [vmem:[%s7942 + $0xc] sm:$0xf]
        %v7947 = vunpack.c.l.b16 %v7571
        %v7948 = vunpack.c.l.b16 %v7581
        %v7949 = vunpack.c.l.b16 %v7595
        %v7950 = vunpack.c.l.b16 %v7605
        %v7951 = vunpack.c.l.b16 %v7619
        %v7952 = vunpack.c.l.b16 %v7629
        %v7953 = vunpack.c.l.b16 %v7643
        %v7954 = vunpack.c.l.b16 %v7653
        %v7955 = vunpack.c.l.b16 %v7667
        %v7956 = vunpack.c.l.b16 %v7677
        %v7957 = vunpack.c.l.b16 %v7691
        %v7958 = vunpack.c.l.b16 %v7701
        %v7959 = vunpack.c.l.b16 %v7715
        %v7960 = vunpack.c.l.b16 %v7725
        %v7961 = vunpack.c.l.b16 %v7739
        %v7962 = vunpack.c.l.b16 %v7749
        %v7963 = vunpack.c.l.b16 %v7763
        %v7964 = vunpack.c.l.b16 %v7773
        %v7965 = vunpack.c.l.b16 %v7787
        %v7966 = vunpack.c.l.b16 %v7797
        %v7967 = vunpack.c.l.b16 %v7811
        %v7968 = vunpack.c.l.b16 %v7821
        %v7969 = vunpack.c.l.b16 %v7835
        %v7970 = vunpack.c.l.b16 %v7845
        %v7971 = vunpack.c.l.b16 %v7859
        %v7972 = vunpack.c.l.b16 %v7869
        %v7973 = vunpack.c.l.b16 %v7883
        %v7974 = vunpack.c.l.b16 %v7893
        %v7975 = vunpack.c.l.b16 %v7907
        %v7976 = vunpack.c.l.b16 %v7917
        %v7977 = vunpack.c.l.b16 %v7931
        %v7978 = vunpack.c.l.b16 %v7941
        %v7979 = vpack.c.b16 %v7948, %v7947
        %v7980 = vpack.c.b16 %v7950, %v7949
        %v7981 = vpack.c.b16 %v7952, %v7951
        %v7982 = vpack.c.b16 %v7954, %v7953
        %v7983 = vpack.c.b16 %v7956, %v7955
        %v7984 = vpack.c.b16 %v7958, %v7957
        %v7985 = vpack.c.b16 %v7960, %v7959
        %v7986 = vpack.c.b16 %v7962, %v7961
        %v7987 = vpack.c.b16 %v7964, %v7963
        %v7988 = vpack.c.b16 %v7966, %v7965
        %v7989 = vpack.c.b16 %v7968, %v7967
        %v7990 = vpack.c.b16 %v7970, %v7969
        %v7991 = vpack.c.b16 %v7972, %v7971
        %v7992 = vpack.c.b16 %v7974, %v7973
        %v7993 = vpack.c.b16 %v7976, %v7975
        %v7994 = vpack.c.b16 %v7978, %v7977
        %v7999 = vunpack.c.l.b16 %v7943
        %v8000 = vunpack.c.l.b16 %v7944
        %v8001 = vunpack.c.l.b16 %v7945
        %v8002 = vunpack.c.l.b16 %v7946
        %v8003 = vpack.c.b16 %v8000, %v7999
        %v8004 = vpack.c.b16 %v8002, %v8001
        %v8008 = vsel %vm4040, %v7979, 0
        %v8011 = vsel %vm4040, %v7980, 0
        %v8014 = vsel %vm4040, %v7981, 0
        %v8017 = vsel %vm4040, %v7982, 0
        %v8020 = vsel %vm4040, %v7983, 0
        %v8023 = vsel %vm4040, %v7984, 0
        %v8026 = vsel %vm4040, %v7985, 0
        %v8029 = vsel %vm4040, %v7986, 0
        %v8032 = vsel %vm4040, %v7987, 0
        %v8035 = vsel %vm4040, %v7988, 0
        %v8038 = vsel %vm4040, %v7989, 0
        %v8041 = vsel %vm4040, %v7990, 0
        %v8044 = vsel %vm4040, %v7991, 0
        %v8047 = vsel %vm4040, %v7992, 0
        %v8050 = vsel %vm4040, %v7993, 0
        %v8053 = vsel %vm4040, %v7994, 0
        %8055 = vmatpush.bf16.msra.mxu0 0
        %8056 = vmatpush.bf16.msra.mxu0 0
        %8057 = vmatpush.bf16.msra.mxu0 0
        %8058 = vmatpush.bf16.msra.mxu0 0
        %8059 = vmatpush.bf16.msra.mxu0 0
        %8060 = vmatpush.bf16.msra.mxu0 0
        %8061 = vmatpush.bf16.msra.mxu0 %v8004
        %8062 = vmatpush.bf16.msra.mxu0 %v8003
        %8063 = vmatmul.bf16.gmra.mxu0 %v8008
        %v8064 = vpop.f32.mrf.mxu0
        %v8065 = vadd.f32 0.0, %v8064
        %v8066 = vpop.f32.mrf.mxu0
        %v8067 = vadd.f32 0.0, %v8066
        %8068 = vmatmul.bf16.gmra.mxu0 %v8011
        %v8069 = vpop.f32.mrf.mxu0
        %v8070 = vadd.f32 0.0, %v8069
        %v8071 = vpop.f32.mrf.mxu0
        %v8072 = vadd.f32 0.0, %v8071
        %8073 = vmatmul.bf16.gmra.mxu0 %v8014
        %v8074 = vpop.f32.mrf.mxu0
        %v8075 = vadd.f32 0.0, %v8074
        %v8076 = vpop.f32.mrf.mxu0
        %v8077 = vadd.f32 0.0, %v8076
        %8078 = vmatmul.bf16.gmra.mxu0 %v8017
        %v8079 = vpop.f32.mrf.mxu0
        %v8080 = vadd.f32 0.0, %v8079
        %v8081 = vpop.f32.mrf.mxu0
        %v8082 = vadd.f32 0.0, %v8081
        %8083 = vmatmul.bf16.gmra.mxu0 %v8020
        %v8084 = vpop.f32.mrf.mxu0
        %v8085 = vadd.f32 0.0, %v8084
        %v8086 = vpop.f32.mrf.mxu0
        %v8087 = vadd.f32 0.0, %v8086
        %8088 = vmatmul.bf16.gmra.mxu0 %v8023
        %v8089 = vpop.f32.mrf.mxu0
        %v8090 = vadd.f32 0.0, %v8089
        %v8091 = vpop.f32.mrf.mxu0
        %v8092 = vadd.f32 0.0, %v8091
        %8093 = vmatmul.bf16.gmra.mxu0 %v8026
        %v8094 = vpop.f32.mrf.mxu0
        %v8095 = vadd.f32 0.0, %v8094
        %v8096 = vpop.f32.mrf.mxu0
        %v8097 = vadd.f32 0.0, %v8096
        %8098 = vmatmul.bf16.gmra.mxu0 %v8029
        %v8099 = vpop.f32.mrf.mxu0
        %v8100 = vadd.f32 0.0, %v8099
        %v8101 = vpop.f32.mrf.mxu0
        %v8102 = vadd.f32 0.0, %v8101
        %8103 = vmatmul.bf16.gmra.mxu0 %v8032
        %v8104 = vpop.f32.mrf.mxu0
        %v8105 = vadd.f32 0.0, %v8104
        %v8106 = vpop.f32.mrf.mxu0
        %v8107 = vadd.f32 0.0, %v8106
        %8108 = vmatmul.bf16.gmra.mxu0 %v8035
        %v8109 = vpop.f32.mrf.mxu0
        %v8110 = vadd.f32 0.0, %v8109
        %v8111 = vpop.f32.mrf.mxu0
        %v8112 = vadd.f32 0.0, %v8111
        %8113 = vmatmul.bf16.gmra.mxu0 %v8038
        %v8114 = vpop.f32.mrf.mxu0
        %v8115 = vadd.f32 0.0, %v8114
        %v8116 = vpop.f32.mrf.mxu0
        %v8117 = vadd.f32 0.0, %v8116
        %8118 = vmatmul.bf16.gmra.mxu0 %v8041
        %v8119 = vpop.f32.mrf.mxu0
        %v8120 = vadd.f32 0.0, %v8119
        %v8121 = vpop.f32.mrf.mxu0
        %v8122 = vadd.f32 0.0, %v8121
        %8123 = vmatmul.bf16.gmra.mxu0 %v8044
        %v8124 = vpop.f32.mrf.mxu0
        %v8125 = vadd.f32 0.0, %v8124
        %v8126 = vpop.f32.mrf.mxu0
        %v8127 = vadd.f32 0.0, %v8126
        %8128 = vmatmul.bf16.gmra.mxu0 %v8047
        %v8129 = vpop.f32.mrf.mxu0
        %v8130 = vadd.f32 0.0, %v8129
        %v8131 = vpop.f32.mrf.mxu0
        %v8132 = vadd.f32 0.0, %v8131
        %8133 = vmatmul.bf16.gmra.mxu0 %v8050
        %v8134 = vpop.f32.mrf.mxu0
        %v8135 = vadd.f32 0.0, %v8134
        %v8136 = vpop.f32.mrf.mxu0
        %v8137 = vadd.f32 0.0, %v8136
        %8138 = vmatmul.bf16.gmra.mxu0 %v8053
        %v8139 = vpop.f32.mrf.mxu0
        %v8140 = vadd.f32 0.0, %v8139
        %v8141 = vpop.f32.mrf.mxu0
        %v8142 = vadd.f32 0.0, %v8141
        %8143 = vdwg.mxu0
        %v8144 = vadd.f32 %v7478, %v8065
        %v8145 = vadd.f32 %v7479, %v8067
        %v8146 = vadd.f32 %v7480, %v8070
        %v8147 = vadd.f32 %v7481, %v8072
        %v8148 = vadd.f32 %v7482, %v8075
        %v8149 = vadd.f32 %v7483, %v8077
        %v8150 = vadd.f32 %v7484, %v8080
        %v8151 = vadd.f32 %v7485, %v8082
        %v8152 = vadd.f32 %v7486, %v8085
        %v8153 = vadd.f32 %v7487, %v8087
        %v8154 = vadd.f32 %v7488, %v8090
        %v8155 = vadd.f32 %v7489, %v8092
        %v8156 = vadd.f32 %v7490, %v8095
        %v8157 = vadd.f32 %v7491, %v8097
        %v8158 = vadd.f32 %v7492, %v8100
        %v8159 = vadd.f32 %v7493, %v8102
        %v8160 = vadd.f32 %v7494, %v8105
        %v8161 = vadd.f32 %v7495, %v8107
        %v8162 = vadd.f32 %v7496, %v8110
        %v8163 = vadd.f32 %v7497, %v8112
        %v8164 = vadd.f32 %v7498, %v8115
        %v8165 = vadd.f32 %v7499, %v8117
        %v8166 = vadd.f32 %v7500, %v8120
        %v8167 = vadd.f32 %v7501, %v8122
        %v8168 = vadd.f32 %v7502, %v8125
        %v8169 = vadd.f32 %v7503, %v8127
        %v8170 = vadd.f32 %v7504, %v8130
        %v8171 = vadd.f32 %v7505, %v8132
        %v8172 = vadd.f32 %v7506, %v8135
        %v8173 = vadd.f32 %v7507, %v8137
        %v8174 = vadd.f32 %v7508, %v8140
        %v8175 = vadd.f32 %v7509, %v8142
        %v8176 = vld [vmem:[%s8] sm:$0x1]
        %v8178 = vperm.slane %v8176, 0
        %v8180 = vadd.f32 %v8144, %v8178
        %v8181 = vadd.f32 %v8145, %v8178
        %v8182 = vadd.f32 %v8146, %v8178
        %v8183 = vadd.f32 %v8147, %v8178
        %v8184 = vadd.f32 %v8148, %v8178
        %v8185 = vadd.f32 %v8149, %v8178
        %v8186 = vadd.f32 %v8150, %v8178
        %v8187 = vadd.f32 %v8151, %v8178
        %v8188 = vadd.f32 %v8152, %v8178
        %v8189 = vadd.f32 %v8153, %v8178
        %v8190 = vadd.f32 %v8154, %v8178
        %v8191 = vadd.f32 %v8155, %v8178
        %v8192 = vadd.f32 %v8156, %v8178
        %v8193 = vadd.f32 %v8157, %v8178
        %v8194 = vadd.f32 %v8158, %v8178
        %v8195 = vadd.f32 %v8159, %v8178
        %v8196 = vadd.f32 %v8160, %v8178
        %v8197 = vadd.f32 %v8161, %v8178
        %v8198 = vadd.f32 %v8162, %v8178
        %v8199 = vadd.f32 %v8163, %v8178
        %v8200 = vadd.f32 %v8164, %v8178
        %v8201 = vadd.f32 %v8165, %v8178
        %v8202 = vadd.f32 %v8166, %v8178
        %v8203 = vadd.f32 %v8167, %v8178
        %v8204 = vadd.f32 %v8168, %v8178
        %v8205 = vadd.f32 %v8169, %v8178
        %v8206 = vadd.f32 %v8170, %v8178
        %v8207 = vadd.f32 %v8171, %v8178
        %v8208 = vadd.f32 %v8172, %v8178
        %v8209 = vadd.f32 %v8173, %v8178
        %v8210 = vadd.f32 %v8174, %v8178
        %v8211 = vadd.f32 %v8175, %v8178
        %v8212 = vsel %vm4040, %v8180, 0.0
        %v8213 = vsel %vm4040, %v8181, 0.0
        %v8214 = vadd.f32 %v8212, %v8213
        %v8215 = vsel %vm4040, %v8182, 0.0
        %v8216 = vadd.f32 %v8214, %v8215
        %v8217 = vsel %vm4040, %v8183, 0.0
        %v8218 = vadd.f32 %v8216, %v8217
        %v8219 = vsel %vm4040, %v8184, 0.0
        %v8220 = vadd.f32 %v8218, %v8219
        %v8221 = vsel %vm4040, %v8185, 0.0
        %v8222 = vadd.f32 %v8220, %v8221
        %v8223 = vsel %vm4040, %v8186, 0.0
        %v8224 = vadd.f32 %v8222, %v8223
        %v8225 = vsel %vm4040, %v8187, 0.0
        %v8226 = vadd.f32 %v8224, %v8225
        %v8227 = vsel %vm4040, %v8188, 0.0
        %v8228 = vadd.f32 %v8226, %v8227
        %v8229 = vsel %vm4040, %v8189, 0.0
        %v8230 = vadd.f32 %v8228, %v8229
        %v8231 = vsel %vm4040, %v8190, 0.0
        %v8232 = vadd.f32 %v8230, %v8231
        %v8233 = vsel %vm4040, %v8191, 0.0
        %v8234 = vadd.f32 %v8232, %v8233
        %v8235 = vsel %vm4040, %v8192, 0.0
        %v8236 = vadd.f32 %v8234, %v8235
        %v8237 = vsel %vm4040, %v8193, 0.0
        %v8238 = vadd.f32 %v8236, %v8237
        %v8239 = vsel %vm4040, %v8194, 0.0
        %v8240 = vadd.f32 %v8238, %v8239
        %v8241 = vsel %vm4040, %v8195, 0.0
        %v8242 = vadd.f32 %v8240, %v8241
        %v8243 = vsel %vm4040, %v8196, 0.0
        %v8244 = vadd.f32 %v8242, %v8243
        %v8245 = vsel %vm4040, %v8197, 0.0
        %v8246 = vadd.f32 %v8244, %v8245
        %v8247 = vsel %vm4040, %v8198, 0.0
        %v8248 = vadd.f32 %v8246, %v8247
        %v8249 = vsel %vm4040, %v8199, 0.0
        %v8250 = vadd.f32 %v8248, %v8249
        %v8251 = vsel %vm4040, %v8200, 0.0
        %v8252 = vadd.f32 %v8250, %v8251
        %v8253 = vsel %vm4040, %v8201, 0.0
        %v8254 = vadd.f32 %v8252, %v8253
        %v8255 = vsel %vm4040, %v8202, 0.0
        %v8256 = vadd.f32 %v8254, %v8255
        %v8257 = vsel %vm4040, %v8203, 0.0
        %v8258 = vadd.f32 %v8256, %v8257
        %v8259 = vsel %vm4040, %v8204, 0.0
        %v8260 = vadd.f32 %v8258, %v8259
        %v8261 = vsel %vm4040, %v8205, 0.0
        %v8262 = vadd.f32 %v8260, %v8261
        %v8263 = vsel %vm4040, %v8206, 0.0
        %v8264 = vadd.f32 %v8262, %v8263
        %v8265 = vsel %vm4040, %v8207, 0.0
        %v8266 = vadd.f32 %v8264, %v8265
        %v8267 = vsel %vm4040, %v8208, 0.0
        %v8268 = vadd.f32 %v8266, %v8267
        %v8269 = vsel %vm4040, %v8209, 0.0
        %v8270 = vadd.f32 %v8268, %v8269
        %v8271 = vsel %vm4040, %v8210, 0.0
        %v8272 = vadd.f32 %v8270, %v8271
        %v8273 = vsel %vm4040, %v8211, 0.0
        %v8274 = vadd.f32 %v8272, %v8273
        %v8275 = vrot.slane %v8274, 4
        %v8276 = vadd.f32 %v8274, %v8275
        %v8277 = vrot.slane %v8276, 2
        %v8278 = vadd.f32 %v8276, %v8277
        %v8279 = vrot.slane %v8278, 1
        %v8280 = vadd.f32 %v8278, %v8279
        %v8281 = vrcp.pop 256.0
        %v8282 = vmul.f32 256.0, %v8281
        %v8283 = vsub.f32 1.0, %v8282
        %v8284 = vmul.f32 %v8281, %v8283
        %v8285 = vadd.f32 %v8281, %v8284
        %vm8286 = vweird.f32 %v8281
        %v8287 = vsel %vm8286, %v8281, %v8285
        %v8288 = vmul.f32 %v8280, %v8287
        %v8289 = vld [vmem:[%s9] sm:$0xff]
        %v8290 = vld [vmem:[%s9 + $0x8] sm:$0xff]
        %v8291 = vld [vmem:[%s9 + $0x10] sm:$0xff]
        %v8292 = vld [vmem:[%s9 + $0x18] sm:$0xff]
        %v8294 = vsel %vm4040, %v8288, 0
        %8296 = vmatpush.msra.mxu0 0.0
        %8297 = vmatpush.msra.mxu0 0.0
        %8298 = vmatpush.msra.mxu0 0.0
        %8299 = vmatpush.msra.mxu0 0.0
        %8300 = vmatpush.msra.mxu0 0.0
        %8301 = vmatpush.msra.mxu0 0.0
        %8302 = vmatpush.msra.mxu0 0.0
        %8303 = vmatpush.msra.mxu0 0.0
        %8304 = vmatpush.msra.mxu0 0.0
        %8305 = vmatpush.msra.mxu0 0.0
        %8306 = vmatpush.msra.mxu0 0.0
        %8307 = vmatpush.msra.mxu0 0.0
        %8308 = vmatpush.msra.mxu0 %v8292
        %8309 = vmatpush.msra.mxu0 %v8291
        %8310 = vmatpush.msra.mxu0 %v8290
        %8311 = vmatpush.msra.mxu0 %v8289
        %8312 = vmatmul.f32.gmra.mxu0 %v8294
        %v8313 = vpop.f32.mrf.mxu0
        %v8314 = vadd.f32 0.0, %v8313
        %8315 = vdwg.mxu0
        %v8316 = vmax.f32 %v8314, 0.0
        %v8317 = vld [vmem:[%s10] sm:$0x3]
        %vm8318 = vcmask 15360
        %v8320 = vsel %vm8318, %v8316, 0
        %v8323 = vsel %vm609, %v8317, 0
        %8325 = vmatpush.msra.mxu0 0.0
        %8326 = vmatpush.msra.mxu0 0.0
        %8327 = vmatpush.msra.mxu0 0.0
        %8328 = vmatpush.msra.mxu0 0.0
        %8329 = vmatpush.msra.mxu0 0.0
        %8330 = vmatpush.msra.mxu0 0.0
        %8331 = vmatpush.msra.mxu0 0.0
        %8332 = vmatpush.msra.mxu0 0.0
        %8333 = vmatpush.msra.mxu0 0.0
        %8334 = vmatpush.msra.mxu0 0.0
        %8335 = vmatpush.msra.mxu0 0.0
        %8336 = vmatpush.msra.mxu0 0.0
        %8337 = vmatpush.msra.mxu0 0.0
        %8338 = vmatpush.msra.mxu0 0.0
        %8339 = vmatpush.msra.mxu0 0.0
        %8340 = vmatpush.msra.mxu0 %v8323
        %8341 = vmatmul.f32.gmra.mxu0 %v8320
        %v8342 = vpop.f32.mrf.mxu0
        %v8343 = vadd.f32 0.0, %v8342
        %8344 = vdwg.mxu0
        %v8345 = vxor.u32 %v8343, 2147483648
        %v8346 = vmul.f32 %v8345, 1.442695
        %v8347 = vpow.pop %v8346
        %v8348 = vadd.f32 %v8347, 1.0
        %v8349 = vrcp.pop %v8348
        %v8350 = vmul.f32 %v8348, %v8349
        %v8351 = vsub.f32 1.0, %v8350
        %v8352 = vmul.f32 %v8349, %v8351
        %v8353 = vadd.f32 %v8349, %v8352
        %vm8354 = vweird.f32 %v8348
        %vm8355 = vweird.f32 %v8349
        %vm8356 = vmor %vm8354, %vm8355
        %v8357 = vsel %vm8356, %v8349, %v8353
        %v8358 = vand.u32 2147483647, %v8348
        %vm8359 = vcmp.eq.f32.partialorder %v8358, 8.507059e+37
        %v8360 = vand.u32 %v8348, 2147483648
        %v8361 = vor.u32 1.1754944e-38, %v8360
        %v8362 = vsel %vm8359, %v8361, %v8357
        %v8363 = vmul.f32 1.0, %v8362
        %v8364 = vperm.slane %v8363, 0
        %v8365 = vmul.f32 %v8180, %v8364
        %v8366 = vmul.f32 %v8181, %v8364
        %v8367 = vmul.f32 %v8182, %v8364
        %v8368 = vmul.f32 %v8183, %v8364
        %v8369 = vmul.f32 %v8184, %v8364
        %v8370 = vmul.f32 %v8185, %v8364
        %v8371 = vmul.f32 %v8186, %v8364
        %v8372 = vmul.f32 %v8187, %v8364
        %v8373 = vmul.f32 %v8188, %v8364
        %v8374 = vmul.f32 %v8189, %v8364
        %v8375 = vmul.f32 %v8190, %v8364
        %v8376 = vmul.f32 %v8191, %v8364
        %v8377 = vmul.f32 %v8192, %v8364
        %v8378 = vmul.f32 %v8193, %v8364
        %v8379 = vmul.f32 %v8194, %v8364
        %v8380 = vmul.f32 %v8195, %v8364
        %v8381 = vmul.f32 %v8196, %v8364
        %v8382 = vmul.f32 %v8197, %v8364
        %v8383 = vmul.f32 %v8198, %v8364
        %v8384 = vmul.f32 %v8199, %v8364
        %v8385 = vmul.f32 %v8200, %v8364
        %v8386 = vmul.f32 %v8201, %v8364
        %v8387 = vmul.f32 %v8202, %v8364
        %v8388 = vmul.f32 %v8203, %v8364
        %v8389 = vmul.f32 %v8204, %v8364
        %v8390 = vmul.f32 %v8205, %v8364
        %v8391 = vmul.f32 %v8206, %v8364
        %v8392 = vmul.f32 %v8207, %v8364
        %v8393 = vmul.f32 %v8208, %v8364
        %v8394 = vmul.f32 %v8209, %v8364
        %v8395 = vmul.f32 %v8210, %v8364
        %v8396 = vmul.f32 %v8211, %v8364
        %v8397 = vadd.f32 %v8365, %v752
        %v8398 = vadd.f32 %v8366, %v754
        %v8399 = vadd.f32 %v8367, %v757
        %v8400 = vadd.f32 %v8368, %v759
        %v8401 = vadd.f32 %v8369, %v762
        %v8402 = vadd.f32 %v8370, %v764
        %v8403 = vadd.f32 %v8371, %v767
        %v8404 = vadd.f32 %v8372, %v769
        %v8405 = vadd.f32 %v8373, %v772
        %v8406 = vadd.f32 %v8374, %v774
        %v8407 = vadd.f32 %v8375, %v777
        %v8408 = vadd.f32 %v8376, %v779
        %v8409 = vadd.f32 %v8377, %v782
        %v8410 = vadd.f32 %v8378, %v784
        %v8411 = vadd.f32 %v8379, %v787
        %v8412 = vadd.f32 %v8380, %v789
        %v8413 = vadd.f32 %v8381, %v792
        %v8414 = vadd.f32 %v8382, %v794
        %v8415 = vadd.f32 %v8383, %v797
        %v8416 = vadd.f32 %v8384, %v799
        %v8417 = vadd.f32 %v8385, %v802
        %v8418 = vadd.f32 %v8386, %v804
        %v8419 = vadd.f32 %v8387, %v807
        %v8420 = vadd.f32 %v8388, %v809
        %v8421 = vadd.f32 %v8389, %v812
        %v8422 = vadd.f32 %v8390, %v814
        %v8423 = vadd.f32 %v8391, %v817
        %v8424 = vadd.f32 %v8392, %v819
        %v8425 = vadd.f32 %v8393, %v822
        %v8426 = vadd.f32 %v8394, %v824
        %v8427 = vadd.f32 %v8395, %v827
        %v8428 = vadd.f32 %v8396, %v829
        %v8429 = vmax.f32 %v8397, 0.0
        %v8430 = vmax.f32 %v8398, 0.0
        %v8431 = vmax.f32 %v8399, 0.0
        %v8432 = vmax.f32 %v8400, 0.0
        %v8433 = vmax.f32 %v8401, 0.0
        %v8434 = vmax.f32 %v8402, 0.0
        %v8435 = vmax.f32 %v8403, 0.0
        %v8436 = vmax.f32 %v8404, 0.0
        %v8437 = vmax.f32 %v8405, 0.0
        %v8438 = vmax.f32 %v8406, 0.0
        %v8439 = vmax.f32 %v8407, 0.0
        %v8440 = vmax.f32 %v8408, 0.0
        %v8441 = vmax.f32 %v8409, 0.0
        %v8442 = vmax.f32 %v8410, 0.0
        %v8443 = vmax.f32 %v8411, 0.0
        %v8444 = vmax.f32 %v8412, 0.0
        %v8445 = vmax.f32 %v8413, 0.0
        %v8446 = vmax.f32 %v8414, 0.0
        %v8447 = vmax.f32 %v8415, 0.0
        %v8448 = vmax.f32 %v8416, 0.0
        %v8449 = vmax.f32 %v8417, 0.0
        %v8450 = vmax.f32 %v8418, 0.0
        %v8451 = vmax.f32 %v8419, 0.0
        %v8452 = vmax.f32 %v8420, 0.0
        %v8453 = vmax.f32 %v8421, 0.0
        %v8454 = vmax.f32 %v8422, 0.0
        %v8455 = vmax.f32 %v8423, 0.0
        %v8456 = vmax.f32 %v8424, 0.0
        %v8457 = vmax.f32 %v8425, 0.0
        %v8458 = vmax.f32 %v8426, 0.0
        %v8459 = vmax.f32 %v8427, 0.0
        %v8460 = vmax.f32 %v8428, 0.0
        %8461 = vst.msk [vmem:[%s379] sm:$0xff] %vm4040, %v8429
        %8462 = vst.msk [vmem:[%s379 + $0x8] sm:$0xff] %vm4040, %v8430
        %8463 = vst.msk [vmem:[%s379 + $0x10] sm:$0xff] %vm4040, %v8431
        %8464 = vst.msk [vmem:[%s379 + $0x18] sm:$0xff] %vm4040, %v8432
        %8465 = vst.msk [vmem:[%s379 + $0x20] sm:$0xff] %vm4040, %v8433
        %8466 = vst.msk [vmem:[%s379 + $0x28] sm:$0xff] %vm4040, %v8434
        %8467 = vst.msk [vmem:[%s379 + $0x30] sm:$0xff] %vm4040, %v8435
        %8468 = vst.msk [vmem:[%s379 + $0x38] sm:$0xff] %vm4040, %v8436
        %8469 = vst.msk [vmem:[%s379 + $0x40] sm:$0xff] %vm4040, %v8437
        %8470 = vst.msk [vmem:[%s379 + $0x48] sm:$0xff] %vm4040, %v8438
        %8471 = vst.msk [vmem:[%s379 + $0x50] sm:$0xff] %vm4040, %v8439
        %8472 = vst.msk [vmem:[%s379 + $0x58] sm:$0xff] %vm4040, %v8440
        %8473 = vst.msk [vmem:[%s379 + $0x60] sm:$0xff] %vm4040, %v8441
        %8474 = vst.msk [vmem:[%s379 + $0x68] sm:$0xff] %vm4040, %v8442
        %8475 = vst.msk [vmem:[%s379 + $0x70] sm:$0xff] %vm4040, %v8443
        %8476 = vst.msk [vmem:[%s379 + $0x78] sm:$0xff] %vm4040, %v8444
        %8477 = vst.msk [vmem:[%s379 + $0x80] sm:$0xff] %vm4040, %v8445
        %8478 = vst.msk [vmem:[%s379 + $0x88] sm:$0xff] %vm4040, %v8446
        %8479 = vst.msk [vmem:[%s379 + $0x90] sm:$0xff] %vm4040, %v8447
        %8480 = vst.msk [vmem:[%s379 + $0x98] sm:$0xff] %vm4040, %v8448
        %8481 = vst.msk [vmem:[%s379 + $0xa0] sm:$0xff] %vm4040, %v8449
        %8482 = vst.msk [vmem:[%s379 + $0xa8] sm:$0xff] %vm4040, %v8450
        %8483 = vst.msk [vmem:[%s379 + $0xb0] sm:$0xff] %vm4040, %v8451
        %8484 = vst.msk [vmem:[%s379 + $0xb8] sm:$0xff] %vm4040, %v8452
        %8485 = vst.msk [vmem:[%s379 + $0xc0] sm:$0xff] %vm4040, %v8453
        %8486 = vst.msk [vmem:[%s379 + $0xc8] sm:$0xff] %vm4040, %v8454
        %8487 = vst.msk [vmem:[%s379 + $0xd0] sm:$0xff] %vm4040, %v8455
        %8488 = vst.msk [vmem:[%s379 + $0xd8] sm:$0xff] %vm4040, %v8456
        %8489 = vst.msk [vmem:[%s379 + $0xe0] sm:$0xff] %vm4040, %v8457
        %8490 = vst.msk [vmem:[%s379 + $0xe8] sm:$0xff] %vm4040, %v8458
        %8491 = vst.msk [vmem:[%s379 + $0xf0] sm:$0xff] %vm4040, %v8459
        %8492 = vst.msk [vmem:[%s379 + $0xf8] sm:$0xff] %vm4040, %v8460
        %s8493 = sand.u32 %s269, 1
        %s8494 = scalar_lea.sflag [#allocation4], %s8493
        %s8495 = sand.u32 %s269, 1
        %s8496 = smul.addr %s8495, 256
        %s8497 = scalar_lea.vmem [#allocation3], %s8496
        // Predicated region
        $region65: #{tpu_custom_call.1} parent=63 // pred_check
          %p8498 = pneg %p279
        $region66: #{tpu_custom_call.1} parent=63 // pred_check_branch
          %8500 = sbr.rel (%p8498) target = $region68
        $region67: #{tpu_custom_call.1} parent=63 // pred_region
          %8502 = vsyncadd %s8494, 0
          %s8503 = smul.addr %s25, 32
          %s8504 = smul.addr %s8503, 8
          %s8505 = scalar_lea.hbm %s11, %s8504
          %s8506 = sshll.u32 %s8497, 4
          %s8507 = int_to_ptr.vmem [resolvable:$true] %s8506
          %s8508 = sshll.u32 %s8505, 4
          %s8509 = int_to_ptr.hbm [resolvable:$true] %s8508
          %8514 = dma.vmem_to_hbm [thread:$0]  %s8507, 4096, %s8509, %s8494, 128, 128, 8
        $region68: #{tpu_custom_call.1} parent=63 // pred_fallthru
          _
      $region64: #{tpu_custom_call.1} parent=5 // pred_fallthru
        _
      %p8515 = scmp.le.s32.totalorder 2, %s20
      // Predicated region
      $region69: #{tpu_custom_call.1} parent=5 // pred_check
        %p8516 = pneg %p8515
      $region70: #{tpu_custom_call.1} parent=5 // pred_check_branch
        %8518 = sbr.rel (%p8516) target = $region72
      $region71: #{tpu_custom_call.1} parent=5 // pred_region
        %s8519 = ssub.s32 %s20, 2
        // Predicated region
        $region73: #{tpu_custom_call.1} parent=71 // pred_check
          %p8520 = pneg %p285
        $region74: #{tpu_custom_call.1} parent=71 // pred_check_branch
          %8522 = sbr.rel (%p8520) target = $region76
        $region75: #{tpu_custom_call.1} parent=71 // pred_region
          %s8523 = sand.u32 %s270, 1
          %s8524 = scalar_lea.sflag [#allocation4], %s8523
          %s8525 = sand.u32 %s270, 1
          %s8526 = smul.addr %s8525, 256
          %s8527 = scalar_lea.vmem [#allocation3], %s8526
          %8529 = dma.done %s8524, 4096
        $region76: #{tpu_custom_call.1} parent=71 // pred_fallthru
          _
      $region72: #{tpu_custom_call.1} parent=5 // pred_fallthru
        _
    $region6: #{tpu_custom_call.1} parent=1 // loop_footer
      %s24 = sadd.s32 1, %s20
    $region7: #{tpu_custom_call.1} parent=1 // loop_footer_branch
      %19 = sbr.rel target = $region3
    $region8: #{tpu_custom_call.1} parent=1 // loop_exit
      _
    %8530 = vsyncpa [#allocation4], 1
    %s8531 = scalar_lea.sflag [#allocation4], 1
    %8532 = vsyncpa %s8531, 1

</llo_original>
